<compile_context>
chip_gen: v6e
topology: v6e:2x2x1
jax: 0.10.0
libtpu: 0.0.40
codegen_flags: <defaults>
</compile_context>

<pallas_src>
import math

import jax
import jax.numpy as jnp
from jax import lax
from jax.experimental import pallas as pl
from jax.experimental.pallas import tpu as pltpu

# ----------------------------------------------------------------------------
# Small synthetic config (shapes consistent with the module's constructor).
# ----------------------------------------------------------------------------
BATCH = 2
IMG_SIZE = 28
PATCH_SIZE = 14
IN_CHANS = 3
PROJECTION_DIM = 32

VISION_EMBED_DIM = 64
VISION_MLP_HIDDEN = 128
VISION_NUM_BLOCKS = 2
VISION_NUM_HEADS = 4            # head_dim = 16

TEXT_EMBED_DIM = 48
TEXT_MLP_HIDDEN = 96
TEXT_NUM_BLOCKS = 2
TEXT_NUM_HEADS = 6              # head_dim = 8

VOCAB_SIZE = 64
MAX_CONTEXT_LENGTH = 8
EOS_TOKEN_ID = 63

INIT_TEMPERATURE = 0.07
MAX_LOGIT_SCALE = 100.0
MAX_LOG_LOGIT_SCALE = math.log(MAX_LOGIT_SCALE)

RMS_EPS = 1e-5
HEAD_BN_EPS = 1e-6
NEG_INF = -1e30

NUM_PATCHES = (IMG_SIZE // PATCH_SIZE) ** 2          # 4
PATCH_DIM = IN_CHANS * PATCH_SIZE * PATCH_SIZE       # 588


# ----------------------------------------------------------------------------
# In-kernel helpers (operate on VMEM values, never leave the kernel).
# ----------------------------------------------------------------------------
def _bf16(x):
    return x.astype(jnp.bfloat16)


def _rms(x, w):
    """RMSNorm: x * rsqrt(mean(x^2) + eps) * w.  x: (M, D), w: (1, D)."""
    ms = jnp.mean(x * x, axis=-1, keepdims=True)
    return x * lax.rsqrt(ms + RMS_EPS) * w


def _softmax_last(s):
    s = s - jnp.max(s, axis=-1, keepdims=True)
    p = jnp.exp(s)
    return p * pl.reciprocal(jnp.sum(p, axis=-1, keepdims=True), approx=True)


def _l2_normalize(e):
    """F.normalize(p=2, dim=-1): x / max(||x||, 1e-12)."""
    return e * lax.rsqrt(jnp.maximum(jnp.sum(e * e, axis=-1, keepdims=True), 1e-24))


def _swap_leading(x):
    """(A, B, C) -> (B, A, C) permutation (lane dim untouched)."""
    if hasattr(pltpu, "einshape"):
        return pltpu.einshape("abc->bac", x)
    return jnp.swapaxes(x, 0, 1)


def _split_heads(x2d, groups, H):
    """(N, groups*H*Dh) -> `groups` head-major (H, N, Dh) values (leading-axis slices)."""
    N, C = x2d.shape
    Dh = C // (groups * H)
    g = _swap_leading(x2d.reshape(N, groups * H, Dh))        # (groups*H, N, Dh)
    return tuple(g[i * H:(i + 1) * H] for i in range(groups))


def _merge_heads(xh):
    """(H, N, Dh) -> (N, H*Dh)."""
    H, N, Dh = xh.shape
    return _swap_leading(xh).reshape(N, H * Dh)


def _sdpa(q, k, v, causal):
    """Batched-over-heads attention.  q: (H, Nq, Dh), k/v: (H, Nk, Dh) f32 -> (Nq, H*Dh)."""
    H, Nq, Dh = q.shape
    Nk = k.shape[1]
    s = jnp.einsum("hqd,hkd->hqk", _bf16(q), _bf16(k),
                   preferred_element_type=jnp.float32) * (1.0 / math.sqrt(Dh))
    if causal:
        row = lax.broadcasted_iota(jnp.int32, (Nq, Nk), 0)
        col = lax.broadcasted_iota(jnp.int32, (Nq, Nk), 1)
        s = jnp.where((col <= row)[None, :, :], s, NEG_INF)
    p = _softmax_last(s)                                                   # (H, Nq, Nk) f32
    o = jnp.einsum("hqk,hkd->hqd", _bf16(p), _bf16(v),
                   preferred_element_type=jnp.float32)                     # (H, Nq, Dh)
    return _merge_heads(o)


def _transformer_block(x, H, causal, n1_w, qkv_w, proj_w, n2_w, f13_w, f2_w):
    """AIMv2 block: x += attn(rms(x)); x += swiglu(rms(x)).  x: (N, D) f32."""
    h = _rms(x, n1_w)
    qkv = jnp.dot(_bf16(h), qkv_w, preferred_element_type=jnp.float32)     # (N, 3D)
    q, k, v = _split_heads(qkv, 3, H)
    a = _sdpa(q, k, v, causal)
    x = x + jnp.dot(_bf16(a), proj_w, preferred_element_type=jnp.float32)  # proj bias=False
    h = _rms(x, n2_w)
    h13 = jnp.dot(_bf16(h), f13_w, preferred_element_type=jnp.float32)     # (N, 2*hidden)
    hid = h13.shape[-1] // 2
    h1 = h13[:, :hid]
    h3 = h13[:, hid:]
    hh = (h1 * jax.nn.sigmoid(h1)) * h3                                    # SwiGLU
    return x + jnp.dot(_bf16(hh), f2_w, preferred_element_type=jnp.float32)


# ----------------------------------------------------------------------------
# Fused Pallas kernels (grid over the batch axis; one image / sequence per step).
# ----------------------------------------------------------------------------
def _vision_encoder_kernel(
        patches_ref, pw_ref, pb_ref, pnw_ref, pos_ref,
        n1_ref, qkv_ref, prj_ref, n2_ref, f13_ref, f2_ref,
        postn_ref, cls_ref, hkv_ref, hl_ref, hlb_ref, iproj_ref,
        img_ref):
    H = VISION_NUM_HEADS

    # PatchEmbed (Conv2d k=stride=P == per-patch matmul) + RMSNorm + absolute pos embed.
    x = jnp.dot(_bf16(patches_ref[0]), pw_ref[...],
                preferred_element_type=jnp.float32) + pb_ref[...]          # (N, D)
    x = _rms(x, pnw_ref[...])
    x = x + pos_ref[...]

    # TODO(synk): at real AIMv2 depth, stream per-block weights over a grid axis with
    # double buffering instead of a Python-unrolled loop over fully resident weights.
    for l in range(VISION_NUM_BLOCKS):
        x = _transformer_block(x, H, False,
                               n1_ref[l], qkv_ref[l], prj_ref[l], n2_ref[l],
                               f13_ref[l], f2_ref[l])
    x = _rms(x, postn_ref[...])

    # Attention-pool head: 1 learned query; average_pool over 1 query == identity;
    # eval-mode BatchNorm1d(affine=False) with fresh running stats == x / sqrt(1 + eps).
    # TODO(synk): train-mode BatchNorm1d batch statistics are not modeled.
    x = x * (1.0 / math.sqrt(1.0 + HEAD_BN_EPS))
    kv = jnp.dot(_bf16(x), hkv_ref[...], preferred_element_type=jnp.float32)   # (N, 2D)
    k, v = _split_heads(kv, 2, H)
    q, = _split_heads(cls_ref[...], 1, H)                                  # (H, 1, Dh)
    o = _sdpa(q, k, v, False)                                              # (1, D)
    o = jnp.dot(_bf16(o), hl_ref[...], preferred_element_type=jnp.float32) + hlb_ref[...]

    # image_projector (bias=False) + F.normalize.
    e = jnp.dot(_bf16(o), iproj_ref[...], preferred_element_type=jnp.float32)  # (1, P)
    img_ref[0] = _l2_normalize(e)


def _text_encoder_logits_kernel(
        eos_ref, scale_ref, tok_ref, pos_ref,
        n1_ref, qkv_ref, prj_ref, n2_ref, f13_ref, f2_ref,
        postn_ref, tproj_ref, imgn_ref,
        logits_ref):
    S, H = MAX_CONTEXT_LENGTH, TEXT_NUM_HEADS
    b = pl.program_id(0)

    x = tok_ref[0] + pos_ref[...]                                          # (S, D)
    for l in range(TEXT_NUM_BLOCKS):
        x = _transformer_block(x, H, True,
                               n1_ref[l], qkv_ref[l], prj_ref[l], n2_ref[l],
                               f13_ref[l], f2_ref[l])
    x = _rms(x, postn_ref[...])

    # Pool at the first-EOS position: SMEM index + iota select/reduce (no one-hot matmul).
    eos = eos_ref[b]
    sel = (lax.broadcasted_iota(jnp.int32, (S, 1), 0) == eos).astype(jnp.float32)
    pooled = jnp.sum(x * sel, axis=0, keepdims=True)                       # (1, D)

    # text_projector (bias=False) + F.normalize.
    e = jnp.dot(_bf16(pooled), tproj_ref[...], preferred_element_type=jnp.float32)  # (1, P)
    txt_n = _l2_normalize(e)

    # One row of the CLIP logits against the (already L2-normalized) image embeddings.
    row = lax.dot_general(txt_n, imgn_ref[...], (((1,), (1,)), ((), ())),
                          preferred_element_type=jnp.float32)              # (1, B)
    logits_ref[0] = row * scale_ref[0, 0]


# ----------------------------------------------------------------------------
# BlockSpec / cost helpers.
# ----------------------------------------------------------------------------
def _const_spec(shape):
    nd = len(shape)
    return pl.BlockSpec(tuple(shape), lambda b, _nd=nd: (0,) * _nd)


def _batch_spec(shape):
    nd = len(shape)
    return pl.BlockSpec((1,) + tuple(shape[1:]),
                        lambda b, _nd=nd: (b,) + (0,) * (_nd - 1))


def _smem_spec():
    return pl.BlockSpec(memory_space=pltpu.MemorySpace.SMEM)


def _cost_estimate(args, out_shape, flops, transcendentals):
    nbytes = sum(math.prod(a.shape) * jnp.dtype(a.dtype).itemsize for a in args)
    nbytes += math.prod(out_shape.shape) * jnp.dtype(out_shape.dtype).itemsize
    return pl.CostEstimate(flops=int(flops), transcendentals=int(transcendentals),
                           bytes_accessed=int(nbytes))


def _mm(m, k, n):
    return 2 * m * k * n


def _vision_cost_numbers():
    N, D, H, HID = NUM_PATCHES, VISION_EMBED_DIM, VISION_NUM_HEADS, VISION_MLP_HIDDEN
    Dh = D // H
    per_block = (_mm(N, D, 3 * D) + 2 * H * _mm(N, Dh, N) + _mm(N, D, D)
                 + _mm(N, D, 2 * HID) + _mm(N, HID, D))
    flops = (_mm(N, PATCH_DIM, D) + VISION_NUM_BLOCKS * per_block
             + _mm(N, D, 2 * D) + 2 * H * _mm(1, Dh, N)
             + _mm(1, D, D) + _mm(1, D, PROJECTION_DIM))
    trans = VISION_NUM_BLOCKS * (H * N * N + N * HID) + H * N
    return BATCH * flops, BATCH * trans


def _text_cost_numbers():
    S, D, H, HID = MAX_CONTEXT_LENGTH, TEXT_EMBED_DIM, TEXT_NUM_HEADS, TEXT_MLP_HIDDEN
    Dh = D // H
    per_block = (_mm(S, D, 3 * D) + 2 * H * _mm(S, Dh, S) + _mm(S, D, D)
                 + _mm(S, D, 2 * HID) + _mm(S, HID, D))
    flops = (TEXT_NUM_BLOCKS * per_block + _mm(1, D, PROJECTION_DIM)
             + _mm(1, PROJECTION_DIM, BATCH))
    trans = TEXT_NUM_BLOCKS * (H * S * S + S * HID)
    return BATCH * flops, BATCH * trans


# ----------------------------------------------------------------------------
# Forward pass (2 pallas_calls + tiny JAX glue).
# ----------------------------------------------------------------------------
def aimv2_lit_forward(params, input_pixels, input_ids):
    vp, tp = params["vision"], params["text"]
    B = input_pixels.shape[0]
    P = PATCH_SIZE
    nh = IMG_SIZE // P

    # Patchify (glue reshape): NCHW -> (B, N, C*P*P), matching Conv2d weight flattening.
    patches = input_pixels.reshape(B, IN_CHANS, nh, P, nh, P)
    patches = jnp.transpose(patches, (0, 2, 4, 1, 3, 5)).reshape(B, NUM_PATCHES, PATCH_DIM)

    v_args = (patches, vp["patch_w_t"], vp["patch_b"], vp["patch_norm_w"], vp["pos_embed"],
              vp["norm1_w"], vp["qkv_w_t"], vp["proj_w_t"], vp["norm2_w"],
              vp["fc13_w_t"], vp["fc2_w_t"],
              vp["post_norm_w"], vp["head_cls"], vp["head_kv_w_t"],
              vp["head_lin_w_t"], vp["head_lin_b"], params["image_projector_w_t"])
    v_out = jax.ShapeDtypeStruct((B, 1, PROJECTION_DIM), jnp.float32)
    v_flops, v_trans = _vision_cost_numbers()
    img_n = pl.pallas_call(
        _vision_encoder_kernel,
        grid=(B,),
        in_specs=[_batch_spec(patches.shape)] + [_const_spec(a.shape) for a in v_args[1:]],
        out_specs=_batch_spec(v_out.shape),
        out_shape=v_out,
        compiler_params=pltpu.CompilerParams(dimension_semantics=("parallel",)),
        cost_estimate=_cost_estimate(v_args, v_out, v_flops, v_trans),
    )(*v_args).reshape(B, PROJECTION_DIM)

    # Text glue: embedding gather, first-EOS index, clamp().exp() of the scalar logit scale.
    tok = tp["tok_embed"][input_ids]                                       # (B, S, D)
    eos_idx = jnp.argmax((input_ids == EOS_TOKEN_ID).astype(jnp.int32),
                         axis=-1).astype(jnp.int32)                        # (B,)
    scale = jnp.exp(jnp.clip(params["log_logit_scale"], 0.0, MAX_LOG_LOGIT_SCALE))  # (1, 1)

    t_args = (eos_idx, scale, tok, tp["pos_embed"],
              tp["norm1_w"], tp["qkv_w_t"], tp["proj_w_t"], tp["norm2_w"],
              tp["fc13_w_t"], tp["fc2_w_t"],
              tp["post_norm_w"], params["text_projector_w_t"], img_n)
    t_out = jax.ShapeDtypeStruct((B, 1, B), jnp.float32)
    t_flops, t_trans = _text_cost_numbers()
    logits_per_text = pl.pallas_call(
        _text_encoder_logits_kernel,
        grid=(B,),
        in_specs=([_smem_spec(), _smem_spec(), _batch_spec(tok.shape)]
                  + [_const_spec(a.shape) for a in t_args[3:]]),
        out_specs=_batch_spec(t_out.shape),
        out_shape=t_out,
        compiler_params=pltpu.CompilerParams(dimension_semantics=("parallel",)),
        cost_estimate=_cost_estimate(t_args, t_out, t_flops, t_trans),
    )(*t_args).reshape(B, B)

    logits_per_image = logits_per_text.T
    return logits_per_image, logits_per_text


# ----------------------------------------------------------------------------
# Deterministic parameter init — matmul weights pre-transposed ((in, out)), stored in
# bf16, fused where profitable (fc1|fc3, head K|V), per-block weights stacked over a
# leading `block` axis.  Norm weights / biases / embeddings stay f32.
# ----------------------------------------------------------------------------
def init_params(key):
    keys = iter(jax.random.split(key, 64))

    def nrm(shape, dtype=jnp.float32, std=0.02):
        return (jax.random.normal(next(keys), shape, jnp.float32) * std).astype(dtype)

    bf16 = jnp.bfloat16

    def make_blocks(n_blocks, dim, hidden):
        return {
            "norm1_w": jnp.ones((n_blocks, 1, dim), jnp.float32),
            "qkv_w_t": nrm((n_blocks, dim, 3 * dim), bf16),      # qkv bias=False
            "proj_w_t": nrm((n_blocks, dim, dim), bf16),         # proj bias=False
            "norm2_w": jnp.ones((n_blocks, 1, dim), jnp.float32),
            "fc13_w_t": nrm((n_blocks, dim, 2 * hidden), bf16),  # fc1 | fc3 fused, bias=False
            "fc2_w_t": nrm((n_blocks, hidden, dim), bf16),
        }

    vision = {
        "patch_w_t": nrm((PATCH_DIM, VISION_EMBED_DIM), bf16),  # Conv2d weight flattened+T
        "patch_b": nrm((1, VISION_EMBED_DIM)),
        "patch_norm_w": jnp.ones((1, VISION_EMBED_DIM), jnp.float32),
        "pos_embed": nrm((NUM_PATCHES, VISION_EMBED_DIM)),
        **make_blocks(VISION_NUM_BLOCKS, VISION_EMBED_DIM, VISION_MLP_HIDDEN),
        "post_norm_w": jnp.ones((1, VISION_EMBED_DIM), jnp.float32),
        "head_cls": nrm((1, VISION_EMBED_DIM)),
        "head_kv_w_t": nrm((VISION_EMBED_DIM, 2 * VISION_EMBED_DIM), bf16),  # K | V fused
        "head_lin_w_t": nrm((VISION_EMBED_DIM, VISION_EMBED_DIM), bf16),
        "head_lin_b": nrm((1, VISION_EMBED_DIM)),
    }
    text = {
        "tok_embed": nrm((VOCAB_SIZE, TEXT_EMBED_DIM)),
        "pos_embed": nrm((MAX_CONTEXT_LENGTH, TEXT_EMBED_DIM)),
        **make_blocks(TEXT_NUM_BLOCKS, TEXT_EMBED_DIM, TEXT_MLP_HIDDEN),
        "post_norm_w": jnp.ones((1, TEXT_EMBED_DIM), jnp.float32),
    }
    return {
        "vision": vision,
        "text": text,
        "image_projector_w_t": nrm((VISION_EMBED_DIM, PROJECTION_DIM), bf16),
        "text_projector_w_t": nrm((TEXT_EMBED_DIM, PROJECTION_DIM), bf16),
        "log_logit_scale": jnp.full((1, 1), math.log(1.0 / INIT_TEMPERATURE), jnp.float32),
    }


# ----------------------------------------------------------------------------
# Main
# ----------------------------------------------------------------------------
if __name__ == "__main__":
    root = jax.random.PRNGKey(0)
    k_params, k_pix, k_ids = jax.random.split(root, 3)

    params = init_params(k_params)

    input_pixels = jax.random.normal(
        k_pix, (BATCH, IN_CHANS, IMG_SIZE, IMG_SIZE), jnp.float32
    )
    input_ids = jax.random.randint(
        k_ids, (BATCH, MAX_CONTEXT_LENGTH), 1, EOS_TOKEN_ID, dtype=jnp.int32
    )
    # Guarantee an EOS token for the CLIP-style text pooling.
    input_ids = input_ids.at[:, -1].set(EOS_TOKEN_ID)

    fwd = jax.jit(aimv2_lit_forward)
    logits_per_image, logits_per_text = fwd(params, input_pixels, input_ids)
    jax.block_until_ready((logits_per_image, logits_per_text))

    assert logits_per_image.shape == (BATCH, BATCH)
    assert logits_per_text.shape == (BATCH, BATCH)
    assert bool(jnp.all(jnp.isfinite(logits_per_image)))
    assert bool(
        jnp.allclose(logits_per_image, logits_per_text.T, atol=1e-5, rtol=1e-5)
    )
    print("KERNEL_OK")
</pallas_src>

<mosaic_0001>
module attributes {stable_mosaic.version = 11 : i64} {
  func.func @_vision_encoder_kernel(%arg0: i32, %arg1: memref<1x4x588xf32, #tpu.memory_space<vmem>>, %arg2: memref<588x64xbf16, #tpu.memory_space<vmem>>, %arg3: memref<1x64xf32, #tpu.memory_space<vmem>>, %arg4: memref<1x64xf32, #tpu.memory_space<vmem>>, %arg5: memref<4x64xf32, #tpu.memory_space<vmem>>, %arg6: memref<2x1x64xf32, #tpu.memory_space<vmem>>, %arg7: memref<2x64x192xbf16, #tpu.memory_space<vmem>>, %arg8: memref<2x64x64xbf16, #tpu.memory_space<vmem>>, %arg9: memref<2x1x64xf32, #tpu.memory_space<vmem>>, %arg10: memref<2x64x256xbf16, #tpu.memory_space<vmem>>, %arg11: memref<2x128x64xbf16, #tpu.memory_space<vmem>>, %arg12: memref<1x64xf32, #tpu.memory_space<vmem>>, %arg13: memref<1x64xf32, #tpu.memory_space<vmem>>, %arg14: memref<64x128xbf16, #tpu.memory_space<vmem>>, %arg15: memref<64x64xbf16, #tpu.memory_space<vmem>>, %arg16: memref<1x64xf32, #tpu.memory_space<vmem>>, %arg17: memref<64x32xbf16, #tpu.memory_space<vmem>>, %arg18: memref<1x1x32xf32, #tpu.memory_space<vmem>>) attributes {dimension_semantics = [#tpu.dimension_semantics<parallel>], iteration_bounds = array<i64: 2>, scalar_prefetch = 0 : i64, scratch_operands = 0 : i64, tpu.core_type = #tpu.core_type<tc>, window_params = [{transform_indices = @transform_0, window_bounds = array<i64: 1, 4, 588>}, {pipeline_mode = #tpu.pipeline_mode<synchronous>, transform_indices = @transform_1, window_bounds = array<i64: 588, 64>}, {pipeline_mode = #tpu.pipeline_mode<synchronous>, transform_indices = @transform_2, window_bounds = array<i64: 1, 64>}, {pipeline_mode = #tpu.pipeline_mode<synchronous>, transform_indices = @transform_3, window_bounds = array<i64: 1, 64>}, {pipeline_mode = #tpu.pipeline_mode<synchronous>, transform_indices = @transform_4, window_bounds = array<i64: 4, 64>}, {pipeline_mode = #tpu.pipeline_mode<synchronous>, transform_indices = @transform_5, window_bounds = array<i64: 2, 1, 64>}, {pipeline_mode = #tpu.pipeline_mode<synchronous>, transform_indices = @transform_6, window_bounds = array<i64: 2, 64, 192>}, {pipeline_mode = #tpu.pipeline_mode<synchronous>, transform_indices = @transform_7, window_bounds = array<i64: 2, 64, 64>}, {pipeline_mode = #tpu.pipeline_mode<synchronous>, transform_indices = @transform_8, window_bounds = array<i64: 2, 1, 64>}, {pipeline_mode = #tpu.pipeline_mode<synchronous>, transform_indices = @transform_9, window_bounds = array<i64: 2, 64, 256>}, {pipeline_mode = #tpu.pipeline_mode<synchronous>, transform_indices = @transform_10, window_bounds = array<i64: 2, 128, 64>}, {pipeline_mode = #tpu.pipeline_mode<synchronous>, transform_indices = @transform_11, window_bounds = array<i64: 1, 64>}, {pipeline_mode = #tpu.pipeline_mode<synchronous>, transform_indices = @transform_12, window_bounds = array<i64: 1, 64>}, {pipeline_mode = #tpu.pipeline_mode<synchronous>, transform_indices = @transform_13, window_bounds = array<i64: 64, 128>}, {pipeline_mode = #tpu.pipeline_mode<synchronous>, transform_indices = @transform_14, window_bounds = array<i64: 64, 64>}, {pipeline_mode = #tpu.pipeline_mode<synchronous>, transform_indices = @transform_15, window_bounds = array<i64: 1, 64>}, {pipeline_mode = #tpu.pipeline_mode<synchronous>, transform_indices = @transform_16, window_bounds = array<i64: 64, 32>}, {transform_indices = @transform_17, window_bounds = array<i64: 1, 1, 32>}]} {
    %c0 = arith.constant 0 : index
    %c0_0 = arith.constant 0 : index
    %c0_1 = arith.constant 0 : index
    %0 = vector.load %arg1[%c0, %c0_0, %c0_1] : memref<1x4x588xf32, #tpu.memory_space<vmem>>, vector<1x4x588xf32>
    %1 = vector.shape_cast %0 : vector<1x4x588xf32> to vector<4x588xf32>
    %2 = arith.truncf %1 : vector<4x588xf32> to vector<4x588xbf16>
    %c0_2 = arith.constant 0 : index
    %c0_3 = arith.constant 0 : index
    %3 = vector.load %arg2[%c0_2, %c0_3] : memref<588x64xbf16, #tpu.memory_space<vmem>>, vector<588x64xbf16>
    %cst = arith.constant dense<0.000000e+00> : vector<4x64xf32>
    %4 = tpu.matmul %2, %3, %cst {dimension_numbers = #tpu.dot_dimension_numbers<[1], [0], [0], [1], [0, 0, 1, 1], [], []>} : vector<4x588xbf16>, vector<588x64xbf16>, vector<4x64xf32> -> vector<4x64xf32>
    %c0_4 = arith.constant 0 : index
    %c0_5 = arith.constant 0 : index
    %5 = vector.load %arg3[%c0_4, %c0_5] : memref<1x64xf32, #tpu.memory_space<vmem>>, vector<1x64xf32>
    %6 = vector.broadcast %5 : vector<1x64xf32> to vector<4x64xf32>
    %7 = arith.addf %4, %6 : vector<4x64xf32>
    %c0_6 = arith.constant 0 : index
    %c0_7 = arith.constant 0 : index
    %8 = vector.load %arg4[%c0_6, %c0_7] : memref<1x64xf32, #tpu.memory_space<vmem>>, vector<1x64xf32>
    %9 = arith.mulf %7, %7 : vector<4x64xf32>
    %cst_8 = arith.constant dense<0.000000e+00> : vector<4xf32>
    %10 = vector.multi_reduction <add>, %9, %cst_8 [1] : vector<4x64xf32> to vector<4xf32>
    %11 = vector.shape_cast %10 : vector<4xf32> to vector<4x1xf32>
    %cst_9 = arith.constant 6.400000e+01 : f32
    %12 = vector.broadcast %cst_9 : f32 to vector<4x1xf32>
    %13 = arith.divf %11, %12 : vector<4x1xf32>
    %cst_10 = arith.constant 9.99999974E-6 : f32
    %14 = vector.broadcast %cst_10 : f32 to vector<4x1xf32>
    %15 = arith.addf %13, %14 : vector<4x1xf32>
    %16 = math.rsqrt %15 : vector<4x1xf32>
    %17 = vector.broadcast %16 : vector<4x1xf32> to vector<4x64xf32>
    %18 = arith.mulf %7, %17 : vector<4x64xf32>
    %19 = vector.broadcast %8 : vector<1x64xf32> to vector<4x64xf32>
    %20 = arith.mulf %18, %19 : vector<4x64xf32>
    %c0_11 = arith.constant 0 : index
    %c0_12 = arith.constant 0 : index
    %21 = vector.load %arg5[%c0_11, %c0_12] : memref<4x64xf32, #tpu.memory_space<vmem>>, vector<4x64xf32>
    %22 = arith.addf %20, %21 : vector<4x64xf32>
    %c0_13 = arith.constant 0 : index
    %c0_14 = arith.constant 0 : index
    %c0_15 = arith.constant 0 : index
    %23 = vector.load %arg6[%c0_13, %c0_14, %c0_15] : memref<2x1x64xf32, #tpu.memory_space<vmem>>, vector<1x1x64xf32>
    %24 = vector.shape_cast %23 : vector<1x1x64xf32> to vector<1x64xf32>
    %c0_16 = arith.constant 0 : index
    %c0_17 = arith.constant 0 : index
    %c0_18 = arith.constant 0 : index
    %25 = vector.load %arg7[%c0_16, %c0_17, %c0_18] : memref<2x64x192xbf16, #tpu.memory_space<vmem>>, vector<1x64x192xbf16>
    %26 = vector.shape_cast %25 : vector<1x64x192xbf16> to vector<64x192xbf16>
    %c0_19 = arith.constant 0 : index
    %c0_20 = arith.constant 0 : index
    %c0_21 = arith.constant 0 : index
    %27 = vector.load %arg8[%c0_19, %c0_20, %c0_21] : memref<2x64x64xbf16, #tpu.memory_space<vmem>>, vector<1x64x64xbf16>
    %28 = vector.shape_cast %27 : vector<1x64x64xbf16> to vector<64x64xbf16>
    %c0_22 = arith.constant 0 : index
    %c0_23 = arith.constant 0 : index
    %c0_24 = arith.constant 0 : index
    %29 = vector.load %arg9[%c0_22, %c0_23, %c0_24] : memref<2x1x64xf32, #tpu.memory_space<vmem>>, vector<1x1x64xf32>
    %30 = vector.shape_cast %29 : vector<1x1x64xf32> to vector<1x64xf32>
    %c0_25 = arith.constant 0 : index
    %c0_26 = arith.constant 0 : index
    %c0_27 = arith.constant 0 : index
    %31 = vector.load %arg10[%c0_25, %c0_26, %c0_27] : memref<2x64x256xbf16, #tpu.memory_space<vmem>>, vector<1x64x256xbf16>
    %32 = vector.shape_cast %31 : vector<1x64x256xbf16> to vector<64x256xbf16>
    %c0_28 = arith.constant 0 : index
    %c0_29 = arith.constant 0 : index
    %c0_30 = arith.constant 0 : index
    %33 = vector.load %arg11[%c0_28, %c0_29, %c0_30] : memref<2x128x64xbf16, #tpu.memory_space<vmem>>, vector<1x128x64xbf16>
    %34 = vector.shape_cast %33 : vector<1x128x64xbf16> to vector<128x64xbf16>
    %35 = arith.mulf %22, %22 : vector<4x64xf32>
    %cst_31 = arith.constant dense<0.000000e+00> : vector<4xf32>
    %36 = vector.multi_reduction <add>, %35, %cst_31 [1] : vector<4x64xf32> to vector<4xf32>
    %37 = vector.shape_cast %36 : vector<4xf32> to vector<4x1xf32>
    %cst_32 = arith.constant 6.400000e+01 : f32
    %38 = vector.broadcast %cst_32 : f32 to vector<4x1xf32>
    %39 = arith.divf %37, %38 : vector<4x1xf32>
    %cst_33 = arith.constant 9.99999974E-6 : f32
    %40 = vector.broadcast %cst_33 : f32 to vector<4x1xf32>
    %41 = arith.addf %39, %40 : vector<4x1xf32>
    %42 = math.rsqrt %41 : vector<4x1xf32>
    %43 = vector.broadcast %42 : vector<4x1xf32> to vector<4x64xf32>
    %44 = arith.mulf %22, %43 : vector<4x64xf32>
    %45 = vector.broadcast %24 : vector<1x64xf32> to vector<4x64xf32>
    %46 = arith.mulf %44, %45 : vector<4x64xf32>
    %47 = arith.truncf %46 : vector<4x64xf32> to vector<4x64xbf16>
    %cst_34 = arith.constant dense<0.000000e+00> : vector<4x192xf32>
    %48 = tpu.matmul %47, %26, %cst_34 {dimension_numbers = #tpu.dot_dimension_numbers<[1], [0], [0], [1], [0, 0, 1, 1], [], []>} : vector<4x64xbf16>, vector<64x192xbf16>, vector<4x192xf32> -> vector<4x192xf32>
    %49 = vector.shape_cast %48 : vector<4x192xf32> to vector<4x12x16xf32>
    %50 = tpu.transpose %49, [1, 0, 2] : vector<4x12x16xf32> -> vector<12x4x16xf32>
    %51 = vector.extract_strided_slice %50 {offsets = [0, 0, 0], sizes = [4, 4, 16], strides = [1, 1, 1]} : vector<12x4x16xf32> to vector<4x4x16xf32>
    %52 = vector.extract_strided_slice %50 {offsets = [4, 0, 0], sizes = [4, 4, 16], strides = [1, 1, 1]} : vector<12x4x16xf32> to vector<4x4x16xf32>
    %53 = vector.extract_strided_slice %50 {offsets = [8, 0, 0], sizes = [4, 4, 16], strides = [1, 1, 1]} : vector<12x4x16xf32> to vector<4x4x16xf32>
    %54 = arith.truncf %51 : vector<4x4x16xf32> to vector<4x4x16xbf16>
    %55 = arith.truncf %52 : vector<4x4x16xf32> to vector<4x4x16xbf16>
    "tpu.trace_start"() <{level = 10 : i32, message = "hqd,hkd->hqk"}> : () -> ()
    %cst_35 = arith.constant dense<0.000000e+00> : vector<4x4x4xf32>
    %56 = tpu.matmul %54, %55, %cst_35 {dimension_numbers = #tpu.dot_dimension_numbers<[2], [2], [1], [1], [0, 0, 0, 1, 1, 1], [0], [0]>} : vector<4x4x16xbf16>, vector<4x4x16xbf16>, vector<4x4x4xf32> -> vector<4x4x4xf32>
    "tpu.trace_stop"() : () -> ()
    %cst_36 = arith.constant 2.500000e-01 : f32
    %57 = vector.broadcast %cst_36 : f32 to vector<4x4x4xf32>
    %58 = arith.mulf %56, %57 : vector<4x4x4xf32>
    %cst_37 = arith.constant dense<0xFF800000> : vector<4x4xf32>
    %59 = vector.multi_reduction <maximumf>, %58, %cst_37 [2] : vector<4x4x4xf32> to vector<4x4xf32>
    %60 = vector.shape_cast %59 : vector<4x4xf32> to vector<4x4x1xf32>
    %61 = vector.broadcast %60 : vector<4x4x1xf32> to vector<4x4x4xf32>
    %62 = arith.subf %58, %61 : vector<4x4x4xf32>
    %63 = math.exp %62 : vector<4x4x4xf32>
    %cst_38 = arith.constant dense<0.000000e+00> : vector<4x4xf32>
    %64 = vector.multi_reduction <add>, %63, %cst_38 [2] : vector<4x4x4xf32> to vector<4x4xf32>
    %65 = vector.shape_cast %64 : vector<4x4xf32> to vector<4x4x1xf32>
    %66 = tpu.reciprocal %65 {approx = true} : vector<4x4x1xf32> -> vector<4x4x1xf32>
    %67 = vector.broadcast %66 : vector<4x4x1xf32> to vector<4x4x4xf32>
    %68 = arith.mulf %63, %67 : vector<4x4x4xf32>
    %69 = arith.truncf %68 : vector<4x4x4xf32> to vector<4x4x4xbf16>
    %70 = arith.truncf %53 : vector<4x4x16xf32> to vector<4x4x16xbf16>
    "tpu.trace_start"() <{level = 10 : i32, message = "hqk,hkd->hqd"}> : () -> ()
    %cst_39 = arith.constant dense<0.000000e+00> : vector<4x4x16xf32>
    %71 = tpu.matmul %69, %70, %cst_39 {dimension_numbers = #tpu.dot_dimension_numbers<[2], [1], [1], [2], [0, 0, 0, 1, 1, 2], [0], [0]>} : vector<4x4x4xbf16>, vector<4x4x16xbf16>, vector<4x4x16xf32> -> vector<4x4x16xf32>
    "tpu.trace_stop"() : () -> ()
    %72 = tpu.transpose %71, [1, 0, 2] : vector<4x4x16xf32> -> vector<4x4x16xf32>
    %73 = vector.shape_cast %72 : vector<4x4x16xf32> to vector<4x64xf32>
    %74 = arith.truncf %73 : vector<4x64xf32> to vector<4x64xbf16>
    %cst_40 = arith.constant dense<0.000000e+00> : vector<4x64xf32>
    %75 = tpu.matmul %74, %28, %cst_40 {dimension_numbers = #tpu.dot_dimension_numbers<[1], [0], [0], [1], [0, 0, 1, 1], [], []>} : vector<4x64xbf16>, vector<64x64xbf16>, vector<4x64xf32> -> vector<4x64xf32>
    %76 = arith.addf %22, %75 : vector<4x64xf32>
    %77 = arith.mulf %76, %76 : vector<4x64xf32>
    %cst_41 = arith.constant dense<0.000000e+00> : vector<4xf32>
    %78 = vector.multi_reduction <add>, %77, %cst_41 [1] : vector<4x64xf32> to vector<4xf32>
    %79 = vector.shape_cast %78 : vector<4xf32> to vector<4x1xf32>
    %cst_42 = arith.constant 6.400000e+01 : f32
    %80 = vector.broadcast %cst_42 : f32 to vector<4x1xf32>
    %81 = arith.divf %79, %80 : vector<4x1xf32>
    %cst_43 = arith.constant 9.99999974E-6 : f32
    %82 = vector.broadcast %cst_43 : f32 to vector<4x1xf32>
    %83 = arith.addf %81, %82 : vector<4x1xf32>
    %84 = math.rsqrt %83 : vector<4x1xf32>
    %85 = vector.broadcast %84 : vector<4x1xf32> to vector<4x64xf32>
    %86 = arith.mulf %76, %85 : vector<4x64xf32>
    %87 = vector.broadcast %30 : vector<1x64xf32> to vector<4x64xf32>
    %88 = arith.mulf %86, %87 : vector<4x64xf32>
    %89 = arith.truncf %88 : vector<4x64xf32> to vector<4x64xbf16>
    %cst_44 = arith.constant dense<0.000000e+00> : vector<4x256xf32>
    %90 = tpu.matmul %89, %32, %cst_44 {dimension_numbers = #tpu.dot_dimension_numbers<[1], [0], [0], [1], [0, 0, 1, 1], [], []>} : vector<4x64xbf16>, vector<64x256xbf16>, vector<4x256xf32> -> vector<4x256xf32>
    %91 = vector.extract_strided_slice %90 {offsets = [0, 0], sizes = [4, 128], strides = [1, 1]} : vector<4x256xf32> to vector<4x128xf32>
    %92 = vector.extract_strided_slice %90 {offsets = [0, 128], sizes = [4, 128], strides = [1, 1]} : vector<4x256xf32> to vector<4x128xf32>
    %93 = arith.negf %91 : vector<4x128xf32>
    %94 = math.exp %93 : vector<4x128xf32>
    %cst_45 = arith.constant 1.000000e+00 : f32
    %95 = vector.broadcast %cst_45 : f32 to vector<4x128xf32>
    %96 = arith.addf %95, %94 : vector<4x128xf32>
    %97 = arith.divf %95, %96 : vector<4x128xf32>
    %98 = arith.mulf %91, %97 : vector<4x128xf32>
    %99 = arith.mulf %98, %92 : vector<4x128xf32>
    %100 = arith.truncf %99 : vector<4x128xf32> to vector<4x128xbf16>
    %cst_46 = arith.constant dense<0.000000e+00> : vector<4x64xf32>
    %101 = tpu.matmul %100, %34, %cst_46 {dimension_numbers = #tpu.dot_dimension_numbers<[1], [0], [0], [1], [0, 0, 1, 1], [], []>} : vector<4x128xbf16>, vector<128x64xbf16>, vector<4x64xf32> -> vector<4x64xf32>
    %102 = arith.addf %76, %101 : vector<4x64xf32>
    %c1 = arith.constant 1 : index
    %c0_47 = arith.constant 0 : index
    %c0_48 = arith.constant 0 : index
    %103 = vector.load %arg6[%c1, %c0_47, %c0_48] : memref<2x1x64xf32, #tpu.memory_space<vmem>>, vector<1x1x64xf32>
    %104 = vector.shape_cast %103 : vector<1x1x64xf32> to vector<1x64xf32>
    %c1_49 = arith.constant 1 : index
    %c0_50 = arith.constant 0 : index
    %c0_51 = arith.constant 0 : index
    %105 = vector.load %arg7[%c1_49, %c0_50, %c0_51] : memref<2x64x192xbf16, #tpu.memory_space<vmem>>, vector<1x64x192xbf16>
    %106 = vector.shape_cast %105 : vector<1x64x192xbf16> to vector<64x192xbf16>
    %c1_52 = arith.constant 1 : index
    %c0_53 = arith.constant 0 : index
    %c0_54 = arith.constant 0 : index
    %107 = vector.load %arg8[%c1_52, %c0_53, %c0_54] : memref<2x64x64xbf16, #tpu.memory_space<vmem>>, vector<1x64x64xbf16>
    %108 = vector.shape_cast %107 : vector<1x64x64xbf16> to vector<64x64xbf16>
    %c1_55 = arith.constant 1 : index
    %c0_56 = arith.constant 0 : index
    %c0_57 = arith.constant 0 : index
    %109 = vector.load %arg9[%c1_55, %c0_56, %c0_57] : memref<2x1x64xf32, #tpu.memory_space<vmem>>, vector<1x1x64xf32>
    %110 = vector.shape_cast %109 : vector<1x1x64xf32> to vector<1x64xf32>
    %c1_58 = arith.constant 1 : index
    %c0_59 = arith.constant 0 : index
    %c0_60 = arith.constant 0 : index
    %111 = vector.load %arg10[%c1_58, %c0_59, %c0_60] : memref<2x64x256xbf16, #tpu.memory_space<vmem>>, vector<1x64x256xbf16>
    %112 = vector.shape_cast %111 : vector<1x64x256xbf16> to vector<64x256xbf16>
    %c1_61 = arith.constant 1 : index
    %c0_62 = arith.constant 0 : index
    %c0_63 = arith.constant 0 : index
    %113 = vector.load %arg11[%c1_61, %c0_62, %c0_63] : memref<2x128x64xbf16, #tpu.memory_space<vmem>>, vector<1x128x64xbf16>
    %114 = vector.shape_cast %113 : vector<1x128x64xbf16> to vector<128x64xbf16>
    %115 = arith.mulf %102, %102 : vector<4x64xf32>
    %cst_64 = arith.constant dense<0.000000e+00> : vector<4xf32>
    %116 = vector.multi_reduction <add>, %115, %cst_64 [1] : vector<4x64xf32> to vector<4xf32>
    %117 = vector.shape_cast %116 : vector<4xf32> to vector<4x1xf32>
    %cst_65 = arith.constant 6.400000e+01 : f32
    %118 = vector.broadcast %cst_65 : f32 to vector<4x1xf32>
    %119 = arith.divf %117, %118 : vector<4x1xf32>
    %cst_66 = arith.constant 9.99999974E-6 : f32
    %120 = vector.broadcast %cst_66 : f32 to vector<4x1xf32>
    %121 = arith.addf %119, %120 : vector<4x1xf32>
    %122 = math.rsqrt %121 : vector<4x1xf32>
    %123 = vector.broadcast %122 : vector<4x1xf32> to vector<4x64xf32>
    %124 = arith.mulf %102, %123 : vector<4x64xf32>
    %125 = vector.broadcast %104 : vector<1x64xf32> to vector<4x64xf32>
    %126 = arith.mulf %124, %125 : vector<4x64xf32>
    %127 = arith.truncf %126 : vector<4x64xf32> to vector<4x64xbf16>
    %cst_67 = arith.constant dense<0.000000e+00> : vector<4x192xf32>
    %128 = tpu.matmul %127, %106, %cst_67 {dimension_numbers = #tpu.dot_dimension_numbers<[1], [0], [0], [1], [0, 0, 1, 1], [], []>} : vector<4x64xbf16>, vector<64x192xbf16>, vector<4x192xf32> -> vector<4x192xf32>
    %129 = vector.shape_cast %128 : vector<4x192xf32> to vector<4x12x16xf32>
    %130 = tpu.transpose %129, [1, 0, 2] : vector<4x12x16xf32> -> vector<12x4x16xf32>
    %131 = vector.extract_strided_slice %130 {offsets = [0, 0, 0], sizes = [4, 4, 16], strides = [1, 1, 1]} : vector<12x4x16xf32> to vector<4x4x16xf32>
    %132 = vector.extract_strided_slice %130 {offsets = [4, 0, 0], sizes = [4, 4, 16], strides = [1, 1, 1]} : vector<12x4x16xf32> to vector<4x4x16xf32>
    %133 = vector.extract_strided_slice %130 {offsets = [8, 0, 0], sizes = [4, 4, 16], strides = [1, 1, 1]} : vector<12x4x16xf32> to vector<4x4x16xf32>
    %134 = arith.truncf %131 : vector<4x4x16xf32> to vector<4x4x16xbf16>
    %135 = arith.truncf %132 : vector<4x4x16xf32> to vector<4x4x16xbf16>
    "tpu.trace_start"() <{level = 10 : i32, message = "hqd,hkd->hqk"}> : () -> ()
    %cst_68 = arith.constant dense<0.000000e+00> : vector<4x4x4xf32>
    %136 = tpu.matmul %134, %135, %cst_68 {dimension_numbers = #tpu.dot_dimension_numbers<[2], [2], [1], [1], [0, 0, 0, 1, 1, 1], [0], [0]>} : vector<4x4x16xbf16>, vector<4x4x16xbf16>, vector<4x4x4xf32> -> vector<4x4x4xf32>
    "tpu.trace_stop"() : () -> ()
    %cst_69 = arith.constant 2.500000e-01 : f32
    %137 = vector.broadcast %cst_69 : f32 to vector<4x4x4xf32>
    %138 = arith.mulf %136, %137 : vector<4x4x4xf32>
    %cst_70 = arith.constant dense<0xFF800000> : vector<4x4xf32>
    %139 = vector.multi_reduction <maximumf>, %138, %cst_70 [2] : vector<4x4x4xf32> to vector<4x4xf32>
    %140 = vector.shape_cast %139 : vector<4x4xf32> to vector<4x4x1xf32>
    %141 = vector.broadcast %140 : vector<4x4x1xf32> to vector<4x4x4xf32>
    %142 = arith.subf %138, %141 : vector<4x4x4xf32>
    %143 = math.exp %142 : vector<4x4x4xf32>
    %cst_71 = arith.constant dense<0.000000e+00> : vector<4x4xf32>
    %144 = vector.multi_reduction <add>, %143, %cst_71 [2] : vector<4x4x4xf32> to vector<4x4xf32>
    %145 = vector.shape_cast %144 : vector<4x4xf32> to vector<4x4x1xf32>
    %146 = tpu.reciprocal %145 {approx = true} : vector<4x4x1xf32> -> vector<4x4x1xf32>
    %147 = vector.broadcast %146 : vector<4x4x1xf32> to vector<4x4x4xf32>
    %148 = arith.mulf %143, %147 : vector<4x4x4xf32>
    %149 = arith.truncf %148 : vector<4x4x4xf32> to vector<4x4x4xbf16>
    %150 = arith.truncf %133 : vector<4x4x16xf32> to vector<4x4x16xbf16>
    "tpu.trace_start"() <{level = 10 : i32, message = "hqk,hkd->hqd"}> : () -> ()
    %cst_72 = arith.constant dense<0.000000e+00> : vector<4x4x16xf32>
    %151 = tpu.matmul %149, %150, %cst_72 {dimension_numbers = #tpu.dot_dimension_numbers<[2], [1], [1], [2], [0, 0, 0, 1, 1, 2], [0], [0]>} : vector<4x4x4xbf16>, vector<4x4x16xbf16>, vector<4x4x16xf32> -> vector<4x4x16xf32>
    "tpu.trace_stop"() : () -> ()
    %152 = tpu.transpose %151, [1, 0, 2] : vector<4x4x16xf32> -> vector<4x4x16xf32>
    %153 = vector.shape_cast %152 : vector<4x4x16xf32> to vector<4x64xf32>
    %154 = arith.truncf %153 : vector<4x64xf32> to vector<4x64xbf16>
    %cst_73 = arith.constant dense<0.000000e+00> : vector<4x64xf32>
    %155 = tpu.matmul %154, %108, %cst_73 {dimension_numbers = #tpu.dot_dimension_numbers<[1], [0], [0], [1], [0, 0, 1, 1], [], []>} : vector<4x64xbf16>, vector<64x64xbf16>, vector<4x64xf32> -> vector<4x64xf32>
    %156 = arith.addf %102, %155 : vector<4x64xf32>
    %157 = arith.mulf %156, %156 : vector<4x64xf32>
    %cst_74 = arith.constant dense<0.000000e+00> : vector<4xf32>
    %158 = vector.multi_reduction <add>, %157, %cst_74 [1] : vector<4x64xf32> to vector<4xf32>
    %159 = vector.shape_cast %158 : vector<4xf32> to vector<4x1xf32>
    %cst_75 = arith.constant 6.400000e+01 : f32
    %160 = vector.broadcast %cst_75 : f32 to vector<4x1xf32>
    %161 = arith.divf %159, %160 : vector<4x1xf32>
    %cst_76 = arith.constant 9.99999974E-6 : f32
    %162 = vector.broadcast %cst_76 : f32 to vector<4x1xf32>
    %163 = arith.addf %161, %162 : vector<4x1xf32>
    %164 = math.rsqrt %163 : vector<4x1xf32>
    %165 = vector.broadcast %164 : vector<4x1xf32> to vector<4x64xf32>
    %166 = arith.mulf %156, %165 : vector<4x64xf32>
    %167 = vector.broadcast %110 : vector<1x64xf32> to vector<4x64xf32>
    %168 = arith.mulf %166, %167 : vector<4x64xf32>
    %169 = arith.truncf %168 : vector<4x64xf32> to vector<4x64xbf16>
    %cst_77 = arith.constant dense<0.000000e+00> : vector<4x256xf32>
    %170 = tpu.matmul %169, %112, %cst_77 {dimension_numbers = #tpu.dot_dimension_numbers<[1], [0], [0], [1], [0, 0, 1, 1], [], []>} : vector<4x64xbf16>, vector<64x256xbf16>, vector<4x256xf32> -> vector<4x256xf32>
    %171 = vector.extract_strided_slice %170 {offsets = [0, 0], sizes = [4, 128], strides = [1, 1]} : vector<4x256xf32> to vector<4x128xf32>
    %172 = vector.extract_strided_slice %170 {offsets = [0, 128], sizes = [4, 128], strides = [1, 1]} : vector<4x256xf32> to vector<4x128xf32>
    %173 = arith.negf %171 : vector<4x128xf32>
    %174 = math.exp %173 : vector<4x128xf32>
    %cst_78 = arith.constant 1.000000e+00 : f32
    %175 = vector.broadcast %cst_78 : f32 to vector<4x128xf32>
    %176 = arith.addf %175, %174 : vector<4x128xf32>
    %177 = arith.divf %175, %176 : vector<4x128xf32>
    %178 = arith.mulf %171, %177 : vector<4x128xf32>
    %179 = arith.mulf %178, %172 : vector<4x128xf32>
    %180 = arith.truncf %179 : vector<4x128xf32> to vector<4x128xbf16>
    %cst_79 = arith.constant dense<0.000000e+00> : vector<4x64xf32>
    %181 = tpu.matmul %180, %114, %cst_79 {dimension_numbers = #tpu.dot_dimension_numbers<[1], [0], [0], [1], [0, 0, 1, 1], [], []>} : vector<4x128xbf16>, vector<128x64xbf16>, vector<4x64xf32> -> vector<4x64xf32>
    %182 = arith.addf %156, %181 : vector<4x64xf32>
    %c0_80 = arith.constant 0 : index
    %c0_81 = arith.constant 0 : index
    %183 = vector.load %arg12[%c0_80, %c0_81] : memref<1x64xf32, #tpu.memory_space<vmem>>, vector<1x64xf32>
    %184 = arith.mulf %182, %182 : vector<4x64xf32>
    %cst_82 = arith.constant dense<0.000000e+00> : vector<4xf32>
    %185 = vector.multi_reduction <add>, %184, %cst_82 [1] : vector<4x64xf32> to vector<4xf32>
    %186 = vector.shape_cast %185 : vector<4xf32> to vector<4x1xf32>
    %cst_83 = arith.constant 6.400000e+01 : f32
    %187 = vector.broadcast %cst_83 : f32 to vector<4x1xf32>
    %188 = arith.divf %186, %187 : vector<4x1xf32>
    %cst_84 = arith.constant 9.99999974E-6 : f32
    %189 = vector.broadcast %cst_84 : f32 to vector<4x1xf32>
    %190 = arith.addf %188, %189 : vector<4x1xf32>
    %191 = math.rsqrt %190 : vector<4x1xf32>
    %192 = vector.broadcast %191 : vector<4x1xf32> to vector<4x64xf32>
    %193 = arith.mulf %182, %192 : vector<4x64xf32>
    %194 = vector.broadcast %183 : vector<1x64xf32> to vector<4x64xf32>
    %195 = arith.mulf %193, %194 : vector<4x64xf32>
    %cst_85 = arith.constant 0.999999523 : f32
    %196 = vector.broadcast %cst_85 : f32 to vector<4x64xf32>
    %197 = arith.mulf %195, %196 : vector<4x64xf32>
    %198 = arith.truncf %197 : vector<4x64xf32> to vector<4x64xbf16>
    %c0_86 = arith.constant 0 : index
    %c0_87 = arith.constant 0 : index
    %199 = vector.load %arg14[%c0_86, %c0_87] : memref<64x128xbf16, #tpu.memory_space<vmem>>, vector<64x128xbf16>
    %cst_88 = arith.constant dense<0.000000e+00> : vector<4x128xf32>
    %200 = tpu.matmul %198, %199, %cst_88 {dimension_numbers = #tpu.dot_dimension_numbers<[1], [0], [0], [1], [0, 0, 1, 1], [], []>} : vector<4x64xbf16>, vector<64x128xbf16>, vector<4x128xf32> -> vector<4x128xf32>
    %201 = vector.shape_cast %200 : vector<4x128xf32> to vector<4x8x16xf32>
    %202 = tpu.transpose %201, [1, 0, 2] : vector<4x8x16xf32> -> vector<8x4x16xf32>
    %203 = vector.extract_strided_slice %202 {offsets = [0, 0, 0], sizes = [4, 4, 16], strides = [1, 1, 1]} : vector<8x4x16xf32> to vector<4x4x16xf32>
    %204 = vector.extract_strided_slice %202 {offsets = [4, 0, 0], sizes = [4, 4, 16], strides = [1, 1, 1]} : vector<8x4x16xf32> to vector<4x4x16xf32>
    %c0_89 = arith.constant 0 : index
    %c0_90 = arith.constant 0 : index
    %205 = vector.load %arg13[%c0_89, %c0_90] : memref<1x64xf32, #tpu.memory_space<vmem>>, vector<1x64xf32>
    %206 = vector.shape_cast %205 : vector<1x64xf32> to vector<1x4x16xf32>
    %207 = tpu.transpose %206, [1, 0, 2] : vector<1x4x16xf32> -> vector<4x1x16xf32>
    %208 = arith.truncf %207 : vector<4x1x16xf32> to vector<4x1x16xbf16>
    %209 = arith.truncf %203 : vector<4x4x16xf32> to vector<4x4x16xbf16>
    "tpu.trace_start"() <{level = 10 : i32, message = "hqd,hkd->hqk"}> : () -> ()
    %cst_91 = arith.constant dense<0.000000e+00> : vector<4x1x4xf32>
    %210 = tpu.matmul %208, %209, %cst_91 {dimension_numbers = #tpu.dot_dimension_numbers<[2], [2], [1], [1], [0, 0, 0, 1, 1, 1], [0], [0]>} : vector<4x1x16xbf16>, vector<4x4x16xbf16>, vector<4x1x4xf32> -> vector<4x1x4xf32>
    "tpu.trace_stop"() : () -> ()
    %cst_92 = arith.constant 2.500000e-01 : f32
    %211 = vector.broadcast %cst_92 : f32 to vector<4x1x4xf32>
    %212 = arith.mulf %210, %211 : vector<4x1x4xf32>
    %cst_93 = arith.constant dense<0xFF800000> : vector<4x1xf32>
    %213 = vector.multi_reduction <maximumf>, %212, %cst_93 [2] : vector<4x1x4xf32> to vector<4x1xf32>
    %214 = vector.shape_cast %213 : vector<4x1xf32> to vector<4x1x1xf32>
    %215 = vector.broadcast %214 : vector<4x1x1xf32> to vector<4x1x4xf32>
    %216 = arith.subf %212, %215 : vector<4x1x4xf32>
    %217 = math.exp %216 : vector<4x1x4xf32>
    %cst_94 = arith.constant dense<0.000000e+00> : vector<4x1xf32>
    %218 = vector.multi_reduction <add>, %217, %cst_94 [2] : vector<4x1x4xf32> to vector<4x1xf32>
    %219 = vector.shape_cast %218 : vector<4x1xf32> to vector<4x1x1xf32>
    %220 = tpu.reciprocal %219 {approx = true} : vector<4x1x1xf32> -> vector<4x1x1xf32>
    %221 = vector.broadcast %220 : vector<4x1x1xf32> to vector<4x1x4xf32>
    %222 = arith.mulf %217, %221 : vector<4x1x4xf32>
    %223 = arith.truncf %222 : vector<4x1x4xf32> to vector<4x1x4xbf16>
    %224 = arith.truncf %204 : vector<4x4x16xf32> to vector<4x4x16xbf16>
    "tpu.trace_start"() <{level = 10 : i32, message = "hqk,hkd->hqd"}> : () -> ()
    %cst_95 = arith.constant dense<0.000000e+00> : vector<4x1x16xf32>
    %225 = tpu.matmul %223, %224, %cst_95 {dimension_numbers = #tpu.dot_dimension_numbers<[2], [1], [1], [2], [0, 0, 0, 1, 1, 2], [0], [0]>} : vector<4x1x4xbf16>, vector<4x4x16xbf16>, vector<4x1x16xf32> -> vector<4x1x16xf32>
    "tpu.trace_stop"() : () -> ()
    %226 = tpu.transpose %225, [1, 0, 2] : vector<4x1x16xf32> -> vector<1x4x16xf32>
    %227 = vector.shape_cast %226 : vector<1x4x16xf32> to vector<1x64xf32>
    %228 = arith.truncf %227 : vector<1x64xf32> to vector<1x64xbf16>
    %c0_96 = arith.constant 0 : index
    %c0_97 = arith.constant 0 : index
    %229 = vector.load %arg15[%c0_96, %c0_97] : memref<64x64xbf16, #tpu.memory_space<vmem>>, vector<64x64xbf16>
    %cst_98 = arith.constant dense<0.000000e+00> : vector<1x64xf32>
    %230 = tpu.matmul %228, %229, %cst_98 {dimension_numbers = #tpu.dot_dimension_numbers<[1], [0], [0], [1], [0, 0, 1, 1], [], []>} : vector<1x64xbf16>, vector<64x64xbf16>, vector<1x64xf32> -> vector<1x64xf32>
    %c0_99 = arith.constant 0 : index
    %c0_100 = arith.constant 0 : index
    %231 = vector.load %arg16[%c0_99, %c0_100] : memref<1x64xf32, #tpu.memory_space<vmem>>, vector<1x64xf32>
    %232 = arith.addf %230, %231 : vector<1x64xf32>
    %233 = arith.truncf %232 : vector<1x64xf32> to vector<1x64xbf16>
    %c0_101 = arith.constant 0 : index
    %c0_102 = arith.constant 0 : index
    %234 = vector.load %arg17[%c0_101, %c0_102] : memref<64x32xbf16, #tpu.memory_space<vmem>>, vector<64x32xbf16>
    %cst_103 = arith.constant dense<0.000000e+00> : vector<1x32xf32>
    %235 = tpu.matmul %233, %234, %cst_103 {dimension_numbers = #tpu.dot_dimension_numbers<[1], [0], [0], [1], [0, 0, 1, 1], [], []>} : vector<1x64xbf16>, vector<64x32xbf16>, vector<1x32xf32> -> vector<1x32xf32>
    %236 = arith.mulf %235, %235 : vector<1x32xf32>
    %cst_104 = arith.constant dense<0.000000e+00> : vector<1xf32>
    %237 = vector.multi_reduction <add>, %236, %cst_104 [1] : vector<1x32xf32> to vector<1xf32>
    %238 = vector.shape_cast %237 : vector<1xf32> to vector<1x1xf32>
    %cst_105 = arith.constant 1.000000e-24 : f32
    %239 = vector.broadcast %cst_105 : f32 to vector<1x1xf32>
    %240 = arith.maximumf %238, %239 : vector<1x1xf32>
    %241 = math.rsqrt %240 : vector<1x1xf32>
    %242 = vector.broadcast %241 : vector<1x1xf32> to vector<1x32xf32>
    %243 = arith.mulf %235, %242 : vector<1x32xf32>
    %c0_106 = arith.constant 0 : index
    %c0_107 = arith.constant 0 : index
    %c0_108 = arith.constant 0 : index
    %244 = vector.load %arg18[%c0_106, %c0_107, %c0_108] : memref<1x1x32xf32, #tpu.memory_space<vmem>>, vector<1x1x32xf32>
    %245 = vector.shape_cast %244 : vector<1x1x32xf32> to vector<1x32xf32>
    %246 = vector.shape_cast %243 : vector<1x32xf32> to vector<1x1x32xf32>
    tpu.vector_store %arg18[%c0_106, %c0_107, %c0_108], %246 {strides = array<i32>} : memref<1x1x32xf32, #tpu.memory_space<vmem>>, vector<1x1x32xf32>,
    return
  }
  func.func @transform_0(%arg0: i32) -> (i32, i32, i32) {
    %c0_i32 = arith.constant 0 : i32
    %c0_i32_0 = arith.constant 0 : i32
    %c0_i32_1 = arith.constant 0 : i32
    return %arg0, %c0_i32, %c0_i32_0 : i32, i32, i32
  }
  func.func @transform_1(%arg0: i32) -> (i32, i32) {
    %c0_i32 = arith.constant 0 : i32
    %c0_i32_0 = arith.constant 0 : i32
    %c0_i32_1 = arith.constant 0 : i32
    return %c0_i32, %c0_i32_0 : i32, i32
  }
  func.func @transform_2(%arg0: i32) -> (i32, i32) {
    %c0_i32 = arith.constant 0 : i32
    %c0_i32_0 = arith.constant 0 : i32
    %c0_i32_1 = arith.constant 0 : i32
    return %c0_i32, %c0_i32_0 : i32, i32
  }
  func.func @transform_3(%arg0: i32) -> (i32, i32) {
    %c0_i32 = arith.constant 0 : i32
    %c0_i32_0 = arith.constant 0 : i32
    %c0_i32_1 = arith.constant 0 : i32
    return %c0_i32, %c0_i32_0 : i32, i32
  }
  func.func @transform_4(%arg0: i32) -> (i32, i32) {
    %c0_i32 = arith.constant 0 : i32
    %c0_i32_0 = arith.constant 0 : i32
    %c0_i32_1 = arith.constant 0 : i32
    return %c0_i32, %c0_i32_0 : i32, i32
  }
  func.func @transform_5(%arg0: i32) -> (i32, i32, i32) {
    %c0_i32 = arith.constant 0 : i32
    %c0_i32_0 = arith.constant 0 : i32
    %c0_i32_1 = arith.constant 0 : i32
    %c0_i32_2 = arith.constant 0 : i32
    return %c0_i32, %c0_i32_0, %c0_i32_1 : i32, i32, i32
  }
  func.func @transform_6(%arg0: i32) -> (i32, i32, i32) {
    %c0_i32 = arith.constant 0 : i32
    %c0_i32_0 = arith.constant 0 : i32
    %c0_i32_1 = arith.constant 0 : i32
    %c0_i32_2 = arith.constant 0 : i32
    return %c0_i32, %c0_i32_0, %c0_i32_1 : i32, i32, i32
  }
  func.func @transform_7(%arg0: i32) -> (i32, i32, i32) {
    %c0_i32 = arith.constant 0 : i32
    %c0_i32_0 = arith.constant 0 : i32
    %c0_i32_1 = arith.constant 0 : i32
    %c0_i32_2 = arith.constant 0 : i32
    return %c0_i32, %c0_i32_0, %c0_i32_1 : i32, i32, i32
  }
  func.func @transform_8(%arg0: i32) -> (i32, i32, i32) {
    %c0_i32 = arith.constant 0 : i32
    %c0_i32_0 = arith.constant 0 : i32
    %c0_i32_1 = arith.constant 0 : i32
    %c0_i32_2 = arith.constant 0 : i32
    return %c0_i32, %c0_i32_0, %c0_i32_1 : i32, i32, i32
  }
  func.func @transform_9(%arg0: i32) -> (i32, i32, i32) {
    %c0_i32 = arith.constant 0 : i32
    %c0_i32_0 = arith.constant 0 : i32
    %c0_i32_1 = arith.constant 0 : i32
    %c0_i32_2 = arith.constant 0 : i32
    return %c0_i32, %c0_i32_0, %c0_i32_1 : i32, i32, i32
  }
  func.func @transform_10(%arg0: i32) -> (i32, i32, i32) {
    %c0_i32 = arith.constant 0 : i32
    %c0_i32_0 = arith.constant 0 : i32
    %c0_i32_1 = arith.constant 0 : i32
    %c0_i32_2 = arith.constant 0 : i32
    return %c0_i32, %c0_i32_0, %c0_i32_1 : i32, i32, i32
  }
  func.func @transform_11(%arg0: i32) -> (i32, i32) {
    %c0_i32 = arith.constant 0 : i32
    %c0_i32_0 = arith.constant 0 : i32
    %c0_i32_1 = arith.constant 0 : i32
    return %c0_i32, %c0_i32_0 : i32, i32
  }
  func.func @transform_12(%arg0: i32) -> (i32, i32) {
    %c0_i32 = arith.constant 0 : i32
    %c0_i32_0 = arith.constant 0 : i32
    %c0_i32_1 = arith.constant 0 : i32
    return %c0_i32, %c0_i32_0 : i32, i32
  }
  func.func @transform_13(%arg0: i32) -> (i32, i32) {
    %c0_i32 = arith.constant 0 : i32
    %c0_i32_0 = arith.constant 0 : i32
    %c0_i32_1 = arith.constant 0 : i32
    return %c0_i32, %c0_i32_0 : i32, i32
  }
  func.func @transform_14(%arg0: i32) -> (i32, i32) {
    %c0_i32 = arith.constant 0 : i32
    %c0_i32_0 = arith.constant 0 : i32
    %c0_i32_1 = arith.constant 0 : i32
    return %c0_i32, %c0_i32_0 : i32, i32
  }
  func.func @transform_15(%arg0: i32) -> (i32, i32) {
    %c0_i32 = arith.constant 0 : i32
    %c0_i32_0 = arith.constant 0 : i32
    %c0_i32_1 = arith.constant 0 : i32
    return %c0_i32, %c0_i32_0 : i32, i32
  }
  func.func @transform_16(%arg0: i32) -> (i32, i32) {
    %c0_i32 = arith.constant 0 : i32
    %c0_i32_0 = arith.constant 0 : i32
    %c0_i32_1 = arith.constant 0 : i32
    return %c0_i32, %c0_i32_0 : i32, i32
  }
  func.func @transform_17(%arg0: i32) -> (i32, i32, i32) {
    %c0_i32 = arith.constant 0 : i32
    %c0_i32_0 = arith.constant 0 : i32
    %c0_i32_1 = arith.constant 0 : i32
    return %arg0, %c0_i32, %c0_i32_0 : i32, i32, i32
  }
}

module attributes {stable_mosaic.version = 11 : i64} {
  func.func @_text_encoder_logits_kernel(%arg0: i32, %arg1: memref<2xi32, #tpu.memory_space<smem>>, %arg2: memref<1x1xf32, #tpu.memory_space<smem>>, %arg3: memref<1x8x48xf32, #tpu.memory_space<vmem>>, %arg4: memref<8x48xf32, #tpu.memory_space<vmem>>, %arg5: memref<2x1x48xf32, #tpu.memory_space<vmem>>, %arg6: memref<2x48x144xbf16, #tpu.memory_space<vmem>>, %arg7: memref<2x48x48xbf16, #tpu.memory_space<vmem>>, %arg8: memref<2x1x48xf32, #tpu.memory_space<vmem>>, %arg9: memref<2x48x192xbf16, #tpu.memory_space<vmem>>, %arg10: memref<2x96x48xbf16, #tpu.memory_space<vmem>>, %arg11: memref<1x48xf32, #tpu.memory_space<vmem>>, %arg12: memref<48x32xbf16, #tpu.memory_space<vmem>>, %arg13: memref<2x32xf32, #tpu.memory_space<vmem>>, %arg14: memref<1x1x2xf32, #tpu.memory_space<vmem>>) attributes {dimension_semantics = [#tpu.dimension_semantics<parallel>], iteration_bounds = array<i64: 2>, scalar_prefetch = 0 : i64, scratch_operands = 0 : i64, tpu.core_type = #tpu.core_type<tc>, window_params = [{transform_indices = @transform_0, window_bounds = array<i64: 2>}, {transform_indices = @transform_1, window_bounds = array<i64: 1, 1>}, {transform_indices = @transform_2, window_bounds = array<i64: 1, 8, 48>}, {pipeline_mode = #tpu.pipeline_mode<synchronous>, transform_indices = @transform_3, window_bounds = array<i64: 8, 48>}, {pipeline_mode = #tpu.pipeline_mode<synchronous>, transform_indices = @transform_4, window_bounds = array<i64: 2, 1, 48>}, {pipeline_mode = #tpu.pipeline_mode<synchronous>, transform_indices = @transform_5, window_bounds = array<i64: 2, 48, 144>}, {pipeline_mode = #tpu.pipeline_mode<synchronous>, transform_indices = @transform_6, window_bounds = array<i64: 2, 48, 48>}, {pipeline_mode = #tpu.pipeline_mode<synchronous>, transform_indices = @transform_7, window_bounds = array<i64: 2, 1, 48>}, {pipeline_mode = #tpu.pipeline_mode<synchronous>, transform_indices = @transform_8, window_bounds = array<i64: 2, 48, 192>}, {pipeline_mode = #tpu.pipeline_mode<synchronous>, transform_indices = @transform_9, window_bounds = array<i64: 2, 96, 48>}, {pipeline_mode = #tpu.pipeline_mode<synchronous>, transform_indices = @transform_10, window_bounds = array<i64: 1, 48>}, {pipeline_mode = #tpu.pipeline_mode<synchronous>, transform_indices = @transform_11, window_bounds = array<i64: 48, 32>}, {pipeline_mode = #tpu.pipeline_mode<synchronous>, transform_indices = @transform_12, window_bounds = array<i64: 2, 32>}, {transform_indices = @transform_13, window_bounds = array<i64: 1, 1, 2>}]} {
    %c0 = arith.constant 0 : index
    %c0_0 = arith.constant 0 : index
    %c0_1 = arith.constant 0 : index
    %0 = vector.load %arg3[%c0, %c0_0, %c0_1] : memref<1x8x48xf32, #tpu.memory_space<vmem>>, vector<1x8x48xf32>
    %1 = vector.shape_cast %0 : vector<1x8x48xf32> to vector<8x48xf32>
    %c0_2 = arith.constant 0 : index
    %c0_3 = arith.constant 0 : index
    %2 = vector.load %arg4[%c0_2, %c0_3] : memref<8x48xf32, #tpu.memory_space<vmem>>, vector<8x48xf32>
    %3 = arith.addf %1, %2 : vector<8x48xf32>
    %c0_4 = arith.constant 0 : index
    %c0_5 = arith.constant 0 : index
    %c0_6 = arith.constant 0 : index
    %4 = vector.load %arg5[%c0_4, %c0_5, %c0_6] : memref<2x1x48xf32, #tpu.memory_space<vmem>>, vector<1x1x48xf32>
    %5 = vector.shape_cast %4 : vector<1x1x48xf32> to vector<1x48xf32>
    %c0_7 = arith.constant 0 : index
    %c0_8 = arith.constant 0 : index
    %c0_9 = arith.constant 0 : index
    %6 = vector.load %arg6[%c0_7, %c0_8, %c0_9] : memref<2x48x144xbf16, #tpu.memory_space<vmem>>, vector<1x48x144xbf16>
    %7 = vector.shape_cast %6 : vector<1x48x144xbf16> to vector<48x144xbf16>
    %c0_10 = arith.constant 0 : index
    %c0_11 = arith.constant 0 : index
    %c0_12 = arith.constant 0 : index
    %8 = vector.load %arg7[%c0_10, %c0_11, %c0_12] : memref<2x48x48xbf16, #tpu.memory_space<vmem>>, vector<1x48x48xbf16>
    %9 = vector.shape_cast %8 : vector<1x48x48xbf16> to vector<48x48xbf16>
    %c0_13 = arith.constant 0 : index
    %c0_14 = arith.constant 0 : index
    %c0_15 = arith.constant 0 : index
    %10 = vector.load %arg8[%c0_13, %c0_14, %c0_15] : memref<2x1x48xf32, #tpu.memory_space<vmem>>, vector<1x1x48xf32>
    %11 = vector.shape_cast %10 : vector<1x1x48xf32> to vector<1x48xf32>
    %c0_16 = arith.constant 0 : index
    %c0_17 = arith.constant 0 : index
    %c0_18 = arith.constant 0 : index
    %12 = vector.load %arg9[%c0_16, %c0_17, %c0_18] : memref<2x48x192xbf16, #tpu.memory_space<vmem>>, vector<1x48x192xbf16>
    %13 = vector.shape_cast %12 : vector<1x48x192xbf16> to vector<48x192xbf16>
    %c0_19 = arith.constant 0 : index
    %c0_20 = arith.constant 0 : index
    %c0_21 = arith.constant 0 : index
    %14 = vector.load %arg10[%c0_19, %c0_20, %c0_21] : memref<2x96x48xbf16, #tpu.memory_space<vmem>>, vector<1x96x48xbf16>
    %15 = vector.shape_cast %14 : vector<1x96x48xbf16> to vector<96x48xbf16>
    %16 = arith.mulf %3, %3 : vector<8x48xf32>
    %cst = arith.constant dense<0.000000e+00> : vector<8xf32>
    %17 = vector.multi_reduction <add>, %16, %cst [1] : vector<8x48xf32> to vector<8xf32>
    %18 = vector.shape_cast %17 : vector<8xf32> to vector<8x1xf32>
    %cst_22 = arith.constant 4.800000e+01 : f32
    %19 = vector.broadcast %cst_22 : f32 to vector<8x1xf32>
    %20 = arith.divf %18, %19 : vector<8x1xf32>
    %cst_23 = arith.constant 9.99999974E-6 : f32
    %21 = vector.broadcast %cst_23 : f32 to vector<8x1xf32>
    %22 = arith.addf %20, %21 : vector<8x1xf32>
    %23 = math.rsqrt %22 : vector<8x1xf32>
    %24 = vector.broadcast %23 : vector<8x1xf32> to vector<8x48xf32>
    %25 = arith.mulf %3, %24 : vector<8x48xf32>
    %26 = vector.broadcast %5 : vector<1x48xf32> to vector<8x48xf32>
    %27 = arith.mulf %25, %26 : vector<8x48xf32>
    %28 = arith.truncf %27 : vector<8x48xf32> to vector<8x48xbf16>
    %cst_24 = arith.constant dense<0.000000e+00> : vector<8x144xf32>
    %29 = tpu.matmul %28, %7, %cst_24 {dimension_numbers = #tpu.dot_dimension_numbers<[1], [0], [0], [1], [0, 0, 1, 1], [], []>} : vector<8x48xbf16>, vector<48x144xbf16>, vector<8x144xf32> -> vector<8x144xf32>
    %30 = vector.shape_cast %29 : vector<8x144xf32> to vector<8x18x8xf32>
    %31 = tpu.transpose %30, [1, 0, 2] : vector<8x18x8xf32> -> vector<18x8x8xf32>
    %32 = vector.extract_strided_slice %31 {offsets = [0, 0, 0], sizes = [6, 8, 8], strides = [1, 1, 1]} : vector<18x8x8xf32> to vector<6x8x8xf32>
    %33 = vector.extract_strided_slice %31 {offsets = [6, 0, 0], sizes = [6, 8, 8], strides = [1, 1, 1]} : vector<18x8x8xf32> to vector<6x8x8xf32>
    %34 = vector.extract_strided_slice %31 {offsets = [12, 0, 0], sizes = [6, 8, 8], strides = [1, 1, 1]} : vector<18x8x8xf32> to vector<6x8x8xf32>
    %35 = arith.truncf %32 : vector<6x8x8xf32> to vector<6x8x8xbf16>
    %36 = arith.truncf %33 : vector<6x8x8xf32> to vector<6x8x8xbf16>
    "tpu.trace_start"() <{level = 10 : i32, message = "hqd,hkd->hqk"}> : () -> ()
    %cst_25 = arith.constant dense<0.000000e+00> : vector<6x8x8xf32>
    %37 = tpu.matmul %35, %36, %cst_25 {dimension_numbers = #tpu.dot_dimension_numbers<[2], [2], [1], [1], [0, 0, 0, 1, 1, 1], [0], [0]>} : vector<6x8x8xbf16>, vector<6x8x8xbf16>, vector<6x8x8xf32> -> vector<6x8x8xf32>
    "tpu.trace_stop"() : () -> ()
    %cst_26 = arith.constant 0.353553385 : f32
    %38 = vector.broadcast %cst_26 : f32 to vector<6x8x8xf32>
    %39 = arith.mulf %37, %38 : vector<6x8x8xf32>
    %40 = tpu.iota {dimensions = array<i32: 0>} : vector<8x8xi32>
    %41 = tpu.iota {dimensions = array<i32: 1>} : vector<8x8xi32>
    %42 = arith.cmpi sle, %41, %40 : vector<8x8xi32>
    %43 = vector.shape_cast %42 : vector<8x8xi1> to vector<1x8x8xi1>
    %cst_27 = arith.constant -1.000000e+30 : f32
    %44 = vector.shape_cast %43 : vector<1x8x8xi1> to vector<1x8x8xi1>
    %45 = vector.broadcast %44 : vector<1x8x8xi1> to vector<6x8x8xi1>
    %46 = vector.broadcast %cst_27 : f32 to vector<6x8x8xf32>
    %47 = arith.select %45, %39, %46 : vector<6x8x8xi1>, vector<6x8x8xf32>
    %cst_28 = arith.constant dense<0xFF800000> : vector<6x8xf32>
    %48 = vector.multi_reduction <maximumf>, %47, %cst_28 [2] : vector<6x8x8xf32> to vector<6x8xf32>
    %49 = vector.shape_cast %48 : vector<6x8xf32> to vector<6x8x1xf32>
    %50 = vector.broadcast %49 : vector<6x8x1xf32> to vector<6x8x8xf32>
    %51 = arith.subf %47, %50 : vector<6x8x8xf32>
    %52 = math.exp %51 : vector<6x8x8xf32>
    %cst_29 = arith.constant dense<0.000000e+00> : vector<6x8xf32>
    %53 = vector.multi_reduction <add>, %52, %cst_29 [2] : vector<6x8x8xf32> to vector<6x8xf32>
    %54 = vector.shape_cast %53 : vector<6x8xf32> to vector<6x8x1xf32>
    %55 = tpu.reciprocal %54 {approx = true} : vector<6x8x1xf32> -> vector<6x8x1xf32>
    %56 = vector.broadcast %55 : vector<6x8x1xf32> to vector<6x8x8xf32>
    %57 = arith.mulf %52, %56 : vector<6x8x8xf32>
    %58 = arith.truncf %57 : vector<6x8x8xf32> to vector<6x8x8xbf16>
    %59 = arith.truncf %34 : vector<6x8x8xf32> to vector<6x8x8xbf16>
    "tpu.trace_start"() <{level = 10 : i32, message = "hqk,hkd->hqd"}> : () -> ()
    %cst_30 = arith.constant dense<0.000000e+00> : vector<6x8x8xf32>
    %60 = tpu.matmul %58, %59, %cst_30 {dimension_numbers = #tpu.dot_dimension_numbers<[2], [1], [1], [2], [0, 0, 0, 1, 1, 2], [0], [0]>} : vector<6x8x8xbf16>, vector<6x8x8xbf16>, vector<6x8x8xf32> -> vector<6x8x8xf32>
    "tpu.trace_stop"() : () -> ()
    %61 = tpu.transpose %60, [1, 0, 2] : vector<6x8x8xf32> -> vector<8x6x8xf32>
    %62 = vector.shape_cast %61 : vector<8x6x8xf32> to vector<8x48xf32>
    %63 = arith.truncf %62 : vector<8x48xf32> to vector<8x48xbf16>
    %cst_31 = arith.constant dense<0.000000e+00> : vector<8x48xf32>
    %64 = tpu.matmul %63, %9, %cst_31 {dimension_numbers = #tpu.dot_dimension_numbers<[1], [0], [0], [1], [0, 0, 1, 1], [], []>} : vector<8x48xbf16>, vector<48x48xbf16>, vector<8x48xf32> -> vector<8x48xf32>
    %65 = arith.addf %3, %64 : vector<8x48xf32>
    %66 = arith.mulf %65, %65 : vector<8x48xf32>
    %cst_32 = arith.constant dense<0.000000e+00> : vector<8xf32>
    %67 = vector.multi_reduction <add>, %66, %cst_32 [1] : vector<8x48xf32> to vector<8xf32>
    %68 = vector.shape_cast %67 : vector<8xf32> to vector<8x1xf32>
    %cst_33 = arith.constant 4.800000e+01 : f32
    %69 = vector.broadcast %cst_33 : f32 to vector<8x1xf32>
    %70 = arith.divf %68, %69 : vector<8x1xf32>
    %cst_34 = arith.constant 9.99999974E-6 : f32
    %71 = vector.broadcast %cst_34 : f32 to vector<8x1xf32>
    %72 = arith.addf %70, %71 : vector<8x1xf32>
    %73 = math.rsqrt %72 : vector<8x1xf32>
    %74 = vector.broadcast %73 : vector<8x1xf32> to vector<8x48xf32>
    %75 = arith.mulf %65, %74 : vector<8x48xf32>
    %76 = vector.broadcast %11 : vector<1x48xf32> to vector<8x48xf32>
    %77 = arith.mulf %75, %76 : vector<8x48xf32>
    %78 = arith.truncf %77 : vector<8x48xf32> to vector<8x48xbf16>
    %cst_35 = arith.constant dense<0.000000e+00> : vector<8x192xf32>
    %79 = tpu.matmul %78, %13, %cst_35 {dimension_numbers = #tpu.dot_dimension_numbers<[1], [0], [0], [1], [0, 0, 1, 1], [], []>} : vector<8x48xbf16>, vector<48x192xbf16>, vector<8x192xf32> -> vector<8x192xf32>
    %80 = vector.extract_strided_slice %79 {offsets = [0, 0], sizes = [8, 96], strides = [1, 1]} : vector<8x192xf32> to vector<8x96xf32>
    %81 = vector.extract_strided_slice %79 {offsets = [0, 96], sizes = [8, 96], strides = [1, 1]} : vector<8x192xf32> to vector<8x96xf32>
    %82 = arith.negf %80 : vector<8x96xf32>
    %83 = math.exp %82 : vector<8x96xf32>
    %cst_36 = arith.constant 1.000000e+00 : f32
    %84 = vector.broadcast %cst_36 : f32 to vector<8x96xf32>
    %85 = arith.addf %84, %83 : vector<8x96xf32>
    %86 = arith.divf %84, %85 : vector<8x96xf32>
    %87 = arith.mulf %80, %86 : vector<8x96xf32>
    %88 = arith.mulf %87, %81 : vector<8x96xf32>
    %89 = arith.truncf %88 : vector<8x96xf32> to vector<8x96xbf16>
    %cst_37 = arith.constant dense<0.000000e+00> : vector<8x48xf32>
    %90 = tpu.matmul %89, %15, %cst_37 {dimension_numbers = #tpu.dot_dimension_numbers<[1], [0], [0], [1], [0, 0, 1, 1], [], []>} : vector<8x96xbf16>, vector<96x48xbf16>, vector<8x48xf32> -> vector<8x48xf32>
    %91 = arith.addf %65, %90 : vector<8x48xf32>
    %c1 = arith.constant 1 : index
    %c0_38 = arith.constant 0 : index
    %c0_39 = arith.constant 0 : index
    %92 = vector.load %arg5[%c1, %c0_38, %c0_39] : memref<2x1x48xf32, #tpu.memory_space<vmem>>, vector<1x1x48xf32>
    %93 = vector.shape_cast %92 : vector<1x1x48xf32> to vector<1x48xf32>
    %c1_40 = arith.constant 1 : index
    %c0_41 = arith.constant 0 : index
    %c0_42 = arith.constant 0 : index
    %94 = vector.load %arg6[%c1_40, %c0_41, %c0_42] : memref<2x48x144xbf16, #tpu.memory_space<vmem>>, vector<1x48x144xbf16>
    %95 = vector.shape_cast %94 : vector<1x48x144xbf16> to vector<48x144xbf16>
    %c1_43 = arith.constant 1 : index
    %c0_44 = arith.constant 0 : index
    %c0_45 = arith.constant 0 : index
    %96 = vector.load %arg7[%c1_43, %c0_44, %c0_45] : memref<2x48x48xbf16, #tpu.memory_space<vmem>>, vector<1x48x48xbf16>
    %97 = vector.shape_cast %96 : vector<1x48x48xbf16> to vector<48x48xbf16>
    %c1_46 = arith.constant 1 : index
    %c0_47 = arith.constant 0 : index
    %c0_48 = arith.constant 0 : index
    %98 = vector.load %arg8[%c1_46, %c0_47, %c0_48] : memref<2x1x48xf32, #tpu.memory_space<vmem>>, vector<1x1x48xf32>
    %99 = vector.shape_cast %98 : vector<1x1x48xf32> to vector<1x48xf32>
    %c1_49 = arith.constant 1 : index
    %c0_50 = arith.constant 0 : index
    %c0_51 = arith.constant 0 : index
    %100 = vector.load %arg9[%c1_49, %c0_50, %c0_51] : memref<2x48x192xbf16, #tpu.memory_space<vmem>>, vector<1x48x192xbf16>
    %101 = vector.shape_cast %100 : vector<1x48x192xbf16> to vector<48x192xbf16>
    %c1_52 = arith.constant 1 : index
    %c0_53 = arith.constant 0 : index
    %c0_54 = arith.constant 0 : index
    %102 = vector.load %arg10[%c1_52, %c0_53, %c0_54] : memref<2x96x48xbf16, #tpu.memory_space<vmem>>, vector<1x96x48xbf16>
    %103 = vector.shape_cast %102 : vector<1x96x48xbf16> to vector<96x48xbf16>
    %104 = arith.mulf %91, %91 : vector<8x48xf32>
    %cst_55 = arith.constant dense<0.000000e+00> : vector<8xf32>
    %105 = vector.multi_reduction <add>, %104, %cst_55 [1] : vector<8x48xf32> to vector<8xf32>
    %106 = vector.shape_cast %105 : vector<8xf32> to vector<8x1xf32>
    %cst_56 = arith.constant 4.800000e+01 : f32
    %107 = vector.broadcast %cst_56 : f32 to vector<8x1xf32>
    %108 = arith.divf %106, %107 : vector<8x1xf32>
    %cst_57 = arith.constant 9.99999974E-6 : f32
    %109 = vector.broadcast %cst_57 : f32 to vector<8x1xf32>
    %110 = arith.addf %108, %109 : vector<8x1xf32>
    %111 = math.rsqrt %110 : vector<8x1xf32>
    %112 = vector.broadcast %111 : vector<8x1xf32> to vector<8x48xf32>
    %113 = arith.mulf %91, %112 : vector<8x48xf32>
    %114 = vector.broadcast %93 : vector<1x48xf32> to vector<8x48xf32>
    %115 = arith.mulf %113, %114 : vector<8x48xf32>
    %116 = arith.truncf %115 : vector<8x48xf32> to vector<8x48xbf16>
    %cst_58 = arith.constant dense<0.000000e+00> : vector<8x144xf32>
    %117 = tpu.matmul %116, %95, %cst_58 {dimension_numbers = #tpu.dot_dimension_numbers<[1], [0], [0], [1], [0, 0, 1, 1], [], []>} : vector<8x48xbf16>, vector<48x144xbf16>, vector<8x144xf32> -> vector<8x144xf32>
    %118 = vector.shape_cast %117 : vector<8x144xf32> to vector<8x18x8xf32>
    %119 = tpu.transpose %118, [1, 0, 2] : vector<8x18x8xf32> -> vector<18x8x8xf32>
    %120 = vector.extract_strided_slice %119 {offsets = [0, 0, 0], sizes = [6, 8, 8], strides = [1, 1, 1]} : vector<18x8x8xf32> to vector<6x8x8xf32>
    %121 = vector.extract_strided_slice %119 {offsets = [6, 0, 0], sizes = [6, 8, 8], strides = [1, 1, 1]} : vector<18x8x8xf32> to vector<6x8x8xf32>
    %122 = vector.extract_strided_slice %119 {offsets = [12, 0, 0], sizes = [6, 8, 8], strides = [1, 1, 1]} : vector<18x8x8xf32> to vector<6x8x8xf32>
    %123 = arith.truncf %120 : vector<6x8x8xf32> to vector<6x8x8xbf16>
    %124 = arith.truncf %121 : vector<6x8x8xf32> to vector<6x8x8xbf16>
    "tpu.trace_start"() <{level = 10 : i32, message = "hqd,hkd->hqk"}> : () -> ()
    %cst_59 = arith.constant dense<0.000000e+00> : vector<6x8x8xf32>
    %125 = tpu.matmul %123, %124, %cst_59 {dimension_numbers = #tpu.dot_dimension_numbers<[2], [2], [1], [1], [0, 0, 0, 1, 1, 1], [0], [0]>} : vector<6x8x8xbf16>, vector<6x8x8xbf16>, vector<6x8x8xf32> -> vector<6x8x8xf32>
    "tpu.trace_stop"() : () -> ()
    %cst_60 = arith.constant 0.353553385 : f32
    %126 = vector.broadcast %cst_60 : f32 to vector<6x8x8xf32>
    %127 = arith.mulf %125, %126 : vector<6x8x8xf32>
    %128 = tpu.iota {dimensions = array<i32: 0>} : vector<8x8xi32>
    %129 = tpu.iota {dimensions = array<i32: 1>} : vector<8x8xi32>
    %130 = arith.cmpi sle, %129, %128 : vector<8x8xi32>
    %131 = vector.shape_cast %130 : vector<8x8xi1> to vector<1x8x8xi1>
    %cst_61 = arith.constant -1.000000e+30 : f32
    %132 = vector.shape_cast %131 : vector<1x8x8xi1> to vector<1x8x8xi1>
    %133 = vector.broadcast %132 : vector<1x8x8xi1> to vector<6x8x8xi1>
    %134 = vector.broadcast %cst_61 : f32 to vector<6x8x8xf32>
    %135 = arith.select %133, %127, %134 : vector<6x8x8xi1>, vector<6x8x8xf32>
    %cst_62 = arith.constant dense<0xFF800000> : vector<6x8xf32>
    %136 = vector.multi_reduction <maximumf>, %135, %cst_62 [2] : vector<6x8x8xf32> to vector<6x8xf32>
    %137 = vector.shape_cast %136 : vector<6x8xf32> to vector<6x8x1xf32>
    %138 = vector.broadcast %137 : vector<6x8x1xf32> to vector<6x8x8xf32>
    %139 = arith.subf %135, %138 : vector<6x8x8xf32>
    %140 = math.exp %139 : vector<6x8x8xf32>
    %cst_63 = arith.constant dense<0.000000e+00> : vector<6x8xf32>
    %141 = vector.multi_reduction <add>, %140, %cst_63 [2] : vector<6x8x8xf32> to vector<6x8xf32>
    %142 = vector.shape_cast %141 : vector<6x8xf32> to vector<6x8x1xf32>
    %143 = tpu.reciprocal %142 {approx = true} : vector<6x8x1xf32> -> vector<6x8x1xf32>
    %144 = vector.broadcast %143 : vector<6x8x1xf32> to vector<6x8x8xf32>
    %145 = arith.mulf %140, %144 : vector<6x8x8xf32>
    %146 = arith.truncf %145 : vector<6x8x8xf32> to vector<6x8x8xbf16>
    %147 = arith.truncf %122 : vector<6x8x8xf32> to vector<6x8x8xbf16>
    "tpu.trace_start"() <{level = 10 : i32, message = "hqk,hkd->hqd"}> : () -> ()
    %cst_64 = arith.constant dense<0.000000e+00> : vector<6x8x8xf32>
    %148 = tpu.matmul %146, %147, %cst_64 {dimension_numbers = #tpu.dot_dimension_numbers<[2], [1], [1], [2], [0, 0, 0, 1, 1, 2], [0], [0]>} : vector<6x8x8xbf16>, vector<6x8x8xbf16>, vector<6x8x8xf32> -> vector<6x8x8xf32>
    "tpu.trace_stop"() : () -> ()
    %149 = tpu.transpose %148, [1, 0, 2] : vector<6x8x8xf32> -> vector<8x6x8xf32>
    %150 = vector.shape_cast %149 : vector<8x6x8xf32> to vector<8x48xf32>
    %151 = arith.truncf %150 : vector<8x48xf32> to vector<8x48xbf16>
    %cst_65 = arith.constant dense<0.000000e+00> : vector<8x48xf32>
    %152 = tpu.matmul %151, %97, %cst_65 {dimension_numbers = #tpu.dot_dimension_numbers<[1], [0], [0], [1], [0, 0, 1, 1], [], []>} : vector<8x48xbf16>, vector<48x48xbf16>, vector<8x48xf32> -> vector<8x48xf32>
    %153 = arith.addf %91, %152 : vector<8x48xf32>
    %154 = arith.mulf %153, %153 : vector<8x48xf32>
    %cst_66 = arith.constant dense<0.000000e+00> : vector<8xf32>
    %155 = vector.multi_reduction <add>, %154, %cst_66 [1] : vector<8x48xf32> to vector<8xf32>
    %156 = vector.shape_cast %155 : vector<8xf32> to vector<8x1xf32>
    %cst_67 = arith.constant 4.800000e+01 : f32
    %157 = vector.broadcast %cst_67 : f32 to vector<8x1xf32>
    %158 = arith.divf %156, %157 : vector<8x1xf32>
    %cst_68 = arith.constant 9.99999974E-6 : f32
    %159 = vector.broadcast %cst_68 : f32 to vector<8x1xf32>
    %160 = arith.addf %158, %159 : vector<8x1xf32>
    %161 = math.rsqrt %160 : vector<8x1xf32>
    %162 = vector.broadcast %161 : vector<8x1xf32> to vector<8x48xf32>
    %163 = arith.mulf %153, %162 : vector<8x48xf32>
    %164 = vector.broadcast %99 : vector<1x48xf32> to vector<8x48xf32>
    %165 = arith.mulf %163, %164 : vector<8x48xf32>
    %166 = arith.truncf %165 : vector<8x48xf32> to vector<8x48xbf16>
    %cst_69 = arith.constant dense<0.000000e+00> : vector<8x192xf32>
    %167 = tpu.matmul %166, %101, %cst_69 {dimension_numbers = #tpu.dot_dimension_numbers<[1], [0], [0], [1], [0, 0, 1, 1], [], []>} : vector<8x48xbf16>, vector<48x192xbf16>, vector<8x192xf32> -> vector<8x192xf32>
    %168 = vector.extract_strided_slice %167 {offsets = [0, 0], sizes = [8, 96], strides = [1, 1]} : vector<8x192xf32> to vector<8x96xf32>
    %169 = vector.extract_strided_slice %167 {offsets = [0, 96], sizes = [8, 96], strides = [1, 1]} : vector<8x192xf32> to vector<8x96xf32>
    %170 = arith.negf %168 : vector<8x96xf32>
    %171 = math.exp %170 : vector<8x96xf32>
    %cst_70 = arith.constant 1.000000e+00 : f32
    %172 = vector.broadcast %cst_70 : f32 to vector<8x96xf32>
    %173 = arith.addf %172, %171 : vector<8x96xf32>
    %174 = arith.divf %172, %173 : vector<8x96xf32>
    %175 = arith.mulf %168, %174 : vector<8x96xf32>
    %176 = arith.mulf %175, %169 : vector<8x96xf32>
    %177 = arith.truncf %176 : vector<8x96xf32> to vector<8x96xbf16>
    %cst_71 = arith.constant dense<0.000000e+00> : vector<8x48xf32>
    %178 = tpu.matmul %177, %103, %cst_71 {dimension_numbers = #tpu.dot_dimension_numbers<[1], [0], [0], [1], [0, 0, 1, 1], [], []>} : vector<8x96xbf16>, vector<96x48xbf16>, vector<8x48xf32> -> vector<8x48xf32>
    %179 = arith.addf %153, %178 : vector<8x48xf32>
    %c0_72 = arith.constant 0 : index
    %c0_73 = arith.constant 0 : index
    %180 = vector.load %arg11[%c0_72, %c0_73] : memref<1x48xf32, #tpu.memory_space<vmem>>, vector<1x48xf32>
    %181 = arith.mulf %179, %179 : vector<8x48xf32>
    %cst_74 = arith.constant dense<0.000000e+00> : vector<8xf32>
    %182 = vector.multi_reduction <add>, %181, %cst_74 [1] : vector<8x48xf32> to vector<8xf32>
    %183 = vector.shape_cast %182 : vector<8xf32> to vector<8x1xf32>
    %cst_75 = arith.constant 4.800000e+01 : f32
    %184 = vector.broadcast %cst_75 : f32 to vector<8x1xf32>
    %185 = arith.divf %183, %184 : vector<8x1xf32>
    %cst_76 = arith.constant 9.99999974E-6 : f32
    %186 = vector.broadcast %cst_76 : f32 to vector<8x1xf32>
    %187 = arith.addf %185, %186 : vector<8x1xf32>
    %188 = math.rsqrt %187 : vector<8x1xf32>
    %189 = vector.broadcast %188 : vector<8x1xf32> to vector<8x48xf32>
    %190 = arith.mulf %179, %189 : vector<8x48xf32>
    %191 = vector.broadcast %180 : vector<1x48xf32> to vector<8x48xf32>
    %192 = arith.mulf %190, %191 : vector<8x48xf32>
    %193 = arith.index_cast %arg0 : i32 to index
    %194 = memref.load %arg1[%193] : memref<2xi32, #tpu.memory_space<smem>>
    %195 = tpu.iota {dimensions = array<i32: 0>} : vector<8x1xi32>
    %196 = vector.broadcast %194 : i32 to vector<8x1xi32>
    %197 = arith.cmpi eq, %195, %196 : vector<8x1xi32>
    %198 = arith.extui %197 : vector<8x1xi1> to vector<8x1xi32>
    %199 = arith.sitofp %198 : vector<8x1xi32> to vector<8x1xf32>
    %200 = vector.broadcast %199 : vector<8x1xf32> to vector<8x48xf32>
    %201 = arith.mulf %192, %200 : vector<8x48xf32>
    %cst_77 = arith.constant dense<0.000000e+00> : vector<48xf32>
    %202 = vector.multi_reduction <add>, %201, %cst_77 [0] : vector<8x48xf32> to vector<48xf32>
    %203 = vector.shape_cast %202 : vector<48xf32> to vector<1x48xf32>
    %204 = arith.truncf %203 : vector<1x48xf32> to vector<1x48xbf16>
    %c0_78 = arith.constant 0 : index
    %c0_79 = arith.constant 0 : index
    %205 = vector.load %arg12[%c0_78, %c0_79] : memref<48x32xbf16, #tpu.memory_space<vmem>>, vector<48x32xbf16>
    %cst_80 = arith.constant dense<0.000000e+00> : vector<1x32xf32>
    %206 = tpu.matmul %204, %205, %cst_80 {dimension_numbers = #tpu.dot_dimension_numbers<[1], [0], [0], [1], [0, 0, 1, 1], [], []>} : vector<1x48xbf16>, vector<48x32xbf16>, vector<1x32xf32> -> vector<1x32xf32>
    %207 = arith.mulf %206, %206 : vector<1x32xf32>
    %cst_81 = arith.constant dense<0.000000e+00> : vector<1xf32>
    %208 = vector.multi_reduction <add>, %207, %cst_81 [1] : vector<1x32xf32> to vector<1xf32>
    %209 = vector.shape_cast %208 : vector<1xf32> to vector<1x1xf32>
    %cst_82 = arith.constant 1.000000e-24 : f32
    %210 = vector.broadcast %cst_82 : f32 to vector<1x1xf32>
    %211 = arith.maximumf %209, %210 : vector<1x1xf32>
    %212 = math.rsqrt %211 : vector<1x1xf32>
    %213 = vector.broadcast %212 : vector<1x1xf32> to vector<1x32xf32>
    %214 = arith.mulf %206, %213 : vector<1x32xf32>
    %c0_83 = arith.constant 0 : index
    %c0_84 = arith.constant 0 : index
    %215 = vector.load %arg13[%c0_83, %c0_84] : memref<2x32xf32, #tpu.memory_space<vmem>>, vector<2x32xf32>
    %cst_85 = arith.constant dense<0.000000e+00> : vector<1x2xf32>
    %216 = tpu.matmul %214, %215, %cst_85 {dimension_numbers = #tpu.dot_dimension_numbers<[1], [1], [0], [0], [0, 0, 1, 0], [], []>} : vector<1x32xf32>, vector<2x32xf32>, vector<1x2xf32> -> vector<1x2xf32>
    %c0_86 = arith.constant 0 : index
    %c0_87 = arith.constant 0 : index
    %217 = memref.load %arg2[%c0_86, %c0_87] : memref<1x1xf32, #tpu.memory_space<smem>>
    %218 = vector.broadcast %217 : f32 to vector<1x2xf32>
    %219 = arith.mulf %216, %218 : vector<1x2xf32>
    %c0_88 = arith.constant 0 : index
    %c0_89 = arith.constant 0 : index
    %c0_90 = arith.constant 0 : index
    %220 = vector.load %arg14[%c0_88, %c0_89, %c0_90] : memref<1x1x2xf32, #tpu.memory_space<vmem>>, vector<1x1x2xf32>
    %221 = vector.shape_cast %220 : vector<1x1x2xf32> to vector<1x2xf32>
    %222 = vector.shape_cast %219 : vector<1x2xf32> to vector<1x1x2xf32>
    tpu.vector_store %arg14[%c0_88, %c0_89, %c0_90], %222 {strides = array<i32>} : memref<1x1x2xf32, #tpu.memory_space<vmem>>, vector<1x1x2xf32>,
    return
  }
  func.func @transform_0(%arg0: i32) -> i32 {
    %c0_i32 = arith.constant 0 : i32
    %c0_i32_0 = arith.constant 0 : i32
    return %c0_i32 : i32
  }
  func.func @transform_1(%arg0: i32) -> (i32, i32) {
    %c0_i32 = arith.constant 0 : i32
    %c0_i32_0 = arith.constant 0 : i32
    %c0_i32_1 = arith.constant 0 : i32
    return %c0_i32, %c0_i32_0 : i32, i32
  }
  func.func @transform_2(%arg0: i32) -> (i32, i32, i32) {
    %c0_i32 = arith.constant 0 : i32
    %c0_i32_0 = arith.constant 0 : i32
    %c0_i32_1 = arith.constant 0 : i32
    return %arg0, %c0_i32, %c0_i32_0 : i32, i32, i32
  }
  func.func @transform_3(%arg0: i32) -> (i32, i32) {
    %c0_i32 = arith.constant 0 : i32
    %c0_i32_0 = arith.constant 0 : i32
    %c0_i32_1 = arith.constant 0 : i32
    return %c0_i32, %c0_i32_0 : i32, i32
  }
  func.func @transform_4(%arg0: i32) -> (i32, i32, i32) {
    %c0_i32 = arith.constant 0 : i32
    %c0_i32_0 = arith.constant 0 : i32
    %c0_i32_1 = arith.constant 0 : i32
    %c0_i32_2 = arith.constant 0 : i32
    return %c0_i32, %c0_i32_0, %c0_i32_1 : i32, i32, i32
  }
  func.func @transform_5(%arg0: i32) -> (i32, i32, i32) {
    %c0_i32 = arith.constant 0 : i32
    %c0_i32_0 = arith.constant 0 : i32
    %c0_i32_1 = arith.constant 0 : i32
    %c0_i32_2 = arith.constant 0 : i32
    return %c0_i32, %c0_i32_0, %c0_i32_1 : i32, i32, i32
  }
  func.func @transform_6(%arg0: i32) -> (i32, i32, i32) {
    %c0_i32 = arith.constant 0 : i32
    %c0_i32_0 = arith.constant 0 : i32
    %c0_i32_1 = arith.constant 0 : i32
    %c0_i32_2 = arith.constant 0 : i32
    return %c0_i32, %c0_i32_0, %c0_i32_1 : i32, i32, i32
  }
  func.func @transform_7(%arg0: i32) -> (i32, i32, i32) {
    %c0_i32 = arith.constant 0 : i32
    %c0_i32_0 = arith.constant 0 : i32
    %c0_i32_1 = arith.constant 0 : i32
    %c0_i32_2 = arith.constant 0 : i32
    return %c0_i32, %c0_i32_0, %c0_i32_1 : i32, i32, i32
  }
  func.func @transform_8(%arg0: i32) -> (i32, i32, i32) {
    %c0_i32 = arith.constant 0 : i32
    %c0_i32_0 = arith.constant 0 : i32
    %c0_i32_1 = arith.constant 0 : i32
    %c0_i32_2 = arith.constant 0 : i32
    return %c0_i32, %c0_i32_0, %c0_i32_1 : i32, i32, i32
  }
  func.func @transform_9(%arg0: i32) -> (i32, i32, i32) {
    %c0_i32 = arith.constant 0 : i32
    %c0_i32_0 = arith.constant 0 : i32
    %c0_i32_1 = arith.constant 0 : i32
    %c0_i32_2 = arith.constant 0 : i32
    return %c0_i32, %c0_i32_0, %c0_i32_1 : i32, i32, i32
  }
  func.func @transform_10(%arg0: i32) -> (i32, i32) {
    %c0_i32 = arith.constant 0 : i32
    %c0_i32_0 = arith.constant 0 : i32
    %c0_i32_1 = arith.constant 0 : i32
    return %c0_i32, %c0_i32_0 : i32, i32
  }
  func.func @transform_11(%arg0: i32) -> (i32, i32) {
    %c0_i32 = arith.constant 0 : i32
    %c0_i32_0 = arith.constant 0 : i32
    %c0_i32_1 = arith.constant 0 : i32
    return %c0_i32, %c0_i32_0 : i32, i32
  }
  func.func @transform_12(%arg0: i32) -> (i32, i32) {
    %c0_i32 = arith.constant 0 : i32
    %c0_i32_0 = arith.constant 0 : i32
    %c0_i32_1 = arith.constant 0 : i32
    return %c0_i32, %c0_i32_0 : i32, i32
  }
  func.func @transform_13(%arg0: i32) -> (i32, i32, i32) {
    %c0_i32 = arith.constant 0 : i32
    %c0_i32_0 = arith.constant 0 : i32
    %c0_i32_1 = arith.constant 0 : i32
    return %arg0, %c0_i32, %c0_i32_0 : i32, i32, i32
  }
}

</mosaic_0001>

<llo_original>
// kernel: aimv2_lit_forward.3
$region0: #{aimv2_lit_forward.3}
  #allocation0 [shape = 'u32[]', space=smem, size = 0x4, offset = 0x4, fixed_abs, tag = 'smem constant byte address 0x4 - core index']
  #allocation1 [shape = 'u32[144,128]{1,0:T(1,128)}', space=vmem, size = 0x12000, scoped, tag = 'internal scratch']
  #allocation2 [shape = 'f32[1,1]{1,0:T(1,128)S(6)}', space=smem, size = 0x200, scoped, tag = 'scoped memory for aimv2_lit_forward.3']
  %s0 = inlined_call_operand.vmem [shape: s32[2], index: 0, kind: input, shape index: {}]
  %s1 = inlined_call_operand.<no memory space> [shape: f32[1,1], index: 1, kind: input, shape index: {}]
  %s2 = inlined_call_operand.vmem [shape: f32[2,8,48], index: 2, kind: input, shape index: {}]
  %s3 = inlined_call_operand.vmem [shape: f32[8,48], index: 3, kind: input, shape index: {}]
  %s4 = inlined_call_operand.vmem [shape: f32[2,1,48], index: 4, kind: input, shape index: {}]
  %s5 = inlined_call_operand.vmem [shape: bf16[2,48,144], index: 5, kind: input, shape index: {}]
  %s6 = inlined_call_operand.vmem [shape: bf16[2,48,48], index: 6, kind: input, shape index: {}]
  %s7 = inlined_call_operand.vmem [shape: f32[2,1,48], index: 7, kind: input, shape index: {}]
  %s8 = inlined_call_operand.vmem [shape: bf16[2,48,192], index: 8, kind: input, shape index: {}]
  %s9 = inlined_call_operand.vmem [shape: bf16[2,96,48], index: 9, kind: input, shape index: {}]
  %s10 = inlined_call_operand.vmem [shape: f32[1,48], index: 10, kind: input, shape index: {}]
  %s11 = inlined_call_operand.vmem [shape: bf16[48,32], index: 11, kind: input, shape index: {}]
  %s12 = inlined_call_operand.vmem [shape: f32[2,32], index: 12, kind: input, shape index: {}]
  %s13 = inlined_call_operand.vmem [shape: f32[2,1,2], index: 13, kind: output, shape index: {}]
  %s14 = sld [smem:[#allocation0]]
  $region89: #{aimv2_lit_forward.3} parent=0
    _
  %s16 = ssub.s32 1, %s14
  %s17 = scalar_select 0, %s16, %s14
  %18 = sst [smem:[#allocation2]] %s1
  $region1: #{aimv2_lit_forward.3} parent=0
    #allocation3 [shape = 'u8[512]{0}', space=smem, size = 0x200, scoped, tag = 'input window, operand 0, single buffered']
    #allocation4 [shape = 's32[2]{0}', space=sflag, size = 0x8, scoped, tag = 'scoped memory for aimv2_lit_forward.3']
    %19 = vsyncpa [#allocation4], 0
    loop: start=0, step=1, limit=4
    $region2: #{aimv2_lit_forward.3} parent=1 // loop_pre_header
      _
    $region3: #{aimv2_lit_forward.3} parent=1 // loop_header
      %s21 = sphi 0, %s25
      %p22 = scmp.ge.s32.totalorder %s21, 4
      %s29 = sphi 0, %s29
      %s31 = sphi 0, %s29
      %s32 = sphi 0, %s31
      %s46 = sphi 0, %s32
      %s50 = sphi 0, %s50
      %s52 = sphi 0, %s50
      %s53 = sphi 0, %s52
      %s67 = sphi 0, %s53
      %s73 = sphi 0, %s75
      %s76 = sphi 0, %s73
      %s77 = sphi 0, %s76
      %s93 = sphi 0, %s77
      %s97 = sphi 0, %s97
      %s99 = sphi 0, %s97
      %s100 = sphi 0, %s99
      %s114 = sphi 0, %s100
      %s118 = sphi 0, %s118
      %s120 = sphi 0, %s118
      %s121 = sphi 0, %s120
      %s135 = sphi 0, %s121
      %s139 = sphi 0, %s139
      %s141 = sphi 0, %s139
      %s142 = sphi 0, %s141
      %s156 = sphi 0, %s142
      %s160 = sphi 0, %s160
      %s162 = sphi 0, %s160
      %s163 = sphi 0, %s162
      %s177 = sphi 0, %s163
      %s181 = sphi 0, %s181
      %s183 = sphi 0, %s181
      %s184 = sphi 0, %s183
      %s198 = sphi 0, %s184
      %s202 = sphi 0, %s202
      %s204 = sphi 0, %s202
      %s205 = sphi 0, %s204
      %s219 = sphi 0, %s205
      %s223 = sphi 0, %s223
      %s225 = sphi 0, %s223
      %s226 = sphi 0, %s225
      %s240 = sphi 0, %s226
      %s244 = sphi 0, %s244
      %s246 = sphi 0, %s244
      %s247 = sphi 0, %s246
      %s261 = sphi 0, %s247
      %s265 = sphi 0, %s265
      %s267 = sphi 0, %s265
      %s268 = sphi 0, %s267
      %s282 = sphi 0, %s268
      %s286 = sphi 0, %s286
      %s288 = sphi 0, %s286
      %s289 = sphi 0, %s288
      %s303 = sphi 0, %s289
      %s309 = sphi 0, %s311
      %s312 = sphi 0, %s309
      %s313 = sphi 0, %s312
      %s329 = sphi 0, %s313
    $region4: #{aimv2_lit_forward.3} parent=1 // loop_header_branch
      %24 = sbr.rel (%p22) target = $region8
    $region5: #{aimv2_lit_forward.3} parent=1 // loop_body
      %s26 = ssub.s32 %s21, 1
      %s27 = ssub.s32 %s21, 2
      %s28 = sadd.s32 %s21, 1
      %s30 = sadd.s32 %s29, 1
      %p33 = scmp.eq.s32.totalorder %s21, 1
      %p34 = scmp.ne.s32.totalorder %s29, %s31
      %p35 = scmp.eq.s32.totalorder %s21, 0
      %p36 = por %p34, %p35
      %p37 = scmp.ne.s32.totalorder %s29, %s31
      %p38 = scmp.eq.s32.totalorder %s26, 1
      %p39 = por %p37, %p38
      %p40 = scmp.ne.s32.totalorder %s31, %s32
      %p41 = scmp.eq.s32.totalorder %s26, 0
      %p42 = por %p40, %p41
      %p43 = scmp.ne.s32.totalorder %s31, %s32
      %p44 = scmp.eq.s32.totalorder %s27, 1
      %p45 = por %p43, %p44
      %p47 = scmp.ne.s32.totalorder %s32, %s46
      %p48 = scmp.eq.s32.totalorder %s27, 0
      %p49 = por %p47, %p48
      %s51 = sadd.s32 %s50, 1
      %p54 = scmp.eq.s32.totalorder %s21, 1
      %p55 = scmp.ne.s32.totalorder %s50, %s52
      %p56 = scmp.eq.s32.totalorder %s21, 0
      %p57 = por %p55, %p56
      %p58 = scmp.ne.s32.totalorder %s50, %s52
      %p59 = scmp.eq.s32.totalorder %s26, 1
      %p60 = por %p58, %p59
      %p61 = scmp.ne.s32.totalorder %s52, %s53
      %p62 = scmp.eq.s32.totalorder %s26, 0
      %p63 = por %p61, %p62
      %p64 = scmp.ne.s32.totalorder %s52, %s53
      %p65 = scmp.eq.s32.totalorder %s27, 1
      %p66 = por %p64, %p65
      %p68 = scmp.ne.s32.totalorder %s53, %s67
      %p69 = scmp.eq.s32.totalorder %s27, 0
      %p70 = por %p68, %p69
      %s71 = ssub.s32 %s21, %s28
      %p72 = scmp.eq.s32.totalorder %s71, 0
      %s74 = sadd.s32 %s73, 1
      %s75 = scalar_select %p72, %s73, %s74
      %p78 = pneg %p72
      %p79 = scmp.eq.s32.totalorder %s21, 1
      %p80 = por %p78, %p79
      %p81 = scmp.ne.s32.totalorder %s73, %s76
      %p82 = scmp.eq.s32.totalorder %s21, 0
      %p83 = por %p81, %p82
      %p84 = scmp.ne.s32.totalorder %s73, %s76
      %p85 = scmp.eq.s32.totalorder %s26, 1
      %p86 = por %p84, %p85
      %p87 = scmp.ne.s32.totalorder %s76, %s77
      %p88 = scmp.eq.s32.totalorder %s26, 0
      %p89 = por %p87, %p88
      %p90 = scmp.ne.s32.totalorder %s76, %s77
      %p91 = scmp.eq.s32.totalorder %s27, 1
      %p92 = por %p90, %p91
      %p94 = scmp.ne.s32.totalorder %s77, %s93
      %p95 = scmp.eq.s32.totalorder %s27, 0
      %p96 = por %p94, %p95
      %s98 = sadd.s32 %s97, 1
      %p101 = scmp.eq.s32.totalorder %s21, 1
      %p102 = scmp.ne.s32.totalorder %s97, %s99
      %p103 = scmp.eq.s32.totalorder %s21, 0
      %p104 = por %p102, %p103
      %p105 = scmp.ne.s32.totalorder %s97, %s99
      %p106 = scmp.eq.s32.totalorder %s26, 1
      %p107 = por %p105, %p106
      %p108 = scmp.ne.s32.totalorder %s99, %s100
      %p109 = scmp.eq.s32.totalorder %s26, 0
      %p110 = por %p108, %p109
      %p111 = scmp.ne.s32.totalorder %s99, %s100
      %p112 = scmp.eq.s32.totalorder %s27, 1
      %p113 = por %p111, %p112
      %p115 = scmp.ne.s32.totalorder %s100, %s114
      %p116 = scmp.eq.s32.totalorder %s27, 0
      %p117 = por %p115, %p116
      %s119 = sadd.s32 %s118, 1
      %p122 = scmp.eq.s32.totalorder %s21, 1
      %p123 = scmp.ne.s32.totalorder %s118, %s120
      %p124 = scmp.eq.s32.totalorder %s21, 0
      %p125 = por %p123, %p124
      %p126 = scmp.ne.s32.totalorder %s118, %s120
      %p127 = scmp.eq.s32.totalorder %s26, 1
      %p128 = por %p126, %p127
      %p129 = scmp.ne.s32.totalorder %s120, %s121
      %p130 = scmp.eq.s32.totalorder %s26, 0
      %p131 = por %p129, %p130
      %p132 = scmp.ne.s32.totalorder %s120, %s121
      %p133 = scmp.eq.s32.totalorder %s27, 1
      %p134 = por %p132, %p133
      %p136 = scmp.ne.s32.totalorder %s121, %s135
      %p137 = scmp.eq.s32.totalorder %s27, 0
      %p138 = por %p136, %p137
      %s140 = sadd.s32 %s139, 1
      %p143 = scmp.eq.s32.totalorder %s21, 1
      %p144 = scmp.ne.s32.totalorder %s139, %s141
      %p145 = scmp.eq.s32.totalorder %s21, 0
      %p146 = por %p144, %p145
      %p147 = scmp.ne.s32.totalorder %s139, %s141
      %p148 = scmp.eq.s32.totalorder %s26, 1
      %p149 = por %p147, %p148
      %p150 = scmp.ne.s32.totalorder %s141, %s142
      %p151 = scmp.eq.s32.totalorder %s26, 0
      %p152 = por %p150, %p151
      %p153 = scmp.ne.s32.totalorder %s141, %s142
      %p154 = scmp.eq.s32.totalorder %s27, 1
      %p155 = por %p153, %p154
      %p157 = scmp.ne.s32.totalorder %s142, %s156
      %p158 = scmp.eq.s32.totalorder %s27, 0
      %p159 = por %p157, %p158
      %s161 = sadd.s32 %s160, 1
      %p164 = scmp.eq.s32.totalorder %s21, 1
      %p165 = scmp.ne.s32.totalorder %s160, %s162
      %p166 = scmp.eq.s32.totalorder %s21, 0
      %p167 = por %p165, %p166
      %p168 = scmp.ne.s32.totalorder %s160, %s162
      %p169 = scmp.eq.s32.totalorder %s26, 1
      %p170 = por %p168, %p169
      %p171 = scmp.ne.s32.totalorder %s162, %s163
      %p172 = scmp.eq.s32.totalorder %s26, 0
      %p173 = por %p171, %p172
      %p174 = scmp.ne.s32.totalorder %s162, %s163
      %p175 = scmp.eq.s32.totalorder %s27, 1
      %p176 = por %p174, %p175
      %p178 = scmp.ne.s32.totalorder %s163, %s177
      %p179 = scmp.eq.s32.totalorder %s27, 0
      %p180 = por %p178, %p179
      %s182 = sadd.s32 %s181, 1
      %p185 = scmp.eq.s32.totalorder %s21, 1
      %p186 = scmp.ne.s32.totalorder %s181, %s183
      %p187 = scmp.eq.s32.totalorder %s21, 0
      %p188 = por %p186, %p187
      %p189 = scmp.ne.s32.totalorder %s181, %s183
      %p190 = scmp.eq.s32.totalorder %s26, 1
      %p191 = por %p189, %p190
      %p192 = scmp.ne.s32.totalorder %s183, %s184
      %p193 = scmp.eq.s32.totalorder %s26, 0
      %p194 = por %p192, %p193
      %p195 = scmp.ne.s32.totalorder %s183, %s184
      %p196 = scmp.eq.s32.totalorder %s27, 1
      %p197 = por %p195, %p196
      %p199 = scmp.ne.s32.totalorder %s184, %s198
      %p200 = scmp.eq.s32.totalorder %s27, 0
      %p201 = por %p199, %p200
      %s203 = sadd.s32 %s202, 1
      %p206 = scmp.eq.s32.totalorder %s21, 1
      %p207 = scmp.ne.s32.totalorder %s202, %s204
      %p208 = scmp.eq.s32.totalorder %s21, 0
      %p209 = por %p207, %p208
      %p210 = scmp.ne.s32.totalorder %s202, %s204
      %p211 = scmp.eq.s32.totalorder %s26, 1
      %p212 = por %p210, %p211
      %p213 = scmp.ne.s32.totalorder %s204, %s205
      %p214 = scmp.eq.s32.totalorder %s26, 0
      %p215 = por %p213, %p214
      %p216 = scmp.ne.s32.totalorder %s204, %s205
      %p217 = scmp.eq.s32.totalorder %s27, 1
      %p218 = por %p216, %p217
      %p220 = scmp.ne.s32.totalorder %s205, %s219
      %p221 = scmp.eq.s32.totalorder %s27, 0
      %p222 = por %p220, %p221
      %s224 = sadd.s32 %s223, 1
      %p227 = scmp.eq.s32.totalorder %s21, 1
      %p228 = scmp.ne.s32.totalorder %s223, %s225
      %p229 = scmp.eq.s32.totalorder %s21, 0
      %p230 = por %p228, %p229
      %p231 = scmp.ne.s32.totalorder %s223, %s225
      %p232 = scmp.eq.s32.totalorder %s26, 1
      %p233 = por %p231, %p232
      %p234 = scmp.ne.s32.totalorder %s225, %s226
      %p235 = scmp.eq.s32.totalorder %s26, 0
      %p236 = por %p234, %p235
      %p237 = scmp.ne.s32.totalorder %s225, %s226
      %p238 = scmp.eq.s32.totalorder %s27, 1
      %p239 = por %p237, %p238
      %p241 = scmp.ne.s32.totalorder %s226, %s240
      %p242 = scmp.eq.s32.totalorder %s27, 0
      %p243 = por %p241, %p242
      %s245 = sadd.s32 %s244, 1
      %p248 = scmp.eq.s32.totalorder %s21, 1
      %p249 = scmp.ne.s32.totalorder %s244, %s246
      %p250 = scmp.eq.s32.totalorder %s21, 0
      %p251 = por %p249, %p250
      %p252 = scmp.ne.s32.totalorder %s244, %s246
      %p253 = scmp.eq.s32.totalorder %s26, 1
      %p254 = por %p252, %p253
      %p255 = scmp.ne.s32.totalorder %s246, %s247
      %p256 = scmp.eq.s32.totalorder %s26, 0
      %p257 = por %p255, %p256
      %p258 = scmp.ne.s32.totalorder %s246, %s247
      %p259 = scmp.eq.s32.totalorder %s27, 1
      %p260 = por %p258, %p259
      %p262 = scmp.ne.s32.totalorder %s247, %s261
      %p263 = scmp.eq.s32.totalorder %s27, 0
      %p264 = por %p262, %p263
      %s266 = sadd.s32 %s265, 1
      %p269 = scmp.eq.s32.totalorder %s21, 1
      %p270 = scmp.ne.s32.totalorder %s265, %s267
      %p271 = scmp.eq.s32.totalorder %s21, 0
      %p272 = por %p270, %p271
      %p273 = scmp.ne.s32.totalorder %s265, %s267
      %p274 = scmp.eq.s32.totalorder %s26, 1
      %p275 = por %p273, %p274
      %p276 = scmp.ne.s32.totalorder %s267, %s268
      %p277 = scmp.eq.s32.totalorder %s26, 0
      %p278 = por %p276, %p277
      %p279 = scmp.ne.s32.totalorder %s267, %s268
      %p280 = scmp.eq.s32.totalorder %s27, 1
      %p281 = por %p279, %p280
      %p283 = scmp.ne.s32.totalorder %s268, %s282
      %p284 = scmp.eq.s32.totalorder %s27, 0
      %p285 = por %p283, %p284
      %s287 = sadd.s32 %s286, 1
      %p290 = scmp.eq.s32.totalorder %s21, 1
      %p291 = scmp.ne.s32.totalorder %s286, %s288
      %p292 = scmp.eq.s32.totalorder %s21, 0
      %p293 = por %p291, %p292
      %p294 = scmp.ne.s32.totalorder %s286, %s288
      %p295 = scmp.eq.s32.totalorder %s26, 1
      %p296 = por %p294, %p295
      %p297 = scmp.ne.s32.totalorder %s288, %s289
      %p298 = scmp.eq.s32.totalorder %s26, 0
      %p299 = por %p297, %p298
      %p300 = scmp.ne.s32.totalorder %s288, %s289
      %p301 = scmp.eq.s32.totalorder %s27, 1
      %p302 = por %p300, %p301
      %p304 = scmp.ne.s32.totalorder %s289, %s303
      %p305 = scmp.eq.s32.totalorder %s27, 0
      %p306 = por %p304, %p305
      %s307 = ssub.s32 %s21, %s28
      %p308 = scmp.eq.s32.totalorder %s307, 0
      %s310 = sadd.s32 %s309, 1
      %s311 = scalar_select %p308, %s309, %s310
      %p314 = pneg %p308
      %p315 = scmp.eq.s32.totalorder %s21, 1
      %p316 = por %p314, %p315
      %p317 = scmp.ne.s32.totalorder %s309, %s312
      %p318 = scmp.eq.s32.totalorder %s21, 0
      %p319 = por %p317, %p318
      %p320 = scmp.ne.s32.totalorder %s309, %s312
      %p321 = scmp.eq.s32.totalorder %s26, 1
      %p322 = por %p320, %p321
      %p323 = scmp.ne.s32.totalorder %s312, %s313
      %p324 = scmp.eq.s32.totalorder %s26, 0
      %p325 = por %p323, %p324
      %p326 = scmp.ne.s32.totalorder %s312, %s313
      %p327 = scmp.eq.s32.totalorder %s27, 1
      %p328 = por %p326, %p327
      %p330 = scmp.ne.s32.totalorder %s313, %s329
      %p331 = scmp.eq.s32.totalorder %s27, 0
      %p332 = por %p330, %p331
      %p333 = scmp.le.s32.totalorder 1, %s21
      %p334 = scmp.lt.s32.totalorder %s21, 3
      %p335 = pnand %p333, %p334
      %p336 = pneg %p335
      // Predicated region
      $region9: #{aimv2_lit_forward.3} parent=5 // pred_check
        _
      $region10: #{aimv2_lit_forward.3} parent=5 // pred_check_branch
        %338 = sbr.rel (%p335) target = $region12
      $region11: #{aimv2_lit_forward.3} parent=5 // pred_region
        %s339 = ssub.s32 %s21, 1
        // Predicated region
        $region13: #{aimv2_lit_forward.3} parent=11 // pred_check
          %p340 = pneg %p42
        $region14: #{aimv2_lit_forward.3} parent=11 // pred_check_branch
          %342 = sbr.rel (%p340) target = $region16
        $region15: #{aimv2_lit_forward.3} parent=11 // pred_region
          %s344 = ssub.s32 16, 16
          %345 = vsyncadd [#allocation4], %s344
          %s347 = sshll.u32 %s0, 4
          %s348 = int_to_ptr.vmem [resolvable:$true] %s347
          %350 = dma.vmem_to_smem %s348, 16, [#allocation3], [#allocation4]
        $region16: #{aimv2_lit_forward.3} parent=11 // pred_fallthru
          _
        // Predicated region
        $region17: #{aimv2_lit_forward.3} parent=11 // pred_check
          %p351 = pneg %p63
        $region18: #{aimv2_lit_forward.3} parent=11 // pred_check_branch
          %353 = sbr.rel (%p351) target = $region20
        $region19: #{aimv2_lit_forward.3} parent=11 // pred_region
          _
        $region20: #{aimv2_lit_forward.3} parent=11 // pred_fallthru
          _
        // Predicated region
        $region21: #{aimv2_lit_forward.3} parent=11 // pred_check
          %p354 = pneg %p110
        $region22: #{aimv2_lit_forward.3} parent=11 // pred_check_branch
          %356 = sbr.rel (%p354) target = $region24
        $region23: #{aimv2_lit_forward.3} parent=11 // pred_region
          _
        $region24: #{aimv2_lit_forward.3} parent=11 // pred_fallthru
          _
        // Predicated region
        $region25: #{aimv2_lit_forward.3} parent=11 // pred_check
          %p357 = pneg %p131
        $region26: #{aimv2_lit_forward.3} parent=11 // pred_check_branch
          %359 = sbr.rel (%p357) target = $region28
        $region27: #{aimv2_lit_forward.3} parent=11 // pred_region
          _
        $region28: #{aimv2_lit_forward.3} parent=11 // pred_fallthru
          _
        // Predicated region
        $region29: #{aimv2_lit_forward.3} parent=11 // pred_check
          %p360 = pneg %p152
        $region30: #{aimv2_lit_forward.3} parent=11 // pred_check_branch
          %362 = sbr.rel (%p360) target = $region32
        $region31: #{aimv2_lit_forward.3} parent=11 // pred_region
          _
        $region32: #{aimv2_lit_forward.3} parent=11 // pred_fallthru
          _
        // Predicated region
        $region33: #{aimv2_lit_forward.3} parent=11 // pred_check
          %p363 = pneg %p173
        $region34: #{aimv2_lit_forward.3} parent=11 // pred_check_branch
          %365 = sbr.rel (%p363) target = $region36
        $region35: #{aimv2_lit_forward.3} parent=11 // pred_region
          _
        $region36: #{aimv2_lit_forward.3} parent=11 // pred_fallthru
          _
        // Predicated region
        $region37: #{aimv2_lit_forward.3} parent=11 // pred_check
          %p366 = pneg %p194
        $region38: #{aimv2_lit_forward.3} parent=11 // pred_check_branch
          %368 = sbr.rel (%p366) target = $region40
        $region39: #{aimv2_lit_forward.3} parent=11 // pred_region
          _
        $region40: #{aimv2_lit_forward.3} parent=11 // pred_fallthru
          _
        // Predicated region
        $region41: #{aimv2_lit_forward.3} parent=11 // pred_check
          %p369 = pneg %p215
        $region42: #{aimv2_lit_forward.3} parent=11 // pred_check_branch
          %371 = sbr.rel (%p369) target = $region44
        $region43: #{aimv2_lit_forward.3} parent=11 // pred_region
          _
        $region44: #{aimv2_lit_forward.3} parent=11 // pred_fallthru
          _
        // Predicated region
        $region45: #{aimv2_lit_forward.3} parent=11 // pred_check
          %p372 = pneg %p236
        $region46: #{aimv2_lit_forward.3} parent=11 // pred_check_branch
          %374 = sbr.rel (%p372) target = $region48
        $region47: #{aimv2_lit_forward.3} parent=11 // pred_region
          _
        $region48: #{aimv2_lit_forward.3} parent=11 // pred_fallthru
          _
        // Predicated region
        $region49: #{aimv2_lit_forward.3} parent=11 // pred_check
          %p375 = pneg %p257
        $region50: #{aimv2_lit_forward.3} parent=11 // pred_check_branch
          %377 = sbr.rel (%p375) target = $region52
        $region51: #{aimv2_lit_forward.3} parent=11 // pred_region
          _
        $region52: #{aimv2_lit_forward.3} parent=11 // pred_fallthru
          _
        // Predicated region
        $region53: #{aimv2_lit_forward.3} parent=11 // pred_check
          %p378 = pneg %p278
        $region54: #{aimv2_lit_forward.3} parent=11 // pred_check_branch
          %380 = sbr.rel (%p378) target = $region56
        $region55: #{aimv2_lit_forward.3} parent=11 // pred_region
          _
        $region56: #{aimv2_lit_forward.3} parent=11 // pred_fallthru
          _
        // Predicated region
        $region57: #{aimv2_lit_forward.3} parent=11 // pred_check
          %p381 = pneg %p299
        $region58: #{aimv2_lit_forward.3} parent=11 // pred_check_branch
          %383 = sbr.rel (%p381) target = $region60
        $region59: #{aimv2_lit_forward.3} parent=11 // pred_region
          _
        $region60: #{aimv2_lit_forward.3} parent=11 // pred_fallthru
          _
      $region12: #{aimv2_lit_forward.3} parent=5 // pred_fallthru
        _
      %p384 = scmp.lt.s32.totalorder %s21, 2
      // Predicated region
      $region61: #{aimv2_lit_forward.3} parent=5 // pred_check
        %p385 = pneg %p384
      $region62: #{aimv2_lit_forward.3} parent=5 // pred_check_branch
        %387 = sbr.rel (%p385) target = $region64
      $region63: #{aimv2_lit_forward.3} parent=5 // pred_region
        // Predicated region
        $region65: #{aimv2_lit_forward.3} parent=63 // pred_check
          %p388 = pneg %p83
        $region66: #{aimv2_lit_forward.3} parent=63 // pred_check_branch
          %390 = sbr.rel (%p388) target = $region68
        $region67: #{aimv2_lit_forward.3} parent=63 // pred_region
          %p391 = scmp.lt.s32.totalorder %s21, 1
          %s392 = scalar_select %p391, %s21, 1
          %s393 = smul.addr %s392, 8
          %s394 = scalar_lea.vmem %s2, %s393
        $region68: #{aimv2_lit_forward.3} parent=63 // pred_fallthru
          _
      $region64: #{aimv2_lit_forward.3} parent=5 // pred_fallthru
        _
      %p395 = scmp.le.s32.totalorder 1, %s21
      %p396 = scmp.lt.s32.totalorder %s21, 3
      %p397 = pnand %p395, %p396
      %p398 = pneg %p397
      // Predicated region
      $region69: #{aimv2_lit_forward.3} parent=5 // pred_check
        _
      $region70: #{aimv2_lit_forward.3} parent=5 // pred_check_branch
        %400 = sbr.rel (%p397) target = $region72
      $region71: #{aimv2_lit_forward.3} parent=5 // pred_region
        %s401 = ssub.s32 %s21, 1
        // Predicated region
        $region73: #{aimv2_lit_forward.3} parent=71 // pred_check
          %p402 = pneg %p42
        $region74: #{aimv2_lit_forward.3} parent=71 // pred_check_branch
          %404 = sbr.rel (%p402) target = $region76
        $region75: #{aimv2_lit_forward.3} parent=71 // pred_region
          %405 = dma.done [#allocation4], 16
        $region76: #{aimv2_lit_forward.3} parent=71 // pred_fallthru
          _
        %406 = sfence
        %p407 = pneg %p42
        %p408 = pneg %p39
        %p409 = pneg %p63
        %p410 = pneg %p60
        %p411 = scmp.lt.s32.totalorder %s26, 1
        %s412 = scalar_select %p411, %s26, 1
        %s413 = smul.addr %s412, 8
        %s414 = scalar_lea.vmem %s2, %s413
        %p415 = pneg %p89
        %p416 = pneg %p86
        %p417 = pneg %p110
        %p418 = pneg %p107
        %p419 = pneg %p131
        %p420 = pneg %p128
        %p421 = pneg %p152
        %p422 = pneg %p149
        %p423 = pneg %p173
        %p424 = pneg %p170
        %p425 = pneg %p194
        %p426 = pneg %p191
        %p427 = pneg %p215
        %p428 = pneg %p212
        %p429 = pneg %p236
        %p430 = pneg %p233
        %p431 = pneg %p257
        %p432 = pneg %p254
        %p433 = pneg %p278
        %p434 = pneg %p275
        %p435 = pneg %p299
        %p436 = pneg %p296
        %p437 = pneg %p325
        %p438 = pneg %p322
        %p439 = scmp.lt.s32.totalorder %s26, 1
        %s440 = scalar_select %p439, %s26, 1
        %s441 = scalar_lea.vmem %s13, %s440
        %p442 = scmp.lt.s32.totalorder %s26, 1
        %s443 = scalar_select %p442, %s26, 1
        %s444 = smul.addr %s443, 8
        %s445 = scalar_lea.vmem %s2, %s444
        %p446 = scmp.lt.s32.totalorder %s26, 1
        %s447 = scalar_select %p446, %s26, 1
        %s448 = scalar_lea.vmem %s13, %s447
        %v450 = vld [vmem:[%s445] sm:$0xff]
        %v451 = vld [vmem:[%s3] sm:$0xff]
        %v452 = vadd.f32 %v450, %v451
        %v453 = vld [vmem:[%s4] sm:$0x1]
        %v454 = vld [vmem:[%s5] sm:$0xff]
        %v455 = vld [vmem:[%s5 + $0x8] sm:$0xff]
        %v456 = vld [vmem:[%s5 + $0x10] sm:$0xff]
        %v457 = vld [vmem:[%s5 + $0x18] sm:$0xff]
        %v458 = vld [vmem:[%s5 + $0x20] sm:$0xff]
        %v459 = vld [vmem:[%s5 + $0x28] sm:$0xff]
        %v460 = vld [vmem:[%s6] sm:$0xf]
        %v461 = vld [vmem:[%s6 + $0x4] sm:$0xf]
        %v462 = vld [vmem:[%s6 + $0x8] sm:$0xf]
        %v463 = vld [vmem:[%s6 + $0xc] sm:$0xf]
        %v464 = vld [vmem:[%s6 + $0x10] sm:$0xf]
        %v465 = vld [vmem:[%s6 + $0x14] sm:$0xf]
        %v466 = vld [vmem:[%s7] sm:$0x1]
        %v467 = vld [vmem:[%s8] sm:$0xff]
        %v468 = vld [vmem:[%s8 + $0x8] sm:$0xff]
        %v469 = vld [vmem:[%s8 + $0x10] sm:$0xff]
        %v470 = vld [vmem:[%s8 + $0x18] sm:$0xff]
        %v471 = vld [vmem:[%s8 + $0x20] sm:$0xff]
        %v472 = vld [vmem:[%s8 + $0x28] sm:$0xff]
        %v473 = vld [vmem:[%s9] sm:$0xf]
        %v474 = vld [vmem:[%s9 + $0x4] sm:$0xf]
        %v475 = vld [vmem:[%s9 + $0x8] sm:$0xf]
        %v476 = vld [vmem:[%s9 + $0xc] sm:$0xf]
        %v477 = vld [vmem:[%s9 + $0x10] sm:$0xf]
        %v478 = vld [vmem:[%s9 + $0x14] sm:$0xf]
        %v479 = vld [vmem:[%s9 + $0x18] sm:$0xf]
        %v480 = vld [vmem:[%s9 + $0x1c] sm:$0xf]
        %v481 = vld [vmem:[%s9 + $0x20] sm:$0xf]
        %v482 = vld [vmem:[%s9 + $0x24] sm:$0xf]
        %v483 = vld [vmem:[%s9 + $0x28] sm:$0xf]
        %v484 = vld [vmem:[%s9 + $0x2c] sm:$0xf]
        %v485 = vmul.f32 %v452, %v452
        %vm486 = vcmask 392192
        %v487 = vsel %vm486, %v485, 0.0
        %488 = vadd.xlane.f32.xlu0 %v487
        %v489 = vpop.xlane.xlu0 %488
        %v490 = vrcp.pop 48.0
        %v491 = vmul.f32 %v489, %v490
        %v492 = vadd.f32 %v491, 1e-05
        %v493 = vrsqrt.pop %v492
        %v494 = vmul.f32 %v452, %v493
        %v496 = vlaneseq
        %v497 = vshrl.u32 %v496, 7
        %v498 = vsub.s32 0, %v497
        %v499 = vrot.slane %v453, %v498
        %v501 = vmul.f32 %v494, %v499
        %v502 = vpack.c.bf16 %v501, %v501
        %v509 = vunpack.c.l.b16 %v454
        %v510 = vunpack.c.h.b16 %v454
        %v511 = vunpack.c.l.b16 %v455
        %v512 = vunpack.c.h.b16 %v455
        %v513 = vunpack.c.l.b16 %v456
        %v514 = vunpack.c.h.b16 %v456
        %v515 = vunpack.c.l.b16 %v457
        %v516 = vunpack.c.h.b16 %v457
        %v517 = vunpack.c.l.b16 %v458
        %v518 = vunpack.c.h.b16 %v458
        %v519 = vunpack.c.l.b16 %v459
        %v520 = vunpack.c.h.b16 %v459
        %v521 = vpack.c.b16 %v511, %v509
        %v522 = vpack.c.b16 %v512, %v510
        %v523 = vpack.c.b16 %v515, %v513
        %v524 = vpack.c.b16 %v516, %v514
        %v525 = vpack.c.b16 %v519, %v517
        %v526 = vpack.c.b16 %v520, %v518
        %v534 = vsel %vm486, %v502, 0
        %536 = vmatprep.subr.bf16.mxu0 0
        %537 = vmatpush1.bf16.msra.mxu0 0
        %538 = vmatprep.subr.bf16.mxu0 0
        %539 = vmatpush1.bf16.msra.mxu0 0
        %540 = vmatprep.subr.bf16.mxu0 0
        %541 = vmatpush1.bf16.msra.mxu0 0
        %542 = vmatprep.subr.bf16.mxu0 0
        %543 = vmatpush1.bf16.msra.mxu0 0
        %544 = vmatprep.subr.bf16.mxu0 0
        %545 = vmatpush1.bf16.msra.mxu0 0
        %546 = vmatprep.subr.bf16.mxu0 %v526
        %547 = vmatpush1.bf16.msra.mxu0 %v525
        %548 = vmatprep.subr.bf16.mxu0 %v524
        %549 = vmatpush1.bf16.msra.mxu0 %v523
        %550 = vmatprep.subr.bf16.mxu0 %v522
        %551 = vmatpush1.bf16.msra.mxu0 %v521
        %552 = vmatprep.subr.bf16.mxu0 0
        %553 = vmatpush2.bf16.msra.mxu0 0
        %554 = vmatprep.subr.bf16.mxu0 0
        %555 = vmatpush2.bf16.msra.mxu0 0
        %556 = vmatprep.subr.bf16.mxu0 0
        %557 = vmatpush2.bf16.msra.mxu0 0
        %558 = vmatprep.subr.bf16.mxu0 0
        %559 = vmatpush2.bf16.msra.mxu0 0
        %560 = vmatprep.subr.bf16.mxu0 0
        %561 = vmatpush2.bf16.msra.mxu0 0
        %562 = vmatprep.subr.bf16.mxu0 0
        %563 = vmatpush2.bf16.msra.mxu0 0
        %564 = vmatprep.subr.bf16.mxu0 0
        %565 = vmatpush2.bf16.msra.mxu0 0
        %566 = vmatprep.subr.bf16.mxu0 0
        %567 = vmatpush2.bf16.msra.mxu0 0
        %568 = vmatprep.mubr.bf16.mxu0 0
        %569 = vmatmul.mubr.bf16.gmra.mxu0 %v534
        %v570 = vpop.f32.mrf.mxu0
        %v571 = vadd.f32 0.0, %v570
        %v572 = vpop.f32.mrf.mxu0
        %v573 = vadd.f32 0.0, %v572
        %v574 = vpop.f32.mrf.mxu0
        %v575 = vpop.f32.mrf.mxu0
        %576 = vdwg.mxu0
        %578 = vrot.lane.b32.xlu0 %v571, 120
        %v579 = vpop.permute.xlu0 %578
        %581 = vrot.lane.b32.xlu0 %v571, 112
        %v582 = vpop.permute.xlu0 %581
        %584 = vrot.lane.b32.xlu0 %v571, 104
        %v585 = vpop.permute.xlu0 %584
        %587 = vrot.lane.b32.xlu0 %v571, 96
        %v588 = vpop.permute.xlu0 %587
        %590 = vrot.lane.b32.xlu0 %v571, 88
        %v591 = vpop.permute.xlu0 %590
        %593 = vrot.lane.b32.xlu0 %v571, 80
        %v594 = vpop.permute.xlu0 %593
        %596 = vrot.lane.b32.xlu0 %v571, 72
        %v597 = vpop.permute.xlu0 %596
        %599 = vrot.lane.b32.xlu0 %v571, 64
        %v600 = vpop.permute.xlu0 %599
        %602 = vrot.lane.b32.xlu0 %v571, 56
        %v603 = vpop.permute.xlu0 %602
        %605 = vrot.lane.b32.xlu0 %v571, 48
        %v606 = vpop.permute.xlu0 %605
        %608 = vrot.lane.b32.xlu0 %v571, 40
        %v609 = vpop.permute.xlu0 %608
        %611 = vrot.lane.b32.xlu0 %v571, 32
        %v612 = vpop.permute.xlu0 %611
        %614 = vrot.lane.b32.xlu0 %v571, 24
        %v615 = vpop.permute.xlu0 %614
        %617 = vrot.lane.b32.xlu0 %v571, 16
        %v618 = vpop.permute.xlu0 %617
        %620 = vrot.lane.b32.xlu0 %v571, 8
        %v621 = vpop.permute.xlu0 %620
        %624 = vrot.lane.b32.xlu0 %v573, 120
        %v625 = vpop.permute.xlu0 %624
        %v627 = vcombine.low %v571, %v582
        %v628 = vcombine.high %v571, %v582
        %v630 = vunpack.c.l.s4 1983009808
        %v631 = vunpack.c.0.s8 %v630
        %v632 = vlaneseq
        %v633 = vshrl.u32 %v632, 7
        %v634 = vsub.s32 %v631, %v633
        %v635 = vrot.slane %v627, %v634
        %v637 = vunpack.c.l.s4 1983009808
        %v638 = vunpack.c.0.s8 %v637
        %v639 = vlaneseq
        %v640 = vshrl.u32 %v639, 7
        %v641 = vsub.s32 %v638, %v640
        %v642 = vrot.slane %v628, %v641
        %v643 = vcombine.low %v579, %v585
        %v644 = vcombine.high %v579, %v585
        %v646 = vunpack.c.l.s4 1983009808
        %v647 = vunpack.c.0.s8 %v646
        %v648 = vlaneseq
        %v649 = vshrl.u32 %v648, 7
        %v650 = vsub.s32 %v647, %v649
        %v651 = vrot.slane %v643, %v650
        %v653 = vunpack.c.l.s4 1983009808
        %v654 = vunpack.c.0.s8 %v653
        %v655 = vlaneseq
        %v656 = vshrl.u32 %v655, 7
        %v657 = vsub.s32 %v654, %v656
        %v658 = vrot.slane %v644, %v657
        %v659 = vcombine.low %v588, %v594
        %v660 = vcombine.high %v588, %v594
        %v662 = vunpack.c.l.s4 1983009808
        %v663 = vunpack.c.0.s8 %v662
        %v664 = vlaneseq
        %v665 = vshrl.u32 %v664, 7
        %v666 = vsub.s32 %v663, %v665
        %v667 = vrot.slane %v659, %v666
        %v669 = vunpack.c.l.s4 1983009808
        %v670 = vunpack.c.0.s8 %v669
        %v671 = vlaneseq
        %v672 = vshrl.u32 %v671, 7
        %v673 = vsub.s32 %v670, %v672
        %v674 = vrot.slane %v660, %v673
        %v675 = vcombine.low %v591, %v597
        %v676 = vcombine.high %v591, %v597
        %v678 = vunpack.c.l.s4 1983009808
        %v679 = vunpack.c.0.s8 %v678
        %v680 = vlaneseq
        %v681 = vshrl.u32 %v680, 7
        %v682 = vsub.s32 %v679, %v681
        %v683 = vrot.slane %v675, %v682
        %v685 = vunpack.c.l.s4 1983009808
        %v686 = vunpack.c.0.s8 %v685
        %v687 = vlaneseq
        %v688 = vshrl.u32 %v687, 7
        %v689 = vsub.s32 %v686, %v688
        %v690 = vrot.slane %v676, %v689
        %v691 = vcombine.low %v635, %v651
        %v692 = vcombine.high %v635, %v651
        %v694 = vunpack.c.l.s4 1934713408
        %v695 = vunpack.c.0.s8 %v694
        %v696 = vlaneseq
        %v697 = vshrl.u32 %v696, 7
        %v698 = vsub.s32 %v695, %v697
        %v699 = vrot.slane %v691, %v698
        %v701 = vunpack.c.l.s4 1934713408
        %v702 = vunpack.c.0.s8 %v701
        %v703 = vlaneseq
        %v704 = vshrl.u32 %v703, 7
        %v705 = vsub.s32 %v702, %v704
        %v706 = vrot.slane %v692, %v705
        %v707 = vcombine.low %v642, %v658
        %v708 = vcombine.high %v642, %v658
        %v710 = vunpack.c.l.s4 1934713408
        %v711 = vunpack.c.0.s8 %v710
        %v712 = vlaneseq
        %v713 = vshrl.u32 %v712, 7
        %v714 = vsub.s32 %v711, %v713
        %v715 = vrot.slane %v707, %v714
        %v717 = vunpack.c.l.s4 1934713408
        %v718 = vunpack.c.0.s8 %v717
        %v719 = vlaneseq
        %v720 = vshrl.u32 %v719, 7
        %v721 = vsub.s32 %v718, %v720
        %v722 = vrot.slane %v708, %v721
        %v723 = vcombine.low %v667, %v683
        %v724 = vcombine.high %v667, %v683
        %v726 = vunpack.c.l.s4 1934713408
        %v727 = vunpack.c.0.s8 %v726
        %v728 = vlaneseq
        %v729 = vshrl.u32 %v728, 7
        %v730 = vsub.s32 %v727, %v729
        %v731 = vrot.slane %v723, %v730
        %v733 = vunpack.c.l.s4 1934713408
        %v734 = vunpack.c.0.s8 %v733
        %v735 = vlaneseq
        %v736 = vshrl.u32 %v735, 7
        %v737 = vsub.s32 %v734, %v736
        %v738 = vrot.slane %v724, %v737
        %v739 = vcombine.low %v674, %v690
        %v740 = vcombine.high %v674, %v690
        %v742 = vunpack.c.l.s4 1934713408
        %v743 = vunpack.c.0.s8 %v742
        %v744 = vlaneseq
        %v745 = vshrl.u32 %v744, 7
        %v746 = vsub.s32 %v743, %v745
        %v747 = vrot.slane %v739, %v746
        %v749 = vunpack.c.l.s4 1934713408
        %v750 = vunpack.c.0.s8 %v749
        %v751 = vlaneseq
        %v752 = vshrl.u32 %v751, 7
        %v753 = vsub.s32 %v750, %v752
        %v754 = vrot.slane %v740, %v753
        %v755 = vcombine.low %v699, %v731
        %v756 = vcombine.high %v699, %v731
        %v757 = vcombine.low %v706, %v738
        %v758 = vcombine.high %v706, %v738
        %v759 = vcombine.low %v715, %v747
        %v760 = vcombine.high %v715, %v747
        %v761 = vcombine.low %v722, %v754
        %v762 = vcombine.high %v722, %v754
        %v763 = vcombine.low %v600, %v606
        %v764 = vcombine.high %v600, %v606
        %v766 = vunpack.c.l.s4 1983009808
        %v767 = vunpack.c.0.s8 %v766
        %v768 = vlaneseq
        %v769 = vshrl.u32 %v768, 7
        %v770 = vsub.s32 %v767, %v769
        %v771 = vrot.slane %v763, %v770
        %v773 = vunpack.c.l.s4 1983009808
        %v774 = vunpack.c.0.s8 %v773
        %v775 = vlaneseq
        %v776 = vshrl.u32 %v775, 7
        %v777 = vsub.s32 %v774, %v776
        %v778 = vrot.slane %v764, %v777
        %v779 = vcombine.low %v603, %v609
        %v780 = vcombine.high %v603, %v609
        %v782 = vunpack.c.l.s4 1983009808
        %v783 = vunpack.c.0.s8 %v782
        %v784 = vlaneseq
        %v785 = vshrl.u32 %v784, 7
        %v786 = vsub.s32 %v783, %v785
        %v787 = vrot.slane %v779, %v786
        %v789 = vunpack.c.l.s4 1983009808
        %v790 = vunpack.c.0.s8 %v789
        %v791 = vlaneseq
        %v792 = vshrl.u32 %v791, 7
        %v793 = vsub.s32 %v790, %v792
        %v794 = vrot.slane %v780, %v793
        %v795 = vcombine.low %v612, %v618
        %v796 = vcombine.high %v612, %v618
        %v798 = vunpack.c.l.s4 1983009808
        %v799 = vunpack.c.0.s8 %v798
        %v800 = vlaneseq
        %v801 = vshrl.u32 %v800, 7
        %v802 = vsub.s32 %v799, %v801
        %v803 = vrot.slane %v795, %v802
        %v805 = vunpack.c.l.s4 1983009808
        %v806 = vunpack.c.0.s8 %v805
        %v807 = vlaneseq
        %v808 = vshrl.u32 %v807, 7
        %v809 = vsub.s32 %v806, %v808
        %v810 = vrot.slane %v796, %v809
        %v811 = vcombine.low %v615, %v621
        %v812 = vcombine.high %v615, %v621
        %v814 = vunpack.c.l.s4 1983009808
        %v815 = vunpack.c.0.s8 %v814
        %v816 = vlaneseq
        %v817 = vshrl.u32 %v816, 7
        %v818 = vsub.s32 %v815, %v817
        %v819 = vrot.slane %v811, %v818
        %v821 = vunpack.c.l.s4 1983009808
        %v822 = vunpack.c.0.s8 %v821
        %v823 = vlaneseq
        %v824 = vshrl.u32 %v823, 7
        %v825 = vsub.s32 %v822, %v824
        %v826 = vrot.slane %v812, %v825
        %v827 = vcombine.low %v771, %v787
        %v828 = vcombine.high %v771, %v787
        %v830 = vunpack.c.l.s4 1934713408
        %v831 = vunpack.c.0.s8 %v830
        %v832 = vlaneseq
        %v833 = vshrl.u32 %v832, 7
        %v834 = vsub.s32 %v831, %v833
        %v835 = vrot.slane %v827, %v834
        %v837 = vunpack.c.l.s4 1934713408
        %v838 = vunpack.c.0.s8 %v837
        %v839 = vlaneseq
        %v840 = vshrl.u32 %v839, 7
        %v841 = vsub.s32 %v838, %v840
        %v842 = vrot.slane %v828, %v841
        %v843 = vcombine.low %v778, %v794
        %v844 = vcombine.high %v778, %v794
        %v846 = vunpack.c.l.s4 1934713408
        %v847 = vunpack.c.0.s8 %v846
        %v848 = vlaneseq
        %v849 = vshrl.u32 %v848, 7
        %v850 = vsub.s32 %v847, %v849
        %v851 = vrot.slane %v843, %v850
        %v853 = vunpack.c.l.s4 1934713408
        %v854 = vunpack.c.0.s8 %v853
        %v855 = vlaneseq
        %v856 = vshrl.u32 %v855, 7
        %v857 = vsub.s32 %v854, %v856
        %v858 = vrot.slane %v844, %v857
        %v859 = vcombine.low %v803, %v819
        %v860 = vcombine.high %v803, %v819
        %v862 = vunpack.c.l.s4 1934713408
        %v863 = vunpack.c.0.s8 %v862
        %v864 = vlaneseq
        %v865 = vshrl.u32 %v864, 7
        %v866 = vsub.s32 %v863, %v865
        %v867 = vrot.slane %v859, %v866
        %v869 = vunpack.c.l.s4 1934713408
        %v870 = vunpack.c.0.s8 %v869
        %v871 = vlaneseq
        %v872 = vshrl.u32 %v871, 7
        %v873 = vsub.s32 %v870, %v872
        %v874 = vrot.slane %v860, %v873
        %v875 = vcombine.low %v810, %v826
        %v876 = vcombine.high %v810, %v826
        %v878 = vunpack.c.l.s4 1934713408
        %v879 = vunpack.c.0.s8 %v878
        %v880 = vlaneseq
        %v881 = vshrl.u32 %v880, 7
        %v882 = vsub.s32 %v879, %v881
        %v883 = vrot.slane %v875, %v882
        %v885 = vunpack.c.l.s4 1934713408
        %v886 = vunpack.c.0.s8 %v885
        %v887 = vlaneseq
        %v888 = vshrl.u32 %v887, 7
        %v889 = vsub.s32 %v886, %v888
        %v890 = vrot.slane %v876, %v889
        %v891 = vcombine.low %v835, %v867
        %v892 = vcombine.high %v835, %v867
        %v893 = vcombine.low %v842, %v874
        %v894 = vcombine.high %v842, %v874
        %v895 = vcombine.low %v851, %v883
        %v896 = vcombine.high %v851, %v883
        %v897 = vcombine.low %v858, %v890
        %v898 = vcombine.high %v858, %v890
        %v899 = vcombine.high %v573, 0.0
        %v901 = vunpack.c.l.s4 1983009808
        %v902 = vunpack.c.0.s8 %v901
        %v903 = vlaneseq
        %v904 = vshrl.u32 %v903, 7
        %v905 = vsub.s32 %v902, %v904
        %v906 = vrot.slane %v573, %v905
        %v908 = vunpack.c.l.s4 1983009808
        %v909 = vunpack.c.0.s8 %v908
        %v910 = vlaneseq
        %v911 = vshrl.u32 %v910, 7
        %v912 = vsub.s32 %v909, %v911
        %v913 = vrot.slane %v899, %v912
        %v914 = vcombine.high %v625, 0.0
        %v916 = vunpack.c.l.s4 1983009808
        %v917 = vunpack.c.0.s8 %v916
        %v918 = vlaneseq
        %v919 = vshrl.u32 %v918, 7
        %v920 = vsub.s32 %v917, %v919
        %v921 = vrot.slane %v625, %v920
        %v923 = vunpack.c.l.s4 1983009808
        %v924 = vunpack.c.0.s8 %v923
        %v925 = vlaneseq
        %v926 = vshrl.u32 %v925, 7
        %v927 = vsub.s32 %v924, %v926
        %v928 = vrot.slane %v914, %v927
        %v929 = vcombine.low %v906, %v921
        %v930 = vcombine.high %v906, %v921
        %v932 = vunpack.c.l.s4 1934713408
        %v933 = vunpack.c.0.s8 %v932
        %v934 = vlaneseq
        %v935 = vshrl.u32 %v934, 7
        %v936 = vsub.s32 %v933, %v935
        %v937 = vrot.slane %v929, %v936
        %v939 = vunpack.c.l.s4 1934713408
        %v940 = vunpack.c.0.s8 %v939
        %v941 = vlaneseq
        %v942 = vshrl.u32 %v941, 7
        %v943 = vsub.s32 %v940, %v942
        %v944 = vrot.slane %v930, %v943
        %v945 = vcombine.low %v913, %v928
        %v946 = vcombine.high %v913, %v928
        %v948 = vunpack.c.l.s4 1934713408
        %v949 = vunpack.c.0.s8 %v948
        %v950 = vlaneseq
        %v951 = vshrl.u32 %v950, 7
        %v952 = vsub.s32 %v949, %v951
        %v953 = vrot.slane %v945, %v952
        %v955 = vunpack.c.l.s4 1934713408
        %v956 = vunpack.c.0.s8 %v955
        %v957 = vlaneseq
        %v958 = vshrl.u32 %v957, 7
        %v959 = vsub.s32 %v956, %v958
        %v960 = vrot.slane %v946, %v959
        %v961 = vcombine.high %v937, 0.0
        %v962 = vcombine.high %v944, 0.0
        %v963 = vcombine.high %v953, 0.0
        %v964 = vcombine.high %v960, 0.0
        %v965 = vcombine.low %v755, %v757
        %v966 = vcombine.high %v755, %v757
        %v968 = vunpack.c.l.s4 1983009808
        %v969 = vunpack.c.0.s8 %v968
        %v970 = vlaneseq
        %v971 = vshrl.u32 %v970, 7
        %v972 = vsub.s32 %v969, %v971
        %v973 = vrot.slane %v965, %v972
        %v975 = vunpack.c.l.s4 1983009808
        %v976 = vunpack.c.0.s8 %v975
        %v977 = vlaneseq
        %v978 = vshrl.u32 %v977, 7
        %v979 = vsub.s32 %v976, %v978
        %v980 = vrot.slane %v966, %v979
        %v981 = vcombine.low %v756, %v758
        %v982 = vcombine.high %v756, %v758
        %v984 = vunpack.c.l.s4 1983009808
        %v985 = vunpack.c.0.s8 %v984
        %v986 = vlaneseq
        %v987 = vshrl.u32 %v986, 7
        %v988 = vsub.s32 %v985, %v987
        %v989 = vrot.slane %v981, %v988
        %v991 = vunpack.c.l.s4 1983009808
        %v992 = vunpack.c.0.s8 %v991
        %v993 = vlaneseq
        %v994 = vshrl.u32 %v993, 7
        %v995 = vsub.s32 %v992, %v994
        %v996 = vrot.slane %v982, %v995
        %v997 = vcombine.low %v759, %v761
        %v998 = vcombine.high %v759, %v761
        %v1000 = vunpack.c.l.s4 1983009808
        %v1001 = vunpack.c.0.s8 %v1000
        %v1002 = vlaneseq
        %v1003 = vshrl.u32 %v1002, 7
        %v1004 = vsub.s32 %v1001, %v1003
        %v1005 = vrot.slane %v997, %v1004
        %v1007 = vunpack.c.l.s4 1983009808
        %v1008 = vunpack.c.0.s8 %v1007
        %v1009 = vlaneseq
        %v1010 = vshrl.u32 %v1009, 7
        %v1011 = vsub.s32 %v1008, %v1010
        %v1012 = vrot.slane %v998, %v1011
        %v1013 = vcombine.low %v760, %v762
        %v1014 = vcombine.high %v760, %v762
        %v1016 = vunpack.c.l.s4 1983009808
        %v1017 = vunpack.c.0.s8 %v1016
        %v1018 = vlaneseq
        %v1019 = vshrl.u32 %v1018, 7
        %v1020 = vsub.s32 %v1017, %v1019
        %v1021 = vrot.slane %v1013, %v1020
        %v1023 = vunpack.c.l.s4 1983009808
        %v1024 = vunpack.c.0.s8 %v1023
        %v1025 = vlaneseq
        %v1026 = vshrl.u32 %v1025, 7
        %v1027 = vsub.s32 %v1024, %v1026
        %v1028 = vrot.slane %v1014, %v1027
        %v1029 = vcombine.low %v973, %v989
        %v1030 = vcombine.high %v973, %v989
        %v1032 = vunpack.c.l.s4 1934713408
        %v1033 = vunpack.c.0.s8 %v1032
        %v1034 = vlaneseq
        %v1035 = vshrl.u32 %v1034, 7
        %v1036 = vsub.s32 %v1033, %v1035
        %v1037 = vrot.slane %v1029, %v1036
        %v1039 = vunpack.c.l.s4 1934713408
        %v1040 = vunpack.c.0.s8 %v1039
        %v1041 = vlaneseq
        %v1042 = vshrl.u32 %v1041, 7
        %v1043 = vsub.s32 %v1040, %v1042
        %v1044 = vrot.slane %v1030, %v1043
        %v1045 = vcombine.low %v980, %v996
        %v1046 = vcombine.high %v980, %v996
        %v1048 = vunpack.c.l.s4 1934713408
        %v1049 = vunpack.c.0.s8 %v1048
        %v1050 = vlaneseq
        %v1051 = vshrl.u32 %v1050, 7
        %v1052 = vsub.s32 %v1049, %v1051
        %v1053 = vrot.slane %v1045, %v1052
        %v1055 = vunpack.c.l.s4 1934713408
        %v1056 = vunpack.c.0.s8 %v1055
        %v1057 = vlaneseq
        %v1058 = vshrl.u32 %v1057, 7
        %v1059 = vsub.s32 %v1056, %v1058
        %v1060 = vrot.slane %v1046, %v1059
        %v1061 = vcombine.low %v1005, %v1021
        %v1062 = vcombine.high %v1005, %v1021
        %v1064 = vunpack.c.l.s4 1934713408
        %v1065 = vunpack.c.0.s8 %v1064
        %v1066 = vlaneseq
        %v1067 = vshrl.u32 %v1066, 7
        %v1068 = vsub.s32 %v1065, %v1067
        %v1069 = vrot.slane %v1061, %v1068
        %v1071 = vunpack.c.l.s4 1934713408
        %v1072 = vunpack.c.0.s8 %v1071
        %v1073 = vlaneseq
        %v1074 = vshrl.u32 %v1073, 7
        %v1075 = vsub.s32 %v1072, %v1074
        %v1076 = vrot.slane %v1062, %v1075
        %v1077 = vcombine.low %v1012, %v1028
        %v1078 = vcombine.high %v1012, %v1028
        %v1080 = vunpack.c.l.s4 1934713408
        %v1081 = vunpack.c.0.s8 %v1080
        %v1082 = vlaneseq
        %v1083 = vshrl.u32 %v1082, 7
        %v1084 = vsub.s32 %v1081, %v1083
        %v1085 = vrot.slane %v1077, %v1084
        %v1087 = vunpack.c.l.s4 1934713408
        %v1088 = vunpack.c.0.s8 %v1087
        %v1089 = vlaneseq
        %v1090 = vshrl.u32 %v1089, 7
        %v1091 = vsub.s32 %v1088, %v1090
        %v1092 = vrot.slane %v1078, %v1091
        %v1093 = vcombine.low %v1037, %v1069
        %v1094 = vcombine.high %v1037, %v1069
        %v1095 = vcombine.low %v1044, %v1076
        %v1096 = vcombine.high %v1044, %v1076
        %v1097 = vcombine.low %v1053, %v1085
        %v1098 = vcombine.high %v1053, %v1085
        %v1099 = vcombine.low %v1060, %v1092
        %v1100 = vcombine.high %v1060, %v1092
        %v1101 = vcombine.low %v891, %v893
        %v1102 = vcombine.high %v891, %v893
        %v1104 = vunpack.c.l.s4 1983009808
        %v1105 = vunpack.c.0.s8 %v1104
        %v1106 = vlaneseq
        %v1107 = vshrl.u32 %v1106, 7
        %v1108 = vsub.s32 %v1105, %v1107
        %v1109 = vrot.slane %v1101, %v1108
        %v1111 = vunpack.c.l.s4 1983009808
        %v1112 = vunpack.c.0.s8 %v1111
        %v1113 = vlaneseq
        %v1114 = vshrl.u32 %v1113, 7
        %v1115 = vsub.s32 %v1112, %v1114
        %v1116 = vrot.slane %v1102, %v1115
        %v1117 = vcombine.low %v892, %v894
        %v1118 = vcombine.high %v892, %v894
        %v1120 = vunpack.c.l.s4 1983009808
        %v1121 = vunpack.c.0.s8 %v1120
        %v1122 = vlaneseq
        %v1123 = vshrl.u32 %v1122, 7
        %v1124 = vsub.s32 %v1121, %v1123
        %v1125 = vrot.slane %v1117, %v1124
        %v1127 = vunpack.c.l.s4 1983009808
        %v1128 = vunpack.c.0.s8 %v1127
        %v1129 = vlaneseq
        %v1130 = vshrl.u32 %v1129, 7
        %v1131 = vsub.s32 %v1128, %v1130
        %v1132 = vrot.slane %v1118, %v1131
        %v1133 = vcombine.low %v895, %v897
        %v1134 = vcombine.high %v895, %v897
        %v1136 = vunpack.c.l.s4 1983009808
        %v1137 = vunpack.c.0.s8 %v1136
        %v1138 = vlaneseq
        %v1139 = vshrl.u32 %v1138, 7
        %v1140 = vsub.s32 %v1137, %v1139
        %v1141 = vrot.slane %v1133, %v1140
        %v1143 = vunpack.c.l.s4 1983009808
        %v1144 = vunpack.c.0.s8 %v1143
        %v1145 = vlaneseq
        %v1146 = vshrl.u32 %v1145, 7
        %v1147 = vsub.s32 %v1144, %v1146
        %v1148 = vrot.slane %v1134, %v1147
        %v1149 = vcombine.low %v896, %v898
        %v1150 = vcombine.high %v896, %v898
        %v1152 = vunpack.c.l.s4 1983009808
        %v1153 = vunpack.c.0.s8 %v1152
        %v1154 = vlaneseq
        %v1155 = vshrl.u32 %v1154, 7
        %v1156 = vsub.s32 %v1153, %v1155
        %v1157 = vrot.slane %v1149, %v1156
        %v1159 = vunpack.c.l.s4 1983009808
        %v1160 = vunpack.c.0.s8 %v1159
        %v1161 = vlaneseq
        %v1162 = vshrl.u32 %v1161, 7
        %v1163 = vsub.s32 %v1160, %v1162
        %v1164 = vrot.slane %v1150, %v1163
        %v1165 = vcombine.low %v1109, %v1125
        %v1166 = vcombine.high %v1109, %v1125
        %v1168 = vunpack.c.l.s4 1934713408
        %v1169 = vunpack.c.0.s8 %v1168
        %v1170 = vlaneseq
        %v1171 = vshrl.u32 %v1170, 7
        %v1172 = vsub.s32 %v1169, %v1171
        %v1173 = vrot.slane %v1165, %v1172
        %v1175 = vunpack.c.l.s4 1934713408
        %v1176 = vunpack.c.0.s8 %v1175
        %v1177 = vlaneseq
        %v1178 = vshrl.u32 %v1177, 7
        %v1179 = vsub.s32 %v1176, %v1178
        %v1180 = vrot.slane %v1166, %v1179
        %v1181 = vcombine.low %v1116, %v1132
        %v1182 = vcombine.high %v1116, %v1132
        %v1184 = vunpack.c.l.s4 1934713408
        %v1185 = vunpack.c.0.s8 %v1184
        %v1186 = vlaneseq
        %v1187 = vshrl.u32 %v1186, 7
        %v1188 = vsub.s32 %v1185, %v1187
        %v1189 = vrot.slane %v1181, %v1188
        %v1191 = vunpack.c.l.s4 1934713408
        %v1192 = vunpack.c.0.s8 %v1191
        %v1193 = vlaneseq
        %v1194 = vshrl.u32 %v1193, 7
        %v1195 = vsub.s32 %v1192, %v1194
        %v1196 = vrot.slane %v1182, %v1195
        %v1197 = vcombine.low %v1141, %v1157
        %v1198 = vcombine.high %v1141, %v1157
        %v1200 = vunpack.c.l.s4 1934713408
        %v1201 = vunpack.c.0.s8 %v1200
        %v1202 = vlaneseq
        %v1203 = vshrl.u32 %v1202, 7
        %v1204 = vsub.s32 %v1201, %v1203
        %v1205 = vrot.slane %v1197, %v1204
        %v1207 = vunpack.c.l.s4 1934713408
        %v1208 = vunpack.c.0.s8 %v1207
        %v1209 = vlaneseq
        %v1210 = vshrl.u32 %v1209, 7
        %v1211 = vsub.s32 %v1208, %v1210
        %v1212 = vrot.slane %v1198, %v1211
        %v1213 = vcombine.low %v1148, %v1164
        %v1214 = vcombine.high %v1148, %v1164
        %v1216 = vunpack.c.l.s4 1934713408
        %v1217 = vunpack.c.0.s8 %v1216
        %v1218 = vlaneseq
        %v1219 = vshrl.u32 %v1218, 7
        %v1220 = vsub.s32 %v1217, %v1219
        %v1221 = vrot.slane %v1213, %v1220
        %v1223 = vunpack.c.l.s4 1934713408
        %v1224 = vunpack.c.0.s8 %v1223
        %v1225 = vlaneseq
        %v1226 = vshrl.u32 %v1225, 7
        %v1227 = vsub.s32 %v1224, %v1226
        %v1228 = vrot.slane %v1214, %v1227
        %v1229 = vcombine.low %v1173, %v1205
        %v1230 = vcombine.high %v1173, %v1205
        %v1231 = vcombine.low %v1180, %v1212
        %v1232 = vcombine.high %v1180, %v1212
        %v1233 = vcombine.low %v1189, %v1221
        %v1234 = vcombine.high %v1189, %v1221
        %v1235 = vcombine.low %v1196, %v1228
        %v1236 = vcombine.high %v1196, %v1228
        %v1237 = vcombine.low %v937, %v944
        %v1239 = vunpack.c.l.s4 1983009808
        %v1240 = vunpack.c.0.s8 %v1239
        %v1241 = vlaneseq
        %v1242 = vshrl.u32 %v1241, 7
        %v1243 = vsub.s32 %v1240, %v1242
        %v1244 = vrot.slane %v1237, %v1243
        %v1245 = vcombine.low %v961, %v962
        %v1247 = vunpack.c.l.s4 1983009808
        %v1248 = vunpack.c.0.s8 %v1247
        %v1249 = vlaneseq
        %v1250 = vshrl.u32 %v1249, 7
        %v1251 = vsub.s32 %v1248, %v1250
        %v1252 = vrot.slane %v1245, %v1251
        %v1253 = vcombine.low %v953, %v960
        %v1255 = vunpack.c.l.s4 1983009808
        %v1256 = vunpack.c.0.s8 %v1255
        %v1257 = vlaneseq
        %v1258 = vshrl.u32 %v1257, 7
        %v1259 = vsub.s32 %v1256, %v1258
        %v1260 = vrot.slane %v1253, %v1259
        %v1261 = vcombine.low %v963, %v964
        %v1263 = vunpack.c.l.s4 1983009808
        %v1264 = vunpack.c.0.s8 %v1263
        %v1265 = vlaneseq
        %v1266 = vshrl.u32 %v1265, 7
        %v1267 = vsub.s32 %v1264, %v1266
        %v1268 = vrot.slane %v1261, %v1267
        %v1269 = vcombine.low %v1244, %v1252
        %v1271 = vunpack.c.l.s4 1934713408
        %v1272 = vunpack.c.0.s8 %v1271
        %v1273 = vlaneseq
        %v1274 = vshrl.u32 %v1273, 7
        %v1275 = vsub.s32 %v1272, %v1274
        %v1276 = vrot.slane %v1269, %v1275
        %v1277 = vcombine.low %v1260, %v1268
        %v1279 = vunpack.c.l.s4 1934713408
        %v1280 = vunpack.c.0.s8 %v1279
        %v1281 = vlaneseq
        %v1282 = vshrl.u32 %v1281, 7
        %v1283 = vsub.s32 %v1280, %v1282
        %v1284 = vrot.slane %v1277, %v1283
        %v1285 = vcombine.low %v1276, %v1284
        %v1286 = vcombine.high %v1276, %v1284
        %v1287 = vpack.c.bf16 %v1093, %v1093
        %v1288 = vpack.c.bf16 %v1094, %v1094
        %v1289 = vpack.c.bf16 %v1095, %v1095
        %v1290 = vpack.c.bf16 %v1096, %v1096
        %v1291 = vpack.c.bf16 %v1097, %v1097
        %v1292 = vpack.c.bf16 %v1098, %v1098
        %v1293 = vpack.c.bf16 %v1099, %v1099
        %v1294 = vpack.c.bf16 %v1100, %v1100
        %v1295 = vpack.c.bf16 %v1229, %v1229
        %v1296 = vpack.c.bf16 %v1230, %v1230
        %v1297 = vpack.c.bf16 %v1231, %v1231
        %v1298 = vpack.c.bf16 %v1232, %v1232
        %vm1299 = vcmask 64512
        %v1301 = vsel %vm1299, %v1287, 0
        %v1304 = vsel %vm1299, %v1293, 0
        %1306 = vmatprep.subr.bf16.mxu0 0
        %1307 = vmatpush1.bf16.xpose.msra.mxu0 0
        %1308 = vmatprep.subr.bf16.mxu0 0
        %1309 = vmatpush1.bf16.xpose.msra.mxu0 0
        %1310 = vmatprep.subr.bf16.mxu0 0
        %1311 = vmatpush1.bf16.xpose.msra.mxu0 0
        %1312 = vmatprep.subr.bf16.mxu0 0
        %1313 = vmatpush1.bf16.xpose.msra.mxu0 0
        %1314 = vmatprep.subr.bf16.mxu0 0
        %1315 = vmatpush1.bf16.xpose.msra.mxu0 0
        %1316 = vmatprep.subr.bf16.mxu0 0
        %1317 = vmatpush1.bf16.xpose.msra.mxu0 0
        %1318 = vmatprep.subr.bf16.mxu0 0
        %1319 = vmatpush1.bf16.xpose.msra.mxu0 0
        %1320 = vmatprep.subr.bf16.mxu0 0
        %1321 = vmatpush1.bf16.xpose.msra.mxu0 %v1304
        %1322 = vmatprep.subr.bf16.mxu0 0
        %1323 = vmatpush2.bf16.xpose.msra.mxu0 0
        %1324 = vmatprep.subr.bf16.mxu0 0
        %1325 = vmatpush2.bf16.xpose.msra.mxu0 0
        %1326 = vmatprep.subr.bf16.mxu0 0
        %1327 = vmatpush2.bf16.xpose.msra.mxu0 0
        %1328 = vmatprep.subr.bf16.mxu0 0
        %1329 = vmatpush2.bf16.xpose.msra.mxu0 0
        %1330 = vmatprep.subr.bf16.mxu0 0
        %1331 = vmatpush2.bf16.xpose.msra.mxu0 0
        %1332 = vmatprep.subr.bf16.mxu0 0
        %1333 = vmatpush2.bf16.xpose.msra.mxu0 0
        %1334 = vmatprep.subr.bf16.mxu0 0
        %1335 = vmatpush2.bf16.xpose.msra.mxu0 0
        %1336 = vmatprep.subr.bf16.mxu0 0
        %1337 = vmatpush2.bf16.xpose.msra.mxu0 0
        %1338 = vmatprep.mubr.bf16.mxu0 0
        %1339 = vmatmul.mubr.bf16.gmra.mxu0 %v1301
        %v1340 = vpop.f32.mrf.mxu0
        %v1341 = vadd.f32 0.0, %v1340
        %v1342 = vpop.f32.mrf.mxu0
        %v1343 = vpop.f32.mrf.mxu0
        %v1344 = vpop.f32.mrf.mxu0
        %1345 = vdwg.mxu0
        %v1347 = vsel %vm1299, %v1288, 0
        %v1350 = vsel %vm1299, %v1294, 0
        %1352 = vmatprep.subr.bf16.mxu0 0
        %1353 = vmatpush1.bf16.xpose.msra.mxu0 0
        %1354 = vmatprep.subr.bf16.mxu0 0
        %1355 = vmatpush1.bf16.xpose.msra.mxu0 0
        %1356 = vmatprep.subr.bf16.mxu0 0
        %1357 = vmatpush1.bf16.xpose.msra.mxu0 0
        %1358 = vmatprep.subr.bf16.mxu0 0
        %1359 = vmatpush1.bf16.xpose.msra.mxu0 0
        %1360 = vmatprep.subr.bf16.mxu0 0
        %1361 = vmatpush1.bf16.xpose.msra.mxu0 0
        %1362 = vmatprep.subr.bf16.mxu0 0
        %1363 = vmatpush1.bf16.xpose.msra.mxu0 0
        %1364 = vmatprep.subr.bf16.mxu0 0
        %1365 = vmatpush1.bf16.xpose.msra.mxu0 0
        %1366 = vmatprep.subr.bf16.mxu0 0
        %1367 = vmatpush1.bf16.xpose.msra.mxu0 %v1350
        %1368 = vmatprep.subr.bf16.mxu0 0
        %1369 = vmatpush2.bf16.xpose.msra.mxu0 0
        %1370 = vmatprep.subr.bf16.mxu0 0
        %1371 = vmatpush2.bf16.xpose.msra.mxu0 0
        %1372 = vmatprep.subr.bf16.mxu0 0
        %1373 = vmatpush2.bf16.xpose.msra.mxu0 0
        %1374 = vmatprep.subr.bf16.mxu0 0
        %1375 = vmatpush2.bf16.xpose.msra.mxu0 0
        %1376 = vmatprep.subr.bf16.mxu0 0
        %1377 = vmatpush2.bf16.xpose.msra.mxu0 0
        %1378 = vmatprep.subr.bf16.mxu0 0
        %1379 = vmatpush2.bf16.xpose.msra.mxu0 0
        %1380 = vmatprep.subr.bf16.mxu0 0
        %1381 = vmatpush2.bf16.xpose.msra.mxu0 0
        %1382 = vmatprep.subr.bf16.mxu0 0
        %1383 = vmatpush2.bf16.xpose.msra.mxu0 0
        %1384 = vmatprep.mubr.bf16.mxu0 0
        %1385 = vmatmul.mubr.bf16.gmra.mxu0 %v1347
        %v1386 = vpop.f32.mrf.mxu0
        %v1387 = vadd.f32 0.0, %v1386
        %v1388 = vpop.f32.mrf.mxu0
        %v1389 = vpop.f32.mrf.mxu0
        %v1390 = vpop.f32.mrf.mxu0
        %1391 = vdwg.mxu0
        %v1393 = vsel %vm1299, %v1289, 0
        %v1396 = vsel %vm1299, %v1295, 0
        %1398 = vmatprep.subr.bf16.mxu0 0
        %1399 = vmatpush1.bf16.xpose.msra.mxu0 0
        %1400 = vmatprep.subr.bf16.mxu0 0
        %1401 = vmatpush1.bf16.xpose.msra.mxu0 0
        %1402 = vmatprep.subr.bf16.mxu0 0
        %1403 = vmatpush1.bf16.xpose.msra.mxu0 0
        %1404 = vmatprep.subr.bf16.mxu0 0
        %1405 = vmatpush1.bf16.xpose.msra.mxu0 0
        %1406 = vmatprep.subr.bf16.mxu0 0
        %1407 = vmatpush1.bf16.xpose.msra.mxu0 0
        %1408 = vmatprep.subr.bf16.mxu0 0
        %1409 = vmatpush1.bf16.xpose.msra.mxu0 0
        %1410 = vmatprep.subr.bf16.mxu0 0
        %1411 = vmatpush1.bf16.xpose.msra.mxu0 0
        %1412 = vmatprep.subr.bf16.mxu0 0
        %1413 = vmatpush1.bf16.xpose.msra.mxu0 %v1396
        %1414 = vmatprep.subr.bf16.mxu0 0
        %1415 = vmatpush2.bf16.xpose.msra.mxu0 0
        %1416 = vmatprep.subr.bf16.mxu0 0
        %1417 = vmatpush2.bf16.xpose.msra.mxu0 0
        %1418 = vmatprep.subr.bf16.mxu0 0
        %1419 = vmatpush2.bf16.xpose.msra.mxu0 0
        %1420 = vmatprep.subr.bf16.mxu0 0
        %1421 = vmatpush2.bf16.xpose.msra.mxu0 0
        %1422 = vmatprep.subr.bf16.mxu0 0
        %1423 = vmatpush2.bf16.xpose.msra.mxu0 0
        %1424 = vmatprep.subr.bf16.mxu0 0
        %1425 = vmatpush2.bf16.xpose.msra.mxu0 0
        %1426 = vmatprep.subr.bf16.mxu0 0
        %1427 = vmatpush2.bf16.xpose.msra.mxu0 0
        %1428 = vmatprep.subr.bf16.mxu0 0
        %1429 = vmatpush2.bf16.xpose.msra.mxu0 0
        %1430 = vmatprep.mubr.bf16.mxu0 0
        %1431 = vmatmul.mubr.bf16.gmra.mxu0 %v1393
        %v1432 = vpop.f32.mrf.mxu0
        %v1433 = vadd.f32 0.0, %v1432
        %v1434 = vpop.f32.mrf.mxu0
        %v1435 = vpop.f32.mrf.mxu0
        %v1436 = vpop.f32.mrf.mxu0
        %1437 = vdwg.mxu0
        %v1439 = vsel %vm1299, %v1290, 0
        %v1442 = vsel %vm1299, %v1296, 0
        %1444 = vmatprep.subr.bf16.mxu0 0
        %1445 = vmatpush1.bf16.xpose.msra.mxu0 0
        %1446 = vmatprep.subr.bf16.mxu0 0
        %1447 = vmatpush1.bf16.xpose.msra.mxu0 0
        %1448 = vmatprep.subr.bf16.mxu0 0
        %1449 = vmatpush1.bf16.xpose.msra.mxu0 0
        %1450 = vmatprep.subr.bf16.mxu0 0
        %1451 = vmatpush1.bf16.xpose.msra.mxu0 0
        %1452 = vmatprep.subr.bf16.mxu0 0
        %1453 = vmatpush1.bf16.xpose.msra.mxu0 0
        %1454 = vmatprep.subr.bf16.mxu0 0
        %1455 = vmatpush1.bf16.xpose.msra.mxu0 0
        %1456 = vmatprep.subr.bf16.mxu0 0
        %1457 = vmatpush1.bf16.xpose.msra.mxu0 0
        %1458 = vmatprep.subr.bf16.mxu0 0
        %1459 = vmatpush1.bf16.xpose.msra.mxu0 %v1442
        %1460 = vmatprep.subr.bf16.mxu0 0
        %1461 = vmatpush2.bf16.xpose.msra.mxu0 0
        %1462 = vmatprep.subr.bf16.mxu0 0
        %1463 = vmatpush2.bf16.xpose.msra.mxu0 0
        %1464 = vmatprep.subr.bf16.mxu0 0
        %1465 = vmatpush2.bf16.xpose.msra.mxu0 0
        %1466 = vmatprep.subr.bf16.mxu0 0
        %1467 = vmatpush2.bf16.xpose.msra.mxu0 0
        %1468 = vmatprep.subr.bf16.mxu0 0
        %1469 = vmatpush2.bf16.xpose.msra.mxu0 0
        %1470 = vmatprep.subr.bf16.mxu0 0
        %1471 = vmatpush2.bf16.xpose.msra.mxu0 0
        %1472 = vmatprep.subr.bf16.mxu0 0
        %1473 = vmatpush2.bf16.xpose.msra.mxu0 0
        %1474 = vmatprep.subr.bf16.mxu0 0
        %1475 = vmatpush2.bf16.xpose.msra.mxu0 0
        %1476 = vmatprep.mubr.bf16.mxu0 0
        %1477 = vmatmul.mubr.bf16.gmra.mxu0 %v1439
        %v1478 = vpop.f32.mrf.mxu0
        %v1479 = vadd.f32 0.0, %v1478
        %v1480 = vpop.f32.mrf.mxu0
        %v1481 = vpop.f32.mrf.mxu0
        %v1482 = vpop.f32.mrf.mxu0
        %1483 = vdwg.mxu0
        %v1485 = vsel %vm1299, %v1291, 0
        %v1488 = vsel %vm1299, %v1297, 0
        %1490 = vmatprep.subr.bf16.mxu0 0
        %1491 = vmatpush1.bf16.xpose.msra.mxu0 0
        %1492 = vmatprep.subr.bf16.mxu0 0
        %1493 = vmatpush1.bf16.xpose.msra.mxu0 0
        %1494 = vmatprep.subr.bf16.mxu0 0
        %1495 = vmatpush1.bf16.xpose.msra.mxu0 0
        %1496 = vmatprep.subr.bf16.mxu0 0
        %1497 = vmatpush1.bf16.xpose.msra.mxu0 0
        %1498 = vmatprep.subr.bf16.mxu0 0
        %1499 = vmatpush1.bf16.xpose.msra.mxu0 0
        %1500 = vmatprep.subr.bf16.mxu0 0
        %1501 = vmatpush1.bf16.xpose.msra.mxu0 0
        %1502 = vmatprep.subr.bf16.mxu0 0
        %1503 = vmatpush1.bf16.xpose.msra.mxu0 0
        %1504 = vmatprep.subr.bf16.mxu0 0
        %1505 = vmatpush1.bf16.xpose.msra.mxu0 %v1488
        %1506 = vmatprep.subr.bf16.mxu0 0
        %1507 = vmatpush2.bf16.xpose.msra.mxu0 0
        %1508 = vmatprep.subr.bf16.mxu0 0
        %1509 = vmatpush2.bf16.xpose.msra.mxu0 0
        %1510 = vmatprep.subr.bf16.mxu0 0
        %1511 = vmatpush2.bf16.xpose.msra.mxu0 0
        %1512 = vmatprep.subr.bf16.mxu0 0
        %1513 = vmatpush2.bf16.xpose.msra.mxu0 0
        %1514 = vmatprep.subr.bf16.mxu0 0
        %1515 = vmatpush2.bf16.xpose.msra.mxu0 0
        %1516 = vmatprep.subr.bf16.mxu0 0
        %1517 = vmatpush2.bf16.xpose.msra.mxu0 0
        %1518 = vmatprep.subr.bf16.mxu0 0
        %1519 = vmatpush2.bf16.xpose.msra.mxu0 0
        %1520 = vmatprep.subr.bf16.mxu0 0
        %1521 = vmatpush2.bf16.xpose.msra.mxu0 0
        %1522 = vmatprep.mubr.bf16.mxu0 0
        %1523 = vmatmul.mubr.bf16.gmra.mxu0 %v1485
        %v1524 = vpop.f32.mrf.mxu0
        %v1525 = vadd.f32 0.0, %v1524
        %v1526 = vpop.f32.mrf.mxu0
        %v1527 = vpop.f32.mrf.mxu0
        %v1528 = vpop.f32.mrf.mxu0
        %1529 = vdwg.mxu0
        %v1531 = vsel %vm1299, %v1292, 0
        %v1534 = vsel %vm1299, %v1298, 0
        %1536 = vmatprep.subr.bf16.mxu0 0
        %1537 = vmatpush1.bf16.xpose.msra.mxu0 0
        %1538 = vmatprep.subr.bf16.mxu0 0
        %1539 = vmatpush1.bf16.xpose.msra.mxu0 0
        %1540 = vmatprep.subr.bf16.mxu0 0
        %1541 = vmatpush1.bf16.xpose.msra.mxu0 0
        %1542 = vmatprep.subr.bf16.mxu0 0
        %1543 = vmatpush1.bf16.xpose.msra.mxu0 0
        %1544 = vmatprep.subr.bf16.mxu0 0
        %1545 = vmatpush1.bf16.xpose.msra.mxu0 0
        %1546 = vmatprep.subr.bf16.mxu0 0
        %1547 = vmatpush1.bf16.xpose.msra.mxu0 0
        %1548 = vmatprep.subr.bf16.mxu0 0
        %1549 = vmatpush1.bf16.xpose.msra.mxu0 0
        %1550 = vmatprep.subr.bf16.mxu0 0
        %1551 = vmatpush1.bf16.xpose.msra.mxu0 %v1534
        %1552 = vmatprep.subr.bf16.mxu0 0
        %1553 = vmatpush2.bf16.xpose.msra.mxu0 0
        %1554 = vmatprep.subr.bf16.mxu0 0
        %1555 = vmatpush2.bf16.xpose.msra.mxu0 0
        %1556 = vmatprep.subr.bf16.mxu0 0
        %1557 = vmatpush2.bf16.xpose.msra.mxu0 0
        %1558 = vmatprep.subr.bf16.mxu0 0
        %1559 = vmatpush2.bf16.xpose.msra.mxu0 0
        %1560 = vmatprep.subr.bf16.mxu0 0
        %1561 = vmatpush2.bf16.xpose.msra.mxu0 0
        %1562 = vmatprep.subr.bf16.mxu0 0
        %1563 = vmatpush2.bf16.xpose.msra.mxu0 0
        %1564 = vmatprep.subr.bf16.mxu0 0
        %1565 = vmatpush2.bf16.xpose.msra.mxu0 0
        %1566 = vmatprep.subr.bf16.mxu0 0
        %1567 = vmatpush2.bf16.xpose.msra.mxu0 0
        %1568 = vmatprep.mubr.bf16.mxu0 0
        %1569 = vmatmul.mubr.bf16.gmra.mxu0 %v1531
        %v1570 = vpop.f32.mrf.mxu0
        %v1571 = vadd.f32 0.0, %v1570
        %v1572 = vpop.f32.mrf.mxu0
        %v1573 = vpop.f32.mrf.mxu0
        %v1574 = vpop.f32.mrf.mxu0
        %1575 = vdwg.mxu0
        %v1576 = vmul.f32 %v1341, 0.35355338
        %v1577 = vmul.f32 %v1387, 0.35355338
        %v1578 = vmul.f32 %v1433, 0.35355338
        %v1579 = vmul.f32 %v1479, 0.35355338
        %v1580 = vmul.f32 %v1525, 0.35355338
        %v1581 = vmul.f32 %v1571, 0.35355338
        %v1582 = vlaneseq
        %v1583 = vshrl.u32 %v1582, 7
        %v1584 = vlaneseq
        %v1585 = vand.u32 %v1584, 127
        %vm1586 = vcmp.le.s32.totalorder %v1585, %v1583
        %v1587 = vsel %vm1586, 1, 0
        %vm1588 = vcmp.eq.s32.totalorder %v1587, 1
        %v1589 = vsel %vm1588, %v1576, -1e+30
        %v1590 = vsel %vm1588, %v1577, -1e+30
        %v1591 = vsel %vm1588, %v1578, -1e+30
        %v1592 = vsel %vm1588, %v1579, -1e+30
        %v1593 = vsel %vm1588, %v1580, -1e+30
        %v1594 = vsel %vm1588, %v1581, -1e+30
        %v1595 = vsel %vm1299, %v1589, -inf
        %1596 = vmax.xlane.f32.xlu0 %v1595
        %v1597 = vpop.xlane.xlu0 %1596
        %v1598 = vsel %vm1299, %v1590, -inf
        %1599 = vmax.xlane.f32.xlu0 %v1598
        %v1600 = vpop.xlane.xlu0 %1599
        %v1601 = vsel %vm1299, %v1591, -inf
        %1602 = vmax.xlane.f32.xlu0 %v1601
        %v1603 = vpop.xlane.xlu0 %1602
        %v1604 = vsel %vm1299, %v1592, -inf
        %1605 = vmax.xlane.f32.xlu0 %v1604
        %v1606 = vpop.xlane.xlu0 %1605
        %v1607 = vsel %vm1299, %v1593, -inf
        %1608 = vmax.xlane.f32.xlu0 %v1607
        %v1609 = vpop.xlane.xlu0 %1608
        %v1610 = vsel %vm1299, %v1594, -inf
        %1611 = vmax.xlane.f32.xlu0 %v1610
        %v1612 = vpop.xlane.xlu0 %1611
        %v1613 = vsub.f32 %v1589, %v1597
        %v1614 = vsub.f32 %v1590, %v1600
        %v1615 = vsub.f32 %v1591, %v1603
        %v1616 = vsub.f32 %v1592, %v1606
        %v1617 = vsub.f32 %v1593, %v1609
        %v1618 = vsub.f32 %v1594, %v1612
        %v1619 = vmul.f32 %v1613, 1.442695
        %v1620 = vpow.pop %v1619
        %v1621 = vmul.f32 %v1614, 1.442695
        %v1622 = vpow.pop %v1621
        %v1623 = vmul.f32 %v1615, 1.442695
        %v1624 = vpow.pop %v1623
        %v1625 = vmul.f32 %v1616, 1.442695
        %v1626 = vpow.pop %v1625
        %v1627 = vmul.f32 %v1617, 1.442695
        %v1628 = vpow.pop %v1627
        %v1629 = vmul.f32 %v1618, 1.442695
        %v1630 = vpow.pop %v1629
        %v1631 = vsel %vm1299, %v1620, 0.0
        %1632 = vadd.xlane.f32.xlu0 %v1631
        %v1633 = vpop.xlane.xlu0 %1632
        %v1634 = vsel %vm1299, %v1622, 0.0
        %1635 = vadd.xlane.f32.xlu0 %v1634
        %v1636 = vpop.xlane.xlu0 %1635
        %v1637 = vsel %vm1299, %v1624, 0.0
        %1638 = vadd.xlane.f32.xlu0 %v1637
        %v1639 = vpop.xlane.xlu0 %1638
        %v1640 = vsel %vm1299, %v1626, 0.0
        %1641 = vadd.xlane.f32.xlu0 %v1640
        %v1642 = vpop.xlane.xlu0 %1641
        %v1643 = vsel %vm1299, %v1628, 0.0
        %1644 = vadd.xlane.f32.xlu0 %v1643
        %v1645 = vpop.xlane.xlu0 %1644
        %v1646 = vsel %vm1299, %v1630, 0.0
        %1647 = vadd.xlane.f32.xlu0 %v1646
        %v1648 = vpop.xlane.xlu0 %1647
        %v1649 = vrcp.pop %v1633
        %v1650 = vrcp.pop %v1636
        %v1651 = vrcp.pop %v1639
        %v1652 = vrcp.pop %v1642
        %v1653 = vrcp.pop %v1645
        %v1654 = vrcp.pop %v1648
        %v1655 = vmul.f32 %v1620, %v1649
        %v1656 = vmul.f32 %v1622, %v1650
        %v1657 = vmul.f32 %v1624, %v1651
        %v1658 = vmul.f32 %v1626, %v1652
        %v1659 = vmul.f32 %v1628, %v1653
        %v1660 = vmul.f32 %v1630, %v1654
        %v1661 = vpack.c.bf16 %v1655, %v1655
        %v1662 = vpack.c.bf16 %v1656, %v1656
        %v1663 = vpack.c.bf16 %v1657, %v1657
        %v1664 = vpack.c.bf16 %v1658, %v1658
        %v1665 = vpack.c.bf16 %v1659, %v1659
        %v1666 = vpack.c.bf16 %v1660, %v1660
        %v1667 = vpack.c.bf16 %v1233, %v1233
        %v1668 = vpack.c.bf16 %v1234, %v1234
        %v1669 = vpack.c.bf16 %v1235, %v1235
        %v1670 = vpack.c.bf16 %v1236, %v1236
        %v1671 = vpack.c.bf16 %v1285, %v1285
        %v1672 = vpack.c.bf16 %v1286, %v1286
        %v1674 = vsel %vm1299, %v1661, 0
        %vm1676 = vcmask 1043456
        %v1678 = vsel %vm1676, %v1667, 0
        %1680 = vmatprep.subr.bf16.mxu0 0
        %1681 = vmatpush1.bf16.msra.mxu0 0
        %1682 = vmatprep.subr.bf16.mxu0 0
        %1683 = vmatpush1.bf16.msra.mxu0 0
        %1684 = vmatprep.subr.bf16.mxu0 0
        %1685 = vmatpush1.bf16.msra.mxu0 0
        %1686 = vmatprep.subr.bf16.mxu0 0
        %1687 = vmatpush1.bf16.msra.mxu0 0
        %1688 = vmatprep.subr.bf16.mxu0 0
        %1689 = vmatpush1.bf16.msra.mxu0 0
        %1690 = vmatprep.subr.bf16.mxu0 0
        %1691 = vmatpush1.bf16.msra.mxu0 0
        %1692 = vmatprep.subr.bf16.mxu0 0
        %1693 = vmatpush1.bf16.msra.mxu0 0
        %1694 = vmatprep.subr.bf16.mxu0 0
        %1695 = vmatpush1.bf16.msra.mxu0 %v1678
        %1696 = vmatprep.subr.bf16.mxu0 0
        %1697 = vmatpush2.bf16.msra.mxu0 0
        %1698 = vmatprep.subr.bf16.mxu0 0
        %1699 = vmatpush2.bf16.msra.mxu0 0
        %1700 = vmatprep.subr.bf16.mxu0 0
        %1701 = vmatpush2.bf16.msra.mxu0 0
        %1702 = vmatprep.subr.bf16.mxu0 0
        %1703 = vmatpush2.bf16.msra.mxu0 0
        %1704 = vmatprep.subr.bf16.mxu0 0
        %1705 = vmatpush2.bf16.msra.mxu0 0
        %1706 = vmatprep.subr.bf16.mxu0 0
        %1707 = vmatpush2.bf16.msra.mxu0 0
        %1708 = vmatprep.subr.bf16.mxu0 0
        %1709 = vmatpush2.bf16.msra.mxu0 0
        %1710 = vmatprep.subr.bf16.mxu0 0
        %1711 = vmatpush2.bf16.msra.mxu0 0
        %1712 = vmatprep.mubr.bf16.mxu0 0
        %1713 = vmatmul.mubr.bf16.gmra.mxu0 %v1674
        %v1714 = vpop.f32.mrf.mxu0
        %v1715 = vadd.f32 0.0, %v1714
        %v1716 = vpop.f32.mrf.mxu0
        %v1717 = vpop.f32.mrf.mxu0
        %v1718 = vpop.f32.mrf.mxu0
        %1719 = vdwg.mxu0
        %v1721 = vsel %vm1299, %v1662, 0
        %v1724 = vsel %vm1676, %v1668, 0
        %1726 = vmatprep.subr.bf16.mxu0 0
        %1727 = vmatpush1.bf16.msra.mxu0 0
        %1728 = vmatprep.subr.bf16.mxu0 0
        %1729 = vmatpush1.bf16.msra.mxu0 0
        %1730 = vmatprep.subr.bf16.mxu0 0
        %1731 = vmatpush1.bf16.msra.mxu0 0
        %1732 = vmatprep.subr.bf16.mxu0 0
        %1733 = vmatpush1.bf16.msra.mxu0 0
        %1734 = vmatprep.subr.bf16.mxu0 0
        %1735 = vmatpush1.bf16.msra.mxu0 0
        %1736 = vmatprep.subr.bf16.mxu0 0
        %1737 = vmatpush1.bf16.msra.mxu0 0
        %1738 = vmatprep.subr.bf16.mxu0 0
        %1739 = vmatpush1.bf16.msra.mxu0 0
        %1740 = vmatprep.subr.bf16.mxu0 0
        %1741 = vmatpush1.bf16.msra.mxu0 %v1724
        %1742 = vmatprep.subr.bf16.mxu0 0
        %1743 = vmatpush2.bf16.msra.mxu0 0
        %1744 = vmatprep.subr.bf16.mxu0 0
        %1745 = vmatpush2.bf16.msra.mxu0 0
        %1746 = vmatprep.subr.bf16.mxu0 0
        %1747 = vmatpush2.bf16.msra.mxu0 0
        %1748 = vmatprep.subr.bf16.mxu0 0
        %1749 = vmatpush2.bf16.msra.mxu0 0
        %1750 = vmatprep.subr.bf16.mxu0 0
        %1751 = vmatpush2.bf16.msra.mxu0 0
        %1752 = vmatprep.subr.bf16.mxu0 0
        %1753 = vmatpush2.bf16.msra.mxu0 0
        %1754 = vmatprep.subr.bf16.mxu0 0
        %1755 = vmatpush2.bf16.msra.mxu0 0
        %1756 = vmatprep.subr.bf16.mxu0 0
        %1757 = vmatpush2.bf16.msra.mxu0 0
        %1758 = vmatprep.mubr.bf16.mxu0 0
        %1759 = vmatmul.mubr.bf16.gmra.mxu0 %v1721
        %v1760 = vpop.f32.mrf.mxu0
        %v1761 = vadd.f32 0.0, %v1760
        %v1762 = vpop.f32.mrf.mxu0
        %v1763 = vpop.f32.mrf.mxu0
        %v1764 = vpop.f32.mrf.mxu0
        %1765 = vdwg.mxu0
        %v1767 = vsel %vm1299, %v1663, 0
        %v1770 = vsel %vm1676, %v1669, 0
        %1772 = vmatprep.subr.bf16.mxu0 0
        %1773 = vmatpush1.bf16.msra.mxu0 0
        %1774 = vmatprep.subr.bf16.mxu0 0
        %1775 = vmatpush1.bf16.msra.mxu0 0
        %1776 = vmatprep.subr.bf16.mxu0 0
        %1777 = vmatpush1.bf16.msra.mxu0 0
        %1778 = vmatprep.subr.bf16.mxu0 0
        %1779 = vmatpush1.bf16.msra.mxu0 0
        %1780 = vmatprep.subr.bf16.mxu0 0
        %1781 = vmatpush1.bf16.msra.mxu0 0
        %1782 = vmatprep.subr.bf16.mxu0 0
        %1783 = vmatpush1.bf16.msra.mxu0 0
        %1784 = vmatprep.subr.bf16.mxu0 0
        %1785 = vmatpush1.bf16.msra.mxu0 0
        %1786 = vmatprep.subr.bf16.mxu0 0
        %1787 = vmatpush1.bf16.msra.mxu0 %v1770
        %1788 = vmatprep.subr.bf16.mxu0 0
        %1789 = vmatpush2.bf16.msra.mxu0 0
        %1790 = vmatprep.subr.bf16.mxu0 0
        %1791 = vmatpush2.bf16.msra.mxu0 0
        %1792 = vmatprep.subr.bf16.mxu0 0
        %1793 = vmatpush2.bf16.msra.mxu0 0
        %1794 = vmatprep.subr.bf16.mxu0 0
        %1795 = vmatpush2.bf16.msra.mxu0 0
        %1796 = vmatprep.subr.bf16.mxu0 0
        %1797 = vmatpush2.bf16.msra.mxu0 0
        %1798 = vmatprep.subr.bf16.mxu0 0
        %1799 = vmatpush2.bf16.msra.mxu0 0
        %1800 = vmatprep.subr.bf16.mxu0 0
        %1801 = vmatpush2.bf16.msra.mxu0 0
        %1802 = vmatprep.subr.bf16.mxu0 0
        %1803 = vmatpush2.bf16.msra.mxu0 0
        %1804 = vmatprep.mubr.bf16.mxu0 0
        %1805 = vmatmul.mubr.bf16.gmra.mxu0 %v1767
        %v1806 = vpop.f32.mrf.mxu0
        %v1807 = vadd.f32 0.0, %v1806
        %v1808 = vpop.f32.mrf.mxu0
        %v1809 = vpop.f32.mrf.mxu0
        %v1810 = vpop.f32.mrf.mxu0
        %1811 = vdwg.mxu0
        %v1813 = vsel %vm1299, %v1664, 0
        %v1816 = vsel %vm1676, %v1670, 0
        %1818 = vmatprep.subr.bf16.mxu0 0
        %1819 = vmatpush1.bf16.msra.mxu0 0
        %1820 = vmatprep.subr.bf16.mxu0 0
        %1821 = vmatpush1.bf16.msra.mxu0 0
        %1822 = vmatprep.subr.bf16.mxu0 0
        %1823 = vmatpush1.bf16.msra.mxu0 0
        %1824 = vmatprep.subr.bf16.mxu0 0
        %1825 = vmatpush1.bf16.msra.mxu0 0
        %1826 = vmatprep.subr.bf16.mxu0 0
        %1827 = vmatpush1.bf16.msra.mxu0 0
        %1828 = vmatprep.subr.bf16.mxu0 0
        %1829 = vmatpush1.bf16.msra.mxu0 0
        %1830 = vmatprep.subr.bf16.mxu0 0
        %1831 = vmatpush1.bf16.msra.mxu0 0
        %1832 = vmatprep.subr.bf16.mxu0 0
        %1833 = vmatpush1.bf16.msra.mxu0 %v1816
        %1834 = vmatprep.subr.bf16.mxu0 0
        %1835 = vmatpush2.bf16.msra.mxu0 0
        %1836 = vmatprep.subr.bf16.mxu0 0
        %1837 = vmatpush2.bf16.msra.mxu0 0
        %1838 = vmatprep.subr.bf16.mxu0 0
        %1839 = vmatpush2.bf16.msra.mxu0 0
        %1840 = vmatprep.subr.bf16.mxu0 0
        %1841 = vmatpush2.bf16.msra.mxu0 0
        %1842 = vmatprep.subr.bf16.mxu0 0
        %1843 = vmatpush2.bf16.msra.mxu0 0
        %1844 = vmatprep.subr.bf16.mxu0 0
        %1845 = vmatpush2.bf16.msra.mxu0 0
        %1846 = vmatprep.subr.bf16.mxu0 0
        %1847 = vmatpush2.bf16.msra.mxu0 0
        %1848 = vmatprep.subr.bf16.mxu0 0
        %1849 = vmatpush2.bf16.msra.mxu0 0
        %1850 = vmatprep.mubr.bf16.mxu0 0
        %1851 = vmatmul.mubr.bf16.gmra.mxu0 %v1813
        %v1852 = vpop.f32.mrf.mxu0
        %v1853 = vadd.f32 0.0, %v1852
        %v1854 = vpop.f32.mrf.mxu0
        %v1855 = vpop.f32.mrf.mxu0
        %v1856 = vpop.f32.mrf.mxu0
        %1857 = vdwg.mxu0
        %v1859 = vsel %vm1299, %v1665, 0
        %v1862 = vsel %vm1676, %v1671, 0
        %1864 = vmatprep.subr.bf16.mxu0 0
        %1865 = vmatpush1.bf16.msra.mxu0 0
        %1866 = vmatprep.subr.bf16.mxu0 0
        %1867 = vmatpush1.bf16.msra.mxu0 0
        %1868 = vmatprep.subr.bf16.mxu0 0
        %1869 = vmatpush1.bf16.msra.mxu0 0
        %1870 = vmatprep.subr.bf16.mxu0 0
        %1871 = vmatpush1.bf16.msra.mxu0 0
        %1872 = vmatprep.subr.bf16.mxu0 0
        %1873 = vmatpush1.bf16.msra.mxu0 0
        %1874 = vmatprep.subr.bf16.mxu0 0
        %1875 = vmatpush1.bf16.msra.mxu0 0
        %1876 = vmatprep.subr.bf16.mxu0 0
        %1877 = vmatpush1.bf16.msra.mxu0 0
        %1878 = vmatprep.subr.bf16.mxu0 0
        %1879 = vmatpush1.bf16.msra.mxu0 %v1862
        %1880 = vmatprep.subr.bf16.mxu0 0
        %1881 = vmatpush2.bf16.msra.mxu0 0
        %1882 = vmatprep.subr.bf16.mxu0 0
        %1883 = vmatpush2.bf16.msra.mxu0 0
        %1884 = vmatprep.subr.bf16.mxu0 0
        %1885 = vmatpush2.bf16.msra.mxu0 0
        %1886 = vmatprep.subr.bf16.mxu0 0
        %1887 = vmatpush2.bf16.msra.mxu0 0
        %1888 = vmatprep.subr.bf16.mxu0 0
        %1889 = vmatpush2.bf16.msra.mxu0 0
        %1890 = vmatprep.subr.bf16.mxu0 0
        %1891 = vmatpush2.bf16.msra.mxu0 0
        %1892 = vmatprep.subr.bf16.mxu0 0
        %1893 = vmatpush2.bf16.msra.mxu0 0
        %1894 = vmatprep.subr.bf16.mxu0 0
        %1895 = vmatpush2.bf16.msra.mxu0 0
        %1896 = vmatprep.mubr.bf16.mxu0 0
        %1897 = vmatmul.mubr.bf16.gmra.mxu0 %v1859
        %v1898 = vpop.f32.mrf.mxu0
        %v1899 = vadd.f32 0.0, %v1898
        %v1900 = vpop.f32.mrf.mxu0
        %v1901 = vpop.f32.mrf.mxu0
        %v1902 = vpop.f32.mrf.mxu0
        %1903 = vdwg.mxu0
        %v1905 = vsel %vm1299, %v1666, 0
        %v1908 = vsel %vm1676, %v1672, 0
        %1910 = vmatprep.subr.bf16.mxu0 0
        %1911 = vmatpush1.bf16.msra.mxu0 0
        %1912 = vmatprep.subr.bf16.mxu0 0
        %1913 = vmatpush1.bf16.msra.mxu0 0
        %1914 = vmatprep.subr.bf16.mxu0 0
        %1915 = vmatpush1.bf16.msra.mxu0 0
        %1916 = vmatprep.subr.bf16.mxu0 0
        %1917 = vmatpush1.bf16.msra.mxu0 0
        %1918 = vmatprep.subr.bf16.mxu0 0
        %1919 = vmatpush1.bf16.msra.mxu0 0
        %1920 = vmatprep.subr.bf16.mxu0 0
        %1921 = vmatpush1.bf16.msra.mxu0 0
        %1922 = vmatprep.subr.bf16.mxu0 0
        %1923 = vmatpush1.bf16.msra.mxu0 0
        %1924 = vmatprep.subr.bf16.mxu0 0
        %1925 = vmatpush1.bf16.msra.mxu0 %v1908
        %1926 = vmatprep.subr.bf16.mxu0 0
        %1927 = vmatpush2.bf16.msra.mxu0 0
        %1928 = vmatprep.subr.bf16.mxu0 0
        %1929 = vmatpush2.bf16.msra.mxu0 0
        %1930 = vmatprep.subr.bf16.mxu0 0
        %1931 = vmatpush2.bf16.msra.mxu0 0
        %1932 = vmatprep.subr.bf16.mxu0 0
        %1933 = vmatpush2.bf16.msra.mxu0 0
        %1934 = vmatprep.subr.bf16.mxu0 0
        %1935 = vmatpush2.bf16.msra.mxu0 0
        %1936 = vmatprep.subr.bf16.mxu0 0
        %1937 = vmatpush2.bf16.msra.mxu0 0
        %1938 = vmatprep.subr.bf16.mxu0 0
        %1939 = vmatpush2.bf16.msra.mxu0 0
        %1940 = vmatprep.subr.bf16.mxu0 0
        %1941 = vmatpush2.bf16.msra.mxu0 0
        %1942 = vmatprep.mubr.bf16.mxu0 0
        %1943 = vmatmul.mubr.bf16.gmra.mxu0 %v1905
        %v1944 = vpop.f32.mrf.mxu0
        %v1945 = vadd.f32 0.0, %v1944
        %v1946 = vpop.f32.mrf.mxu0
        %v1947 = vpop.f32.mrf.mxu0
        %v1948 = vpop.f32.mrf.mxu0
        %1949 = vdwg.mxu0
        %v1950 = vcombine.low %v1715, %v1807
        %v1951 = vcombine.high %v1715, %v1807
        %v1953 = vunpack.c.l.s4 1983009808
        %v1954 = vunpack.c.0.s8 %v1953
        %v1955 = vlaneseq
        %v1956 = vshrl.u32 %v1955, 7
        %v1957 = vsub.s32 %v1954, %v1956
        %v1958 = vrot.slane %v1950, %v1957
        %v1960 = vunpack.c.l.s4 1983009808
        %v1961 = vunpack.c.0.s8 %v1960
        %v1962 = vlaneseq
        %v1963 = vshrl.u32 %v1962, 7
        %v1964 = vsub.s32 %v1961, %v1963
        %v1965 = vrot.slane %v1951, %v1964
        %v1966 = vcombine.low %v1761, %v1853
        %v1967 = vcombine.high %v1761, %v1853
        %v1969 = vunpack.c.l.s4 1983009808
        %v1970 = vunpack.c.0.s8 %v1969
        %v1971 = vlaneseq
        %v1972 = vshrl.u32 %v1971, 7
        %v1973 = vsub.s32 %v1970, %v1972
        %v1974 = vrot.slane %v1966, %v1973
        %v1976 = vunpack.c.l.s4 1983009808
        %v1977 = vunpack.c.0.s8 %v1976
        %v1978 = vlaneseq
        %v1979 = vshrl.u32 %v1978, 7
        %v1980 = vsub.s32 %v1977, %v1979
        %v1981 = vrot.slane %v1967, %v1980
        %v1982 = vcombine.high %v1899, 0.0
        %v1984 = vunpack.c.l.s4 1983009808
        %v1985 = vunpack.c.0.s8 %v1984
        %v1986 = vlaneseq
        %v1987 = vshrl.u32 %v1986, 7
        %v1988 = vsub.s32 %v1985, %v1987
        %v1989 = vrot.slane %v1899, %v1988
        %v1991 = vunpack.c.l.s4 1983009808
        %v1992 = vunpack.c.0.s8 %v1991
        %v1993 = vlaneseq
        %v1994 = vshrl.u32 %v1993, 7
        %v1995 = vsub.s32 %v1992, %v1994
        %v1996 = vrot.slane %v1982, %v1995
        %v1997 = vcombine.high %v1945, 0.0
        %v1999 = vunpack.c.l.s4 1983009808
        %v2000 = vunpack.c.0.s8 %v1999
        %v2001 = vlaneseq
        %v2002 = vshrl.u32 %v2001, 7
        %v2003 = vsub.s32 %v2000, %v2002
        %v2004 = vrot.slane %v1945, %v2003
        %v2006 = vunpack.c.l.s4 1983009808
        %v2007 = vunpack.c.0.s8 %v2006
        %v2008 = vlaneseq
        %v2009 = vshrl.u32 %v2008, 7
        %v2010 = vsub.s32 %v2007, %v2009
        %v2011 = vrot.slane %v1997, %v2010
        %v2012 = vcombine.low %v1958, %v1974
        %v2013 = vcombine.high %v1958, %v1974
        %v2015 = vunpack.c.l.s4 1934713408
        %v2016 = vunpack.c.0.s8 %v2015
        %v2017 = vlaneseq
        %v2018 = vshrl.u32 %v2017, 7
        %v2019 = vsub.s32 %v2016, %v2018
        %v2020 = vrot.slane %v2012, %v2019
        %v2022 = vunpack.c.l.s4 1934713408
        %v2023 = vunpack.c.0.s8 %v2022
        %v2024 = vlaneseq
        %v2025 = vshrl.u32 %v2024, 7
        %v2026 = vsub.s32 %v2023, %v2025
        %v2027 = vrot.slane %v2013, %v2026
        %v2028 = vcombine.low %v1965, %v1981
        %v2029 = vcombine.high %v1965, %v1981
        %v2031 = vunpack.c.l.s4 1934713408
        %v2032 = vunpack.c.0.s8 %v2031
        %v2033 = vlaneseq
        %v2034 = vshrl.u32 %v2033, 7
        %v2035 = vsub.s32 %v2032, %v2034
        %v2036 = vrot.slane %v2028, %v2035
        %v2038 = vunpack.c.l.s4 1934713408
        %v2039 = vunpack.c.0.s8 %v2038
        %v2040 = vlaneseq
        %v2041 = vshrl.u32 %v2040, 7
        %v2042 = vsub.s32 %v2039, %v2041
        %v2043 = vrot.slane %v2029, %v2042
        %v2044 = vcombine.low %v1989, %v2004
        %v2045 = vcombine.high %v1989, %v2004
        %v2047 = vunpack.c.l.s4 1934713408
        %v2048 = vunpack.c.0.s8 %v2047
        %v2049 = vlaneseq
        %v2050 = vshrl.u32 %v2049, 7
        %v2051 = vsub.s32 %v2048, %v2050
        %v2052 = vrot.slane %v2044, %v2051
        %v2054 = vunpack.c.l.s4 1934713408
        %v2055 = vunpack.c.0.s8 %v2054
        %v2056 = vlaneseq
        %v2057 = vshrl.u32 %v2056, 7
        %v2058 = vsub.s32 %v2055, %v2057
        %v2059 = vrot.slane %v2045, %v2058
        %v2060 = vcombine.low %v1996, %v2011
        %v2061 = vcombine.high %v1996, %v2011
        %v2063 = vunpack.c.l.s4 1934713408
        %v2064 = vunpack.c.0.s8 %v2063
        %v2065 = vlaneseq
        %v2066 = vshrl.u32 %v2065, 7
        %v2067 = vsub.s32 %v2064, %v2066
        %v2068 = vrot.slane %v2060, %v2067
        %v2070 = vunpack.c.l.s4 1934713408
        %v2071 = vunpack.c.0.s8 %v2070
        %v2072 = vlaneseq
        %v2073 = vshrl.u32 %v2072, 7
        %v2074 = vsub.s32 %v2071, %v2073
        %v2075 = vrot.slane %v2061, %v2074
        %v2076 = vcombine.low %v2020, %v2052
        %v2077 = vcombine.high %v2020, %v2052
        %v2078 = vcombine.low %v2027, %v2059
        %v2079 = vcombine.high %v2027, %v2059
        %v2080 = vcombine.low %v2036, %v2068
        %v2081 = vcombine.high %v2036, %v2068
        %v2082 = vcombine.low %v2043, %v2075
        %v2083 = vcombine.high %v2043, %v2075
        %v2084 = vcombine.low %v2076, %v2078
        %v2085 = vcombine.high %v2076, %v2078
        %v2087 = vunpack.c.l.s4 1983009808
        %v2088 = vunpack.c.0.s8 %v2087
        %v2089 = vlaneseq
        %v2090 = vshrl.u32 %v2089, 7
        %v2091 = vsub.s32 %v2088, %v2090
        %v2092 = vrot.slane %v2084, %v2091
        %v2094 = vunpack.c.l.s4 1983009808
        %v2095 = vunpack.c.0.s8 %v2094
        %v2096 = vlaneseq
        %v2097 = vshrl.u32 %v2096, 7
        %v2098 = vsub.s32 %v2095, %v2097
        %v2099 = vrot.slane %v2085, %v2098
        %v2100 = vcombine.low %v2077, %v2079
        %v2101 = vcombine.high %v2077, %v2079
        %v2103 = vunpack.c.l.s4 1983009808
        %v2104 = vunpack.c.0.s8 %v2103
        %v2105 = vlaneseq
        %v2106 = vshrl.u32 %v2105, 7
        %v2107 = vsub.s32 %v2104, %v2106
        %v2108 = vrot.slane %v2100, %v2107
        %v2110 = vunpack.c.l.s4 1983009808
        %v2111 = vunpack.c.0.s8 %v2110
        %v2112 = vlaneseq
        %v2113 = vshrl.u32 %v2112, 7
        %v2114 = vsub.s32 %v2111, %v2113
        %v2115 = vrot.slane %v2101, %v2114
        %v2116 = vcombine.low %v2080, %v2082
        %v2117 = vcombine.high %v2080, %v2082
        %v2119 = vunpack.c.l.s4 1983009808
        %v2120 = vunpack.c.0.s8 %v2119
        %v2121 = vlaneseq
        %v2122 = vshrl.u32 %v2121, 7
        %v2123 = vsub.s32 %v2120, %v2122
        %v2124 = vrot.slane %v2116, %v2123
        %v2126 = vunpack.c.l.s4 1983009808
        %v2127 = vunpack.c.0.s8 %v2126
        %v2128 = vlaneseq
        %v2129 = vshrl.u32 %v2128, 7
        %v2130 = vsub.s32 %v2127, %v2129
        %v2131 = vrot.slane %v2117, %v2130
        %v2132 = vcombine.low %v2081, %v2083
        %v2133 = vcombine.high %v2081, %v2083
        %v2135 = vunpack.c.l.s4 1983009808
        %v2136 = vunpack.c.0.s8 %v2135
        %v2137 = vlaneseq
        %v2138 = vshrl.u32 %v2137, 7
        %v2139 = vsub.s32 %v2136, %v2138
        %v2140 = vrot.slane %v2132, %v2139
        %v2142 = vunpack.c.l.s4 1983009808
        %v2143 = vunpack.c.0.s8 %v2142
        %v2144 = vlaneseq
        %v2145 = vshrl.u32 %v2144, 7
        %v2146 = vsub.s32 %v2143, %v2145
        %v2147 = vrot.slane %v2133, %v2146
        %v2148 = vcombine.low %v2092, %v2108
        %v2149 = vcombine.high %v2092, %v2108
        %v2151 = vunpack.c.l.s4 1934713408
        %v2152 = vunpack.c.0.s8 %v2151
        %v2153 = vlaneseq
        %v2154 = vshrl.u32 %v2153, 7
        %v2155 = vsub.s32 %v2152, %v2154
        %v2156 = vrot.slane %v2148, %v2155
        %v2158 = vunpack.c.l.s4 1934713408
        %v2159 = vunpack.c.0.s8 %v2158
        %v2160 = vlaneseq
        %v2161 = vshrl.u32 %v2160, 7
        %v2162 = vsub.s32 %v2159, %v2161
        %v2163 = vrot.slane %v2149, %v2162
        %v2164 = vcombine.low %v2099, %v2115
        %v2166 = vunpack.c.l.s4 1934713408
        %v2167 = vunpack.c.0.s8 %v2166
        %v2168 = vlaneseq
        %v2169 = vshrl.u32 %v2168, 7
        %v2170 = vsub.s32 %v2167, %v2169
        %v2171 = vrot.slane %v2164, %v2170
        %v2172 = vcombine.low %v2124, %v2140
        %v2173 = vcombine.high %v2124, %v2140
        %v2175 = vunpack.c.l.s4 1934713408
        %v2176 = vunpack.c.0.s8 %v2175
        %v2177 = vlaneseq
        %v2178 = vshrl.u32 %v2177, 7
        %v2179 = vsub.s32 %v2176, %v2178
        %v2180 = vrot.slane %v2172, %v2179
        %v2182 = vunpack.c.l.s4 1934713408
        %v2183 = vunpack.c.0.s8 %v2182
        %v2184 = vlaneseq
        %v2185 = vshrl.u32 %v2184, 7
        %v2186 = vsub.s32 %v2183, %v2185
        %v2187 = vrot.slane %v2173, %v2186
        %v2188 = vcombine.low %v2131, %v2147
        %v2190 = vunpack.c.l.s4 1934713408
        %v2191 = vunpack.c.0.s8 %v2190
        %v2192 = vlaneseq
        %v2193 = vshrl.u32 %v2192, 7
        %v2194 = vsub.s32 %v2191, %v2193
        %v2195 = vrot.slane %v2188, %v2194
        %v2196 = vcombine.low %v2156, %v2180
        %v2197 = vcombine.high %v2156, %v2180
        %v2198 = vcombine.low %v2163, %v2187
        %v2199 = vcombine.high %v2163, %v2187
        %v2200 = vcombine.low %v2171, %v2195
        %v2201 = vcombine.high %v2171, %v2195
        %2203 = vrot.lane.b32.xlu0 %v2197, 8
        %v2204 = vpop.permute.xlu0 %2203
        %2207 = vrot.lane.b32.xlu0 %v2198, 16
        %v2208 = vpop.permute.xlu0 %2207
        %2211 = vrot.lane.b32.xlu0 %v2199, 24
        %v2212 = vpop.permute.xlu0 %2211
        %2215 = vrot.lane.b32.xlu0 %v2200, 32
        %v2216 = vpop.permute.xlu0 %2215
        %2219 = vrot.lane.b32.xlu0 %v2201, 40
        %v2220 = vpop.permute.xlu0 %2219
        %v2222 = vsel %vm1299, %v2196, %v2204
        %vm2223 = vcmask 130048
        %v2224 = vsel %vm2223, %v2222, %v2208
        %vm2225 = vcmask 195584
        %v2226 = vsel %vm2225, %v2224, %v2212
        %vm2227 = vcmask 261120
        %v2228 = vsel %vm2227, %v2226, %v2216
        %vm2229 = vcmask 326656
        %v2230 = vsel %vm2229, %v2228, %v2220
        %v2231 = vpack.c.bf16 %v2230, %v2230
        %v2238 = vunpack.c.l.b16 %v460
        %v2239 = vunpack.c.l.b16 %v461
        %v2240 = vunpack.c.l.b16 %v462
        %v2241 = vunpack.c.l.b16 %v463
        %v2242 = vunpack.c.l.b16 %v464
        %v2243 = vunpack.c.l.b16 %v465
        %v2244 = vpack.c.b16 %v2239, %v2238
        %v2245 = vpack.c.b16 %v2241, %v2240
        %v2246 = vpack.c.b16 %v2243, %v2242
        %v2251 = vsel %vm486, %v2231, 0
        %2253 = vmatprep.subr.bf16.mxu0 0
        %2254 = vmatpush1.bf16.msra.mxu0 0
        %2255 = vmatprep.subr.bf16.mxu0 0
        %2256 = vmatpush1.bf16.msra.mxu0 0
        %2257 = vmatprep.subr.bf16.mxu0 0
        %2258 = vmatpush1.bf16.msra.mxu0 0
        %2259 = vmatprep.subr.bf16.mxu0 0
        %2260 = vmatpush1.bf16.msra.mxu0 0
        %2261 = vmatprep.subr.bf16.mxu0 0
        %2262 = vmatpush1.bf16.msra.mxu0 0
        %2263 = vmatprep.subr.bf16.mxu0 0
        %2264 = vmatpush1.bf16.msra.mxu0 %v2246
        %2265 = vmatprep.subr.bf16.mxu0 0
        %2266 = vmatpush1.bf16.msra.mxu0 %v2245
        %2267 = vmatprep.subr.bf16.mxu0 0
        %2268 = vmatpush1.bf16.msra.mxu0 %v2244
        %2269 = vmatprep.subr.bf16.mxu0 0
        %2270 = vmatpush2.bf16.msra.mxu0 0
        %2271 = vmatprep.subr.bf16.mxu0 0
        %2272 = vmatpush2.bf16.msra.mxu0 0
        %2273 = vmatprep.subr.bf16.mxu0 0
        %2274 = vmatpush2.bf16.msra.mxu0 0
        %2275 = vmatprep.subr.bf16.mxu0 0
        %2276 = vmatpush2.bf16.msra.mxu0 0
        %2277 = vmatprep.subr.bf16.mxu0 0
        %2278 = vmatpush2.bf16.msra.mxu0 0
        %2279 = vmatprep.subr.bf16.mxu0 0
        %2280 = vmatpush2.bf16.msra.mxu0 0
        %2281 = vmatprep.subr.bf16.mxu0 0
        %2282 = vmatpush2.bf16.msra.mxu0 0
        %2283 = vmatprep.subr.bf16.mxu0 0
        %2284 = vmatpush2.bf16.msra.mxu0 0
        %2285 = vmatprep.mubr.bf16.mxu0 0
        %2286 = vmatmul.mubr.bf16.gmra.mxu0 %v2251
        %v2287 = vpop.f32.mrf.mxu0
        %v2288 = vadd.f32 0.0, %v2287
        %v2289 = vpop.f32.mrf.mxu0
        %v2290 = vpop.f32.mrf.mxu0
        %v2291 = vpop.f32.mrf.mxu0
        %2292 = vdwg.mxu0
        %v2293 = vadd.f32 %v452, %v2288
        %v2294 = vmul.f32 %v2293, %v2293
        %v2295 = vsel %vm486, %v2294, 0.0
        %2296 = vadd.xlane.f32.xlu0 %v2295
        %v2297 = vpop.xlane.xlu0 %2296
        %v2298 = vmul.f32 %v2297, %v490
        %v2299 = vadd.f32 %v2298, 1e-05
        %v2300 = vrsqrt.pop %v2299
        %v2301 = vmul.f32 %v2293, %v2300
        %v2303 = vlaneseq
        %v2304 = vshrl.u32 %v2303, 7
        %v2305 = vsub.s32 0, %v2304
        %v2306 = vrot.slane %v466, %v2305
        %v2308 = vmul.f32 %v2301, %v2306
        %v2309 = vpack.c.bf16 %v2308, %v2308
        %v2316 = vunpack.c.l.b16 %v467
        %v2317 = vunpack.c.h.b16 %v467
        %v2318 = vunpack.c.l.b16 %v468
        %v2319 = vunpack.c.h.b16 %v468
        %v2320 = vunpack.c.l.b16 %v469
        %v2321 = vunpack.c.h.b16 %v469
        %v2322 = vunpack.c.l.b16 %v470
        %v2323 = vunpack.c.h.b16 %v470
        %v2324 = vunpack.c.l.b16 %v471
        %v2325 = vunpack.c.h.b16 %v471
        %v2326 = vunpack.c.l.b16 %v472
        %v2327 = vunpack.c.h.b16 %v472
        %v2328 = vpack.c.b16 %v2318, %v2316
        %v2329 = vpack.c.b16 %v2319, %v2317
        %v2330 = vpack.c.b16 %v2322, %v2320
        %v2331 = vpack.c.b16 %v2323, %v2321
        %v2332 = vpack.c.b16 %v2326, %v2324
        %v2333 = vpack.c.b16 %v2327, %v2325
        %v2341 = vsel %vm486, %v2309, 0
        %2343 = vmatprep.subr.bf16.mxu0 0
        %2344 = vmatpush1.bf16.msra.mxu0 0
        %2345 = vmatprep.subr.bf16.mxu0 0
        %2346 = vmatpush1.bf16.msra.mxu0 0
        %2347 = vmatprep.subr.bf16.mxu0 0
        %2348 = vmatpush1.bf16.msra.mxu0 0
        %2349 = vmatprep.subr.bf16.mxu0 0
        %2350 = vmatpush1.bf16.msra.mxu0 0
        %2351 = vmatprep.subr.bf16.mxu0 0
        %2352 = vmatpush1.bf16.msra.mxu0 0
        %2353 = vmatprep.subr.bf16.mxu0 %v2333
        %2354 = vmatpush1.bf16.msra.mxu0 %v2332
        %2355 = vmatprep.subr.bf16.mxu0 %v2331
        %2356 = vmatpush1.bf16.msra.mxu0 %v2330
        %2357 = vmatprep.subr.bf16.mxu0 %v2329
        %2358 = vmatpush1.bf16.msra.mxu0 %v2328
        %2359 = vmatprep.subr.bf16.mxu0 0
        %2360 = vmatpush2.bf16.msra.mxu0 0
        %2361 = vmatprep.subr.bf16.mxu0 0
        %2362 = vmatpush2.bf16.msra.mxu0 0
        %2363 = vmatprep.subr.bf16.mxu0 0
        %2364 = vmatpush2.bf16.msra.mxu0 0
        %2365 = vmatprep.subr.bf16.mxu0 0
        %2366 = vmatpush2.bf16.msra.mxu0 0
        %2367 = vmatprep.subr.bf16.mxu0 0
        %2368 = vmatpush2.bf16.msra.mxu0 0
        %2369 = vmatprep.subr.bf16.mxu0 0
        %2370 = vmatpush2.bf16.msra.mxu0 0
        %2371 = vmatprep.subr.bf16.mxu0 0
        %2372 = vmatpush2.bf16.msra.mxu0 0
        %2373 = vmatprep.subr.bf16.mxu0 0
        %2374 = vmatpush2.bf16.msra.mxu0 0
        %2375 = vmatprep.mubr.bf16.mxu0 0
        %2376 = vmatmul.mubr.bf16.gmra.mxu0 %v2341
        %v2377 = vpop.f32.mrf.mxu0
        %v2378 = vadd.f32 0.0, %v2377
        %v2379 = vpop.f32.mrf.mxu0
        %v2380 = vadd.f32 0.0, %v2379
        %v2381 = vpop.f32.mrf.mxu0
        %v2382 = vpop.f32.mrf.mxu0
        %2383 = vdwg.mxu0
        %v2384 = vxor.u32 %v2378, 2147483648
        %v2385 = vmul.f32 %v2384, 1.442695
        %v2386 = vpow.pop %v2385
        %v2387 = vadd.f32 %v2386, 1.0
        %v2388 = vrcp.pop %v2387
        %v2389 = vmul.f32 1.0, %v2388
        %v2390 = vmul.f32 %v2378, %v2389
        %2393 = vrot.lane.b32.xlu0 %v2378, 32
        %v2394 = vpop.permute.xlu0 %2393
        %2395 = vrot.lane.b32.xlu0 %v2380, 32
        %v2396 = vpop.permute.xlu0 %2395
        %v2397 = vsel %vm2227, %v2394, %v2396
        %v2399 = vmul.f32 %v2390, %v2397
        %v2400 = vpack.c.bf16 %v2399, %v2399
        %v2413 = vunpack.c.l.b16 %v473
        %v2414 = vunpack.c.l.b16 %v474
        %v2415 = vunpack.c.l.b16 %v475
        %v2416 = vunpack.c.l.b16 %v476
        %v2417 = vunpack.c.l.b16 %v477
        %v2418 = vunpack.c.l.b16 %v478
        %v2419 = vunpack.c.l.b16 %v479
        %v2420 = vunpack.c.l.b16 %v480
        %v2421 = vunpack.c.l.b16 %v481
        %v2422 = vunpack.c.l.b16 %v482
        %v2423 = vunpack.c.l.b16 %v483
        %v2424 = vunpack.c.l.b16 %v484
        %v2425 = vpack.c.b16 %v2414, %v2413
        %v2426 = vpack.c.b16 %v2416, %v2415
        %v2427 = vpack.c.b16 %v2418, %v2417
        %v2428 = vpack.c.b16 %v2420, %v2419
        %v2429 = vpack.c.b16 %v2422, %v2421
        %v2430 = vpack.c.b16 %v2424, %v2423
        %vm2437 = vcmask 785408
        %v2439 = vsel %vm2437, %v2400, 0
        %2441 = vmatprep.subr.bf16.mxu0 0
        %2442 = vmatpush1.bf16.msra.mxu0 0
        %2443 = vmatprep.subr.bf16.mxu0 0
        %2444 = vmatpush1.bf16.msra.mxu0 0
        %2445 = vmatprep.subr.bf16.mxu0 0
        %2446 = vmatpush1.bf16.msra.mxu0 %v2430
        %2447 = vmatprep.subr.bf16.mxu0 0
        %2448 = vmatpush1.bf16.msra.mxu0 %v2429
        %2449 = vmatprep.subr.bf16.mxu0 0
        %2450 = vmatpush1.bf16.msra.mxu0 %v2428
        %2451 = vmatprep.subr.bf16.mxu0 0
        %2452 = vmatpush1.bf16.msra.mxu0 %v2427
        %2453 = vmatprep.subr.bf16.mxu0 0
        %2454 = vmatpush1.bf16.msra.mxu0 %v2426
        %2455 = vmatprep.subr.bf16.mxu0 0
        %2456 = vmatpush1.bf16.msra.mxu0 %v2425
        %2457 = vmatprep.subr.bf16.mxu0 0
        %2458 = vmatpush2.bf16.msra.mxu0 0
        %2459 = vmatprep.subr.bf16.mxu0 0
        %2460 = vmatpush2.bf16.msra.mxu0 0
        %2461 = vmatprep.subr.bf16.mxu0 0
        %2462 = vmatpush2.bf16.msra.mxu0 0
        %2463 = vmatprep.subr.bf16.mxu0 0
        %2464 = vmatpush2.bf16.msra.mxu0 0
        %2465 = vmatprep.subr.bf16.mxu0 0
        %2466 = vmatpush2.bf16.msra.mxu0 0
        %2467 = vmatprep.subr.bf16.mxu0 0
        %2468 = vmatpush2.bf16.msra.mxu0 0
        %2469 = vmatprep.subr.bf16.mxu0 0
        %2470 = vmatpush2.bf16.msra.mxu0 0
        %2471 = vmatprep.subr.bf16.mxu0 0
        %2472 = vmatpush2.bf16.msra.mxu0 0
        %2473 = vmatprep.mubr.bf16.mxu0 0
        %2474 = vmatmul.mubr.bf16.gmra.mxu0 %v2439
        %v2475 = vpop.f32.mrf.mxu0
        %v2476 = vadd.f32 0.0, %v2475
        %v2477 = vpop.f32.mrf.mxu0
        %v2478 = vpop.f32.mrf.mxu0
        %v2479 = vpop.f32.mrf.mxu0
        %2480 = vdwg.mxu0
        %v2481 = vadd.f32 %v2293, %v2476
        %s2482 = scalar_lea.vmem %s4, 1
        %v2483 = vld [vmem:[%s2482] sm:$0x1]
        %s2484 = scalar_lea.vmem %s5, 48
        %v2485 = vld [vmem:[%s2484] sm:$0xff]
        %v2486 = vld [vmem:[%s2484 + $0x8] sm:$0xff]
        %v2487 = vld [vmem:[%s2484 + $0x10] sm:$0xff]
        %v2488 = vld [vmem:[%s2484 + $0x18] sm:$0xff]
        %v2489 = vld [vmem:[%s2484 + $0x20] sm:$0xff]
        %v2490 = vld [vmem:[%s2484 + $0x28] sm:$0xff]
        %s2491 = scalar_lea.vmem %s6, 24
        %v2492 = vld [vmem:[%s2491] sm:$0xf]
        %v2493 = vld [vmem:[%s2491 + $0x4] sm:$0xf]
        %v2494 = vld [vmem:[%s2491 + $0x8] sm:$0xf]
        %v2495 = vld [vmem:[%s2491 + $0xc] sm:$0xf]
        %v2496 = vld [vmem:[%s2491 + $0x10] sm:$0xf]
        %v2497 = vld [vmem:[%s2491 + $0x14] sm:$0xf]
        %s2498 = scalar_lea.vmem %s7, 1
        %v2499 = vld [vmem:[%s2498] sm:$0x1]
        %s2500 = scalar_lea.vmem %s8, 48
        %v2501 = vld [vmem:[%s2500] sm:$0xff]
        %v2502 = vld [vmem:[%s2500 + $0x8] sm:$0xff]
        %v2503 = vld [vmem:[%s2500 + $0x10] sm:$0xff]
        %v2504 = vld [vmem:[%s2500 + $0x18] sm:$0xff]
        %v2505 = vld [vmem:[%s2500 + $0x20] sm:$0xff]
        %v2506 = vld [vmem:[%s2500 + $0x28] sm:$0xff]
        %s2507 = scalar_lea.vmem %s9, 48
        %v2508 = vld [vmem:[%s2507] sm:$0xf]
        %v2509 = vld [vmem:[%s2507 + $0x4] sm:$0xf]
        %v2510 = vld [vmem:[%s2507 + $0x8] sm:$0xf]
        %v2511 = vld [vmem:[%s2507 + $0xc] sm:$0xf]
        %v2512 = vld [vmem:[%s2507 + $0x10] sm:$0xf]
        %v2513 = vld [vmem:[%s2507 + $0x14] sm:$0xf]
        %v2514 = vld [vmem:[%s2507 + $0x18] sm:$0xf]
        %v2515 = vld [vmem:[%s2507 + $0x1c] sm:$0xf]
        %v2516 = vld [vmem:[%s2507 + $0x20] sm:$0xf]
        %v2517 = vld [vmem:[%s2507 + $0x24] sm:$0xf]
        %v2518 = vld [vmem:[%s2507 + $0x28] sm:$0xf]
        %v2519 = vld [vmem:[%s2507 + $0x2c] sm:$0xf]
        %v2520 = vmul.f32 %v2481, %v2481
        %v2521 = vsel %vm486, %v2520, 0.0
        %2522 = vadd.xlane.f32.xlu0 %v2521
        %v2523 = vpop.xlane.xlu0 %2522
        %v2524 = vmul.f32 %v2523, %v490
        %v2525 = vadd.f32 %v2524, 1e-05
        %v2526 = vrsqrt.pop %v2525
        %v2527 = vmul.f32 %v2481, %v2526
        %v2529 = vlaneseq
        %v2530 = vshrl.u32 %v2529, 7
        %v2531 = vsub.s32 0, %v2530
        %v2532 = vrot.slane %v2483, %v2531
        %v2534 = vmul.f32 %v2527, %v2532
        %v2535 = vpack.c.bf16 %v2534, %v2534
        %v2542 = vunpack.c.l.b16 %v2485
        %v2543 = vunpack.c.h.b16 %v2485
        %v2544 = vunpack.c.l.b16 %v2486
        %v2545 = vunpack.c.h.b16 %v2486
        %v2546 = vunpack.c.l.b16 %v2487
        %v2547 = vunpack.c.h.b16 %v2487
        %v2548 = vunpack.c.l.b16 %v2488
        %v2549 = vunpack.c.h.b16 %v2488
        %v2550 = vunpack.c.l.b16 %v2489
        %v2551 = vunpack.c.h.b16 %v2489
        %v2552 = vunpack.c.l.b16 %v2490
        %v2553 = vunpack.c.h.b16 %v2490
        %v2554 = vpack.c.b16 %v2544, %v2542
        %v2555 = vpack.c.b16 %v2545, %v2543
        %v2556 = vpack.c.b16 %v2548, %v2546
        %v2557 = vpack.c.b16 %v2549, %v2547
        %v2558 = vpack.c.b16 %v2552, %v2550
        %v2559 = vpack.c.b16 %v2553, %v2551
        %v2567 = vsel %vm486, %v2535, 0
        %2569 = vmatprep.subr.bf16.mxu0 0
        %2570 = vmatpush1.bf16.msra.mxu0 0
        %2571 = vmatprep.subr.bf16.mxu0 0
        %2572 = vmatpush1.bf16.msra.mxu0 0
        %2573 = vmatprep.subr.bf16.mxu0 0
        %2574 = vmatpush1.bf16.msra.mxu0 0
        %2575 = vmatprep.subr.bf16.mxu0 0
        %2576 = vmatpush1.bf16.msra.mxu0 0
        %2577 = vmatprep.subr.bf16.mxu0 0
        %2578 = vmatpush1.bf16.msra.mxu0 0
        %2579 = vmatprep.subr.bf16.mxu0 %v2559
        %2580 = vmatpush1.bf16.msra.mxu0 %v2558
        %2581 = vmatprep.subr.bf16.mxu0 %v2557
        %2582 = vmatpush1.bf16.msra.mxu0 %v2556
        %2583 = vmatprep.subr.bf16.mxu0 %v2555
        %2584 = vmatpush1.bf16.msra.mxu0 %v2554
        %2585 = vmatprep.subr.bf16.mxu0 0
        %2586 = vmatpush2.bf16.msra.mxu0 0
        %2587 = vmatprep.subr.bf16.mxu0 0
        %2588 = vmatpush2.bf16.msra.mxu0 0
        %2589 = vmatprep.subr.bf16.mxu0 0
        %2590 = vmatpush2.bf16.msra.mxu0 0
        %2591 = vmatprep.subr.bf16.mxu0 0
        %2592 = vmatpush2.bf16.msra.mxu0 0
        %2593 = vmatprep.subr.bf16.mxu0 0
        %2594 = vmatpush2.bf16.msra.mxu0 0
        %2595 = vmatprep.subr.bf16.mxu0 0
        %2596 = vmatpush2.bf16.msra.mxu0 0
        %2597 = vmatprep.subr.bf16.mxu0 0
        %2598 = vmatpush2.bf16.msra.mxu0 0
        %2599 = vmatprep.subr.bf16.mxu0 0
        %2600 = vmatpush2.bf16.msra.mxu0 0
        %2601 = vmatprep.mubr.bf16.mxu0 0
        %2602 = vmatmul.mubr.bf16.gmra.mxu0 %v2567
        %v2603 = vpop.f32.mrf.mxu0
        %v2604 = vadd.f32 0.0, %v2603
        %v2605 = vpop.f32.mrf.mxu0
        %v2606 = vadd.f32 0.0, %v2605
        %v2607 = vpop.f32.mrf.mxu0
        %v2608 = vpop.f32.mrf.mxu0
        %2609 = vdwg.mxu0
        %2611 = vrot.lane.b32.xlu0 %v2604, 120
        %v2612 = vpop.permute.xlu0 %2611
        %2614 = vrot.lane.b32.xlu0 %v2604, 112
        %v2615 = vpop.permute.xlu0 %2614
        %2617 = vrot.lane.b32.xlu0 %v2604, 104
        %v2618 = vpop.permute.xlu0 %2617
        %2620 = vrot.lane.b32.xlu0 %v2604, 96
        %v2621 = vpop.permute.xlu0 %2620
        %2623 = vrot.lane.b32.xlu0 %v2604, 88
        %v2624 = vpop.permute.xlu0 %2623
        %2626 = vrot.lane.b32.xlu0 %v2604, 80
        %v2627 = vpop.permute.xlu0 %2626
        %2629 = vrot.lane.b32.xlu0 %v2604, 72
        %v2630 = vpop.permute.xlu0 %2629
        %2632 = vrot.lane.b32.xlu0 %v2604, 64
        %v2633 = vpop.permute.xlu0 %2632
        %2635 = vrot.lane.b32.xlu0 %v2604, 56
        %v2636 = vpop.permute.xlu0 %2635
        %2638 = vrot.lane.b32.xlu0 %v2604, 48
        %v2639 = vpop.permute.xlu0 %2638
        %2641 = vrot.lane.b32.xlu0 %v2604, 40
        %v2642 = vpop.permute.xlu0 %2641
        %2644 = vrot.lane.b32.xlu0 %v2604, 32
        %v2645 = vpop.permute.xlu0 %2644
        %2647 = vrot.lane.b32.xlu0 %v2604, 24
        %v2648 = vpop.permute.xlu0 %2647
        %2650 = vrot.lane.b32.xlu0 %v2604, 16
        %v2651 = vpop.permute.xlu0 %2650
        %2653 = vrot.lane.b32.xlu0 %v2604, 8
        %v2654 = vpop.permute.xlu0 %2653
        %2657 = vrot.lane.b32.xlu0 %v2606, 120
        %v2658 = vpop.permute.xlu0 %2657
        %v2660 = vcombine.low %v2604, %v2615
        %v2661 = vcombine.high %v2604, %v2615
        %v2663 = vunpack.c.l.s4 1983009808
        %v2664 = vunpack.c.0.s8 %v2663
        %v2665 = vlaneseq
        %v2666 = vshrl.u32 %v2665, 7
        %v2667 = vsub.s32 %v2664, %v2666
        %v2668 = vrot.slane %v2660, %v2667
        %v2670 = vunpack.c.l.s4 1983009808
        %v2671 = vunpack.c.0.s8 %v2670
        %v2672 = vlaneseq
        %v2673 = vshrl.u32 %v2672, 7
        %v2674 = vsub.s32 %v2671, %v2673
        %v2675 = vrot.slane %v2661, %v2674
        %v2676 = vcombine.low %v2612, %v2618
        %v2677 = vcombine.high %v2612, %v2618
        %v2679 = vunpack.c.l.s4 1983009808
        %v2680 = vunpack.c.0.s8 %v2679
        %v2681 = vlaneseq
        %v2682 = vshrl.u32 %v2681, 7
        %v2683 = vsub.s32 %v2680, %v2682
        %v2684 = vrot.slane %v2676, %v2683
        %v2686 = vunpack.c.l.s4 1983009808
        %v2687 = vunpack.c.0.s8 %v2686
        %v2688 = vlaneseq
        %v2689 = vshrl.u32 %v2688, 7
        %v2690 = vsub.s32 %v2687, %v2689
        %v2691 = vrot.slane %v2677, %v2690
        %v2692 = vcombine.low %v2621, %v2627
        %v2693 = vcombine.high %v2621, %v2627
        %v2695 = vunpack.c.l.s4 1983009808
        %v2696 = vunpack.c.0.s8 %v2695
        %v2697 = vlaneseq
        %v2698 = vshrl.u32 %v2697, 7
        %v2699 = vsub.s32 %v2696, %v2698
        %v2700 = vrot.slane %v2692, %v2699
        %v2702 = vunpack.c.l.s4 1983009808
        %v2703 = vunpack.c.0.s8 %v2702
        %v2704 = vlaneseq
        %v2705 = vshrl.u32 %v2704, 7
        %v2706 = vsub.s32 %v2703, %v2705
        %v2707 = vrot.slane %v2693, %v2706
        %v2708 = vcombine.low %v2624, %v2630
        %v2709 = vcombine.high %v2624, %v2630
        %v2711 = vunpack.c.l.s4 1983009808
        %v2712 = vunpack.c.0.s8 %v2711
        %v2713 = vlaneseq
        %v2714 = vshrl.u32 %v2713, 7
        %v2715 = vsub.s32 %v2712, %v2714
        %v2716 = vrot.slane %v2708, %v2715
        %v2718 = vunpack.c.l.s4 1983009808
        %v2719 = vunpack.c.0.s8 %v2718
        %v2720 = vlaneseq
        %v2721 = vshrl.u32 %v2720, 7
        %v2722 = vsub.s32 %v2719, %v2721
        %v2723 = vrot.slane %v2709, %v2722
        %v2724 = vcombine.low %v2668, %v2684
        %v2725 = vcombine.high %v2668, %v2684
        %v2727 = vunpack.c.l.s4 1934713408
        %v2728 = vunpack.c.0.s8 %v2727
        %v2729 = vlaneseq
        %v2730 = vshrl.u32 %v2729, 7
        %v2731 = vsub.s32 %v2728, %v2730
        %v2732 = vrot.slane %v2724, %v2731
        %v2734 = vunpack.c.l.s4 1934713408
        %v2735 = vunpack.c.0.s8 %v2734
        %v2736 = vlaneseq
        %v2737 = vshrl.u32 %v2736, 7
        %v2738 = vsub.s32 %v2735, %v2737
        %v2739 = vrot.slane %v2725, %v2738
        %v2740 = vcombine.low %v2675, %v2691
        %v2741 = vcombine.high %v2675, %v2691
        %v2743 = vunpack.c.l.s4 1934713408
        %v2744 = vunpack.c.0.s8 %v2743
        %v2745 = vlaneseq
        %v2746 = vshrl.u32 %v2745, 7
        %v2747 = vsub.s32 %v2744, %v2746
        %v2748 = vrot.slane %v2740, %v2747
        %v2750 = vunpack.c.l.s4 1934713408
        %v2751 = vunpack.c.0.s8 %v2750
        %v2752 = vlaneseq
        %v2753 = vshrl.u32 %v2752, 7
        %v2754 = vsub.s32 %v2751, %v2753
        %v2755 = vrot.slane %v2741, %v2754
        %v2756 = vcombine.low %v2700, %v2716
        %v2757 = vcombine.high %v2700, %v2716
        %v2759 = vunpack.c.l.s4 1934713408
        %v2760 = vunpack.c.0.s8 %v2759
        %v2761 = vlaneseq
        %v2762 = vshrl.u32 %v2761, 7
        %v2763 = vsub.s32 %v2760, %v2762
        %v2764 = vrot.slane %v2756, %v2763
        %v2766 = vunpack.c.l.s4 1934713408
        %v2767 = vunpack.c.0.s8 %v2766
        %v2768 = vlaneseq
        %v2769 = vshrl.u32 %v2768, 7
        %v2770 = vsub.s32 %v2767, %v2769
        %v2771 = vrot.slane %v2757, %v2770
        %v2772 = vcombine.low %v2707, %v2723
        %v2773 = vcombine.high %v2707, %v2723
        %v2775 = vunpack.c.l.s4 1934713408
        %v2776 = vunpack.c.0.s8 %v2775
        %v2777 = vlaneseq
        %v2778 = vshrl.u32 %v2777, 7
        %v2779 = vsub.s32 %v2776, %v2778
        %v2780 = vrot.slane %v2772, %v2779
        %v2782 = vunpack.c.l.s4 1934713408
        %v2783 = vunpack.c.0.s8 %v2782
        %v2784 = vlaneseq
        %v2785 = vshrl.u32 %v2784, 7
        %v2786 = vsub.s32 %v2783, %v2785
        %v2787 = vrot.slane %v2773, %v2786
        %v2788 = vcombine.low %v2732, %v2764
        %v2789 = vcombine.high %v2732, %v2764
        %v2790 = vcombine.low %v2739, %v2771
        %v2791 = vcombine.high %v2739, %v2771
        %v2792 = vcombine.low %v2748, %v2780
        %v2793 = vcombine.high %v2748, %v2780
        %v2794 = vcombine.low %v2755, %v2787
        %v2795 = vcombine.high %v2755, %v2787
        %v2796 = vcombine.low %v2633, %v2639
        %v2797 = vcombine.high %v2633, %v2639
        %v2799 = vunpack.c.l.s4 1983009808
        %v2800 = vunpack.c.0.s8 %v2799
        %v2801 = vlaneseq
        %v2802 = vshrl.u32 %v2801, 7
        %v2803 = vsub.s32 %v2800, %v2802
        %v2804 = vrot.slane %v2796, %v2803
        %v2806 = vunpack.c.l.s4 1983009808
        %v2807 = vunpack.c.0.s8 %v2806
        %v2808 = vlaneseq
        %v2809 = vshrl.u32 %v2808, 7
        %v2810 = vsub.s32 %v2807, %v2809
        %v2811 = vrot.slane %v2797, %v2810
        %v2812 = vcombine.low %v2636, %v2642
        %v2813 = vcombine.high %v2636, %v2642
        %v2815 = vunpack.c.l.s4 1983009808
        %v2816 = vunpack.c.0.s8 %v2815
        %v2817 = vlaneseq
        %v2818 = vshrl.u32 %v2817, 7
        %v2819 = vsub.s32 %v2816, %v2818
        %v2820 = vrot.slane %v2812, %v2819
        %v2822 = vunpack.c.l.s4 1983009808
        %v2823 = vunpack.c.0.s8 %v2822
        %v2824 = vlaneseq
        %v2825 = vshrl.u32 %v2824, 7
        %v2826 = vsub.s32 %v2823, %v2825
        %v2827 = vrot.slane %v2813, %v2826
        %v2828 = vcombine.low %v2645, %v2651
        %v2829 = vcombine.high %v2645, %v2651
        %v2831 = vunpack.c.l.s4 1983009808
        %v2832 = vunpack.c.0.s8 %v2831
        %v2833 = vlaneseq
        %v2834 = vshrl.u32 %v2833, 7
        %v2835 = vsub.s32 %v2832, %v2834
        %v2836 = vrot.slane %v2828, %v2835
        %v2838 = vunpack.c.l.s4 1983009808
        %v2839 = vunpack.c.0.s8 %v2838
        %v2840 = vlaneseq
        %v2841 = vshrl.u32 %v2840, 7
        %v2842 = vsub.s32 %v2839, %v2841
        %v2843 = vrot.slane %v2829, %v2842
        %v2844 = vcombine.low %v2648, %v2654
        %v2845 = vcombine.high %v2648, %v2654
        %v2847 = vunpack.c.l.s4 1983009808
        %v2848 = vunpack.c.0.s8 %v2847
        %v2849 = vlaneseq
        %v2850 = vshrl.u32 %v2849, 7
        %v2851 = vsub.s32 %v2848, %v2850
        %v2852 = vrot.slane %v2844, %v2851
        %v2854 = vunpack.c.l.s4 1983009808
        %v2855 = vunpack.c.0.s8 %v2854
        %v2856 = vlaneseq
        %v2857 = vshrl.u32 %v2856, 7
        %v2858 = vsub.s32 %v2855, %v2857
        %v2859 = vrot.slane %v2845, %v2858
        %v2860 = vcombine.low %v2804, %v2820
        %v2861 = vcombine.high %v2804, %v2820
        %v2863 = vunpack.c.l.s4 1934713408
        %v2864 = vunpack.c.0.s8 %v2863
        %v2865 = vlaneseq
        %v2866 = vshrl.u32 %v2865, 7
        %v2867 = vsub.s32 %v2864, %v2866
        %v2868 = vrot.slane %v2860, %v2867
        %v2870 = vunpack.c.l.s4 1934713408
        %v2871 = vunpack.c.0.s8 %v2870
        %v2872 = vlaneseq
        %v2873 = vshrl.u32 %v2872, 7
        %v2874 = vsub.s32 %v2871, %v2873
        %v2875 = vrot.slane %v2861, %v2874
        %v2876 = vcombine.low %v2811, %v2827
        %v2877 = vcombine.high %v2811, %v2827
        %v2879 = vunpack.c.l.s4 1934713408
        %v2880 = vunpack.c.0.s8 %v2879
        %v2881 = vlaneseq
        %v2882 = vshrl.u32 %v2881, 7
        %v2883 = vsub.s32 %v2880, %v2882
        %v2884 = vrot.slane %v2876, %v2883
        %v2886 = vunpack.c.l.s4 1934713408
        %v2887 = vunpack.c.0.s8 %v2886
        %v2888 = vlaneseq
        %v2889 = vshrl.u32 %v2888, 7
        %v2890 = vsub.s32 %v2887, %v2889
        %v2891 = vrot.slane %v2877, %v2890
        %v2892 = vcombine.low %v2836, %v2852
        %v2893 = vcombine.high %v2836, %v2852
        %v2895 = vunpack.c.l.s4 1934713408
        %v2896 = vunpack.c.0.s8 %v2895
        %v2897 = vlaneseq
        %v2898 = vshrl.u32 %v2897, 7
        %v2899 = vsub.s32 %v2896, %v2898
        %v2900 = vrot.slane %v2892, %v2899
        %v2902 = vunpack.c.l.s4 1934713408
        %v2903 = vunpack.c.0.s8 %v2902
        %v2904 = vlaneseq
        %v2905 = vshrl.u32 %v2904, 7
        %v2906 = vsub.s32 %v2903, %v2905
        %v2907 = vrot.slane %v2893, %v2906
        %v2908 = vcombine.low %v2843, %v2859
        %v2909 = vcombine.high %v2843, %v2859
        %v2911 = vunpack.c.l.s4 1934713408
        %v2912 = vunpack.c.0.s8 %v2911
        %v2913 = vlaneseq
        %v2914 = vshrl.u32 %v2913, 7
        %v2915 = vsub.s32 %v2912, %v2914
        %v2916 = vrot.slane %v2908, %v2915
        %v2918 = vunpack.c.l.s4 1934713408
        %v2919 = vunpack.c.0.s8 %v2918
        %v2920 = vlaneseq
        %v2921 = vshrl.u32 %v2920, 7
        %v2922 = vsub.s32 %v2919, %v2921
        %v2923 = vrot.slane %v2909, %v2922
        %v2924 = vcombine.low %v2868, %v2900
        %v2925 = vcombine.high %v2868, %v2900
        %v2926 = vcombine.low %v2875, %v2907
        %v2927 = vcombine.high %v2875, %v2907
        %v2928 = vcombine.low %v2884, %v2916
        %v2929 = vcombine.high %v2884, %v2916
        %v2930 = vcombine.low %v2891, %v2923
        %v2931 = vcombine.high %v2891, %v2923
        %v2932 = vcombine.high %v2606, 0.0
        %v2934 = vunpack.c.l.s4 1983009808
        %v2935 = vunpack.c.0.s8 %v2934
        %v2936 = vlaneseq
        %v2937 = vshrl.u32 %v2936, 7
        %v2938 = vsub.s32 %v2935, %v2937
        %v2939 = vrot.slane %v2606, %v2938
        %v2941 = vunpack.c.l.s4 1983009808
        %v2942 = vunpack.c.0.s8 %v2941
        %v2943 = vlaneseq
        %v2944 = vshrl.u32 %v2943, 7
        %v2945 = vsub.s32 %v2942, %v2944
        %v2946 = vrot.slane %v2932, %v2945
        %v2947 = vcombine.high %v2658, 0.0
        %v2949 = vunpack.c.l.s4 1983009808
        %v2950 = vunpack.c.0.s8 %v2949
        %v2951 = vlaneseq
        %v2952 = vshrl.u32 %v2951, 7
        %v2953 = vsub.s32 %v2950, %v2952
        %v2954 = vrot.slane %v2658, %v2953
        %v2956 = vunpack.c.l.s4 1983009808
        %v2957 = vunpack.c.0.s8 %v2956
        %v2958 = vlaneseq
        %v2959 = vshrl.u32 %v2958, 7
        %v2960 = vsub.s32 %v2957, %v2959
        %v2961 = vrot.slane %v2947, %v2960
        %v2962 = vcombine.low %v2939, %v2954
        %v2963 = vcombine.high %v2939, %v2954
        %v2965 = vunpack.c.l.s4 1934713408
        %v2966 = vunpack.c.0.s8 %v2965
        %v2967 = vlaneseq
        %v2968 = vshrl.u32 %v2967, 7
        %v2969 = vsub.s32 %v2966, %v2968
        %v2970 = vrot.slane %v2962, %v2969
        %v2972 = vunpack.c.l.s4 1934713408
        %v2973 = vunpack.c.0.s8 %v2972
        %v2974 = vlaneseq
        %v2975 = vshrl.u32 %v2974, 7
        %v2976 = vsub.s32 %v2973, %v2975
        %v2977 = vrot.slane %v2963, %v2976
        %v2978 = vcombine.low %v2946, %v2961
        %v2979 = vcombine.high %v2946, %v2961
        %v2981 = vunpack.c.l.s4 1934713408
        %v2982 = vunpack.c.0.s8 %v2981
        %v2983 = vlaneseq
        %v2984 = vshrl.u32 %v2983, 7
        %v2985 = vsub.s32 %v2982, %v2984
        %v2986 = vrot.slane %v2978, %v2985
        %v2988 = vunpack.c.l.s4 1934713408
        %v2989 = vunpack.c.0.s8 %v2988
        %v2990 = vlaneseq
        %v2991 = vshrl.u32 %v2990, 7
        %v2992 = vsub.s32 %v2989, %v2991
        %v2993 = vrot.slane %v2979, %v2992
        %v2994 = vcombine.high %v2970, 0.0
        %v2995 = vcombine.high %v2977, 0.0
        %v2996 = vcombine.high %v2986, 0.0
        %v2997 = vcombine.high %v2993, 0.0
        %v2998 = vcombine.low %v2788, %v2790
        %v2999 = vcombine.high %v2788, %v2790
        %v3001 = vunpack.c.l.s4 1983009808
        %v3002 = vunpack.c.0.s8 %v3001
        %v3003 = vlaneseq
        %v3004 = vshrl.u32 %v3003, 7
        %v3005 = vsub.s32 %v3002, %v3004
        %v3006 = vrot.slane %v2998, %v3005
        %v3008 = vunpack.c.l.s4 1983009808
        %v3009 = vunpack.c.0.s8 %v3008
        %v3010 = vlaneseq
        %v3011 = vshrl.u32 %v3010, 7
        %v3012 = vsub.s32 %v3009, %v3011
        %v3013 = vrot.slane %v2999, %v3012
        %v3014 = vcombine.low %v2789, %v2791
        %v3015 = vcombine.high %v2789, %v2791
        %v3017 = vunpack.c.l.s4 1983009808
        %v3018 = vunpack.c.0.s8 %v3017
        %v3019 = vlaneseq
        %v3020 = vshrl.u32 %v3019, 7
        %v3021 = vsub.s32 %v3018, %v3020
        %v3022 = vrot.slane %v3014, %v3021
        %v3024 = vunpack.c.l.s4 1983009808
        %v3025 = vunpack.c.0.s8 %v3024
        %v3026 = vlaneseq
        %v3027 = vshrl.u32 %v3026, 7
        %v3028 = vsub.s32 %v3025, %v3027
        %v3029 = vrot.slane %v3015, %v3028
        %v3030 = vcombine.low %v2792, %v2794
        %v3031 = vcombine.high %v2792, %v2794
        %v3033 = vunpack.c.l.s4 1983009808
        %v3034 = vunpack.c.0.s8 %v3033
        %v3035 = vlaneseq
        %v3036 = vshrl.u32 %v3035, 7
        %v3037 = vsub.s32 %v3034, %v3036
        %v3038 = vrot.slane %v3030, %v3037
        %v3040 = vunpack.c.l.s4 1983009808
        %v3041 = vunpack.c.0.s8 %v3040
        %v3042 = vlaneseq
        %v3043 = vshrl.u32 %v3042, 7
        %v3044 = vsub.s32 %v3041, %v3043
        %v3045 = vrot.slane %v3031, %v3044
        %v3046 = vcombine.low %v2793, %v2795
        %v3047 = vcombine.high %v2793, %v2795
        %v3049 = vunpack.c.l.s4 1983009808
        %v3050 = vunpack.c.0.s8 %v3049
        %v3051 = vlaneseq
        %v3052 = vshrl.u32 %v3051, 7
        %v3053 = vsub.s32 %v3050, %v3052
        %v3054 = vrot.slane %v3046, %v3053
        %v3056 = vunpack.c.l.s4 1983009808
        %v3057 = vunpack.c.0.s8 %v3056
        %v3058 = vlaneseq
        %v3059 = vshrl.u32 %v3058, 7
        %v3060 = vsub.s32 %v3057, %v3059
        %v3061 = vrot.slane %v3047, %v3060
        %v3062 = vcombine.low %v3006, %v3022
        %v3063 = vcombine.high %v3006, %v3022
        %v3065 = vunpack.c.l.s4 1934713408
        %v3066 = vunpack.c.0.s8 %v3065
        %v3067 = vlaneseq
        %v3068 = vshrl.u32 %v3067, 7
        %v3069 = vsub.s32 %v3066, %v3068
        %v3070 = vrot.slane %v3062, %v3069
        %v3072 = vunpack.c.l.s4 1934713408
        %v3073 = vunpack.c.0.s8 %v3072
        %v3074 = vlaneseq
        %v3075 = vshrl.u32 %v3074, 7
        %v3076 = vsub.s32 %v3073, %v3075
        %v3077 = vrot.slane %v3063, %v3076
        %v3078 = vcombine.low %v3013, %v3029
        %v3079 = vcombine.high %v3013, %v3029
        %v3081 = vunpack.c.l.s4 1934713408
        %v3082 = vunpack.c.0.s8 %v3081
        %v3083 = vlaneseq
        %v3084 = vshrl.u32 %v3083, 7
        %v3085 = vsub.s32 %v3082, %v3084
        %v3086 = vrot.slane %v3078, %v3085
        %v3088 = vunpack.c.l.s4 1934713408
        %v3089 = vunpack.c.0.s8 %v3088
        %v3090 = vlaneseq
        %v3091 = vshrl.u32 %v3090, 7
        %v3092 = vsub.s32 %v3089, %v3091
        %v3093 = vrot.slane %v3079, %v3092
        %v3094 = vcombine.low %v3038, %v3054
        %v3095 = vcombine.high %v3038, %v3054
        %v3097 = vunpack.c.l.s4 1934713408
        %v3098 = vunpack.c.0.s8 %v3097
        %v3099 = vlaneseq
        %v3100 = vshrl.u32 %v3099, 7
        %v3101 = vsub.s32 %v3098, %v3100
        %v3102 = vrot.slane %v3094, %v3101
        %v3104 = vunpack.c.l.s4 1934713408
        %v3105 = vunpack.c.0.s8 %v3104
        %v3106 = vlaneseq
        %v3107 = vshrl.u32 %v3106, 7
        %v3108 = vsub.s32 %v3105, %v3107
        %v3109 = vrot.slane %v3095, %v3108
        %v3110 = vcombine.low %v3045, %v3061
        %v3111 = vcombine.high %v3045, %v3061
        %v3113 = vunpack.c.l.s4 1934713408
        %v3114 = vunpack.c.0.s8 %v3113
        %v3115 = vlaneseq
        %v3116 = vshrl.u32 %v3115, 7
        %v3117 = vsub.s32 %v3114, %v3116
        %v3118 = vrot.slane %v3110, %v3117
        %v3120 = vunpack.c.l.s4 1934713408
        %v3121 = vunpack.c.0.s8 %v3120
        %v3122 = vlaneseq
        %v3123 = vshrl.u32 %v3122, 7
        %v3124 = vsub.s32 %v3121, %v3123
        %v3125 = vrot.slane %v3111, %v3124
        %v3126 = vcombine.low %v3070, %v3102
        %v3127 = vcombine.high %v3070, %v3102
        %v3128 = vcombine.low %v3077, %v3109
        %v3129 = vcombine.high %v3077, %v3109
        %v3130 = vcombine.low %v3086, %v3118
        %v3131 = vcombine.high %v3086, %v3118
        %v3132 = vcombine.low %v3093, %v3125
        %v3133 = vcombine.high %v3093, %v3125
        %v3134 = vcombine.low %v2924, %v2926
        %v3135 = vcombine.high %v2924, %v2926
        %v3137 = vunpack.c.l.s4 1983009808
        %v3138 = vunpack.c.0.s8 %v3137
        %v3139 = vlaneseq
        %v3140 = vshrl.u32 %v3139, 7
        %v3141 = vsub.s32 %v3138, %v3140
        %v3142 = vrot.slane %v3134, %v3141
        %v3144 = vunpack.c.l.s4 1983009808
        %v3145 = vunpack.c.0.s8 %v3144
        %v3146 = vlaneseq
        %v3147 = vshrl.u32 %v3146, 7
        %v3148 = vsub.s32 %v3145, %v3147
        %v3149 = vrot.slane %v3135, %v3148
        %v3150 = vcombine.low %v2925, %v2927
        %v3151 = vcombine.high %v2925, %v2927
        %v3153 = vunpack.c.l.s4 1983009808
        %v3154 = vunpack.c.0.s8 %v3153
        %v3155 = vlaneseq
        %v3156 = vshrl.u32 %v3155, 7
        %v3157 = vsub.s32 %v3154, %v3156
        %v3158 = vrot.slane %v3150, %v3157
        %v3160 = vunpack.c.l.s4 1983009808
        %v3161 = vunpack.c.0.s8 %v3160
        %v3162 = vlaneseq
        %v3163 = vshrl.u32 %v3162, 7
        %v3164 = vsub.s32 %v3161, %v3163
        %v3165 = vrot.slane %v3151, %v3164
        %v3166 = vcombine.low %v2928, %v2930
        %v3167 = vcombine.high %v2928, %v2930
        %v3169 = vunpack.c.l.s4 1983009808
        %v3170 = vunpack.c.0.s8 %v3169
        %v3171 = vlaneseq
        %v3172 = vshrl.u32 %v3171, 7
        %v3173 = vsub.s32 %v3170, %v3172
        %v3174 = vrot.slane %v3166, %v3173
        %v3176 = vunpack.c.l.s4 1983009808
        %v3177 = vunpack.c.0.s8 %v3176
        %v3178 = vlaneseq
        %v3179 = vshrl.u32 %v3178, 7
        %v3180 = vsub.s32 %v3177, %v3179
        %v3181 = vrot.slane %v3167, %v3180
        %v3182 = vcombine.low %v2929, %v2931
        %v3183 = vcombine.high %v2929, %v2931
        %v3185 = vunpack.c.l.s4 1983009808
        %v3186 = vunpack.c.0.s8 %v3185
        %v3187 = vlaneseq
        %v3188 = vshrl.u32 %v3187, 7
        %v3189 = vsub.s32 %v3186, %v3188
        %v3190 = vrot.slane %v3182, %v3189
        %v3192 = vunpack.c.l.s4 1983009808
        %v3193 = vunpack.c.0.s8 %v3192
        %v3194 = vlaneseq
        %v3195 = vshrl.u32 %v3194, 7
        %v3196 = vsub.s32 %v3193, %v3195
        %v3197 = vrot.slane %v3183, %v3196
        %v3198 = vcombine.low %v3142, %v3158
        %v3199 = vcombine.high %v3142, %v3158
        %v3201 = vunpack.c.l.s4 1934713408
        %v3202 = vunpack.c.0.s8 %v3201
        %v3203 = vlaneseq
        %v3204 = vshrl.u32 %v3203, 7
        %v3205 = vsub.s32 %v3202, %v3204
        %v3206 = vrot.slane %v3198, %v3205
        %v3208 = vunpack.c.l.s4 1934713408
        %v3209 = vunpack.c.0.s8 %v3208
        %v3210 = vlaneseq
        %v3211 = vshrl.u32 %v3210, 7
        %v3212 = vsub.s32 %v3209, %v3211
        %v3213 = vrot.slane %v3199, %v3212
        %v3214 = vcombine.low %v3149, %v3165
        %v3215 = vcombine.high %v3149, %v3165
        %v3217 = vunpack.c.l.s4 1934713408
        %v3218 = vunpack.c.0.s8 %v3217
        %v3219 = vlaneseq
        %v3220 = vshrl.u32 %v3219, 7
        %v3221 = vsub.s32 %v3218, %v3220
        %v3222 = vrot.slane %v3214, %v3221
        %v3224 = vunpack.c.l.s4 1934713408
        %v3225 = vunpack.c.0.s8 %v3224
        %v3226 = vlaneseq
        %v3227 = vshrl.u32 %v3226, 7
        %v3228 = vsub.s32 %v3225, %v3227
        %v3229 = vrot.slane %v3215, %v3228
        %v3230 = vcombine.low %v3174, %v3190
        %v3231 = vcombine.high %v3174, %v3190
        %v3233 = vunpack.c.l.s4 1934713408
        %v3234 = vunpack.c.0.s8 %v3233
        %v3235 = vlaneseq
        %v3236 = vshrl.u32 %v3235, 7
        %v3237 = vsub.s32 %v3234, %v3236
        %v3238 = vrot.slane %v3230, %v3237
        %v3240 = vunpack.c.l.s4 1934713408
        %v3241 = vunpack.c.0.s8 %v3240
        %v3242 = vlaneseq
        %v3243 = vshrl.u32 %v3242, 7
        %v3244 = vsub.s32 %v3241, %v3243
        %v3245 = vrot.slane %v3231, %v3244
        %v3246 = vcombine.low %v3181, %v3197
        %v3247 = vcombine.high %v3181, %v3197
        %v3249 = vunpack.c.l.s4 1934713408
        %v3250 = vunpack.c.0.s8 %v3249
        %v3251 = vlaneseq
        %v3252 = vshrl.u32 %v3251, 7
        %v3253 = vsub.s32 %v3250, %v3252
        %v3254 = vrot.slane %v3246, %v3253
        %v3256 = vunpack.c.l.s4 1934713408
        %v3257 = vunpack.c.0.s8 %v3256
        %v3258 = vlaneseq
        %v3259 = vshrl.u32 %v3258, 7
        %v3260 = vsub.s32 %v3257, %v3259
        %v3261 = vrot.slane %v3247, %v3260
        %v3262 = vcombine.low %v3206, %v3238
        %v3263 = vcombine.high %v3206, %v3238
        %v3264 = vcombine.low %v3213, %v3245
        %v3265 = vcombine.high %v3213, %v3245
        %v3266 = vcombine.low %v3222, %v3254
        %v3267 = vcombine.high %v3222, %v3254
        %v3268 = vcombine.low %v3229, %v3261
        %v3269 = vcombine.high %v3229, %v3261
        %v3270 = vcombine.low %v2970, %v2977
        %v3272 = vunpack.c.l.s4 1983009808
        %v3273 = vunpack.c.0.s8 %v3272
        %v3274 = vlaneseq
        %v3275 = vshrl.u32 %v3274, 7
        %v3276 = vsub.s32 %v3273, %v3275
        %v3277 = vrot.slane %v3270, %v3276
        %v3278 = vcombine.low %v2994, %v2995
        %v3280 = vunpack.c.l.s4 1983009808
        %v3281 = vunpack.c.0.s8 %v3280
        %v3282 = vlaneseq
        %v3283 = vshrl.u32 %v3282, 7
        %v3284 = vsub.s32 %v3281, %v3283
        %v3285 = vrot.slane %v3278, %v3284
        %v3286 = vcombine.low %v2986, %v2993
        %v3288 = vunpack.c.l.s4 1983009808
        %v3289 = vunpack.c.0.s8 %v3288
        %v3290 = vlaneseq
        %v3291 = vshrl.u32 %v3290, 7
        %v3292 = vsub.s32 %v3289, %v3291
        %v3293 = vrot.slane %v3286, %v3292
        %v3294 = vcombine.low %v2996, %v2997
        %v3296 = vunpack.c.l.s4 1983009808
        %v3297 = vunpack.c.0.s8 %v3296
        %v3298 = vlaneseq
        %v3299 = vshrl.u32 %v3298, 7
        %v3300 = vsub.s32 %v3297, %v3299
        %v3301 = vrot.slane %v3294, %v3300
        %v3302 = vcombine.low %v3277, %v3285
        %v3304 = vunpack.c.l.s4 1934713408
        %v3305 = vunpack.c.0.s8 %v3304
        %v3306 = vlaneseq
        %v3307 = vshrl.u32 %v3306, 7
        %v3308 = vsub.s32 %v3305, %v3307
        %v3309 = vrot.slane %v3302, %v3308
        %v3310 = vcombine.low %v3293, %v3301
        %v3312 = vunpack.c.l.s4 1934713408
        %v3313 = vunpack.c.0.s8 %v3312
        %v3314 = vlaneseq
        %v3315 = vshrl.u32 %v3314, 7
        %v3316 = vsub.s32 %v3313, %v3315
        %v3317 = vrot.slane %v3310, %v3316
        %v3318 = vcombine.low %v3309, %v3317
        %v3319 = vcombine.high %v3309, %v3317
        %v3320 = vpack.c.bf16 %v3126, %v3126
        %v3321 = vpack.c.bf16 %v3127, %v3127
        %v3322 = vpack.c.bf16 %v3128, %v3128
        %v3323 = vpack.c.bf16 %v3129, %v3129
        %v3324 = vpack.c.bf16 %v3130, %v3130
        %v3325 = vpack.c.bf16 %v3131, %v3131
        %v3326 = vpack.c.bf16 %v3132, %v3132
        %v3327 = vpack.c.bf16 %v3133, %v3133
        %v3328 = vpack.c.bf16 %v3262, %v3262
        %v3329 = vpack.c.bf16 %v3263, %v3263
        %v3330 = vpack.c.bf16 %v3264, %v3264
        %v3331 = vpack.c.bf16 %v3265, %v3265
        %v3333 = vsel %vm1299, %v3320, 0
        %v3336 = vsel %vm1299, %v3326, 0
        %3338 = vmatprep.subr.bf16.mxu0 0
        %3339 = vmatpush1.bf16.xpose.msra.mxu0 0
        %3340 = vmatprep.subr.bf16.mxu0 0
        %3341 = vmatpush1.bf16.xpose.msra.mxu0 0
        %3342 = vmatprep.subr.bf16.mxu0 0
        %3343 = vmatpush1.bf16.xpose.msra.mxu0 0
        %3344 = vmatprep.subr.bf16.mxu0 0
        %3345 = vmatpush1.bf16.xpose.msra.mxu0 0
        %3346 = vmatprep.subr.bf16.mxu0 0
        %3347 = vmatpush1.bf16.xpose.msra.mxu0 0
        %3348 = vmatprep.subr.bf16.mxu0 0
        %3349 = vmatpush1.bf16.xpose.msra.mxu0 0
        %3350 = vmatprep.subr.bf16.mxu0 0
        %3351 = vmatpush1.bf16.xpose.msra.mxu0 0
        %3352 = vmatprep.subr.bf16.mxu0 0
        %3353 = vmatpush1.bf16.xpose.msra.mxu0 %v3336
        %3354 = vmatprep.subr.bf16.mxu0 0
        %3355 = vmatpush2.bf16.xpose.msra.mxu0 0
        %3356 = vmatprep.subr.bf16.mxu0 0
        %3357 = vmatpush2.bf16.xpose.msra.mxu0 0
        %3358 = vmatprep.subr.bf16.mxu0 0
        %3359 = vmatpush2.bf16.xpose.msra.mxu0 0
        %3360 = vmatprep.subr.bf16.mxu0 0
        %3361 = vmatpush2.bf16.xpose.msra.mxu0 0
        %3362 = vmatprep.subr.bf16.mxu0 0
        %3363 = vmatpush2.bf16.xpose.msra.mxu0 0
        %3364 = vmatprep.subr.bf16.mxu0 0
        %3365 = vmatpush2.bf16.xpose.msra.mxu0 0
        %3366 = vmatprep.subr.bf16.mxu0 0
        %3367 = vmatpush2.bf16.xpose.msra.mxu0 0
        %3368 = vmatprep.subr.bf16.mxu0 0
        %3369 = vmatpush2.bf16.xpose.msra.mxu0 0
        %3370 = vmatprep.mubr.bf16.mxu0 0
        %3371 = vmatmul.mubr.bf16.gmra.mxu0 %v3333
        %v3372 = vpop.f32.mrf.mxu0
        %v3373 = vadd.f32 0.0, %v3372
        %v3374 = vpop.f32.mrf.mxu0
        %v3375 = vpop.f32.mrf.mxu0
        %v3376 = vpop.f32.mrf.mxu0
        %3377 = vdwg.mxu0
        %v3379 = vsel %vm1299, %v3321, 0
        %v3382 = vsel %vm1299, %v3327, 0
        %3384 = vmatprep.subr.bf16.mxu0 0
        %3385 = vmatpush1.bf16.xpose.msra.mxu0 0
        %3386 = vmatprep.subr.bf16.mxu0 0
        %3387 = vmatpush1.bf16.xpose.msra.mxu0 0
        %3388 = vmatprep.subr.bf16.mxu0 0
        %3389 = vmatpush1.bf16.xpose.msra.mxu0 0
        %3390 = vmatprep.subr.bf16.mxu0 0
        %3391 = vmatpush1.bf16.xpose.msra.mxu0 0
        %3392 = vmatprep.subr.bf16.mxu0 0
        %3393 = vmatpush1.bf16.xpose.msra.mxu0 0
        %3394 = vmatprep.subr.bf16.mxu0 0
        %3395 = vmatpush1.bf16.xpose.msra.mxu0 0
        %3396 = vmatprep.subr.bf16.mxu0 0
        %3397 = vmatpush1.bf16.xpose.msra.mxu0 0
        %3398 = vmatprep.subr.bf16.mxu0 0
        %3399 = vmatpush1.bf16.xpose.msra.mxu0 %v3382
        %3400 = vmatprep.subr.bf16.mxu0 0
        %3401 = vmatpush2.bf16.xpose.msra.mxu0 0
        %3402 = vmatprep.subr.bf16.mxu0 0
        %3403 = vmatpush2.bf16.xpose.msra.mxu0 0
        %3404 = vmatprep.subr.bf16.mxu0 0
        %3405 = vmatpush2.bf16.xpose.msra.mxu0 0
        %3406 = vmatprep.subr.bf16.mxu0 0
        %3407 = vmatpush2.bf16.xpose.msra.mxu0 0
        %3408 = vmatprep.subr.bf16.mxu0 0
        %3409 = vmatpush2.bf16.xpose.msra.mxu0 0
        %3410 = vmatprep.subr.bf16.mxu0 0
        %3411 = vmatpush2.bf16.xpose.msra.mxu0 0
        %3412 = vmatprep.subr.bf16.mxu0 0
        %3413 = vmatpush2.bf16.xpose.msra.mxu0 0
        %3414 = vmatprep.subr.bf16.mxu0 0
        %3415 = vmatpush2.bf16.xpose.msra.mxu0 0
        %3416 = vmatprep.mubr.bf16.mxu0 0
        %3417 = vmatmul.mubr.bf16.gmra.mxu0 %v3379
        %v3418 = vpop.f32.mrf.mxu0
        %v3419 = vadd.f32 0.0, %v3418
        %v3420 = vpop.f32.mrf.mxu0
        %v3421 = vpop.f32.mrf.mxu0
        %v3422 = vpop.f32.mrf.mxu0
        %3423 = vdwg.mxu0
        %v3425 = vsel %vm1299, %v3322, 0
        %v3428 = vsel %vm1299, %v3328, 0
        %3430 = vmatprep.subr.bf16.mxu0 0
        %3431 = vmatpush1.bf16.xpose.msra.mxu0 0
        %3432 = vmatprep.subr.bf16.mxu0 0
        %3433 = vmatpush1.bf16.xpose.msra.mxu0 0
        %3434 = vmatprep.subr.bf16.mxu0 0
        %3435 = vmatpush1.bf16.xpose.msra.mxu0 0
        %3436 = vmatprep.subr.bf16.mxu0 0
        %3437 = vmatpush1.bf16.xpose.msra.mxu0 0
        %3438 = vmatprep.subr.bf16.mxu0 0
        %3439 = vmatpush1.bf16.xpose.msra.mxu0 0
        %3440 = vmatprep.subr.bf16.mxu0 0
        %3441 = vmatpush1.bf16.xpose.msra.mxu0 0
        %3442 = vmatprep.subr.bf16.mxu0 0
        %3443 = vmatpush1.bf16.xpose.msra.mxu0 0
        %3444 = vmatprep.subr.bf16.mxu0 0
        %3445 = vmatpush1.bf16.xpose.msra.mxu0 %v3428
        %3446 = vmatprep.subr.bf16.mxu0 0
        %3447 = vmatpush2.bf16.xpose.msra.mxu0 0
        %3448 = vmatprep.subr.bf16.mxu0 0
        %3449 = vmatpush2.bf16.xpose.msra.mxu0 0
        %3450 = vmatprep.subr.bf16.mxu0 0
        %3451 = vmatpush2.bf16.xpose.msra.mxu0 0
        %3452 = vmatprep.subr.bf16.mxu0 0
        %3453 = vmatpush2.bf16.xpose.msra.mxu0 0
        %3454 = vmatprep.subr.bf16.mxu0 0
        %3455 = vmatpush2.bf16.xpose.msra.mxu0 0
        %3456 = vmatprep.subr.bf16.mxu0 0
        %3457 = vmatpush2.bf16.xpose.msra.mxu0 0
        %3458 = vmatprep.subr.bf16.mxu0 0
        %3459 = vmatpush2.bf16.xpose.msra.mxu0 0
        %3460 = vmatprep.subr.bf16.mxu0 0
        %3461 = vmatpush2.bf16.xpose.msra.mxu0 0
        %3462 = vmatprep.mubr.bf16.mxu0 0
        %3463 = vmatmul.mubr.bf16.gmra.mxu0 %v3425
        %v3464 = vpop.f32.mrf.mxu0
        %v3465 = vadd.f32 0.0, %v3464
        %v3466 = vpop.f32.mrf.mxu0
        %v3467 = vpop.f32.mrf.mxu0
        %v3468 = vpop.f32.mrf.mxu0
        %3469 = vdwg.mxu0
        %v3471 = vsel %vm1299, %v3323, 0
        %v3474 = vsel %vm1299, %v3329, 0
        %3476 = vmatprep.subr.bf16.mxu0 0
        %3477 = vmatpush1.bf16.xpose.msra.mxu0 0
        %3478 = vmatprep.subr.bf16.mxu0 0
        %3479 = vmatpush1.bf16.xpose.msra.mxu0 0
        %3480 = vmatprep.subr.bf16.mxu0 0
        %3481 = vmatpush1.bf16.xpose.msra.mxu0 0
        %3482 = vmatprep.subr.bf16.mxu0 0
        %3483 = vmatpush1.bf16.xpose.msra.mxu0 0
        %3484 = vmatprep.subr.bf16.mxu0 0
        %3485 = vmatpush1.bf16.xpose.msra.mxu0 0
        %3486 = vmatprep.subr.bf16.mxu0 0
        %3487 = vmatpush1.bf16.xpose.msra.mxu0 0
        %3488 = vmatprep.subr.bf16.mxu0 0
        %3489 = vmatpush1.bf16.xpose.msra.mxu0 0
        %3490 = vmatprep.subr.bf16.mxu0 0
        %3491 = vmatpush1.bf16.xpose.msra.mxu0 %v3474
        %3492 = vmatprep.subr.bf16.mxu0 0
        %3493 = vmatpush2.bf16.xpose.msra.mxu0 0
        %3494 = vmatprep.subr.bf16.mxu0 0
        %3495 = vmatpush2.bf16.xpose.msra.mxu0 0
        %3496 = vmatprep.subr.bf16.mxu0 0
        %3497 = vmatpush2.bf16.xpose.msra.mxu0 0
        %3498 = vmatprep.subr.bf16.mxu0 0
        %3499 = vmatpush2.bf16.xpose.msra.mxu0 0
        %3500 = vmatprep.subr.bf16.mxu0 0
        %3501 = vmatpush2.bf16.xpose.msra.mxu0 0
        %3502 = vmatprep.subr.bf16.mxu0 0
        %3503 = vmatpush2.bf16.xpose.msra.mxu0 0
        %3504 = vmatprep.subr.bf16.mxu0 0
        %3505 = vmatpush2.bf16.xpose.msra.mxu0 0
        %3506 = vmatprep.subr.bf16.mxu0 0
        %3507 = vmatpush2.bf16.xpose.msra.mxu0 0
        %3508 = vmatprep.mubr.bf16.mxu0 0
        %3509 = vmatmul.mubr.bf16.gmra.mxu0 %v3471
        %v3510 = vpop.f32.mrf.mxu0
        %v3511 = vadd.f32 0.0, %v3510
        %v3512 = vpop.f32.mrf.mxu0
        %v3513 = vpop.f32.mrf.mxu0
        %v3514 = vpop.f32.mrf.mxu0
        %3515 = vdwg.mxu0
        %v3517 = vsel %vm1299, %v3324, 0
        %v3520 = vsel %vm1299, %v3330, 0
        %3522 = vmatprep.subr.bf16.mxu0 0
        %3523 = vmatpush1.bf16.xpose.msra.mxu0 0
        %3524 = vmatprep.subr.bf16.mxu0 0
        %3525 = vmatpush1.bf16.xpose.msra.mxu0 0
        %3526 = vmatprep.subr.bf16.mxu0 0
        %3527 = vmatpush1.bf16.xpose.msra.mxu0 0
        %3528 = vmatprep.subr.bf16.mxu0 0
        %3529 = vmatpush1.bf16.xpose.msra.mxu0 0
        %3530 = vmatprep.subr.bf16.mxu0 0
        %3531 = vmatpush1.bf16.xpose.msra.mxu0 0
        %3532 = vmatprep.subr.bf16.mxu0 0
        %3533 = vmatpush1.bf16.xpose.msra.mxu0 0
        %3534 = vmatprep.subr.bf16.mxu0 0
        %3535 = vmatpush1.bf16.xpose.msra.mxu0 0
        %3536 = vmatprep.subr.bf16.mxu0 0
        %3537 = vmatpush1.bf16.xpose.msra.mxu0 %v3520
        %3538 = vmatprep.subr.bf16.mxu0 0
        %3539 = vmatpush2.bf16.xpose.msra.mxu0 0
        %3540 = vmatprep.subr.bf16.mxu0 0
        %3541 = vmatpush2.bf16.xpose.msra.mxu0 0
        %3542 = vmatprep.subr.bf16.mxu0 0
        %3543 = vmatpush2.bf16.xpose.msra.mxu0 0
        %3544 = vmatprep.subr.bf16.mxu0 0
        %3545 = vmatpush2.bf16.xpose.msra.mxu0 0
        %3546 = vmatprep.subr.bf16.mxu0 0
        %3547 = vmatpush2.bf16.xpose.msra.mxu0 0
        %3548 = vmatprep.subr.bf16.mxu0 0
        %3549 = vmatpush2.bf16.xpose.msra.mxu0 0
        %3550 = vmatprep.subr.bf16.mxu0 0
        %3551 = vmatpush2.bf16.xpose.msra.mxu0 0
        %3552 = vmatprep.subr.bf16.mxu0 0
        %3553 = vmatpush2.bf16.xpose.msra.mxu0 0
        %3554 = vmatprep.mubr.bf16.mxu0 0
        %3555 = vmatmul.mubr.bf16.gmra.mxu0 %v3517
        %v3556 = vpop.f32.mrf.mxu0
        %v3557 = vadd.f32 0.0, %v3556
        %v3558 = vpop.f32.mrf.mxu0
        %v3559 = vpop.f32.mrf.mxu0
        %v3560 = vpop.f32.mrf.mxu0
        %3561 = vdwg.mxu0
        %v3563 = vsel %vm1299, %v3325, 0
        %v3566 = vsel %vm1299, %v3331, 0
        %3568 = vmatprep.subr.bf16.mxu0 0
        %3569 = vmatpush1.bf16.xpose.msra.mxu0 0
        %3570 = vmatprep.subr.bf16.mxu0 0
        %3571 = vmatpush1.bf16.xpose.msra.mxu0 0
        %3572 = vmatprep.subr.bf16.mxu0 0
        %3573 = vmatpush1.bf16.xpose.msra.mxu0 0
        %3574 = vmatprep.subr.bf16.mxu0 0
        %3575 = vmatpush1.bf16.xpose.msra.mxu0 0
        %3576 = vmatprep.subr.bf16.mxu0 0
        %3577 = vmatpush1.bf16.xpose.msra.mxu0 0
        %3578 = vmatprep.subr.bf16.mxu0 0
        %3579 = vmatpush1.bf16.xpose.msra.mxu0 0
        %3580 = vmatprep.subr.bf16.mxu0 0
        %3581 = vmatpush1.bf16.xpose.msra.mxu0 0
        %3582 = vmatprep.subr.bf16.mxu0 0
        %3583 = vmatpush1.bf16.xpose.msra.mxu0 %v3566
        %3584 = vmatprep.subr.bf16.mxu0 0
        %3585 = vmatpush2.bf16.xpose.msra.mxu0 0
        %3586 = vmatprep.subr.bf16.mxu0 0
        %3587 = vmatpush2.bf16.xpose.msra.mxu0 0
        %3588 = vmatprep.subr.bf16.mxu0 0
        %3589 = vmatpush2.bf16.xpose.msra.mxu0 0
        %3590 = vmatprep.subr.bf16.mxu0 0
        %3591 = vmatpush2.bf16.xpose.msra.mxu0 0
        %3592 = vmatprep.subr.bf16.mxu0 0
        %3593 = vmatpush2.bf16.xpose.msra.mxu0 0
        %3594 = vmatprep.subr.bf16.mxu0 0
        %3595 = vmatpush2.bf16.xpose.msra.mxu0 0
        %3596 = vmatprep.subr.bf16.mxu0 0
        %3597 = vmatpush2.bf16.xpose.msra.mxu0 0
        %3598 = vmatprep.subr.bf16.mxu0 0
        %3599 = vmatpush2.bf16.xpose.msra.mxu0 0
        %3600 = vmatprep.mubr.bf16.mxu0 0
        %3601 = vmatmul.mubr.bf16.gmra.mxu0 %v3563
        %v3602 = vpop.f32.mrf.mxu0
        %v3603 = vadd.f32 0.0, %v3602
        %v3604 = vpop.f32.mrf.mxu0
        %v3605 = vpop.f32.mrf.mxu0
        %v3606 = vpop.f32.mrf.mxu0
        %3607 = vdwg.mxu0
        %v3608 = vmul.f32 %v3373, 0.35355338
        %v3609 = vmul.f32 %v3419, 0.35355338
        %v3610 = vmul.f32 %v3465, 0.35355338
        %v3611 = vmul.f32 %v3511, 0.35355338
        %v3612 = vmul.f32 %v3557, 0.35355338
        %v3613 = vmul.f32 %v3603, 0.35355338
        %v3614 = vsel %vm1588, %v3608, -1e+30
        %v3615 = vsel %vm1588, %v3609, -1e+30
        %v3616 = vsel %vm1588, %v3610, -1e+30
        %v3617 = vsel %vm1588, %v3611, -1e+30
        %v3618 = vsel %vm1588, %v3612, -1e+30
        %v3619 = vsel %vm1588, %v3613, -1e+30
        %v3620 = vsel %vm1299, %v3614, -inf
        %3621 = vmax.xlane.f32.xlu0 %v3620
        %v3622 = vpop.xlane.xlu0 %3621
        %v3623 = vsel %vm1299, %v3615, -inf
        %3624 = vmax.xlane.f32.xlu0 %v3623
        %v3625 = vpop.xlane.xlu0 %3624
        %v3626 = vsel %vm1299, %v3616, -inf
        %3627 = vmax.xlane.f32.xlu0 %v3626
        %v3628 = vpop.xlane.xlu0 %3627
        %v3629 = vsel %vm1299, %v3617, -inf
        %3630 = vmax.xlane.f32.xlu0 %v3629
        %v3631 = vpop.xlane.xlu0 %3630
        %v3632 = vsel %vm1299, %v3618, -inf
        %3633 = vmax.xlane.f32.xlu0 %v3632
        %v3634 = vpop.xlane.xlu0 %3633
        %v3635 = vsel %vm1299, %v3619, -inf
        %3636 = vmax.xlane.f32.xlu0 %v3635
        %v3637 = vpop.xlane.xlu0 %3636
        %v3638 = vsub.f32 %v3614, %v3622
        %v3639 = vsub.f32 %v3615, %v3625
        %v3640 = vsub.f32 %v3616, %v3628
        %v3641 = vsub.f32 %v3617, %v3631
        %v3642 = vsub.f32 %v3618, %v3634
        %v3643 = vsub.f32 %v3619, %v3637
        %v3644 = vmul.f32 %v3638, 1.442695
        %v3645 = vpow.pop %v3644
        %v3646 = vmul.f32 %v3639, 1.442695
        %v3647 = vpow.pop %v3646
        %v3648 = vmul.f32 %v3640, 1.442695
        %v3649 = vpow.pop %v3648
        %v3650 = vmul.f32 %v3641, 1.442695
        %v3651 = vpow.pop %v3650
        %v3652 = vmul.f32 %v3642, 1.442695
        %v3653 = vpow.pop %v3652
        %v3654 = vmul.f32 %v3643, 1.442695
        %v3655 = vpow.pop %v3654
        %v3656 = vsel %vm1299, %v3645, 0.0
        %3657 = vadd.xlane.f32.xlu0 %v3656
        %v3658 = vpop.xlane.xlu0 %3657
        %v3659 = vsel %vm1299, %v3647, 0.0
        %3660 = vadd.xlane.f32.xlu0 %v3659
        %v3661 = vpop.xlane.xlu0 %3660
        %v3662 = vsel %vm1299, %v3649, 0.0
        %3663 = vadd.xlane.f32.xlu0 %v3662
        %v3664 = vpop.xlane.xlu0 %3663
        %v3665 = vsel %vm1299, %v3651, 0.0
        %3666 = vadd.xlane.f32.xlu0 %v3665
        %v3667 = vpop.xlane.xlu0 %3666
        %v3668 = vsel %vm1299, %v3653, 0.0
        %3669 = vadd.xlane.f32.xlu0 %v3668
        %v3670 = vpop.xlane.xlu0 %3669
        %v3671 = vsel %vm1299, %v3655, 0.0
        %3672 = vadd.xlane.f32.xlu0 %v3671
        %v3673 = vpop.xlane.xlu0 %3672
        %v3674 = vrcp.pop %v3658
        %v3675 = vrcp.pop %v3661
        %v3676 = vrcp.pop %v3664
        %v3677 = vrcp.pop %v3667
        %v3678 = vrcp.pop %v3670
        %v3679 = vrcp.pop %v3673
        %v3680 = vmul.f32 %v3645, %v3674
        %v3681 = vmul.f32 %v3647, %v3675
        %v3682 = vmul.f32 %v3649, %v3676
        %v3683 = vmul.f32 %v3651, %v3677
        %v3684 = vmul.f32 %v3653, %v3678
        %v3685 = vmul.f32 %v3655, %v3679
        %v3686 = vpack.c.bf16 %v3680, %v3680
        %v3687 = vpack.c.bf16 %v3681, %v3681
        %v3688 = vpack.c.bf16 %v3682, %v3682
        %v3689 = vpack.c.bf16 %v3683, %v3683
        %v3690 = vpack.c.bf16 %v3684, %v3684
        %v3691 = vpack.c.bf16 %v3685, %v3685
        %v3692 = vpack.c.bf16 %v3266, %v3266
        %v3693 = vpack.c.bf16 %v3267, %v3267
        %v3694 = vpack.c.bf16 %v3268, %v3268
        %v3695 = vpack.c.bf16 %v3269, %v3269
        %v3696 = vpack.c.bf16 %v3318, %v3318
        %v3697 = vpack.c.bf16 %v3319, %v3319
        %v3699 = vsel %vm1299, %v3686, 0
        %v3702 = vsel %vm1676, %v3692, 0
        %3704 = vmatprep.subr.bf16.mxu0 0
        %3705 = vmatpush1.bf16.msra.mxu0 0
        %3706 = vmatprep.subr.bf16.mxu0 0
        %3707 = vmatpush1.bf16.msra.mxu0 0
        %3708 = vmatprep.subr.bf16.mxu0 0
        %3709 = vmatpush1.bf16.msra.mxu0 0
        %3710 = vmatprep.subr.bf16.mxu0 0
        %3711 = vmatpush1.bf16.msra.mxu0 0
        %3712 = vmatprep.subr.bf16.mxu0 0
        %3713 = vmatpush1.bf16.msra.mxu0 0
        %3714 = vmatprep.subr.bf16.mxu0 0
        %3715 = vmatpush1.bf16.msra.mxu0 0
        %3716 = vmatprep.subr.bf16.mxu0 0
        %3717 = vmatpush1.bf16.msra.mxu0 0
        %3718 = vmatprep.subr.bf16.mxu0 0
        %3719 = vmatpush1.bf16.msra.mxu0 %v3702
        %3720 = vmatprep.subr.bf16.mxu0 0
        %3721 = vmatpush2.bf16.msra.mxu0 0
        %3722 = vmatprep.subr.bf16.mxu0 0
        %3723 = vmatpush2.bf16.msra.mxu0 0
        %3724 = vmatprep.subr.bf16.mxu0 0
        %3725 = vmatpush2.bf16.msra.mxu0 0
        %3726 = vmatprep.subr.bf16.mxu0 0
        %3727 = vmatpush2.bf16.msra.mxu0 0
        %3728 = vmatprep.subr.bf16.mxu0 0
        %3729 = vmatpush2.bf16.msra.mxu0 0
        %3730 = vmatprep.subr.bf16.mxu0 0
        %3731 = vmatpush2.bf16.msra.mxu0 0
        %3732 = vmatprep.subr.bf16.mxu0 0
        %3733 = vmatpush2.bf16.msra.mxu0 0
        %3734 = vmatprep.subr.bf16.mxu0 0
        %3735 = vmatpush2.bf16.msra.mxu0 0
        %3736 = vmatprep.mubr.bf16.mxu0 0
        %3737 = vmatmul.mubr.bf16.gmra.mxu0 %v3699
        %v3738 = vpop.f32.mrf.mxu0
        %v3739 = vadd.f32 0.0, %v3738
        %v3740 = vpop.f32.mrf.mxu0
        %v3741 = vpop.f32.mrf.mxu0
        %v3742 = vpop.f32.mrf.mxu0
        %3743 = vdwg.mxu0
        %v3745 = vsel %vm1299, %v3687, 0
        %v3748 = vsel %vm1676, %v3693, 0
        %3750 = vmatprep.subr.bf16.mxu0 0
        %3751 = vmatpush1.bf16.msra.mxu0 0
        %3752 = vmatprep.subr.bf16.mxu0 0
        %3753 = vmatpush1.bf16.msra.mxu0 0
        %3754 = vmatprep.subr.bf16.mxu0 0
        %3755 = vmatpush1.bf16.msra.mxu0 0
        %3756 = vmatprep.subr.bf16.mxu0 0
        %3757 = vmatpush1.bf16.msra.mxu0 0
        %3758 = vmatprep.subr.bf16.mxu0 0
        %3759 = vmatpush1.bf16.msra.mxu0 0
        %3760 = vmatprep.subr.bf16.mxu0 0
        %3761 = vmatpush1.bf16.msra.mxu0 0
        %3762 = vmatprep.subr.bf16.mxu0 0
        %3763 = vmatpush1.bf16.msra.mxu0 0
        %3764 = vmatprep.subr.bf16.mxu0 0
        %3765 = vmatpush1.bf16.msra.mxu0 %v3748
        %3766 = vmatprep.subr.bf16.mxu0 0
        %3767 = vmatpush2.bf16.msra.mxu0 0
        %3768 = vmatprep.subr.bf16.mxu0 0
        %3769 = vmatpush2.bf16.msra.mxu0 0
        %3770 = vmatprep.subr.bf16.mxu0 0
        %3771 = vmatpush2.bf16.msra.mxu0 0
        %3772 = vmatprep.subr.bf16.mxu0 0
        %3773 = vmatpush2.bf16.msra.mxu0 0
        %3774 = vmatprep.subr.bf16.mxu0 0
        %3775 = vmatpush2.bf16.msra.mxu0 0
        %3776 = vmatprep.subr.bf16.mxu0 0
        %3777 = vmatpush2.bf16.msra.mxu0 0
        %3778 = vmatprep.subr.bf16.mxu0 0
        %3779 = vmatpush2.bf16.msra.mxu0 0
        %3780 = vmatprep.subr.bf16.mxu0 0
        %3781 = vmatpush2.bf16.msra.mxu0 0
        %3782 = vmatprep.mubr.bf16.mxu0 0
        %3783 = vmatmul.mubr.bf16.gmra.mxu0 %v3745
        %v3784 = vpop.f32.mrf.mxu0
        %v3785 = vadd.f32 0.0, %v3784
        %v3786 = vpop.f32.mrf.mxu0
        %v3787 = vpop.f32.mrf.mxu0
        %v3788 = vpop.f32.mrf.mxu0
        %3789 = vdwg.mxu0
        %v3791 = vsel %vm1299, %v3688, 0
        %v3794 = vsel %vm1676, %v3694, 0
        %3796 = vmatprep.subr.bf16.mxu0 0
        %3797 = vmatpush1.bf16.msra.mxu0 0
        %3798 = vmatprep.subr.bf16.mxu0 0
        %3799 = vmatpush1.bf16.msra.mxu0 0
        %3800 = vmatprep.subr.bf16.mxu0 0
        %3801 = vmatpush1.bf16.msra.mxu0 0
        %3802 = vmatprep.subr.bf16.mxu0 0
        %3803 = vmatpush1.bf16.msra.mxu0 0
        %3804 = vmatprep.subr.bf16.mxu0 0
        %3805 = vmatpush1.bf16.msra.mxu0 0
        %3806 = vmatprep.subr.bf16.mxu0 0
        %3807 = vmatpush1.bf16.msra.mxu0 0
        %3808 = vmatprep.subr.bf16.mxu0 0
        %3809 = vmatpush1.bf16.msra.mxu0 0
        %3810 = vmatprep.subr.bf16.mxu0 0
        %3811 = vmatpush1.bf16.msra.mxu0 %v3794
        %3812 = vmatprep.subr.bf16.mxu0 0
        %3813 = vmatpush2.bf16.msra.mxu0 0
        %3814 = vmatprep.subr.bf16.mxu0 0
        %3815 = vmatpush2.bf16.msra.mxu0 0
        %3816 = vmatprep.subr.bf16.mxu0 0
        %3817 = vmatpush2.bf16.msra.mxu0 0
        %3818 = vmatprep.subr.bf16.mxu0 0
        %3819 = vmatpush2.bf16.msra.mxu0 0
        %3820 = vmatprep.subr.bf16.mxu0 0
        %3821 = vmatpush2.bf16.msra.mxu0 0
        %3822 = vmatprep.subr.bf16.mxu0 0
        %3823 = vmatpush2.bf16.msra.mxu0 0
        %3824 = vmatprep.subr.bf16.mxu0 0
        %3825 = vmatpush2.bf16.msra.mxu0 0
        %3826 = vmatprep.subr.bf16.mxu0 0
        %3827 = vmatpush2.bf16.msra.mxu0 0
        %3828 = vmatprep.mubr.bf16.mxu0 0
        %3829 = vmatmul.mubr.bf16.gmra.mxu0 %v3791
        %v3830 = vpop.f32.mrf.mxu0
        %v3831 = vadd.f32 0.0, %v3830
        %v3832 = vpop.f32.mrf.mxu0
        %v3833 = vpop.f32.mrf.mxu0
        %v3834 = vpop.f32.mrf.mxu0
        %3835 = vdwg.mxu0
        %v3837 = vsel %vm1299, %v3689, 0
        %v3840 = vsel %vm1676, %v3695, 0
        %3842 = vmatprep.subr.bf16.mxu0 0
        %3843 = vmatpush1.bf16.msra.mxu0 0
        %3844 = vmatprep.subr.bf16.mxu0 0
        %3845 = vmatpush1.bf16.msra.mxu0 0
        %3846 = vmatprep.subr.bf16.mxu0 0
        %3847 = vmatpush1.bf16.msra.mxu0 0
        %3848 = vmatprep.subr.bf16.mxu0 0
        %3849 = vmatpush1.bf16.msra.mxu0 0
        %3850 = vmatprep.subr.bf16.mxu0 0
        %3851 = vmatpush1.bf16.msra.mxu0 0
        %3852 = vmatprep.subr.bf16.mxu0 0
        %3853 = vmatpush1.bf16.msra.mxu0 0
        %3854 = vmatprep.subr.bf16.mxu0 0
        %3855 = vmatpush1.bf16.msra.mxu0 0
        %3856 = vmatprep.subr.bf16.mxu0 0
        %3857 = vmatpush1.bf16.msra.mxu0 %v3840
        %3858 = vmatprep.subr.bf16.mxu0 0
        %3859 = vmatpush2.bf16.msra.mxu0 0
        %3860 = vmatprep.subr.bf16.mxu0 0
        %3861 = vmatpush2.bf16.msra.mxu0 0
        %3862 = vmatprep.subr.bf16.mxu0 0
        %3863 = vmatpush2.bf16.msra.mxu0 0
        %3864 = vmatprep.subr.bf16.mxu0 0
        %3865 = vmatpush2.bf16.msra.mxu0 0
        %3866 = vmatprep.subr.bf16.mxu0 0
        %3867 = vmatpush2.bf16.msra.mxu0 0
        %3868 = vmatprep.subr.bf16.mxu0 0
        %3869 = vmatpush2.bf16.msra.mxu0 0
        %3870 = vmatprep.subr.bf16.mxu0 0
        %3871 = vmatpush2.bf16.msra.mxu0 0
        %3872 = vmatprep.subr.bf16.mxu0 0
        %3873 = vmatpush2.bf16.msra.mxu0 0
        %3874 = vmatprep.mubr.bf16.mxu0 0
        %3875 = vmatmul.mubr.bf16.gmra.mxu0 %v3837
        %v3876 = vpop.f32.mrf.mxu0
        %v3877 = vadd.f32 0.0, %v3876
        %v3878 = vpop.f32.mrf.mxu0
        %v3879 = vpop.f32.mrf.mxu0
        %v3880 = vpop.f32.mrf.mxu0
        %3881 = vdwg.mxu0
        %v3883 = vsel %vm1299, %v3690, 0
        %v3886 = vsel %vm1676, %v3696, 0
        %3888 = vmatprep.subr.bf16.mxu0 0
        %3889 = vmatpush1.bf16.msra.mxu0 0
        %3890 = vmatprep.subr.bf16.mxu0 0
        %3891 = vmatpush1.bf16.msra.mxu0 0
        %3892 = vmatprep.subr.bf16.mxu0 0
        %3893 = vmatpush1.bf16.msra.mxu0 0
        %3894 = vmatprep.subr.bf16.mxu0 0
        %3895 = vmatpush1.bf16.msra.mxu0 0
        %3896 = vmatprep.subr.bf16.mxu0 0
        %3897 = vmatpush1.bf16.msra.mxu0 0
        %3898 = vmatprep.subr.bf16.mxu0 0
        %3899 = vmatpush1.bf16.msra.mxu0 0
        %3900 = vmatprep.subr.bf16.mxu0 0
        %3901 = vmatpush1.bf16.msra.mxu0 0
        %3902 = vmatprep.subr.bf16.mxu0 0
        %3903 = vmatpush1.bf16.msra.mxu0 %v3886
        %3904 = vmatprep.subr.bf16.mxu0 0
        %3905 = vmatpush2.bf16.msra.mxu0 0
        %3906 = vmatprep.subr.bf16.mxu0 0
        %3907 = vmatpush2.bf16.msra.mxu0 0
        %3908 = vmatprep.subr.bf16.mxu0 0
        %3909 = vmatpush2.bf16.msra.mxu0 0
        %3910 = vmatprep.subr.bf16.mxu0 0
        %3911 = vmatpush2.bf16.msra.mxu0 0
        %3912 = vmatprep.subr.bf16.mxu0 0
        %3913 = vmatpush2.bf16.msra.mxu0 0
        %3914 = vmatprep.subr.bf16.mxu0 0
        %3915 = vmatpush2.bf16.msra.mxu0 0
        %3916 = vmatprep.subr.bf16.mxu0 0
        %3917 = vmatpush2.bf16.msra.mxu0 0
        %3918 = vmatprep.subr.bf16.mxu0 0
        %3919 = vmatpush2.bf16.msra.mxu0 0
        %3920 = vmatprep.mubr.bf16.mxu0 0
        %3921 = vmatmul.mubr.bf16.gmra.mxu0 %v3883
        %v3922 = vpop.f32.mrf.mxu0
        %v3923 = vadd.f32 0.0, %v3922
        %v3924 = vpop.f32.mrf.mxu0
        %v3925 = vpop.f32.mrf.mxu0
        %v3926 = vpop.f32.mrf.mxu0
        %3927 = vdwg.mxu0
        %v3929 = vsel %vm1299, %v3691, 0
        %v3932 = vsel %vm1676, %v3697, 0
        %3934 = vmatprep.subr.bf16.mxu0 0
        %3935 = vmatpush1.bf16.msra.mxu0 0
        %3936 = vmatprep.subr.bf16.mxu0 0
        %3937 = vmatpush1.bf16.msra.mxu0 0
        %3938 = vmatprep.subr.bf16.mxu0 0
        %3939 = vmatpush1.bf16.msra.mxu0 0
        %3940 = vmatprep.subr.bf16.mxu0 0
        %3941 = vmatpush1.bf16.msra.mxu0 0
        %3942 = vmatprep.subr.bf16.mxu0 0
        %3943 = vmatpush1.bf16.msra.mxu0 0
        %3944 = vmatprep.subr.bf16.mxu0 0
        %3945 = vmatpush1.bf16.msra.mxu0 0
        %3946 = vmatprep.subr.bf16.mxu0 0
        %3947 = vmatpush1.bf16.msra.mxu0 0
        %3948 = vmatprep.subr.bf16.mxu0 0
        %3949 = vmatpush1.bf16.msra.mxu0 %v3932
        %3950 = vmatprep.subr.bf16.mxu0 0
        %3951 = vmatpush2.bf16.msra.mxu0 0
        %3952 = vmatprep.subr.bf16.mxu0 0
        %3953 = vmatpush2.bf16.msra.mxu0 0
        %3954 = vmatprep.subr.bf16.mxu0 0
        %3955 = vmatpush2.bf16.msra.mxu0 0
        %3956 = vmatprep.subr.bf16.mxu0 0
        %3957 = vmatpush2.bf16.msra.mxu0 0
        %3958 = vmatprep.subr.bf16.mxu0 0
        %3959 = vmatpush2.bf16.msra.mxu0 0
        %3960 = vmatprep.subr.bf16.mxu0 0
        %3961 = vmatpush2.bf16.msra.mxu0 0
        %3962 = vmatprep.subr.bf16.mxu0 0
        %3963 = vmatpush2.bf16.msra.mxu0 0
        %3964 = vmatprep.subr.bf16.mxu0 0
        %3965 = vmatpush2.bf16.msra.mxu0 0
        %3966 = vmatprep.mubr.bf16.mxu0 0
        %3967 = vmatmul.mubr.bf16.gmra.mxu0 %v3929
        %v3968 = vpop.f32.mrf.mxu0
        %v3969 = vadd.f32 0.0, %v3968
        %v3970 = vpop.f32.mrf.mxu0
        %v3971 = vpop.f32.mrf.mxu0
        %v3972 = vpop.f32.mrf.mxu0
        %3973 = vdwg.mxu0
        %v3974 = vcombine.low %v3739, %v3831
        %v3975 = vcombine.high %v3739, %v3831
        %v3977 = vunpack.c.l.s4 1983009808
        %v3978 = vunpack.c.0.s8 %v3977
        %v3979 = vlaneseq
        %v3980 = vshrl.u32 %v3979, 7
        %v3981 = vsub.s32 %v3978, %v3980
        %v3982 = vrot.slane %v3974, %v3981
        %v3984 = vunpack.c.l.s4 1983009808
        %v3985 = vunpack.c.0.s8 %v3984
        %v3986 = vlaneseq
        %v3987 = vshrl.u32 %v3986, 7
        %v3988 = vsub.s32 %v3985, %v3987
        %v3989 = vrot.slane %v3975, %v3988
        %v3990 = vcombine.low %v3785, %v3877
        %v3991 = vcombine.high %v3785, %v3877
        %v3993 = vunpack.c.l.s4 1983009808
        %v3994 = vunpack.c.0.s8 %v3993
        %v3995 = vlaneseq
        %v3996 = vshrl.u32 %v3995, 7
        %v3997 = vsub.s32 %v3994, %v3996
        %v3998 = vrot.slane %v3990, %v3997
        %v4000 = vunpack.c.l.s4 1983009808
        %v4001 = vunpack.c.0.s8 %v4000
        %v4002 = vlaneseq
        %v4003 = vshrl.u32 %v4002, 7
        %v4004 = vsub.s32 %v4001, %v4003
        %v4005 = vrot.slane %v3991, %v4004
        %v4006 = vcombine.high %v3923, 0.0
        %v4008 = vunpack.c.l.s4 1983009808
        %v4009 = vunpack.c.0.s8 %v4008
        %v4010 = vlaneseq
        %v4011 = vshrl.u32 %v4010, 7
        %v4012 = vsub.s32 %v4009, %v4011
        %v4013 = vrot.slane %v3923, %v4012
        %v4015 = vunpack.c.l.s4 1983009808
        %v4016 = vunpack.c.0.s8 %v4015
        %v4017 = vlaneseq
        %v4018 = vshrl.u32 %v4017, 7
        %v4019 = vsub.s32 %v4016, %v4018
        %v4020 = vrot.slane %v4006, %v4019
        %v4021 = vcombine.high %v3969, 0.0
        %v4023 = vunpack.c.l.s4 1983009808
        %v4024 = vunpack.c.0.s8 %v4023
        %v4025 = vlaneseq
        %v4026 = vshrl.u32 %v4025, 7
        %v4027 = vsub.s32 %v4024, %v4026
        %v4028 = vrot.slane %v3969, %v4027
        %v4030 = vunpack.c.l.s4 1983009808
        %v4031 = vunpack.c.0.s8 %v4030
        %v4032 = vlaneseq
        %v4033 = vshrl.u32 %v4032, 7
        %v4034 = vsub.s32 %v4031, %v4033
        %v4035 = vrot.slane %v4021, %v4034
        %v4036 = vcombine.low %v3982, %v3998
        %v4037 = vcombine.high %v3982, %v3998
        %v4039 = vunpack.c.l.s4 1934713408
        %v4040 = vunpack.c.0.s8 %v4039
        %v4041 = vlaneseq
        %v4042 = vshrl.u32 %v4041, 7
        %v4043 = vsub.s32 %v4040, %v4042
        %v4044 = vrot.slane %v4036, %v4043
        %v4046 = vunpack.c.l.s4 1934713408
        %v4047 = vunpack.c.0.s8 %v4046
        %v4048 = vlaneseq
        %v4049 = vshrl.u32 %v4048, 7
        %v4050 = vsub.s32 %v4047, %v4049
        %v4051 = vrot.slane %v4037, %v4050
        %v4052 = vcombine.low %v3989, %v4005
        %v4053 = vcombine.high %v3989, %v4005
        %v4055 = vunpack.c.l.s4 1934713408
        %v4056 = vunpack.c.0.s8 %v4055
        %v4057 = vlaneseq
        %v4058 = vshrl.u32 %v4057, 7
        %v4059 = vsub.s32 %v4056, %v4058
        %v4060 = vrot.slane %v4052, %v4059
        %v4062 = vunpack.c.l.s4 1934713408
        %v4063 = vunpack.c.0.s8 %v4062
        %v4064 = vlaneseq
        %v4065 = vshrl.u32 %v4064, 7
        %v4066 = vsub.s32 %v4063, %v4065
        %v4067 = vrot.slane %v4053, %v4066
        %v4068 = vcombine.low %v4013, %v4028
        %v4069 = vcombine.high %v4013, %v4028
        %v4071 = vunpack.c.l.s4 1934713408
        %v4072 = vunpack.c.0.s8 %v4071
        %v4073 = vlaneseq
        %v4074 = vshrl.u32 %v4073, 7
        %v4075 = vsub.s32 %v4072, %v4074
        %v4076 = vrot.slane %v4068, %v4075
        %v4078 = vunpack.c.l.s4 1934713408
        %v4079 = vunpack.c.0.s8 %v4078
        %v4080 = vlaneseq
        %v4081 = vshrl.u32 %v4080, 7
        %v4082 = vsub.s32 %v4079, %v4081
        %v4083 = vrot.slane %v4069, %v4082
        %v4084 = vcombine.low %v4020, %v4035
        %v4085 = vcombine.high %v4020, %v4035
        %v4087 = vunpack.c.l.s4 1934713408
        %v4088 = vunpack.c.0.s8 %v4087
        %v4089 = vlaneseq
        %v4090 = vshrl.u32 %v4089, 7
        %v4091 = vsub.s32 %v4088, %v4090
        %v4092 = vrot.slane %v4084, %v4091
        %v4094 = vunpack.c.l.s4 1934713408
        %v4095 = vunpack.c.0.s8 %v4094
        %v4096 = vlaneseq
        %v4097 = vshrl.u32 %v4096, 7
        %v4098 = vsub.s32 %v4095, %v4097
        %v4099 = vrot.slane %v4085, %v4098
        %v4100 = vcombine.low %v4044, %v4076
        %v4101 = vcombine.high %v4044, %v4076
        %v4102 = vcombine.low %v4051, %v4083
        %v4103 = vcombine.high %v4051, %v4083
        %v4104 = vcombine.low %v4060, %v4092
        %v4105 = vcombine.high %v4060, %v4092
        %v4106 = vcombine.low %v4067, %v4099
        %v4107 = vcombine.high %v4067, %v4099
        %v4108 = vcombine.low %v4100, %v4102
        %v4109 = vcombine.high %v4100, %v4102
        %v4111 = vunpack.c.l.s4 1983009808
        %v4112 = vunpack.c.0.s8 %v4111
        %v4113 = vlaneseq
        %v4114 = vshrl.u32 %v4113, 7
        %v4115 = vsub.s32 %v4112, %v4114
        %v4116 = vrot.slane %v4108, %v4115
        %v4118 = vunpack.c.l.s4 1983009808
        %v4119 = vunpack.c.0.s8 %v4118
        %v4120 = vlaneseq
        %v4121 = vshrl.u32 %v4120, 7
        %v4122 = vsub.s32 %v4119, %v4121
        %v4123 = vrot.slane %v4109, %v4122
        %v4124 = vcombine.low %v4101, %v4103
        %v4125 = vcombine.high %v4101, %v4103
        %v4127 = vunpack.c.l.s4 1983009808
        %v4128 = vunpack.c.0.s8 %v4127
        %v4129 = vlaneseq
        %v4130 = vshrl.u32 %v4129, 7
        %v4131 = vsub.s32 %v4128, %v4130
        %v4132 = vrot.slane %v4124, %v4131
        %v4134 = vunpack.c.l.s4 1983009808
        %v4135 = vunpack.c.0.s8 %v4134
        %v4136 = vlaneseq
        %v4137 = vshrl.u32 %v4136, 7
        %v4138 = vsub.s32 %v4135, %v4137
        %v4139 = vrot.slane %v4125, %v4138
        %v4140 = vcombine.low %v4104, %v4106
        %v4141 = vcombine.high %v4104, %v4106
        %v4143 = vunpack.c.l.s4 1983009808
        %v4144 = vunpack.c.0.s8 %v4143
        %v4145 = vlaneseq
        %v4146 = vshrl.u32 %v4145, 7
        %v4147 = vsub.s32 %v4144, %v4146
        %v4148 = vrot.slane %v4140, %v4147
        %v4150 = vunpack.c.l.s4 1983009808
        %v4151 = vunpack.c.0.s8 %v4150
        %v4152 = vlaneseq
        %v4153 = vshrl.u32 %v4152, 7
        %v4154 = vsub.s32 %v4151, %v4153
        %v4155 = vrot.slane %v4141, %v4154
        %v4156 = vcombine.low %v4105, %v4107
        %v4157 = vcombine.high %v4105, %v4107
        %v4159 = vunpack.c.l.s4 1983009808
        %v4160 = vunpack.c.0.s8 %v4159
        %v4161 = vlaneseq
        %v4162 = vshrl.u32 %v4161, 7
        %v4163 = vsub.s32 %v4160, %v4162
        %v4164 = vrot.slane %v4156, %v4163
        %v4166 = vunpack.c.l.s4 1983009808
        %v4167 = vunpack.c.0.s8 %v4166
        %v4168 = vlaneseq
        %v4169 = vshrl.u32 %v4168, 7
        %v4170 = vsub.s32 %v4167, %v4169
        %v4171 = vrot.slane %v4157, %v4170
        %v4172 = vcombine.low %v4116, %v4132
        %v4173 = vcombine.high %v4116, %v4132
        %v4175 = vunpack.c.l.s4 1934713408
        %v4176 = vunpack.c.0.s8 %v4175
        %v4177 = vlaneseq
        %v4178 = vshrl.u32 %v4177, 7
        %v4179 = vsub.s32 %v4176, %v4178
        %v4180 = vrot.slane %v4172, %v4179
        %v4182 = vunpack.c.l.s4 1934713408
        %v4183 = vunpack.c.0.s8 %v4182
        %v4184 = vlaneseq
        %v4185 = vshrl.u32 %v4184, 7
        %v4186 = vsub.s32 %v4183, %v4185
        %v4187 = vrot.slane %v4173, %v4186
        %v4188 = vcombine.low %v4123, %v4139
        %v4190 = vunpack.c.l.s4 1934713408
        %v4191 = vunpack.c.0.s8 %v4190
        %v4192 = vlaneseq
        %v4193 = vshrl.u32 %v4192, 7
        %v4194 = vsub.s32 %v4191, %v4193
        %v4195 = vrot.slane %v4188, %v4194
        %v4196 = vcombine.low %v4148, %v4164
        %v4197 = vcombine.high %v4148, %v4164
        %v4199 = vunpack.c.l.s4 1934713408
        %v4200 = vunpack.c.0.s8 %v4199
        %v4201 = vlaneseq
        %v4202 = vshrl.u32 %v4201, 7
        %v4203 = vsub.s32 %v4200, %v4202
        %v4204 = vrot.slane %v4196, %v4203
        %v4206 = vunpack.c.l.s4 1934713408
        %v4207 = vunpack.c.0.s8 %v4206
        %v4208 = vlaneseq
        %v4209 = vshrl.u32 %v4208, 7
        %v4210 = vsub.s32 %v4207, %v4209
        %v4211 = vrot.slane %v4197, %v4210
        %v4212 = vcombine.low %v4155, %v4171
        %v4214 = vunpack.c.l.s4 1934713408
        %v4215 = vunpack.c.0.s8 %v4214
        %v4216 = vlaneseq
        %v4217 = vshrl.u32 %v4216, 7
        %v4218 = vsub.s32 %v4215, %v4217
        %v4219 = vrot.slane %v4212, %v4218
        %v4220 = vcombine.low %v4180, %v4204
        %v4221 = vcombine.high %v4180, %v4204
        %v4222 = vcombine.low %v4187, %v4211
        %v4223 = vcombine.high %v4187, %v4211
        %v4224 = vcombine.low %v4195, %v4219
        %v4225 = vcombine.high %v4195, %v4219
        %4227 = vrot.lane.b32.xlu0 %v4221, 8
        %v4228 = vpop.permute.xlu0 %4227
        %4231 = vrot.lane.b32.xlu0 %v4222, 16
        %v4232 = vpop.permute.xlu0 %4231
        %4235 = vrot.lane.b32.xlu0 %v4223, 24
        %v4236 = vpop.permute.xlu0 %4235
        %4239 = vrot.lane.b32.xlu0 %v4224, 32
        %v4240 = vpop.permute.xlu0 %4239
        %4243 = vrot.lane.b32.xlu0 %v4225, 40
        %v4244 = vpop.permute.xlu0 %4243
        %v4246 = vsel %vm1299, %v4220, %v4228
        %v4247 = vsel %vm2223, %v4246, %v4232
        %v4248 = vsel %vm2225, %v4247, %v4236
        %v4249 = vsel %vm2227, %v4248, %v4240
        %v4250 = vsel %vm2229, %v4249, %v4244
        %v4251 = vpack.c.bf16 %v4250, %v4250
        %v4258 = vunpack.c.l.b16 %v2492
        %v4259 = vunpack.c.l.b16 %v2493
        %v4260 = vunpack.c.l.b16 %v2494
        %v4261 = vunpack.c.l.b16 %v2495
        %v4262 = vunpack.c.l.b16 %v2496
        %v4263 = vunpack.c.l.b16 %v2497
        %v4264 = vpack.c.b16 %v4259, %v4258
        %v4265 = vpack.c.b16 %v4261, %v4260
        %v4266 = vpack.c.b16 %v4263, %v4262
        %v4271 = vsel %vm486, %v4251, 0
        %4273 = vmatprep.subr.bf16.mxu0 0
        %4274 = vmatpush1.bf16.msra.mxu0 0
        %4275 = vmatprep.subr.bf16.mxu0 0
        %4276 = vmatpush1.bf16.msra.mxu0 0
        %4277 = vmatprep.subr.bf16.mxu0 0
        %4278 = vmatpush1.bf16.msra.mxu0 0
        %4279 = vmatprep.subr.bf16.mxu0 0
        %4280 = vmatpush1.bf16.msra.mxu0 0
        %4281 = vmatprep.subr.bf16.mxu0 0
        %4282 = vmatpush1.bf16.msra.mxu0 0
        %4283 = vmatprep.subr.bf16.mxu0 0
        %4284 = vmatpush1.bf16.msra.mxu0 %v4266
        %4285 = vmatprep.subr.bf16.mxu0 0
        %4286 = vmatpush1.bf16.msra.mxu0 %v4265
        %4287 = vmatprep.subr.bf16.mxu0 0
        %4288 = vmatpush1.bf16.msra.mxu0 %v4264
        %4289 = vmatprep.subr.bf16.mxu0 0
        %4290 = vmatpush2.bf16.msra.mxu0 0
        %4291 = vmatprep.subr.bf16.mxu0 0
        %4292 = vmatpush2.bf16.msra.mxu0 0
        %4293 = vmatprep.subr.bf16.mxu0 0
        %4294 = vmatpush2.bf16.msra.mxu0 0
        %4295 = vmatprep.subr.bf16.mxu0 0
        %4296 = vmatpush2.bf16.msra.mxu0 0
        %4297 = vmatprep.subr.bf16.mxu0 0
        %4298 = vmatpush2.bf16.msra.mxu0 0
        %4299 = vmatprep.subr.bf16.mxu0 0
        %4300 = vmatpush2.bf16.msra.mxu0 0
        %4301 = vmatprep.subr.bf16.mxu0 0
        %4302 = vmatpush2.bf16.msra.mxu0 0
        %4303 = vmatprep.subr.bf16.mxu0 0
        %4304 = vmatpush2.bf16.msra.mxu0 0
        %4305 = vmatprep.mubr.bf16.mxu0 0
        %4306 = vmatmul.mubr.bf16.gmra.mxu0 %v4271
        %v4307 = vpop.f32.mrf.mxu0
        %v4308 = vadd.f32 0.0, %v4307
        %v4309 = vpop.f32.mrf.mxu0
        %v4310 = vpop.f32.mrf.mxu0
        %v4311 = vpop.f32.mrf.mxu0
        %4312 = vdwg.mxu0
        %v4313 = vadd.f32 %v2481, %v4308
        %v4314 = vmul.f32 %v4313, %v4313
        %v4315 = vsel %vm486, %v4314, 0.0
        %4316 = vadd.xlane.f32.xlu0 %v4315
        %v4317 = vpop.xlane.xlu0 %4316
        %v4318 = vmul.f32 %v4317, %v490
        %v4319 = vadd.f32 %v4318, 1e-05
        %v4320 = vrsqrt.pop %v4319
        %v4321 = vmul.f32 %v4313, %v4320
        %v4323 = vlaneseq
        %v4324 = vshrl.u32 %v4323, 7
        %v4325 = vsub.s32 0, %v4324
        %v4326 = vrot.slane %v2499, %v4325
        %v4328 = vmul.f32 %v4321, %v4326
        %v4329 = vpack.c.bf16 %v4328, %v4328
        %v4336 = vunpack.c.l.b16 %v2501
        %v4337 = vunpack.c.h.b16 %v2501
        %v4338 = vunpack.c.l.b16 %v2502
        %v4339 = vunpack.c.h.b16 %v2502
        %v4340 = vunpack.c.l.b16 %v2503
        %v4341 = vunpack.c.h.b16 %v2503
        %v4342 = vunpack.c.l.b16 %v2504
        %v4343 = vunpack.c.h.b16 %v2504
        %v4344 = vunpack.c.l.b16 %v2505
        %v4345 = vunpack.c.h.b16 %v2505
        %v4346 = vunpack.c.l.b16 %v2506
        %v4347 = vunpack.c.h.b16 %v2506
        %v4348 = vpack.c.b16 %v4338, %v4336
        %v4349 = vpack.c.b16 %v4339, %v4337
        %v4350 = vpack.c.b16 %v4342, %v4340
        %v4351 = vpack.c.b16 %v4343, %v4341
        %v4352 = vpack.c.b16 %v4346, %v4344
        %v4353 = vpack.c.b16 %v4347, %v4345
        %v4361 = vsel %vm486, %v4329, 0
        %4363 = vmatprep.subr.bf16.mxu0 0
        %4364 = vmatpush1.bf16.msra.mxu0 0
        %4365 = vmatprep.subr.bf16.mxu0 0
        %4366 = vmatpush1.bf16.msra.mxu0 0
        %4367 = vmatprep.subr.bf16.mxu0 0
        %4368 = vmatpush1.bf16.msra.mxu0 0
        %4369 = vmatprep.subr.bf16.mxu0 0
        %4370 = vmatpush1.bf16.msra.mxu0 0
        %4371 = vmatprep.subr.bf16.mxu0 0
        %4372 = vmatpush1.bf16.msra.mxu0 0
        %4373 = vmatprep.subr.bf16.mxu0 %v4353
        %4374 = vmatpush1.bf16.msra.mxu0 %v4352
        %4375 = vmatprep.subr.bf16.mxu0 %v4351
        %4376 = vmatpush1.bf16.msra.mxu0 %v4350
        %4377 = vmatprep.subr.bf16.mxu0 %v4349
        %4378 = vmatpush1.bf16.msra.mxu0 %v4348
        %4379 = vmatprep.subr.bf16.mxu0 0
        %4380 = vmatpush2.bf16.msra.mxu0 0
        %4381 = vmatprep.subr.bf16.mxu0 0
        %4382 = vmatpush2.bf16.msra.mxu0 0
        %4383 = vmatprep.subr.bf16.mxu0 0
        %4384 = vmatpush2.bf16.msra.mxu0 0
        %4385 = vmatprep.subr.bf16.mxu0 0
        %4386 = vmatpush2.bf16.msra.mxu0 0
        %4387 = vmatprep.subr.bf16.mxu0 0
        %4388 = vmatpush2.bf16.msra.mxu0 0
        %4389 = vmatprep.subr.bf16.mxu0 0
        %4390 = vmatpush2.bf16.msra.mxu0 0
        %4391 = vmatprep.subr.bf16.mxu0 0
        %4392 = vmatpush2.bf16.msra.mxu0 0
        %4393 = vmatprep.subr.bf16.mxu0 0
        %4394 = vmatpush2.bf16.msra.mxu0 0
        %4395 = vmatprep.mubr.bf16.mxu0 0
        %4396 = vmatmul.mubr.bf16.gmra.mxu0 %v4361
        %v4397 = vpop.f32.mrf.mxu0
        %v4398 = vadd.f32 0.0, %v4397
        %v4399 = vpop.f32.mrf.mxu0
        %v4400 = vadd.f32 0.0, %v4399
        %v4401 = vpop.f32.mrf.mxu0
        %v4402 = vpop.f32.mrf.mxu0
        %4403 = vdwg.mxu0
        %v4404 = vxor.u32 %v4398, 2147483648
        %v4405 = vmul.f32 %v4404, 1.442695
        %v4406 = vpow.pop %v4405
        %v4407 = vadd.f32 %v4406, 1.0
        %v4408 = vrcp.pop %v4407
        %v4409 = vmul.f32 1.0, %v4408
        %v4410 = vmul.f32 %v4398, %v4409
        %4413 = vrot.lane.b32.xlu0 %v4398, 32
        %v4414 = vpop.permute.xlu0 %4413
        %4415 = vrot.lane.b32.xlu0 %v4400, 32
        %v4416 = vpop.permute.xlu0 %4415
        %v4417 = vsel %vm2227, %v4414, %v4416
        %v4419 = vmul.f32 %v4410, %v4417
        %v4420 = vpack.c.bf16 %v4419, %v4419
        %v4433 = vunpack.c.l.b16 %v2508
        %v4434 = vunpack.c.l.b16 %v2509
        %v4435 = vunpack.c.l.b16 %v2510
        %v4436 = vunpack.c.l.b16 %v2511
        %v4437 = vunpack.c.l.b16 %v2512
        %v4438 = vunpack.c.l.b16 %v2513
        %v4439 = vunpack.c.l.b16 %v2514
        %v4440 = vunpack.c.l.b16 %v2515
        %v4441 = vunpack.c.l.b16 %v2516
        %v4442 = vunpack.c.l.b16 %v2517
        %v4443 = vunpack.c.l.b16 %v2518
        %v4444 = vunpack.c.l.b16 %v2519
        %v4445 = vpack.c.b16 %v4434, %v4433
        %v4446 = vpack.c.b16 %v4436, %v4435
        %v4447 = vpack.c.b16 %v4438, %v4437
        %v4448 = vpack.c.b16 %v4440, %v4439
        %v4449 = vpack.c.b16 %v4442, %v4441
        %v4450 = vpack.c.b16 %v4444, %v4443
        %v4458 = vsel %vm2437, %v4420, 0
        %4460 = vmatprep.subr.bf16.mxu0 0
        %4461 = vmatpush1.bf16.msra.mxu0 0
        %4462 = vmatprep.subr.bf16.mxu0 0
        %4463 = vmatpush1.bf16.msra.mxu0 0
        %4464 = vmatprep.subr.bf16.mxu0 0
        %4465 = vmatpush1.bf16.msra.mxu0 %v4450
        %4466 = vmatprep.subr.bf16.mxu0 0
        %4467 = vmatpush1.bf16.msra.mxu0 %v4449
        %4468 = vmatprep.subr.bf16.mxu0 0
        %4469 = vmatpush1.bf16.msra.mxu0 %v4448
        %4470 = vmatprep.subr.bf16.mxu0 0
        %4471 = vmatpush1.bf16.msra.mxu0 %v4447
        %4472 = vmatprep.subr.bf16.mxu0 0
        %4473 = vmatpush1.bf16.msra.mxu0 %v4446
        %4474 = vmatprep.subr.bf16.mxu0 0
        %4475 = vmatpush1.bf16.msra.mxu0 %v4445
        %4476 = vmatprep.subr.bf16.mxu0 0
        %4477 = vmatpush2.bf16.msra.mxu0 0
        %4478 = vmatprep.subr.bf16.mxu0 0
        %4479 = vmatpush2.bf16.msra.mxu0 0
        %4480 = vmatprep.subr.bf16.mxu0 0
        %4481 = vmatpush2.bf16.msra.mxu0 0
        %4482 = vmatprep.subr.bf16.mxu0 0
        %4483 = vmatpush2.bf16.msra.mxu0 0
        %4484 = vmatprep.subr.bf16.mxu0 0
        %4485 = vmatpush2.bf16.msra.mxu0 0
        %4486 = vmatprep.subr.bf16.mxu0 0
        %4487 = vmatpush2.bf16.msra.mxu0 0
        %4488 = vmatprep.subr.bf16.mxu0 0
        %4489 = vmatpush2.bf16.msra.mxu0 0
        %4490 = vmatprep.subr.bf16.mxu0 0
        %4491 = vmatpush2.bf16.msra.mxu0 0
        %4492 = vmatprep.mubr.bf16.mxu0 0
        %4493 = vmatmul.mubr.bf16.gmra.mxu0 %v4458
        %v4494 = vpop.f32.mrf.mxu0
        %v4495 = vadd.f32 0.0, %v4494
        %v4496 = vpop.f32.mrf.mxu0
        %v4497 = vpop.f32.mrf.mxu0
        %v4498 = vpop.f32.mrf.mxu0
        %4499 = vdwg.mxu0
        %v4500 = vadd.f32 %v4313, %v4495
        %v4501 = vld [vmem:[%s10] sm:$0x1]
        %v4502 = vmul.f32 %v4500, %v4500
        %v4503 = vsel %vm486, %v4502, 0.0
        %4504 = vadd.xlane.f32.xlu0 %v4503
        %v4505 = vpop.xlane.xlu0 %4504
        %v4506 = vmul.f32 %v4505, %v490
        %v4507 = vadd.f32 %v4506, 1e-05
        %v4508 = vrsqrt.pop %v4507
        %v4509 = vmul.f32 %v4500, %v4508
        %v4511 = vlaneseq
        %v4512 = vshrl.u32 %v4511, 7
        %v4513 = vsub.s32 0, %v4512
        %v4514 = vrot.slane %v4501, %v4513
        %v4516 = vmul.f32 %v4509, %v4514
        %s4517 = sld [smem:[#allocation3 + %s26]]
        %v4518 = vstv %s4517
        %vm4519 = vcmp.eq.s32.totalorder %v1583, %v4518
        %v4520 = vsel %vm4519, 1, 0
        %v4521 = vcvt.s32.f32 %v4520
        %v4522 = vmul.f32 %v4516, %v4521
        %v4523 = vsel %vm486, %v4522, 0.0
        %v4524 = vrot.slane %v4523, 4
        %v4525 = vadd.f32 %v4523, %v4524
        %v4526 = vrot.slane %v4525, 2
        %v4527 = vadd.f32 %v4525, %v4526
        %v4528 = vrot.slane %v4527, 1
        %v4529 = vadd.f32 %v4527, %v4528
        %v4530 = vpack.c.bf16 %v4529, %v4529
        %v4531 = vld [vmem:[%s11] sm:$0xf]
        %v4532 = vld [vmem:[%s11 + $0x4] sm:$0xf]
        %v4533 = vld [vmem:[%s11 + $0x8] sm:$0xf]
        %v4534 = vld [vmem:[%s11 + $0xc] sm:$0xf]
        %v4535 = vld [vmem:[%s11 + $0x10] sm:$0xf]
        %v4536 = vld [vmem:[%s11 + $0x14] sm:$0xf]
        %v4543 = vunpack.c.l.b16 %v4531
        %v4544 = vunpack.c.l.b16 %v4532
        %v4545 = vunpack.c.l.b16 %v4533
        %v4546 = vunpack.c.l.b16 %v4534
        %v4547 = vunpack.c.l.b16 %v4535
        %v4548 = vunpack.c.l.b16 %v4536
        %v4549 = vpack.c.b16 %v4544, %v4543
        %v4550 = vpack.c.b16 %v4546, %v4545
        %v4551 = vpack.c.b16 %v4548, %v4547
        %v4556 = vsel %vm486, %v4530, 0
        %4558 = vmatprep.subr.bf16.mxu0 0
        %4559 = vmatpush1.bf16.msra.mxu0 0
        %4560 = vmatprep.subr.bf16.mxu0 0
        %4561 = vmatpush1.bf16.msra.mxu0 0
        %4562 = vmatprep.subr.bf16.mxu0 0
        %4563 = vmatpush1.bf16.msra.mxu0 0
        %4564 = vmatprep.subr.bf16.mxu0 0
        %4565 = vmatpush1.bf16.msra.mxu0 0
        %4566 = vmatprep.subr.bf16.mxu0 0
        %4567 = vmatpush1.bf16.msra.mxu0 0
        %4568 = vmatprep.subr.bf16.mxu0 0
        %4569 = vmatpush1.bf16.msra.mxu0 %v4551
        %4570 = vmatprep.subr.bf16.mxu0 0
        %4571 = vmatpush1.bf16.msra.mxu0 %v4550
        %4572 = vmatprep.subr.bf16.mxu0 0
        %4573 = vmatpush1.bf16.msra.mxu0 %v4549
        %4574 = vmatprep.subr.bf16.mxu0 0
        %4575 = vmatpush2.bf16.msra.mxu0 0
        %4576 = vmatprep.subr.bf16.mxu0 0
        %4577 = vmatpush2.bf16.msra.mxu0 0
        %4578 = vmatprep.subr.bf16.mxu0 0
        %4579 = vmatpush2.bf16.msra.mxu0 0
        %4580 = vmatprep.subr.bf16.mxu0 0
        %4581 = vmatpush2.bf16.msra.mxu0 0
        %4582 = vmatprep.subr.bf16.mxu0 0
        %4583 = vmatpush2.bf16.msra.mxu0 0
        %4584 = vmatprep.subr.bf16.mxu0 0
        %4585 = vmatpush2.bf16.msra.mxu0 0
        %4586 = vmatprep.subr.bf16.mxu0 0
        %4587 = vmatpush2.bf16.msra.mxu0 0
        %4588 = vmatprep.subr.bf16.mxu0 0
        %4589 = vmatpush2.bf16.msra.mxu0 0
        %4590 = vmatprep.mubr.bf16.mxu0 0
        %4591 = vmatmul.mubr.bf16.gmra.mxu0 %v4556
        %v4592 = vpop.f32.mrf.mxu0
        %v4593 = vadd.f32 0.0, %v4592
        %v4594 = vpop.f32.mrf.mxu0
        %v4595 = vpop.f32.mrf.mxu0
        %v4596 = vpop.f32.mrf.mxu0
        %4597 = vdwg.mxu0
        %v4598 = vmul.f32 %v4593, %v4593
        %vm4599 = vcmask 253952
        %v4600 = vsel %vm4599, %v4598, 0.0
        %4601 = vadd.xlane.f32.xlu0 %v4600
        %v4602 = vpop.xlane.xlu0 %4601
        %v4603 = vmax.f32 %v4602, 1e-24
        %v4604 = vrsqrt.pop %v4603
        %v4605 = vmul.f32 %v4593, %v4604
        %v4606 = vld [vmem:[%s12] sm:$0x3]
        %v4608 = vsel %vm2227, %v4605, 0
        %v4611 = vsel %vm2227, %v4606, 0
        %4613 = vmatprep.subr.mxu0 0.0
        %4614 = vmatpush1.xpose.msra.mxu0 0.0
        %4615 = vmatprep.subr.mxu0 0.0
        %4616 = vmatpush1.xpose.msra.mxu0 0.0
        %4617 = vmatprep.subr.mxu0 0.0
        %4618 = vmatpush1.xpose.msra.mxu0 0.0
        %4619 = vmatprep.subr.mxu0 0.0
        %4620 = vmatpush1.xpose.msra.mxu0 0.0
        %4621 = vmatprep.subr.mxu0 0.0
        %4622 = vmatpush1.xpose.msra.mxu0 0.0
        %4623 = vmatprep.subr.mxu0 0.0
        %4624 = vmatpush1.xpose.msra.mxu0 0.0
        %4625 = vmatprep.subr.mxu0 0.0
        %4626 = vmatpush1.xpose.msra.mxu0 0.0
        %4627 = vmatprep.subr.mxu0 0.0
        %4628 = vmatpush1.xpose.msra.mxu0 0.0
        %4629 = vmatprep.subr.mxu0 0.0
        %4630 = vmatpush1.xpose.msra.mxu0 0.0
        %4631 = vmatprep.subr.mxu0 0.0
        %4632 = vmatpush1.xpose.msra.mxu0 0.0
        %4633 = vmatprep.subr.mxu0 0.0
        %4634 = vmatpush1.xpose.msra.mxu0 0.0
        %4635 = vmatprep.subr.mxu0 0.0
        %4636 = vmatpush1.xpose.msra.mxu0 0.0
        %4637 = vmatprep.subr.mxu0 0.0
        %4638 = vmatpush1.xpose.msra.mxu0 0.0
        %4639 = vmatprep.subr.mxu0 0.0
        %4640 = vmatpush1.xpose.msra.mxu0 0.0
        %4641 = vmatprep.subr.mxu0 0.0
        %4642 = vmatpush1.xpose.msra.mxu0 0.0
        %4643 = vmatprep.subr.mxu0 0.0
        %4644 = vmatpush1.xpose.msra.mxu0 %v4611
        %4645 = vmatprep.subr.mxu0 0.0
        %4646 = vmatpush2.xpose.msra.mxu0 0.0
        %4647 = vmatprep.subr.mxu0 0.0
        %4648 = vmatpush2.xpose.msra.mxu0 0.0
        %4649 = vmatprep.subr.mxu0 0.0
        %4650 = vmatpush2.xpose.msra.mxu0 0.0
        %4651 = vmatprep.subr.mxu0 0.0
        %4652 = vmatpush2.xpose.msra.mxu0 0.0
        %4653 = vmatprep.subr.mxu0 0.0
        %4654 = vmatpush2.xpose.msra.mxu0 0.0
        %4655 = vmatprep.subr.mxu0 0.0
        %4656 = vmatpush2.xpose.msra.mxu0 0.0
        %4657 = vmatprep.subr.mxu0 0.0
        %4658 = vmatpush2.xpose.msra.mxu0 0.0
        %4659 = vmatprep.subr.mxu0 0.0
        %4660 = vmatpush2.xpose.msra.mxu0 0.0
        %4661 = vmatprep.subr.mxu0 0.0
        %4662 = vmatpush2.xpose.msra.mxu0 0.0
        %4663 = vmatprep.subr.mxu0 0.0
        %4664 = vmatpush2.xpose.msra.mxu0 0.0
        %4665 = vmatprep.subr.mxu0 0.0
        %4666 = vmatpush2.xpose.msra.mxu0 0.0
        %4667 = vmatprep.subr.mxu0 0.0
        %4668 = vmatpush2.xpose.msra.mxu0 0.0
        %4669 = vmatprep.subr.mxu0 0.0
        %4670 = vmatpush2.xpose.msra.mxu0 0.0
        %4671 = vmatprep.subr.mxu0 0.0
        %4672 = vmatpush2.xpose.msra.mxu0 0.0
        %4673 = vmatprep.subr.mxu0 0.0
        %4674 = vmatpush2.xpose.msra.mxu0 0.0
        %4675 = vmatprep.subr.mxu0 0.0
        %4676 = vmatpush2.xpose.msra.mxu0 0.0
        %4677 = vmatprep.mubr.f32.mxu0 0.0
        %4678 = vmatmul.mubr.f32.gmra.mxu0 %v4608
        %v4679 = vpop.f32.mrf.mxu0
        %v4680 = vadd.f32 0.0, %v4679
        %v4681 = vpop.f32.mrf.mxu0
        %4682 = vdwg.mxu0
        %s4683 = sld [smem:[#allocation2]]
        %v4684 = vstv %s4683
        %v4685 = vmul.f32 %v4680, %v4684
        %vm4686 = vcmask 8192
        %4687 = vst.msk [vmem:[%s448] sm:$0x1] %vm4686, %v4685
        %p4688 = scmp.lt.s32.totalorder %s26, 1
        %s4689 = scalar_select %p4688, %s26, 1
        %s4690 = scalar_lea.vmem %s13, %s4689
        // Predicated region
        $region77: #{aimv2_lit_forward.3} parent=71 // pred_check
          %p4691 = pneg %p322
        $region78: #{aimv2_lit_forward.3} parent=71 // pred_check_branch
          %4693 = sbr.rel (%p4691) target = $region80
        $region79: #{aimv2_lit_forward.3} parent=71 // pred_region
          _
        $region80: #{aimv2_lit_forward.3} parent=71 // pred_fallthru
          _
      $region72: #{aimv2_lit_forward.3} parent=5 // pred_fallthru
        _
      %p4694 = scmp.le.s32.totalorder 2, %s21
      // Predicated region
      $region81: #{aimv2_lit_forward.3} parent=5 // pred_check
        %p4695 = pneg %p4694
      $region82: #{aimv2_lit_forward.3} parent=5 // pred_check_branch
        %4697 = sbr.rel (%p4695) target = $region84
      $region83: #{aimv2_lit_forward.3} parent=5 // pred_region
        %s4698 = ssub.s32 %s21, 2
        // Predicated region
        $region85: #{aimv2_lit_forward.3} parent=83 // pred_check
          %p4699 = pneg %p328
        $region86: #{aimv2_lit_forward.3} parent=83 // pred_check_branch
          %4701 = sbr.rel (%p4699) target = $region88
        $region87: #{aimv2_lit_forward.3} parent=83 // pred_region
          %p4702 = scmp.lt.s32.totalorder %s27, 1
          %s4703 = scalar_select %p4702, %s27, 1
          %s4704 = scalar_lea.vmem %s13, %s4703
        $region88: #{aimv2_lit_forward.3} parent=83 // pred_fallthru
          _
      $region84: #{aimv2_lit_forward.3} parent=5 // pred_fallthru
        _
    $region6: #{aimv2_lit_forward.3} parent=1 // loop_footer
      %s25 = sadd.s32 1, %s21
    $region7: #{aimv2_lit_forward.3} parent=1 // loop_footer_branch
      %20 = sbr.rel target = $region3
    $region8: #{aimv2_lit_forward.3} parent=1 // loop_exit
      _
    %4705 = vsyncpa [#allocation4], 1
    %s4706 = scalar_lea.sflag [#allocation4], 1
    %4707 = vsyncpa %s4706, 1

// kernel: aimv2_lit_forward.2
$region0: #{aimv2_lit_forward.2}
  #allocation0 [shape = 'u32[]', space=smem, size = 0x4, offset = 0x4, fixed_abs, tag = 'smem constant byte address 0x4 - core index']
  #allocation1 [shape = 'u32[144,128]{1,0:T(1,128)}', space=vmem, size = 0x12000, scoped, tag = 'internal scratch']
  %s0 = inlined_call_operand.vmem [shape: f32[2,4,588], index: 0, kind: input, shape index: {}]
  %s1 = inlined_call_operand.vmem [shape: bf16[588,64], index: 1, kind: input, shape index: {}]
  %s2 = inlined_call_operand.vmem [shape: f32[1,64], index: 2, kind: input, shape index: {}]
  %s3 = inlined_call_operand.vmem [shape: f32[1,64], index: 3, kind: input, shape index: {}]
  %s4 = inlined_call_operand.vmem [shape: f32[4,64], index: 4, kind: input, shape index: {}]
  %s5 = inlined_call_operand.vmem [shape: f32[2,1,64], index: 5, kind: input, shape index: {}]
  %s6 = inlined_call_operand.vmem [shape: bf16[2,64,192], index: 6, kind: input, shape index: {}]
  %s7 = inlined_call_operand.vmem [shape: bf16[2,64,64], index: 7, kind: input, shape index: {}]
  %s8 = inlined_call_operand.vmem [shape: f32[2,1,64], index: 8, kind: input, shape index: {}]
  %s9 = inlined_call_operand.vmem [shape: bf16[2,64,256], index: 9, kind: input, shape index: {}]
  %s10 = inlined_call_operand.vmem [shape: bf16[2,128,64], index: 10, kind: input, shape index: {}]
  %s11 = inlined_call_operand.vmem [shape: f32[1,64], index: 11, kind: input, shape index: {}]
  %s12 = inlined_call_operand.vmem [shape: f32[1,64], index: 12, kind: input, shape index: {}]
  %s13 = inlined_call_operand.vmem [shape: bf16[64,128], index: 13, kind: input, shape index: {}]
  %s14 = inlined_call_operand.vmem [shape: bf16[64,64], index: 14, kind: input, shape index: {}]
  %s15 = inlined_call_operand.vmem [shape: f32[1,64], index: 15, kind: input, shape index: {}]
  %s16 = inlined_call_operand.vmem [shape: bf16[64,32], index: 16, kind: input, shape index: {}]
  %s17 = inlined_call_operand.vmem [shape: f32[2,1,32], index: 17, kind: output, shape index: {}]
  %s18 = sld [smem:[#allocation0]]
  $region101: #{aimv2_lit_forward.2} parent=0
    _
  %s20 = ssub.s32 1, %s18
  %s21 = scalar_select 0, %s20, %s18
  loop: start=0, step=1, limit=4
  $region2: #{aimv2_lit_forward.2} parent=0 // loop_pre_header
    _
  $region3: #{aimv2_lit_forward.2} parent=0 // loop_header
    %s23 = sphi 0, %s27
    %p24 = scmp.ge.s32.totalorder %s23, 4
    %s33 = sphi 0, %s35
    %s36 = sphi 0, %s33
    %s37 = sphi 0, %s36
    %s53 = sphi 0, %s37
    %s57 = sphi 0, %s57
    %s59 = sphi 0, %s57
    %s60 = sphi 0, %s59
    %s74 = sphi 0, %s60
    %s78 = sphi 0, %s78
    %s80 = sphi 0, %s78
    %s81 = sphi 0, %s80
    %s95 = sphi 0, %s81
    %s99 = sphi 0, %s99
    %s101 = sphi 0, %s99
    %s102 = sphi 0, %s101
    %s116 = sphi 0, %s102
    %s120 = sphi 0, %s120
    %s122 = sphi 0, %s120
    %s123 = sphi 0, %s122
    %s137 = sphi 0, %s123
    %s141 = sphi 0, %s141
    %s143 = sphi 0, %s141
    %s144 = sphi 0, %s143
    %s158 = sphi 0, %s144
    %s162 = sphi 0, %s162
    %s164 = sphi 0, %s162
    %s165 = sphi 0, %s164
    %s179 = sphi 0, %s165
    %s183 = sphi 0, %s183
    %s185 = sphi 0, %s183
    %s186 = sphi 0, %s185
    %s200 = sphi 0, %s186
    %s204 = sphi 0, %s204
    %s206 = sphi 0, %s204
    %s207 = sphi 0, %s206
    %s221 = sphi 0, %s207
    %s225 = sphi 0, %s225
    %s227 = sphi 0, %s225
    %s228 = sphi 0, %s227
    %s242 = sphi 0, %s228
    %s246 = sphi 0, %s246
    %s248 = sphi 0, %s246
    %s249 = sphi 0, %s248
    %s263 = sphi 0, %s249
    %s267 = sphi 0, %s267
    %s269 = sphi 0, %s267
    %s270 = sphi 0, %s269
    %s284 = sphi 0, %s270
    %s288 = sphi 0, %s288
    %s290 = sphi 0, %s288
    %s291 = sphi 0, %s290
    %s305 = sphi 0, %s291
    %s309 = sphi 0, %s309
    %s311 = sphi 0, %s309
    %s312 = sphi 0, %s311
    %s326 = sphi 0, %s312
    %s330 = sphi 0, %s330
    %s332 = sphi 0, %s330
    %s333 = sphi 0, %s332
    %s347 = sphi 0, %s333
    %s351 = sphi 0, %s351
    %s353 = sphi 0, %s351
    %s354 = sphi 0, %s353
    %s368 = sphi 0, %s354
    %s372 = sphi 0, %s372
    %s374 = sphi 0, %s372
    %s375 = sphi 0, %s374
    %s389 = sphi 0, %s375
    %s395 = sphi 0, %s397
    %s398 = sphi 0, %s395
    %s399 = sphi 0, %s398
    %s415 = sphi 0, %s399
  $region4: #{aimv2_lit_forward.2} parent=0 // loop_header_branch
    %26 = sbr.rel (%p24) target = $region8
  $region5: #{aimv2_lit_forward.2} parent=0 // loop_body
    %s28 = ssub.s32 %s23, 1
    %s29 = ssub.s32 %s23, 2
    %s30 = sadd.s32 %s23, 1
    %s31 = ssub.s32 %s23, %s30
    %p32 = scmp.eq.s32.totalorder %s31, 0
    %s34 = sadd.s32 %s33, 1
    %s35 = scalar_select %p32, %s33, %s34
    %p38 = pneg %p32
    %p39 = scmp.eq.s32.totalorder %s23, 1
    %p40 = por %p38, %p39
    %p41 = scmp.ne.s32.totalorder %s33, %s36
    %p42 = scmp.eq.s32.totalorder %s23, 0
    %p43 = por %p41, %p42
    %p44 = scmp.ne.s32.totalorder %s33, %s36
    %p45 = scmp.eq.s32.totalorder %s28, 1
    %p46 = por %p44, %p45
    %p47 = scmp.ne.s32.totalorder %s36, %s37
    %p48 = scmp.eq.s32.totalorder %s28, 0
    %p49 = por %p47, %p48
    %p50 = scmp.ne.s32.totalorder %s36, %s37
    %p51 = scmp.eq.s32.totalorder %s29, 1
    %p52 = por %p50, %p51
    %p54 = scmp.ne.s32.totalorder %s37, %s53
    %p55 = scmp.eq.s32.totalorder %s29, 0
    %p56 = por %p54, %p55
    %s58 = sadd.s32 %s57, 1
    %p61 = scmp.eq.s32.totalorder %s23, 1
    %p62 = scmp.ne.s32.totalorder %s57, %s59
    %p63 = scmp.eq.s32.totalorder %s23, 0
    %p64 = por %p62, %p63
    %p65 = scmp.ne.s32.totalorder %s57, %s59
    %p66 = scmp.eq.s32.totalorder %s28, 1
    %p67 = por %p65, %p66
    %p68 = scmp.ne.s32.totalorder %s59, %s60
    %p69 = scmp.eq.s32.totalorder %s28, 0
    %p70 = por %p68, %p69
    %p71 = scmp.ne.s32.totalorder %s59, %s60
    %p72 = scmp.eq.s32.totalorder %s29, 1
    %p73 = por %p71, %p72
    %p75 = scmp.ne.s32.totalorder %s60, %s74
    %p76 = scmp.eq.s32.totalorder %s29, 0
    %p77 = por %p75, %p76
    %s79 = sadd.s32 %s78, 1
    %p82 = scmp.eq.s32.totalorder %s23, 1
    %p83 = scmp.ne.s32.totalorder %s78, %s80
    %p84 = scmp.eq.s32.totalorder %s23, 0
    %p85 = por %p83, %p84
    %p86 = scmp.ne.s32.totalorder %s78, %s80
    %p87 = scmp.eq.s32.totalorder %s28, 1
    %p88 = por %p86, %p87
    %p89 = scmp.ne.s32.totalorder %s80, %s81
    %p90 = scmp.eq.s32.totalorder %s28, 0
    %p91 = por %p89, %p90
    %p92 = scmp.ne.s32.totalorder %s80, %s81
    %p93 = scmp.eq.s32.totalorder %s29, 1
    %p94 = por %p92, %p93
    %p96 = scmp.ne.s32.totalorder %s81, %s95
    %p97 = scmp.eq.s32.totalorder %s29, 0
    %p98 = por %p96, %p97
    %s100 = sadd.s32 %s99, 1
    %p103 = scmp.eq.s32.totalorder %s23, 1
    %p104 = scmp.ne.s32.totalorder %s99, %s101
    %p105 = scmp.eq.s32.totalorder %s23, 0
    %p106 = por %p104, %p105
    %p107 = scmp.ne.s32.totalorder %s99, %s101
    %p108 = scmp.eq.s32.totalorder %s28, 1
    %p109 = por %p107, %p108
    %p110 = scmp.ne.s32.totalorder %s101, %s102
    %p111 = scmp.eq.s32.totalorder %s28, 0
    %p112 = por %p110, %p111
    %p113 = scmp.ne.s32.totalorder %s101, %s102
    %p114 = scmp.eq.s32.totalorder %s29, 1
    %p115 = por %p113, %p114
    %p117 = scmp.ne.s32.totalorder %s102, %s116
    %p118 = scmp.eq.s32.totalorder %s29, 0
    %p119 = por %p117, %p118
    %s121 = sadd.s32 %s120, 1
    %p124 = scmp.eq.s32.totalorder %s23, 1
    %p125 = scmp.ne.s32.totalorder %s120, %s122
    %p126 = scmp.eq.s32.totalorder %s23, 0
    %p127 = por %p125, %p126
    %p128 = scmp.ne.s32.totalorder %s120, %s122
    %p129 = scmp.eq.s32.totalorder %s28, 1
    %p130 = por %p128, %p129
    %p131 = scmp.ne.s32.totalorder %s122, %s123
    %p132 = scmp.eq.s32.totalorder %s28, 0
    %p133 = por %p131, %p132
    %p134 = scmp.ne.s32.totalorder %s122, %s123
    %p135 = scmp.eq.s32.totalorder %s29, 1
    %p136 = por %p134, %p135
    %p138 = scmp.ne.s32.totalorder %s123, %s137
    %p139 = scmp.eq.s32.totalorder %s29, 0
    %p140 = por %p138, %p139
    %s142 = sadd.s32 %s141, 1
    %p145 = scmp.eq.s32.totalorder %s23, 1
    %p146 = scmp.ne.s32.totalorder %s141, %s143
    %p147 = scmp.eq.s32.totalorder %s23, 0
    %p148 = por %p146, %p147
    %p149 = scmp.ne.s32.totalorder %s141, %s143
    %p150 = scmp.eq.s32.totalorder %s28, 1
    %p151 = por %p149, %p150
    %p152 = scmp.ne.s32.totalorder %s143, %s144
    %p153 = scmp.eq.s32.totalorder %s28, 0
    %p154 = por %p152, %p153
    %p155 = scmp.ne.s32.totalorder %s143, %s144
    %p156 = scmp.eq.s32.totalorder %s29, 1
    %p157 = por %p155, %p156
    %p159 = scmp.ne.s32.totalorder %s144, %s158
    %p160 = scmp.eq.s32.totalorder %s29, 0
    %p161 = por %p159, %p160
    %s163 = sadd.s32 %s162, 1
    %p166 = scmp.eq.s32.totalorder %s23, 1
    %p167 = scmp.ne.s32.totalorder %s162, %s164
    %p168 = scmp.eq.s32.totalorder %s23, 0
    %p169 = por %p167, %p168
    %p170 = scmp.ne.s32.totalorder %s162, %s164
    %p171 = scmp.eq.s32.totalorder %s28, 1
    %p172 = por %p170, %p171
    %p173 = scmp.ne.s32.totalorder %s164, %s165
    %p174 = scmp.eq.s32.totalorder %s28, 0
    %p175 = por %p173, %p174
    %p176 = scmp.ne.s32.totalorder %s164, %s165
    %p177 = scmp.eq.s32.totalorder %s29, 1
    %p178 = por %p176, %p177
    %p180 = scmp.ne.s32.totalorder %s165, %s179
    %p181 = scmp.eq.s32.totalorder %s29, 0
    %p182 = por %p180, %p181
    %s184 = sadd.s32 %s183, 1
    %p187 = scmp.eq.s32.totalorder %s23, 1
    %p188 = scmp.ne.s32.totalorder %s183, %s185
    %p189 = scmp.eq.s32.totalorder %s23, 0
    %p190 = por %p188, %p189
    %p191 = scmp.ne.s32.totalorder %s183, %s185
    %p192 = scmp.eq.s32.totalorder %s28, 1
    %p193 = por %p191, %p192
    %p194 = scmp.ne.s32.totalorder %s185, %s186
    %p195 = scmp.eq.s32.totalorder %s28, 0
    %p196 = por %p194, %p195
    %p197 = scmp.ne.s32.totalorder %s185, %s186
    %p198 = scmp.eq.s32.totalorder %s29, 1
    %p199 = por %p197, %p198
    %p201 = scmp.ne.s32.totalorder %s186, %s200
    %p202 = scmp.eq.s32.totalorder %s29, 0
    %p203 = por %p201, %p202
    %s205 = sadd.s32 %s204, 1
    %p208 = scmp.eq.s32.totalorder %s23, 1
    %p209 = scmp.ne.s32.totalorder %s204, %s206
    %p210 = scmp.eq.s32.totalorder %s23, 0
    %p211 = por %p209, %p210
    %p212 = scmp.ne.s32.totalorder %s204, %s206
    %p213 = scmp.eq.s32.totalorder %s28, 1
    %p214 = por %p212, %p213
    %p215 = scmp.ne.s32.totalorder %s206, %s207
    %p216 = scmp.eq.s32.totalorder %s28, 0
    %p217 = por %p215, %p216
    %p218 = scmp.ne.s32.totalorder %s206, %s207
    %p219 = scmp.eq.s32.totalorder %s29, 1
    %p220 = por %p218, %p219
    %p222 = scmp.ne.s32.totalorder %s207, %s221
    %p223 = scmp.eq.s32.totalorder %s29, 0
    %p224 = por %p222, %p223
    %s226 = sadd.s32 %s225, 1
    %p229 = scmp.eq.s32.totalorder %s23, 1
    %p230 = scmp.ne.s32.totalorder %s225, %s227
    %p231 = scmp.eq.s32.totalorder %s23, 0
    %p232 = por %p230, %p231
    %p233 = scmp.ne.s32.totalorder %s225, %s227
    %p234 = scmp.eq.s32.totalorder %s28, 1
    %p235 = por %p233, %p234
    %p236 = scmp.ne.s32.totalorder %s227, %s228
    %p237 = scmp.eq.s32.totalorder %s28, 0
    %p238 = por %p236, %p237
    %p239 = scmp.ne.s32.totalorder %s227, %s228
    %p240 = scmp.eq.s32.totalorder %s29, 1
    %p241 = por %p239, %p240
    %p243 = scmp.ne.s32.totalorder %s228, %s242
    %p244 = scmp.eq.s32.totalorder %s29, 0
    %p245 = por %p243, %p244
    %s247 = sadd.s32 %s246, 1
    %p250 = scmp.eq.s32.totalorder %s23, 1
    %p251 = scmp.ne.s32.totalorder %s246, %s248
    %p252 = scmp.eq.s32.totalorder %s23, 0
    %p253 = por %p251, %p252
    %p254 = scmp.ne.s32.totalorder %s246, %s248
    %p255 = scmp.eq.s32.totalorder %s28, 1
    %p256 = por %p254, %p255
    %p257 = scmp.ne.s32.totalorder %s248, %s249
    %p258 = scmp.eq.s32.totalorder %s28, 0
    %p259 = por %p257, %p258
    %p260 = scmp.ne.s32.totalorder %s248, %s249
    %p261 = scmp.eq.s32.totalorder %s29, 1
    %p262 = por %p260, %p261
    %p264 = scmp.ne.s32.totalorder %s249, %s263
    %p265 = scmp.eq.s32.totalorder %s29, 0
    %p266 = por %p264, %p265
    %s268 = sadd.s32 %s267, 1
    %p271 = scmp.eq.s32.totalorder %s23, 1
    %p272 = scmp.ne.s32.totalorder %s267, %s269
    %p273 = scmp.eq.s32.totalorder %s23, 0
    %p274 = por %p272, %p273
    %p275 = scmp.ne.s32.totalorder %s267, %s269
    %p276 = scmp.eq.s32.totalorder %s28, 1
    %p277 = por %p275, %p276
    %p278 = scmp.ne.s32.totalorder %s269, %s270
    %p279 = scmp.eq.s32.totalorder %s28, 0
    %p280 = por %p278, %p279
    %p281 = scmp.ne.s32.totalorder %s269, %s270
    %p282 = scmp.eq.s32.totalorder %s29, 1
    %p283 = por %p281, %p282
    %p285 = scmp.ne.s32.totalorder %s270, %s284
    %p286 = scmp.eq.s32.totalorder %s29, 0
    %p287 = por %p285, %p286
    %s289 = sadd.s32 %s288, 1
    %p292 = scmp.eq.s32.totalorder %s23, 1
    %p293 = scmp.ne.s32.totalorder %s288, %s290
    %p294 = scmp.eq.s32.totalorder %s23, 0
    %p295 = por %p293, %p294
    %p296 = scmp.ne.s32.totalorder %s288, %s290
    %p297 = scmp.eq.s32.totalorder %s28, 1
    %p298 = por %p296, %p297
    %p299 = scmp.ne.s32.totalorder %s290, %s291
    %p300 = scmp.eq.s32.totalorder %s28, 0
    %p301 = por %p299, %p300
    %p302 = scmp.ne.s32.totalorder %s290, %s291
    %p303 = scmp.eq.s32.totalorder %s29, 1
    %p304 = por %p302, %p303
    %p306 = scmp.ne.s32.totalorder %s291, %s305
    %p307 = scmp.eq.s32.totalorder %s29, 0
    %p308 = por %p306, %p307
    %s310 = sadd.s32 %s309, 1
    %p313 = scmp.eq.s32.totalorder %s23, 1
    %p314 = scmp.ne.s32.totalorder %s309, %s311
    %p315 = scmp.eq.s32.totalorder %s23, 0
    %p316 = por %p314, %p315
    %p317 = scmp.ne.s32.totalorder %s309, %s311
    %p318 = scmp.eq.s32.totalorder %s28, 1
    %p319 = por %p317, %p318
    %p320 = scmp.ne.s32.totalorder %s311, %s312
    %p321 = scmp.eq.s32.totalorder %s28, 0
    %p322 = por %p320, %p321
    %p323 = scmp.ne.s32.totalorder %s311, %s312
    %p324 = scmp.eq.s32.totalorder %s29, 1
    %p325 = por %p323, %p324
    %p327 = scmp.ne.s32.totalorder %s312, %s326
    %p328 = scmp.eq.s32.totalorder %s29, 0
    %p329 = por %p327, %p328
    %s331 = sadd.s32 %s330, 1
    %p334 = scmp.eq.s32.totalorder %s23, 1
    %p335 = scmp.ne.s32.totalorder %s330, %s332
    %p336 = scmp.eq.s32.totalorder %s23, 0
    %p337 = por %p335, %p336
    %p338 = scmp.ne.s32.totalorder %s330, %s332
    %p339 = scmp.eq.s32.totalorder %s28, 1
    %p340 = por %p338, %p339
    %p341 = scmp.ne.s32.totalorder %s332, %s333
    %p342 = scmp.eq.s32.totalorder %s28, 0
    %p343 = por %p341, %p342
    %p344 = scmp.ne.s32.totalorder %s332, %s333
    %p345 = scmp.eq.s32.totalorder %s29, 1
    %p346 = por %p344, %p345
    %p348 = scmp.ne.s32.totalorder %s333, %s347
    %p349 = scmp.eq.s32.totalorder %s29, 0
    %p350 = por %p348, %p349
    %s352 = sadd.s32 %s351, 1
    %p355 = scmp.eq.s32.totalorder %s23, 1
    %p356 = scmp.ne.s32.totalorder %s351, %s353
    %p357 = scmp.eq.s32.totalorder %s23, 0
    %p358 = por %p356, %p357
    %p359 = scmp.ne.s32.totalorder %s351, %s353
    %p360 = scmp.eq.s32.totalorder %s28, 1
    %p361 = por %p359, %p360
    %p362 = scmp.ne.s32.totalorder %s353, %s354
    %p363 = scmp.eq.s32.totalorder %s28, 0
    %p364 = por %p362, %p363
    %p365 = scmp.ne.s32.totalorder %s353, %s354
    %p366 = scmp.eq.s32.totalorder %s29, 1
    %p367 = por %p365, %p366
    %p369 = scmp.ne.s32.totalorder %s354, %s368
    %p370 = scmp.eq.s32.totalorder %s29, 0
    %p371 = por %p369, %p370
    %s373 = sadd.s32 %s372, 1
    %p376 = scmp.eq.s32.totalorder %s23, 1
    %p377 = scmp.ne.s32.totalorder %s372, %s374
    %p378 = scmp.eq.s32.totalorder %s23, 0
    %p379 = por %p377, %p378
    %p380 = scmp.ne.s32.totalorder %s372, %s374
    %p381 = scmp.eq.s32.totalorder %s28, 1
    %p382 = por %p380, %p381
    %p383 = scmp.ne.s32.totalorder %s374, %s375
    %p384 = scmp.eq.s32.totalorder %s28, 0
    %p385 = por %p383, %p384
    %p386 = scmp.ne.s32.totalorder %s374, %s375
    %p387 = scmp.eq.s32.totalorder %s29, 1
    %p388 = por %p386, %p387
    %p390 = scmp.ne.s32.totalorder %s375, %s389
    %p391 = scmp.eq.s32.totalorder %s29, 0
    %p392 = por %p390, %p391
    %s393 = ssub.s32 %s23, %s30
    %p394 = scmp.eq.s32.totalorder %s393, 0
    %s396 = sadd.s32 %s395, 1
    %s397 = scalar_select %p394, %s395, %s396
    %p400 = pneg %p394
    %p401 = scmp.eq.s32.totalorder %s23, 1
    %p402 = por %p400, %p401
    %p403 = scmp.ne.s32.totalorder %s395, %s398
    %p404 = scmp.eq.s32.totalorder %s23, 0
    %p405 = por %p403, %p404
    %p406 = scmp.ne.s32.totalorder %s395, %s398
    %p407 = scmp.eq.s32.totalorder %s28, 1
    %p408 = por %p406, %p407
    %p409 = scmp.ne.s32.totalorder %s398, %s399
    %p410 = scmp.eq.s32.totalorder %s28, 0
    %p411 = por %p409, %p410
    %p412 = scmp.ne.s32.totalorder %s398, %s399
    %p413 = scmp.eq.s32.totalorder %s29, 1
    %p414 = por %p412, %p413
    %p416 = scmp.ne.s32.totalorder %s399, %s415
    %p417 = scmp.eq.s32.totalorder %s29, 0
    %p418 = por %p416, %p417
    %p419 = scmp.le.s32.totalorder 1, %s23
    %p420 = scmp.lt.s32.totalorder %s23, 3
    %p421 = pnand %p419, %p420
    %p422 = pneg %p421
    // Predicated region
    $region9: #{aimv2_lit_forward.2} parent=5 // pred_check
      _
    $region10: #{aimv2_lit_forward.2} parent=5 // pred_check_branch
      %424 = sbr.rel (%p421) target = $region12
    $region11: #{aimv2_lit_forward.2} parent=5 // pred_region
      %s425 = ssub.s32 %s23, 1
      // Predicated region
      $region13: #{aimv2_lit_forward.2} parent=11 // pred_check
        %p426 = pneg %p70
      $region14: #{aimv2_lit_forward.2} parent=11 // pred_check_branch
        %428 = sbr.rel (%p426) target = $region16
      $region15: #{aimv2_lit_forward.2} parent=11 // pred_region
        _
      $region16: #{aimv2_lit_forward.2} parent=11 // pred_fallthru
        _
      // Predicated region
      $region17: #{aimv2_lit_forward.2} parent=11 // pred_check
        %p429 = pneg %p91
      $region18: #{aimv2_lit_forward.2} parent=11 // pred_check_branch
        %431 = sbr.rel (%p429) target = $region20
      $region19: #{aimv2_lit_forward.2} parent=11 // pred_region
        _
      $region20: #{aimv2_lit_forward.2} parent=11 // pred_fallthru
        _
      // Predicated region
      $region21: #{aimv2_lit_forward.2} parent=11 // pred_check
        %p432 = pneg %p112
      $region22: #{aimv2_lit_forward.2} parent=11 // pred_check_branch
        %434 = sbr.rel (%p432) target = $region24
      $region23: #{aimv2_lit_forward.2} parent=11 // pred_region
        _
      $region24: #{aimv2_lit_forward.2} parent=11 // pred_fallthru
        _
      // Predicated region
      $region25: #{aimv2_lit_forward.2} parent=11 // pred_check
        %p435 = pneg %p133
      $region26: #{aimv2_lit_forward.2} parent=11 // pred_check_branch
        %437 = sbr.rel (%p435) target = $region28
      $region27: #{aimv2_lit_forward.2} parent=11 // pred_region
        _
      $region28: #{aimv2_lit_forward.2} parent=11 // pred_fallthru
        _
      // Predicated region
      $region29: #{aimv2_lit_forward.2} parent=11 // pred_check
        %p438 = pneg %p154
      $region30: #{aimv2_lit_forward.2} parent=11 // pred_check_branch
        %440 = sbr.rel (%p438) target = $region32
      $region31: #{aimv2_lit_forward.2} parent=11 // pred_region
        _
      $region32: #{aimv2_lit_forward.2} parent=11 // pred_fallthru
        _
      // Predicated region
      $region33: #{aimv2_lit_forward.2} parent=11 // pred_check
        %p441 = pneg %p175
      $region34: #{aimv2_lit_forward.2} parent=11 // pred_check_branch
        %443 = sbr.rel (%p441) target = $region36
      $region35: #{aimv2_lit_forward.2} parent=11 // pred_region
        _
      $region36: #{aimv2_lit_forward.2} parent=11 // pred_fallthru
        _
      // Predicated region
      $region37: #{aimv2_lit_forward.2} parent=11 // pred_check
        %p444 = pneg %p196
      $region38: #{aimv2_lit_forward.2} parent=11 // pred_check_branch
        %446 = sbr.rel (%p444) target = $region40
      $region39: #{aimv2_lit_forward.2} parent=11 // pred_region
        _
      $region40: #{aimv2_lit_forward.2} parent=11 // pred_fallthru
        _
      // Predicated region
      $region41: #{aimv2_lit_forward.2} parent=11 // pred_check
        %p447 = pneg %p217
      $region42: #{aimv2_lit_forward.2} parent=11 // pred_check_branch
        %449 = sbr.rel (%p447) target = $region44
      $region43: #{aimv2_lit_forward.2} parent=11 // pred_region
        _
      $region44: #{aimv2_lit_forward.2} parent=11 // pred_fallthru
        _
      // Predicated region
      $region45: #{aimv2_lit_forward.2} parent=11 // pred_check
        %p450 = pneg %p238
      $region46: #{aimv2_lit_forward.2} parent=11 // pred_check_branch
        %452 = sbr.rel (%p450) target = $region48
      $region47: #{aimv2_lit_forward.2} parent=11 // pred_region
        _
      $region48: #{aimv2_lit_forward.2} parent=11 // pred_fallthru
        _
      // Predicated region
      $region49: #{aimv2_lit_forward.2} parent=11 // pred_check
        %p453 = pneg %p259
      $region50: #{aimv2_lit_forward.2} parent=11 // pred_check_branch
        %455 = sbr.rel (%p453) target = $region52
      $region51: #{aimv2_lit_forward.2} parent=11 // pred_region
        _
      $region52: #{aimv2_lit_forward.2} parent=11 // pred_fallthru
        _
      // Predicated region
      $region53: #{aimv2_lit_forward.2} parent=11 // pred_check
        %p456 = pneg %p280
      $region54: #{aimv2_lit_forward.2} parent=11 // pred_check_branch
        %458 = sbr.rel (%p456) target = $region56
      $region55: #{aimv2_lit_forward.2} parent=11 // pred_region
        _
      $region56: #{aimv2_lit_forward.2} parent=11 // pred_fallthru
        _
      // Predicated region
      $region57: #{aimv2_lit_forward.2} parent=11 // pred_check
        %p459 = pneg %p301
      $region58: #{aimv2_lit_forward.2} parent=11 // pred_check_branch
        %461 = sbr.rel (%p459) target = $region60
      $region59: #{aimv2_lit_forward.2} parent=11 // pred_region
        _
      $region60: #{aimv2_lit_forward.2} parent=11 // pred_fallthru
        _
      // Predicated region
      $region61: #{aimv2_lit_forward.2} parent=11 // pred_check
        %p462 = pneg %p322
      $region62: #{aimv2_lit_forward.2} parent=11 // pred_check_branch
        %464 = sbr.rel (%p462) target = $region64
      $region63: #{aimv2_lit_forward.2} parent=11 // pred_region
        _
      $region64: #{aimv2_lit_forward.2} parent=11 // pred_fallthru
        _
      // Predicated region
      $region65: #{aimv2_lit_forward.2} parent=11 // pred_check
        %p465 = pneg %p343
      $region66: #{aimv2_lit_forward.2} parent=11 // pred_check_branch
        %467 = sbr.rel (%p465) target = $region68
      $region67: #{aimv2_lit_forward.2} parent=11 // pred_region
        _
      $region68: #{aimv2_lit_forward.2} parent=11 // pred_fallthru
        _
      // Predicated region
      $region69: #{aimv2_lit_forward.2} parent=11 // pred_check
        %p468 = pneg %p364
      $region70: #{aimv2_lit_forward.2} parent=11 // pred_check_branch
        %470 = sbr.rel (%p468) target = $region72
      $region71: #{aimv2_lit_forward.2} parent=11 // pred_region
        _
      $region72: #{aimv2_lit_forward.2} parent=11 // pred_fallthru
        _
      // Predicated region
      $region73: #{aimv2_lit_forward.2} parent=11 // pred_check
        %p471 = pneg %p385
      $region74: #{aimv2_lit_forward.2} parent=11 // pred_check_branch
        %473 = sbr.rel (%p471) target = $region76
      $region75: #{aimv2_lit_forward.2} parent=11 // pred_region
        _
      $region76: #{aimv2_lit_forward.2} parent=11 // pred_fallthru
        _
    $region12: #{aimv2_lit_forward.2} parent=5 // pred_fallthru
      _
    %p474 = scmp.lt.s32.totalorder %s23, 2
    // Predicated region
    $region77: #{aimv2_lit_forward.2} parent=5 // pred_check
      %p475 = pneg %p474
    $region78: #{aimv2_lit_forward.2} parent=5 // pred_check_branch
      %477 = sbr.rel (%p475) target = $region80
    $region79: #{aimv2_lit_forward.2} parent=5 // pred_region
      // Predicated region
      $region81: #{aimv2_lit_forward.2} parent=79 // pred_check
        %p478 = pneg %p43
      $region82: #{aimv2_lit_forward.2} parent=79 // pred_check_branch
        %480 = sbr.rel (%p478) target = $region84
      $region83: #{aimv2_lit_forward.2} parent=79 // pred_region
        %p481 = scmp.lt.s32.totalorder %s23, 1
        %s482 = scalar_select %p481, %s23, 1
        %s483 = smul.addr %s482, 5
        %s484 = smul.addr %s483, 4
        %s485 = scalar_lea.vmem %s0, %s484
      $region84: #{aimv2_lit_forward.2} parent=79 // pred_fallthru
        _
    $region80: #{aimv2_lit_forward.2} parent=5 // pred_fallthru
      _
    %p486 = scmp.le.s32.totalorder 1, %s23
    %p487 = scmp.lt.s32.totalorder %s23, 3
    %p488 = pnand %p486, %p487
    %p489 = pneg %p488
    // Predicated region
    $region85: #{aimv2_lit_forward.2} parent=5 // pred_check
      _
    $region86: #{aimv2_lit_forward.2} parent=5 // pred_check_branch
      %491 = sbr.rel (%p488) target = $region88
    $region87: #{aimv2_lit_forward.2} parent=5 // pred_region
      %s492 = ssub.s32 %s23, 1
      %p493 = scmp.lt.s32.totalorder %s28, 1
      %s494 = scalar_select %p493, %s28, 1
      %s495 = smul.addr %s494, 5
      %s496 = smul.addr %s495, 4
      %s497 = scalar_lea.vmem %s0, %s496
      %p498 = pneg %p49
      %p499 = pneg %p46
      %p500 = pneg %p70
      %p501 = pneg %p67
      %p502 = pneg %p91
      %p503 = pneg %p88
      %p504 = pneg %p112
      %p505 = pneg %p109
      %p506 = pneg %p133
      %p507 = pneg %p130
      %p508 = pneg %p154
      %p509 = pneg %p151
      %p510 = pneg %p175
      %p511 = pneg %p172
      %p512 = pneg %p196
      %p513 = pneg %p193
      %p514 = pneg %p217
      %p515 = pneg %p214
      %p516 = pneg %p238
      %p517 = pneg %p235
      %p518 = pneg %p259
      %p519 = pneg %p256
      %p520 = pneg %p280
      %p521 = pneg %p277
      %p522 = pneg %p301
      %p523 = pneg %p298
      %p524 = pneg %p322
      %p525 = pneg %p319
      %p526 = pneg %p343
      %p527 = pneg %p340
      %p528 = pneg %p364
      %p529 = pneg %p361
      %p530 = pneg %p385
      %p531 = pneg %p382
      %p532 = pneg %p411
      %p533 = pneg %p408
      %p534 = scmp.lt.s32.totalorder %s28, 1
      %s535 = scalar_select %p534, %s28, 1
      %s536 = scalar_lea.vmem %s17, %s535
      %p537 = scmp.lt.s32.totalorder %s28, 1
      %s538 = scalar_select %p537, %s28, 1
      %s539 = smul.addr %s538, 5
      %s540 = smul.addr %s539, 4
      %s541 = scalar_lea.vmem %s0, %s540
      %p542 = scmp.lt.s32.totalorder %s28, 1
      %s543 = scalar_select %p542, %s28, 1
      %s544 = scalar_lea.vmem %s17, %s543
      %v546 = vld [vmem:[%s541] sm:$0xff]
      %v547 = vld [vmem:[%s541 + $0x8] sm:$0xff]
      %v548 = vld [vmem:[%s541 + $0x10] sm:$0xf]
      %v551 = vcombine.high %v546, %v546
      %v552 = vcombine.high %v547, %v547
      %v555 = vpack.c.bf16 %v546, %v546
      %v556 = vpack.c.bf16 %v551, %v551
      %v557 = vpack.c.bf16 %v547, %v547
      %v558 = vpack.c.bf16 %v552, %v552
      %v559 = vpack.c.bf16 %v548, %v548
      %v560 = vld [vmem:[%s1] sm:$0xf]
      %v561 = vld [vmem:[%s1 + $0x4] sm:$0xf]
      %v562 = vld [vmem:[%s1 + $0x8] sm:$0xf]
      %v563 = vld [vmem:[%s1 + $0xc] sm:$0xf]
      %v564 = vld [vmem:[%s1 + $0x10] sm:$0xf]
      %v565 = vld [vmem:[%s1 + $0x14] sm:$0xf]
      %v566 = vld [vmem:[%s1 + $0x18] sm:$0xf]
      %v567 = vld [vmem:[%s1 + $0x1c] sm:$0xf]
      %v568 = vld [vmem:[%s1 + $0x20] sm:$0xf]
      %v569 = vld [vmem:[%s1 + $0x24] sm:$0xf]
      %v570 = vld [vmem:[%s1 + $0x28] sm:$0xf]
      %v571 = vld [vmem:[%s1 + $0x2c] sm:$0xf]
      %v572 = vld [vmem:[%s1 + $0x30] sm:$0xf]
      %v573 = vld [vmem:[%s1 + $0x34] sm:$0xf]
      %v574 = vld [vmem:[%s1 + $0x38] sm:$0xf]
      %v575 = vld [vmem:[%s1 + $0x3c] sm:$0xf]
      %v576 = vld [vmem:[%s1 + $0x40] sm:$0xf]
      %v577 = vld [vmem:[%s1 + $0x44] sm:$0xf]
      %v578 = vld [vmem:[%s1 + $0x48] sm:$0xf]
      %v579 = vld [vmem:[%s1 + $0x4c] sm:$0xf]
      %v580 = vld [vmem:[%s1 + $0x50] sm:$0xf]
      %v581 = vld [vmem:[%s1 + $0x54] sm:$0xf]
      %v582 = vld [vmem:[%s1 + $0x58] sm:$0xf]
      %v583 = vld [vmem:[%s1 + $0x5c] sm:$0xf]
      %v584 = vld [vmem:[%s1 + $0x60] sm:$0xf]
      %v585 = vld [vmem:[%s1 + $0x64] sm:$0xf]
      %v586 = vld [vmem:[%s1 + $0x68] sm:$0xf]
      %v587 = vld [vmem:[%s1 + $0x6c] sm:$0xf]
      %v588 = vld [vmem:[%s1 + $0x70] sm:$0xf]
      %v589 = vld [vmem:[%s1 + $0x74] sm:$0xf]
      %v590 = vld [vmem:[%s1 + $0x78] sm:$0xf]
      %v591 = vld [vmem:[%s1 + $0x7c] sm:$0xf]
      %v592 = vld [vmem:[%s1 + $0x80] sm:$0xf]
      %v593 = vld [vmem:[%s1 + $0x84] sm:$0xf]
      %v594 = vld [vmem:[%s1 + $0x88] sm:$0xf]
      %v595 = vld [vmem:[%s1 + $0x8c] sm:$0xf]
      %v596 = vld [vmem:[%s1 + $0x90] sm:$0xf]
      %v597 = vld [vmem:[%s1 + $0x94] sm:$0xf]
      %v598 = vld [vmem:[%s1 + $0x98] sm:$0xf]
      %v599 = vld [vmem:[%s1 + $0x9c] sm:$0xf]
      %v600 = vld [vmem:[%s1 + $0xa0] sm:$0xf]
      %v601 = vld [vmem:[%s1 + $0xa4] sm:$0xf]
      %v602 = vld [vmem:[%s1 + $0xa8] sm:$0xf]
      %v603 = vld [vmem:[%s1 + $0xac] sm:$0xf]
      %v604 = vld [vmem:[%s1 + $0xb0] sm:$0xf]
      %v605 = vld [vmem:[%s1 + $0xb4] sm:$0xf]
      %v606 = vld [vmem:[%s1 + $0xb8] sm:$0xf]
      %v607 = vld [vmem:[%s1 + $0xbc] sm:$0xf]
      %v608 = vld [vmem:[%s1 + $0xc0] sm:$0xf]
      %v609 = vld [vmem:[%s1 + $0xc4] sm:$0xf]
      %v610 = vld [vmem:[%s1 + $0xc8] sm:$0xf]
      %v611 = vld [vmem:[%s1 + $0xcc] sm:$0xf]
      %v612 = vld [vmem:[%s1 + $0xd0] sm:$0xf]
      %v613 = vld [vmem:[%s1 + $0xd4] sm:$0xf]
      %v614 = vld [vmem:[%s1 + $0xd8] sm:$0xf]
      %v615 = vld [vmem:[%s1 + $0xdc] sm:$0xf]
      %v616 = vld [vmem:[%s1 + $0xe0] sm:$0xf]
      %v617 = vld [vmem:[%s1 + $0xe4] sm:$0xf]
      %v618 = vld [vmem:[%s1 + $0xe8] sm:$0xf]
      %v619 = vld [vmem:[%s1 + $0xec] sm:$0xf]
      %v620 = vld [vmem:[%s1 + $0xf0] sm:$0xf]
      %v621 = vld [vmem:[%s1 + $0xf4] sm:$0xf]
      %v622 = vld [vmem:[%s1 + $0xf8] sm:$0xf]
      %v623 = vld [vmem:[%s1 + $0xfc] sm:$0xf]
      %v624 = vld [vmem:[%s1 + $0x100] sm:$0xf]
      %v625 = vld [vmem:[%s1 + $0x104] sm:$0xf]
      %v626 = vld [vmem:[%s1 + $0x108] sm:$0xf]
      %v627 = vld [vmem:[%s1 + $0x10c] sm:$0xf]
      %v628 = vld [vmem:[%s1 + $0x110] sm:$0xf]
      %v629 = vld [vmem:[%s1 + $0x114] sm:$0xf]
      %v630 = vld [vmem:[%s1 + $0x118] sm:$0xf]
      %v631 = vld [vmem:[%s1 + $0x11c] sm:$0xf]
      %v632 = vld [vmem:[%s1 + $0x120] sm:$0xf]
      %v633 = vld [vmem:[%s1 + $0x124] sm:$0x3]
      %v634 = vld [vmem:[%s2] sm:$0x1]
      %v636 = vlaneseq
      %v637 = vshrl.u32 %v636, 7
      %v638 = vsub.s32 0, %v637
      %v639 = vrot.slane %v634, %v638
      %v715 = vunpack.c.l.b16 %v560
      %v716 = vunpack.c.l.b16 %v561
      %v717 = vunpack.c.l.b16 %v562
      %v718 = vunpack.c.l.b16 %v563
      %v719 = vunpack.c.l.b16 %v564
      %v720 = vunpack.c.l.b16 %v565
      %v721 = vunpack.c.l.b16 %v566
      %v722 = vunpack.c.l.b16 %v567
      %v723 = vunpack.c.l.b16 %v568
      %v724 = vunpack.c.l.b16 %v569
      %v725 = vunpack.c.l.b16 %v570
      %v726 = vunpack.c.l.b16 %v571
      %v727 = vunpack.c.l.b16 %v572
      %v728 = vunpack.c.l.b16 %v573
      %v729 = vunpack.c.l.b16 %v574
      %v730 = vunpack.c.l.b16 %v575
      %v731 = vunpack.c.l.b16 %v576
      %v732 = vunpack.c.l.b16 %v577
      %v733 = vunpack.c.l.b16 %v578
      %v734 = vunpack.c.l.b16 %v579
      %v735 = vunpack.c.l.b16 %v580
      %v736 = vunpack.c.l.b16 %v581
      %v737 = vunpack.c.l.b16 %v582
      %v738 = vunpack.c.l.b16 %v583
      %v739 = vunpack.c.l.b16 %v584
      %v740 = vunpack.c.l.b16 %v585
      %v741 = vunpack.c.l.b16 %v586
      %v742 = vunpack.c.l.b16 %v587
      %v743 = vunpack.c.l.b16 %v588
      %v744 = vunpack.c.l.b16 %v589
      %v745 = vunpack.c.l.b16 %v590
      %v746 = vunpack.c.l.b16 %v591
      %v747 = vunpack.c.l.b16 %v592
      %v748 = vunpack.c.l.b16 %v593
      %v749 = vunpack.c.l.b16 %v594
      %v750 = vunpack.c.l.b16 %v595
      %v751 = vunpack.c.l.b16 %v596
      %v752 = vunpack.c.l.b16 %v597
      %v753 = vunpack.c.l.b16 %v598
      %v754 = vunpack.c.l.b16 %v599
      %v755 = vunpack.c.l.b16 %v600
      %v756 = vunpack.c.l.b16 %v601
      %v757 = vunpack.c.l.b16 %v602
      %v758 = vunpack.c.l.b16 %v603
      %v759 = vunpack.c.l.b16 %v604
      %v760 = vunpack.c.l.b16 %v605
      %v761 = vunpack.c.l.b16 %v606
      %v762 = vunpack.c.l.b16 %v607
      %v763 = vunpack.c.l.b16 %v608
      %v764 = vunpack.c.l.b16 %v609
      %v765 = vunpack.c.l.b16 %v610
      %v766 = vunpack.c.l.b16 %v611
      %v767 = vunpack.c.l.b16 %v612
      %v768 = vunpack.c.l.b16 %v613
      %v769 = vunpack.c.l.b16 %v614
      %v770 = vunpack.c.l.b16 %v615
      %v771 = vunpack.c.l.b16 %v616
      %v772 = vunpack.c.l.b16 %v617
      %v773 = vunpack.c.l.b16 %v618
      %v774 = vunpack.c.l.b16 %v619
      %v775 = vunpack.c.l.b16 %v620
      %v776 = vunpack.c.l.b16 %v621
      %v777 = vunpack.c.l.b16 %v622
      %v778 = vunpack.c.l.b16 %v623
      %v779 = vunpack.c.l.b16 %v624
      %v780 = vunpack.c.l.b16 %v625
      %v781 = vunpack.c.l.b16 %v626
      %v782 = vunpack.c.l.b16 %v627
      %v783 = vunpack.c.l.b16 %v628
      %v784 = vunpack.c.l.b16 %v629
      %v785 = vunpack.c.l.b16 %v630
      %v786 = vunpack.c.l.b16 %v631
      %v787 = vunpack.c.l.b16 %v632
      %v788 = vunpack.c.l.b16 %v633
      %v789 = vpack.c.b16 %v716, %v715
      %v790 = vpack.c.b16 %v718, %v717
      %v791 = vpack.c.b16 %v720, %v719
      %v792 = vpack.c.b16 %v722, %v721
      %v793 = vpack.c.b16 %v724, %v723
      %v794 = vpack.c.b16 %v726, %v725
      %v795 = vpack.c.b16 %v728, %v727
      %v796 = vpack.c.b16 %v730, %v729
      %v797 = vpack.c.b16 %v732, %v731
      %v798 = vpack.c.b16 %v734, %v733
      %v799 = vpack.c.b16 %v736, %v735
      %v800 = vpack.c.b16 %v738, %v737
      %v801 = vpack.c.b16 %v740, %v739
      %v802 = vpack.c.b16 %v742, %v741
      %v803 = vpack.c.b16 %v744, %v743
      %v804 = vpack.c.b16 %v746, %v745
      %v805 = vpack.c.b16 %v748, %v747
      %v806 = vpack.c.b16 %v750, %v749
      %v807 = vpack.c.b16 %v752, %v751
      %v808 = vpack.c.b16 %v754, %v753
      %v809 = vpack.c.b16 %v756, %v755
      %v810 = vpack.c.b16 %v758, %v757
      %v811 = vpack.c.b16 %v760, %v759
      %v812 = vpack.c.b16 %v762, %v761
      %v813 = vpack.c.b16 %v764, %v763
      %v814 = vpack.c.b16 %v766, %v765
      %v815 = vpack.c.b16 %v768, %v767
      %v816 = vpack.c.b16 %v770, %v769
      %v817 = vpack.c.b16 %v772, %v771
      %v818 = vpack.c.b16 %v774, %v773
      %v819 = vpack.c.b16 %v776, %v775
      %v820 = vpack.c.b16 %v778, %v777
      %v821 = vpack.c.b16 %v780, %v779
      %v822 = vpack.c.b16 %v782, %v781
      %v823 = vpack.c.b16 %v784, %v783
      %v824 = vpack.c.b16 %v786, %v785
      %v825 = vpack.c.b16 %v788, %v787
      %vm862 = vcmask 621568
      %v864 = vsel %vm862, %v559, 0
      %vm866 = vcmask 1045504
      %v868 = vsel %vm866, %v825, 0
      %870 = vmatprep.subr.bf16.mxu0 0
      %871 = vmatpush1.bf16.msra.mxu0 %v796
      %872 = vmatprep.subr.bf16.mxu0 0
      %873 = vmatpush1.bf16.msra.mxu0 %v795
      %874 = vmatprep.subr.bf16.mxu0 0
      %875 = vmatpush1.bf16.msra.mxu0 %v794
      %876 = vmatprep.subr.bf16.mxu0 0
      %877 = vmatpush1.bf16.msra.mxu0 %v793
      %878 = vmatprep.subr.bf16.mxu0 0
      %879 = vmatpush1.bf16.msra.mxu0 %v792
      %880 = vmatprep.subr.bf16.mxu0 0
      %881 = vmatpush1.bf16.msra.mxu0 %v791
      %882 = vmatprep.subr.bf16.mxu0 0
      %883 = vmatpush1.bf16.msra.mxu0 %v790
      %884 = vmatprep.subr.bf16.mxu0 0
      %885 = vmatpush1.bf16.msra.mxu0 %v789
      %886 = vmatprep.subr.bf16.mxu0 0
      %887 = vmatpush2.bf16.msra.mxu0 %v804
      %888 = vmatprep.subr.bf16.mxu0 0
      %889 = vmatpush2.bf16.msra.mxu0 %v803
      %890 = vmatprep.subr.bf16.mxu0 0
      %891 = vmatpush2.bf16.msra.mxu0 %v802
      %892 = vmatprep.subr.bf16.mxu0 0
      %893 = vmatpush2.bf16.msra.mxu0 %v801
      %894 = vmatprep.subr.bf16.mxu0 0
      %895 = vmatpush2.bf16.msra.mxu0 %v800
      %896 = vmatprep.subr.bf16.mxu0 0
      %897 = vmatpush2.bf16.msra.mxu0 %v799
      %898 = vmatprep.subr.bf16.mxu0 0
      %899 = vmatpush2.bf16.msra.mxu0 %v798
      %900 = vmatprep.subr.bf16.mxu0 0
      %901 = vmatpush2.bf16.msra.mxu0 %v797
      %902 = vmatprep.mubr.bf16.mxu0 %v556
      %903 = vmatmul.mubr.bf16.gmra.mxu0 %v555
      %v904 = vpop.f32.mrf.mxu0
      %v905 = vadd.f32 %v639, %v904
      %v906 = vpop.f32.mrf.mxu0
      %v907 = vpop.f32.mrf.mxu0
      %v908 = vpop.f32.mrf.mxu0
      %909 = vdwg.mxu0
      %910 = vmatprep.subr.bf16.mxu0 0
      %911 = vmatpush1.bf16.msra.mxu0 %v812
      %912 = vmatprep.subr.bf16.mxu0 0
      %913 = vmatpush1.bf16.msra.mxu0 %v811
      %914 = vmatprep.subr.bf16.mxu0 0
      %915 = vmatpush1.bf16.msra.mxu0 %v810
      %916 = vmatprep.subr.bf16.mxu0 0
      %917 = vmatpush1.bf16.msra.mxu0 %v809
      %918 = vmatprep.subr.bf16.mxu0 0
      %919 = vmatpush1.bf16.msra.mxu0 %v808
      %920 = vmatprep.subr.bf16.mxu0 0
      %921 = vmatpush1.bf16.msra.mxu0 %v807
      %922 = vmatprep.subr.bf16.mxu0 0
      %923 = vmatpush1.bf16.msra.mxu0 %v806
      %924 = vmatprep.subr.bf16.mxu0 0
      %925 = vmatpush1.bf16.msra.mxu0 %v805
      %926 = vmatprep.subr.bf16.mxu0 0
      %927 = vmatpush2.bf16.msra.mxu0 %v820
      %928 = vmatprep.subr.bf16.mxu0 0
      %929 = vmatpush2.bf16.msra.mxu0 %v819
      %930 = vmatprep.subr.bf16.mxu0 0
      %931 = vmatpush2.bf16.msra.mxu0 %v818
      %932 = vmatprep.subr.bf16.mxu0 0
      %933 = vmatpush2.bf16.msra.mxu0 %v817
      %934 = vmatprep.subr.bf16.mxu0 0
      %935 = vmatpush2.bf16.msra.mxu0 %v816
      %936 = vmatprep.subr.bf16.mxu0 0
      %937 = vmatpush2.bf16.msra.mxu0 %v815
      %938 = vmatprep.subr.bf16.mxu0 0
      %939 = vmatpush2.bf16.msra.mxu0 %v814
      %940 = vmatprep.subr.bf16.mxu0 0
      %941 = vmatpush2.bf16.msra.mxu0 %v813
      %942 = vmatprep.mubr.bf16.mxu0 %v558
      %943 = vmatmul.mubr.bf16.gmra.mxu0 %v557
      %v944 = vpop.f32.mrf.mxu0
      %v945 = vadd.f32 %v905, %v944
      %v946 = vpop.f32.mrf.mxu0
      %v947 = vpop.f32.mrf.mxu0
      %v948 = vpop.f32.mrf.mxu0
      %949 = vdwg.mxu0
      %950 = vmatprep.subr.bf16.mxu0 0
      %951 = vmatpush1.bf16.msra.mxu0 0
      %952 = vmatprep.subr.bf16.mxu0 0
      %953 = vmatpush1.bf16.msra.mxu0 0
      %954 = vmatprep.subr.bf16.mxu0 0
      %955 = vmatpush1.bf16.msra.mxu0 0
      %956 = vmatprep.subr.bf16.mxu0 0
      %957 = vmatpush1.bf16.msra.mxu0 %v868
      %958 = vmatprep.subr.bf16.mxu0 0
      %959 = vmatpush1.bf16.msra.mxu0 %v824
      %960 = vmatprep.subr.bf16.mxu0 0
      %961 = vmatpush1.bf16.msra.mxu0 %v823
      %962 = vmatprep.subr.bf16.mxu0 0
      %963 = vmatpush1.bf16.msra.mxu0 %v822
      %964 = vmatprep.subr.bf16.mxu0 0
      %965 = vmatpush1.bf16.msra.mxu0 %v821
      %966 = vmatprep.subr.bf16.mxu0 0
      %967 = vmatpush2.bf16.msra.mxu0 0
      %968 = vmatprep.subr.bf16.mxu0 0
      %969 = vmatpush2.bf16.msra.mxu0 0
      %970 = vmatprep.subr.bf16.mxu0 0
      %971 = vmatpush2.bf16.msra.mxu0 0
      %972 = vmatprep.subr.bf16.mxu0 0
      %973 = vmatpush2.bf16.msra.mxu0 0
      %974 = vmatprep.subr.bf16.mxu0 0
      %975 = vmatpush2.bf16.msra.mxu0 0
      %976 = vmatprep.subr.bf16.mxu0 0
      %977 = vmatpush2.bf16.msra.mxu0 0
      %978 = vmatprep.subr.bf16.mxu0 0
      %979 = vmatpush2.bf16.msra.mxu0 0
      %980 = vmatprep.subr.bf16.mxu0 0
      %981 = vmatpush2.bf16.msra.mxu0 0
      %982 = vmatprep.mubr.bf16.mxu0 0
      %983 = vmatmul.mubr.bf16.gmra.mxu0 %v864
      %v984 = vpop.f32.mrf.mxu0
      %v985 = vadd.f32 %v945, %v984
      %v986 = vpop.f32.mrf.mxu0
      %v987 = vpop.f32.mrf.mxu0
      %v988 = vpop.f32.mrf.mxu0
      %989 = vdwg.mxu0
      %v990 = vld [vmem:[%s3] sm:$0x1]
      %v991 = vmul.f32 %v985, %v985
      %vm992 = vcmask 519168
      %v993 = vsel %vm992, %v991, 0.0
      %994 = vadd.xlane.f32.xlu0 %v993
      %v995 = vpop.xlane.xlu0 %994
      %v996 = vrcp.pop 64.0
      %v997 = vmul.f32 %v995, %v996
      %v998 = vadd.f32 %v997, 1e-05
      %v999 = vrsqrt.pop %v998
      %v1000 = vmul.f32 %v985, %v999
      %v1002 = vlaneseq
      %v1003 = vshrl.u32 %v1002, 7
      %v1004 = vsub.s32 0, %v1003
      %v1005 = vrot.slane %v990, %v1004
      %v1007 = vmul.f32 %v1000, %v1005
      %v1008 = vld [vmem:[%s4] sm:$0xf]
      %v1009 = vadd.f32 %v1007, %v1008
      %v1010 = vld [vmem:[%s5] sm:$0x1]
      %v1011 = vld [vmem:[%s6] sm:$0xff]
      %v1012 = vld [vmem:[%s6 + $0x8] sm:$0xff]
      %v1013 = vld [vmem:[%s6 + $0x10] sm:$0xff]
      %v1014 = vld [vmem:[%s6 + $0x18] sm:$0xff]
      %v1015 = vld [vmem:[%s6 + $0x20] sm:$0xff]
      %v1016 = vld [vmem:[%s6 + $0x28] sm:$0xff]
      %v1017 = vld [vmem:[%s6 + $0x30] sm:$0xff]
      %v1018 = vld [vmem:[%s6 + $0x38] sm:$0xff]
      %v1019 = vld [vmem:[%s7] sm:$0xf]
      %v1020 = vld [vmem:[%s7 + $0x4] sm:$0xf]
      %v1021 = vld [vmem:[%s7 + $0x8] sm:$0xf]
      %v1022 = vld [vmem:[%s7 + $0xc] sm:$0xf]
      %v1023 = vld [vmem:[%s7 + $0x10] sm:$0xf]
      %v1024 = vld [vmem:[%s7 + $0x14] sm:$0xf]
      %v1025 = vld [vmem:[%s7 + $0x18] sm:$0xf]
      %v1026 = vld [vmem:[%s7 + $0x1c] sm:$0xf]
      %v1027 = vld [vmem:[%s8] sm:$0x1]
      %v1028 = vld [vmem:[%s9] sm:$0xff]
      %v1029 = vld [vmem:[%s9 + $0x8] sm:$0xff]
      %v1030 = vld [vmem:[%s9 + $0x10] sm:$0xff]
      %v1031 = vld [vmem:[%s9 + $0x18] sm:$0xff]
      %v1032 = vld [vmem:[%s9 + $0x20] sm:$0xff]
      %v1033 = vld [vmem:[%s9 + $0x28] sm:$0xff]
      %v1034 = vld [vmem:[%s9 + $0x30] sm:$0xff]
      %v1035 = vld [vmem:[%s9 + $0x38] sm:$0xff]
      %v1036 = vld [vmem:[%s10] sm:$0xf]
      %v1037 = vld [vmem:[%s10 + $0x4] sm:$0xf]
      %v1038 = vld [vmem:[%s10 + $0x8] sm:$0xf]
      %v1039 = vld [vmem:[%s10 + $0xc] sm:$0xf]
      %v1040 = vld [vmem:[%s10 + $0x10] sm:$0xf]
      %v1041 = vld [vmem:[%s10 + $0x14] sm:$0xf]
      %v1042 = vld [vmem:[%s10 + $0x18] sm:$0xf]
      %v1043 = vld [vmem:[%s10 + $0x1c] sm:$0xf]
      %v1044 = vld [vmem:[%s10 + $0x20] sm:$0xf]
      %v1045 = vld [vmem:[%s10 + $0x24] sm:$0xf]
      %v1046 = vld [vmem:[%s10 + $0x28] sm:$0xf]
      %v1047 = vld [vmem:[%s10 + $0x2c] sm:$0xf]
      %v1048 = vld [vmem:[%s10 + $0x30] sm:$0xf]
      %v1049 = vld [vmem:[%s10 + $0x34] sm:$0xf]
      %v1050 = vld [vmem:[%s10 + $0x38] sm:$0xf]
      %v1051 = vld [vmem:[%s10 + $0x3c] sm:$0xf]
      %v1052 = vmul.f32 %v1009, %v1009
      %v1053 = vsel %vm992, %v1052, 0.0
      %1054 = vadd.xlane.f32.xlu0 %v1053
      %v1055 = vpop.xlane.xlu0 %1054
      %v1056 = vmul.f32 %v1055, %v996
      %v1057 = vadd.f32 %v1056, 1e-05
      %v1058 = vrsqrt.pop %v1057
      %v1059 = vmul.f32 %v1009, %v1058
      %v1061 = vlaneseq
      %v1062 = vshrl.u32 %v1061, 7
      %v1063 = vsub.s32 0, %v1062
      %v1064 = vrot.slane %v1010, %v1063
      %v1066 = vmul.f32 %v1059, %v1064
      %v1067 = vpack.c.bf16 %v1066, %v1066
      %v1076 = vunpack.c.l.b16 %v1011
      %v1077 = vunpack.c.h.b16 %v1011
      %v1078 = vunpack.c.l.b16 %v1012
      %v1079 = vunpack.c.h.b16 %v1012
      %v1080 = vunpack.c.l.b16 %v1013
      %v1081 = vunpack.c.h.b16 %v1013
      %v1082 = vunpack.c.l.b16 %v1014
      %v1083 = vunpack.c.h.b16 %v1014
      %v1084 = vunpack.c.l.b16 %v1015
      %v1085 = vunpack.c.h.b16 %v1015
      %v1086 = vunpack.c.l.b16 %v1016
      %v1087 = vunpack.c.h.b16 %v1016
      %v1088 = vunpack.c.l.b16 %v1017
      %v1089 = vunpack.c.h.b16 %v1017
      %v1090 = vunpack.c.l.b16 %v1018
      %v1091 = vunpack.c.h.b16 %v1018
      %v1092 = vpack.c.b16 %v1078, %v1076
      %v1093 = vpack.c.b16 %v1079, %v1077
      %v1094 = vpack.c.b16 %v1082, %v1080
      %v1095 = vpack.c.b16 %v1083, %v1081
      %v1096 = vpack.c.b16 %v1086, %v1084
      %v1097 = vpack.c.b16 %v1087, %v1085
      %v1098 = vpack.c.b16 %v1090, %v1088
      %v1099 = vpack.c.b16 %v1091, %v1089
      %vm1108 = vcmask 523264
      %v1110 = vsel %vm1108, %v1067, 0
      %1112 = vmatprep.subr.bf16.mxu0 0
      %1113 = vmatpush1.bf16.msra.mxu0 0
      %1114 = vmatprep.subr.bf16.mxu0 0
      %1115 = vmatpush1.bf16.msra.mxu0 0
      %1116 = vmatprep.subr.bf16.mxu0 0
      %1117 = vmatpush1.bf16.msra.mxu0 0
      %1118 = vmatprep.subr.bf16.mxu0 0
      %1119 = vmatpush1.bf16.msra.mxu0 0
      %1120 = vmatprep.subr.bf16.mxu0 %v1099
      %1121 = vmatpush1.bf16.msra.mxu0 %v1098
      %1122 = vmatprep.subr.bf16.mxu0 %v1097
      %1123 = vmatpush1.bf16.msra.mxu0 %v1096
      %1124 = vmatprep.subr.bf16.mxu0 %v1095
      %1125 = vmatpush1.bf16.msra.mxu0 %v1094
      %1126 = vmatprep.subr.bf16.mxu0 %v1093
      %1127 = vmatpush1.bf16.msra.mxu0 %v1092
      %1128 = vmatprep.subr.bf16.mxu0 0
      %1129 = vmatpush2.bf16.msra.mxu0 0
      %1130 = vmatprep.subr.bf16.mxu0 0
      %1131 = vmatpush2.bf16.msra.mxu0 0
      %1132 = vmatprep.subr.bf16.mxu0 0
      %1133 = vmatpush2.bf16.msra.mxu0 0
      %1134 = vmatprep.subr.bf16.mxu0 0
      %1135 = vmatpush2.bf16.msra.mxu0 0
      %1136 = vmatprep.subr.bf16.mxu0 0
      %1137 = vmatpush2.bf16.msra.mxu0 0
      %1138 = vmatprep.subr.bf16.mxu0 0
      %1139 = vmatpush2.bf16.msra.mxu0 0
      %1140 = vmatprep.subr.bf16.mxu0 0
      %1141 = vmatpush2.bf16.msra.mxu0 0
      %1142 = vmatprep.subr.bf16.mxu0 0
      %1143 = vmatpush2.bf16.msra.mxu0 0
      %1144 = vmatprep.mubr.bf16.mxu0 0
      %1145 = vmatmul.mubr.bf16.gmra.mxu0 %v1110
      %v1146 = vpop.f32.mrf.mxu0
      %v1147 = vadd.f32 0.0, %v1146
      %v1148 = vpop.f32.mrf.mxu0
      %v1149 = vadd.f32 0.0, %v1148
      %v1150 = vpop.f32.mrf.mxu0
      %v1151 = vpop.f32.mrf.mxu0
      %1152 = vdwg.mxu0
      %1154 = vrot.lane.b32.xlu0 %v1147, 112
      %v1155 = vpop.permute.xlu0 %1154
      %1157 = vrot.lane.b32.xlu0 %v1147, 96
      %v1158 = vpop.permute.xlu0 %1157
      %1160 = vrot.lane.b32.xlu0 %v1147, 80
      %v1161 = vpop.permute.xlu0 %1160
      %1163 = vrot.lane.b32.xlu0 %v1147, 64
      %v1164 = vpop.permute.xlu0 %1163
      %1166 = vrot.lane.b32.xlu0 %v1147, 48
      %v1167 = vpop.permute.xlu0 %1166
      %1169 = vrot.lane.b32.xlu0 %v1147, 32
      %v1170 = vpop.permute.xlu0 %1169
      %1172 = vrot.lane.b32.xlu0 %v1147, 16
      %v1173 = vpop.permute.xlu0 %1172
      %1176 = vrot.lane.b32.xlu0 %v1149, 112
      %v1177 = vpop.permute.xlu0 %1176
      %1179 = vrot.lane.b32.xlu0 %v1149, 96
      %v1180 = vpop.permute.xlu0 %1179
      %1182 = vrot.lane.b32.xlu0 %v1149, 80
      %v1183 = vpop.permute.xlu0 %1182
      %v1185 = vcombine.low %v1147, %v1158
      %v1187 = vunpack.c.l.s4 1983009808
      %v1188 = vunpack.c.0.s8 %v1187
      %v1189 = vlaneseq
      %v1190 = vshrl.u32 %v1189, 7
      %v1191 = vsub.s32 %v1188, %v1190
      %v1192 = vrot.slane %v1185, %v1191
      %v1193 = vcombine.low %v1155, %v1161
      %v1195 = vunpack.c.l.s4 1983009808
      %v1196 = vunpack.c.0.s8 %v1195
      %v1197 = vlaneseq
      %v1198 = vshrl.u32 %v1197, 7
      %v1199 = vsub.s32 %v1196, %v1198
      %v1200 = vrot.slane %v1193, %v1199
      %v1201 = vcombine.low %v1164, %v1170
      %v1203 = vunpack.c.l.s4 1983009808
      %v1204 = vunpack.c.0.s8 %v1203
      %v1205 = vlaneseq
      %v1206 = vshrl.u32 %v1205, 7
      %v1207 = vsub.s32 %v1204, %v1206
      %v1208 = vrot.slane %v1201, %v1207
      %v1209 = vcombine.low %v1167, %v1173
      %v1211 = vunpack.c.l.s4 1983009808
      %v1212 = vunpack.c.0.s8 %v1211
      %v1213 = vlaneseq
      %v1214 = vshrl.u32 %v1213, 7
      %v1215 = vsub.s32 %v1212, %v1214
      %v1216 = vrot.slane %v1209, %v1215
      %v1217 = vcombine.low %v1192, %v1200
      %v1218 = vcombine.high %v1192, %v1200
      %v1220 = vunpack.c.l.s4 1934713408
      %v1221 = vunpack.c.0.s8 %v1220
      %v1222 = vlaneseq
      %v1223 = vshrl.u32 %v1222, 7
      %v1224 = vsub.s32 %v1221, %v1223
      %v1225 = vrot.slane %v1217, %v1224
      %v1227 = vunpack.c.l.s4 1934713408
      %v1228 = vunpack.c.0.s8 %v1227
      %v1229 = vlaneseq
      %v1230 = vshrl.u32 %v1229, 7
      %v1231 = vsub.s32 %v1228, %v1230
      %v1232 = vrot.slane %v1218, %v1231
      %v1233 = vcombine.low %v1208, %v1216
      %v1234 = vcombine.high %v1208, %v1216
      %v1236 = vunpack.c.l.s4 1934713408
      %v1237 = vunpack.c.0.s8 %v1236
      %v1238 = vlaneseq
      %v1239 = vshrl.u32 %v1238, 7
      %v1240 = vsub.s32 %v1237, %v1239
      %v1241 = vrot.slane %v1233, %v1240
      %v1243 = vunpack.c.l.s4 1934713408
      %v1244 = vunpack.c.0.s8 %v1243
      %v1245 = vlaneseq
      %v1246 = vshrl.u32 %v1245, 7
      %v1247 = vsub.s32 %v1244, %v1246
      %v1248 = vrot.slane %v1234, %v1247
      %v1249 = vcombine.low %v1225, %v1241
      %v1250 = vcombine.high %v1225, %v1241
      %v1251 = vcombine.low %v1232, %v1248
      %v1252 = vcombine.high %v1232, %v1248
      %v1253 = vcombine.low %v1149, %v1180
      %v1255 = vunpack.c.l.s4 1983009808
      %v1256 = vunpack.c.0.s8 %v1255
      %v1257 = vlaneseq
      %v1258 = vshrl.u32 %v1257, 7
      %v1259 = vsub.s32 %v1256, %v1258
      %v1260 = vrot.slane %v1253, %v1259
      %v1261 = vcombine.low %v1177, %v1183
      %v1263 = vunpack.c.l.s4 1983009808
      %v1264 = vunpack.c.0.s8 %v1263
      %v1265 = vlaneseq
      %v1266 = vshrl.u32 %v1265, 7
      %v1267 = vsub.s32 %v1264, %v1266
      %v1268 = vrot.slane %v1261, %v1267
      %v1269 = vcombine.low %v1260, %v1268
      %v1270 = vcombine.high %v1260, %v1268
      %v1272 = vunpack.c.l.s4 1934713408
      %v1273 = vunpack.c.0.s8 %v1272
      %v1274 = vlaneseq
      %v1275 = vshrl.u32 %v1274, 7
      %v1276 = vsub.s32 %v1273, %v1275
      %v1277 = vrot.slane %v1269, %v1276
      %v1279 = vunpack.c.l.s4 1934713408
      %v1280 = vunpack.c.0.s8 %v1279
      %v1281 = vlaneseq
      %v1282 = vshrl.u32 %v1281, 7
      %v1283 = vsub.s32 %v1280, %v1282
      %v1284 = vrot.slane %v1270, %v1283
      %v1285 = vcombine.high %v1277, 0.0
      %v1286 = vcombine.high %v1284, 0.0
      %v1287 = vcombine.low %v1249, %v1251
      %v1288 = vcombine.high %v1249, %v1251
      %v1290 = vunpack.c.l.s4 1983009808
      %v1291 = vunpack.c.0.s8 %v1290
      %v1292 = vlaneseq
      %v1293 = vshrl.u32 %v1292, 7
      %v1294 = vsub.s32 %v1291, %v1293
      %v1295 = vrot.slane %v1287, %v1294
      %v1297 = vunpack.c.l.s4 1983009808
      %v1298 = vunpack.c.0.s8 %v1297
      %v1299 = vlaneseq
      %v1300 = vshrl.u32 %v1299, 7
      %v1301 = vsub.s32 %v1298, %v1300
      %v1302 = vrot.slane %v1288, %v1301
      %v1303 = vcombine.low %v1250, %v1252
      %v1304 = vcombine.high %v1250, %v1252
      %v1306 = vunpack.c.l.s4 1983009808
      %v1307 = vunpack.c.0.s8 %v1306
      %v1308 = vlaneseq
      %v1309 = vshrl.u32 %v1308, 7
      %v1310 = vsub.s32 %v1307, %v1309
      %v1311 = vrot.slane %v1303, %v1310
      %v1313 = vunpack.c.l.s4 1983009808
      %v1314 = vunpack.c.0.s8 %v1313
      %v1315 = vlaneseq
      %v1316 = vshrl.u32 %v1315, 7
      %v1317 = vsub.s32 %v1314, %v1316
      %v1318 = vrot.slane %v1304, %v1317
      %v1319 = vcombine.low %v1295, %v1311
      %v1320 = vcombine.high %v1295, %v1311
      %v1322 = vunpack.c.l.s4 1934713408
      %v1323 = vunpack.c.0.s8 %v1322
      %v1324 = vlaneseq
      %v1325 = vshrl.u32 %v1324, 7
      %v1326 = vsub.s32 %v1323, %v1325
      %v1327 = vrot.slane %v1319, %v1326
      %v1329 = vunpack.c.l.s4 1934713408
      %v1330 = vunpack.c.0.s8 %v1329
      %v1331 = vlaneseq
      %v1332 = vshrl.u32 %v1331, 7
      %v1333 = vsub.s32 %v1330, %v1332
      %v1334 = vrot.slane %v1320, %v1333
      %v1335 = vcombine.low %v1302, %v1318
      %v1336 = vcombine.high %v1302, %v1318
      %v1338 = vunpack.c.l.s4 1934713408
      %v1339 = vunpack.c.0.s8 %v1338
      %v1340 = vlaneseq
      %v1341 = vshrl.u32 %v1340, 7
      %v1342 = vsub.s32 %v1339, %v1341
      %v1343 = vrot.slane %v1335, %v1342
      %v1345 = vunpack.c.l.s4 1934713408
      %v1346 = vunpack.c.0.s8 %v1345
      %v1347 = vlaneseq
      %v1348 = vshrl.u32 %v1347, 7
      %v1349 = vsub.s32 %v1346, %v1348
      %v1350 = vrot.slane %v1336, %v1349
      %v1351 = vcombine.high %v1327, 0.0
      %v1352 = vcombine.high %v1334, 0.0
      %v1353 = vcombine.high %v1343, 0.0
      %v1354 = vcombine.high %v1350, 0.0
      %v1355 = vcombine.low %v1277, %v1284
      %v1357 = vunpack.c.l.s4 1983009808
      %v1358 = vunpack.c.0.s8 %v1357
      %v1359 = vlaneseq
      %v1360 = vshrl.u32 %v1359, 7
      %v1361 = vsub.s32 %v1358, %v1360
      %v1362 = vrot.slane %v1355, %v1361
      %v1363 = vcombine.low %v1285, %v1286
      %v1365 = vunpack.c.l.s4 1983009808
      %v1366 = vunpack.c.0.s8 %v1365
      %v1367 = vlaneseq
      %v1368 = vshrl.u32 %v1367, 7
      %v1369 = vsub.s32 %v1366, %v1368
      %v1370 = vrot.slane %v1363, %v1369
      %v1371 = vcombine.low %v1362, %v1370
      %v1372 = vcombine.high %v1362, %v1370
      %v1374 = vunpack.c.l.s4 1934713408
      %v1375 = vunpack.c.0.s8 %v1374
      %v1376 = vlaneseq
      %v1377 = vshrl.u32 %v1376, 7
      %v1378 = vsub.s32 %v1375, %v1377
      %v1379 = vrot.slane %v1371, %v1378
      %v1381 = vunpack.c.l.s4 1934713408
      %v1382 = vunpack.c.0.s8 %v1381
      %v1383 = vlaneseq
      %v1384 = vshrl.u32 %v1383, 7
      %v1385 = vsub.s32 %v1382, %v1384
      %v1386 = vrot.slane %v1372, %v1385
      %v1387 = vcombine.high %v1379, 0.0
      %v1388 = vcombine.high %v1386, 0.0
      %v1389 = vpack.c.bf16 %v1327, %v1327
      %v1390 = vpack.c.bf16 %v1351, %v1351
      %v1391 = vpack.c.bf16 %v1334, %v1334
      %v1392 = vpack.c.bf16 %v1352, %v1352
      %v1393 = vpack.c.bf16 %v1343, %v1343
      %v1394 = vpack.c.bf16 %v1353, %v1353
      %v1395 = vpack.c.bf16 %v1350, %v1350
      %v1396 = vpack.c.bf16 %v1354, %v1354
      %vm1397 = vcmask 130048
      %v1399 = vsel %vm1397, %v1389, 0
      %v1402 = vsel %vm1397, %v1393, 0
      %1404 = vmatprep.subr.bf16.mxu0 0
      %1405 = vmatpush1.bf16.xpose.msra.mxu0 0
      %1406 = vmatprep.subr.bf16.mxu0 0
      %1407 = vmatpush1.bf16.xpose.msra.mxu0 0
      %1408 = vmatprep.subr.bf16.mxu0 0
      %1409 = vmatpush1.bf16.xpose.msra.mxu0 0
      %1410 = vmatprep.subr.bf16.mxu0 0
      %1411 = vmatpush1.bf16.xpose.msra.mxu0 0
      %1412 = vmatprep.subr.bf16.mxu0 0
      %1413 = vmatpush1.bf16.xpose.msra.mxu0 0
      %1414 = vmatprep.subr.bf16.mxu0 0
      %1415 = vmatpush1.bf16.xpose.msra.mxu0 0
      %1416 = vmatprep.subr.bf16.mxu0 0
      %1417 = vmatpush1.bf16.xpose.msra.mxu0 0
      %1418 = vmatprep.subr.bf16.mxu0 0
      %1419 = vmatpush1.bf16.xpose.msra.mxu0 %v1402
      %1420 = vmatprep.subr.bf16.mxu0 0
      %1421 = vmatpush2.bf16.xpose.msra.mxu0 0
      %1422 = vmatprep.subr.bf16.mxu0 0
      %1423 = vmatpush2.bf16.xpose.msra.mxu0 0
      %1424 = vmatprep.subr.bf16.mxu0 0
      %1425 = vmatpush2.bf16.xpose.msra.mxu0 0
      %1426 = vmatprep.subr.bf16.mxu0 0
      %1427 = vmatpush2.bf16.xpose.msra.mxu0 0
      %1428 = vmatprep.subr.bf16.mxu0 0
      %1429 = vmatpush2.bf16.xpose.msra.mxu0 0
      %1430 = vmatprep.subr.bf16.mxu0 0
      %1431 = vmatpush2.bf16.xpose.msra.mxu0 0
      %1432 = vmatprep.subr.bf16.mxu0 0
      %1433 = vmatpush2.bf16.xpose.msra.mxu0 0
      %1434 = vmatprep.subr.bf16.mxu0 0
      %1435 = vmatpush2.bf16.xpose.msra.mxu0 0
      %1436 = vmatprep.mubr.bf16.mxu0 0
      %1437 = vmatmul.mubr.bf16.gmra.mxu0 %v1399
      %v1438 = vpop.f32.mrf.mxu0
      %v1439 = vadd.f32 0.0, %v1438
      %v1440 = vpop.f32.mrf.mxu0
      %v1441 = vpop.f32.mrf.mxu0
      %v1442 = vpop.f32.mrf.mxu0
      %1443 = vdwg.mxu0
      %v1445 = vsel %vm1397, %v1390, 0
      %v1448 = vsel %vm1397, %v1394, 0
      %1450 = vmatprep.subr.bf16.mxu0 0
      %1451 = vmatpush1.bf16.xpose.msra.mxu0 0
      %1452 = vmatprep.subr.bf16.mxu0 0
      %1453 = vmatpush1.bf16.xpose.msra.mxu0 0
      %1454 = vmatprep.subr.bf16.mxu0 0
      %1455 = vmatpush1.bf16.xpose.msra.mxu0 0
      %1456 = vmatprep.subr.bf16.mxu0 0
      %1457 = vmatpush1.bf16.xpose.msra.mxu0 0
      %1458 = vmatprep.subr.bf16.mxu0 0
      %1459 = vmatpush1.bf16.xpose.msra.mxu0 0
      %1460 = vmatprep.subr.bf16.mxu0 0
      %1461 = vmatpush1.bf16.xpose.msra.mxu0 0
      %1462 = vmatprep.subr.bf16.mxu0 0
      %1463 = vmatpush1.bf16.xpose.msra.mxu0 0
      %1464 = vmatprep.subr.bf16.mxu0 0
      %1465 = vmatpush1.bf16.xpose.msra.mxu0 %v1448
      %1466 = vmatprep.subr.bf16.mxu0 0
      %1467 = vmatpush2.bf16.xpose.msra.mxu0 0
      %1468 = vmatprep.subr.bf16.mxu0 0
      %1469 = vmatpush2.bf16.xpose.msra.mxu0 0
      %1470 = vmatprep.subr.bf16.mxu0 0
      %1471 = vmatpush2.bf16.xpose.msra.mxu0 0
      %1472 = vmatprep.subr.bf16.mxu0 0
      %1473 = vmatpush2.bf16.xpose.msra.mxu0 0
      %1474 = vmatprep.subr.bf16.mxu0 0
      %1475 = vmatpush2.bf16.xpose.msra.mxu0 0
      %1476 = vmatprep.subr.bf16.mxu0 0
      %1477 = vmatpush2.bf16.xpose.msra.mxu0 0
      %1478 = vmatprep.subr.bf16.mxu0 0
      %1479 = vmatpush2.bf16.xpose.msra.mxu0 0
      %1480 = vmatprep.subr.bf16.mxu0 0
      %1481 = vmatpush2.bf16.xpose.msra.mxu0 0
      %1482 = vmatprep.mubr.bf16.mxu0 0
      %1483 = vmatmul.mubr.bf16.gmra.mxu0 %v1445
      %v1484 = vpop.f32.mrf.mxu0
      %v1485 = vadd.f32 0.0, %v1484
      %v1486 = vpop.f32.mrf.mxu0
      %v1487 = vpop.f32.mrf.mxu0
      %v1488 = vpop.f32.mrf.mxu0
      %1489 = vdwg.mxu0
      %v1491 = vsel %vm1397, %v1391, 0
      %v1494 = vsel %vm1397, %v1395, 0
      %1496 = vmatprep.subr.bf16.mxu0 0
      %1497 = vmatpush1.bf16.xpose.msra.mxu0 0
      %1498 = vmatprep.subr.bf16.mxu0 0
      %1499 = vmatpush1.bf16.xpose.msra.mxu0 0
      %1500 = vmatprep.subr.bf16.mxu0 0
      %1501 = vmatpush1.bf16.xpose.msra.mxu0 0
      %1502 = vmatprep.subr.bf16.mxu0 0
      %1503 = vmatpush1.bf16.xpose.msra.mxu0 0
      %1504 = vmatprep.subr.bf16.mxu0 0
      %1505 = vmatpush1.bf16.xpose.msra.mxu0 0
      %1506 = vmatprep.subr.bf16.mxu0 0
      %1507 = vmatpush1.bf16.xpose.msra.mxu0 0
      %1508 = vmatprep.subr.bf16.mxu0 0
      %1509 = vmatpush1.bf16.xpose.msra.mxu0 0
      %1510 = vmatprep.subr.bf16.mxu0 0
      %1511 = vmatpush1.bf16.xpose.msra.mxu0 %v1494
      %1512 = vmatprep.subr.bf16.mxu0 0
      %1513 = vmatpush2.bf16.xpose.msra.mxu0 0
      %1514 = vmatprep.subr.bf16.mxu0 0
      %1515 = vmatpush2.bf16.xpose.msra.mxu0 0
      %1516 = vmatprep.subr.bf16.mxu0 0
      %1517 = vmatpush2.bf16.xpose.msra.mxu0 0
      %1518 = vmatprep.subr.bf16.mxu0 0
      %1519 = vmatpush2.bf16.xpose.msra.mxu0 0
      %1520 = vmatprep.subr.bf16.mxu0 0
      %1521 = vmatpush2.bf16.xpose.msra.mxu0 0
      %1522 = vmatprep.subr.bf16.mxu0 0
      %1523 = vmatpush2.bf16.xpose.msra.mxu0 0
      %1524 = vmatprep.subr.bf16.mxu0 0
      %1525 = vmatpush2.bf16.xpose.msra.mxu0 0
      %1526 = vmatprep.subr.bf16.mxu0 0
      %1527 = vmatpush2.bf16.xpose.msra.mxu0 0
      %1528 = vmatprep.mubr.bf16.mxu0 0
      %1529 = vmatmul.mubr.bf16.gmra.mxu0 %v1491
      %v1530 = vpop.f32.mrf.mxu0
      %v1531 = vadd.f32 0.0, %v1530
      %v1532 = vpop.f32.mrf.mxu0
      %v1533 = vpop.f32.mrf.mxu0
      %v1534 = vpop.f32.mrf.mxu0
      %1535 = vdwg.mxu0
      %v1537 = vsel %vm1397, %v1392, 0
      %v1540 = vsel %vm1397, %v1396, 0
      %1542 = vmatprep.subr.bf16.mxu0 0
      %1543 = vmatpush1.bf16.xpose.msra.mxu0 0
      %1544 = vmatprep.subr.bf16.mxu0 0
      %1545 = vmatpush1.bf16.xpose.msra.mxu0 0
      %1546 = vmatprep.subr.bf16.mxu0 0
      %1547 = vmatpush1.bf16.xpose.msra.mxu0 0
      %1548 = vmatprep.subr.bf16.mxu0 0
      %1549 = vmatpush1.bf16.xpose.msra.mxu0 0
      %1550 = vmatprep.subr.bf16.mxu0 0
      %1551 = vmatpush1.bf16.xpose.msra.mxu0 0
      %1552 = vmatprep.subr.bf16.mxu0 0
      %1553 = vmatpush1.bf16.xpose.msra.mxu0 0
      %1554 = vmatprep.subr.bf16.mxu0 0
      %1555 = vmatpush1.bf16.xpose.msra.mxu0 0
      %1556 = vmatprep.subr.bf16.mxu0 0
      %1557 = vmatpush1.bf16.xpose.msra.mxu0 %v1540
      %1558 = vmatprep.subr.bf16.mxu0 0
      %1559 = vmatpush2.bf16.xpose.msra.mxu0 0
      %1560 = vmatprep.subr.bf16.mxu0 0
      %1561 = vmatpush2.bf16.xpose.msra.mxu0 0
      %1562 = vmatprep.subr.bf16.mxu0 0
      %1563 = vmatpush2.bf16.xpose.msra.mxu0 0
      %1564 = vmatprep.subr.bf16.mxu0 0
      %1565 = vmatpush2.bf16.xpose.msra.mxu0 0
      %1566 = vmatprep.subr.bf16.mxu0 0
      %1567 = vmatpush2.bf16.xpose.msra.mxu0 0
      %1568 = vmatprep.subr.bf16.mxu0 0
      %1569 = vmatpush2.bf16.xpose.msra.mxu0 0
      %1570 = vmatprep.subr.bf16.mxu0 0
      %1571 = vmatpush2.bf16.xpose.msra.mxu0 0
      %1572 = vmatprep.subr.bf16.mxu0 0
      %1573 = vmatpush2.bf16.xpose.msra.mxu0 0
      %1574 = vmatprep.mubr.bf16.mxu0 0
      %1575 = vmatmul.mubr.bf16.gmra.mxu0 %v1537
      %v1576 = vpop.f32.mrf.mxu0
      %v1577 = vadd.f32 0.0, %v1576
      %v1578 = vpop.f32.mrf.mxu0
      %v1579 = vpop.f32.mrf.mxu0
      %v1580 = vpop.f32.mrf.mxu0
      %1581 = vdwg.mxu0
      %v1582 = vmul.f32 %v1439, 0.25
      %v1583 = vmul.f32 %v1485, 0.25
      %v1584 = vmul.f32 %v1531, 0.25
      %v1585 = vmul.f32 %v1577, 0.25
      %vm1586 = vcmask 27648
      %v1587 = vsel %vm1586, %v1582, -inf
      %1588 = vmax.xlane.f32.xlu0 %v1587
      %v1589 = vpop.xlane.xlu0 %1588
      %v1590 = vsel %vm1586, %v1583, -inf
      %1591 = vmax.xlane.f32.xlu0 %v1590
      %v1592 = vpop.xlane.xlu0 %1591
      %v1593 = vsel %vm1586, %v1584, -inf
      %1594 = vmax.xlane.f32.xlu0 %v1593
      %v1595 = vpop.xlane.xlu0 %1594
      %v1596 = vsel %vm1586, %v1585, -inf
      %1597 = vmax.xlane.f32.xlu0 %v1596
      %v1598 = vpop.xlane.xlu0 %1597
      %v1599 = vsub.f32 %v1582, %v1589
      %v1600 = vsub.f32 %v1583, %v1592
      %v1601 = vsub.f32 %v1584, %v1595
      %v1602 = vsub.f32 %v1585, %v1598
      %v1603 = vmul.f32 %v1599, 1.442695
      %v1604 = vpow.pop %v1603
      %v1605 = vmul.f32 %v1600, 1.442695
      %v1606 = vpow.pop %v1605
      %v1607 = vmul.f32 %v1601, 1.442695
      %v1608 = vpow.pop %v1607
      %v1609 = vmul.f32 %v1602, 1.442695
      %v1610 = vpow.pop %v1609
      %v1611 = vsel %vm1586, %v1604, 0.0
      %1612 = vadd.xlane.f32.xlu0 %v1611
      %v1613 = vpop.xlane.xlu0 %1612
      %v1614 = vsel %vm1586, %v1606, 0.0
      %1615 = vadd.xlane.f32.xlu0 %v1614
      %v1616 = vpop.xlane.xlu0 %1615
      %v1617 = vsel %vm1586, %v1608, 0.0
      %1618 = vadd.xlane.f32.xlu0 %v1617
      %v1619 = vpop.xlane.xlu0 %1618
      %v1620 = vsel %vm1586, %v1610, 0.0
      %1621 = vadd.xlane.f32.xlu0 %v1620
      %v1622 = vpop.xlane.xlu0 %1621
      %v1623 = vrcp.pop %v1613
      %v1624 = vrcp.pop %v1616
      %v1625 = vrcp.pop %v1619
      %v1626 = vrcp.pop %v1622
      %v1627 = vmul.f32 %v1604, %v1623
      %v1628 = vmul.f32 %v1606, %v1624
      %v1629 = vmul.f32 %v1608, %v1625
      %v1630 = vmul.f32 %v1610, %v1626
      %v1631 = vpack.c.bf16 %v1627, %v1627
      %v1632 = vpack.c.bf16 %v1628, %v1628
      %v1633 = vpack.c.bf16 %v1629, %v1629
      %v1634 = vpack.c.bf16 %v1630, %v1630
      %v1635 = vpack.c.bf16 %v1379, %v1379
      %v1636 = vpack.c.bf16 %v1387, %v1387
      %v1637 = vpack.c.bf16 %v1386, %v1386
      %v1638 = vpack.c.bf16 %v1388, %v1388
      %vm1639 = vcmask 31744
      %v1641 = vsel %vm1639, %v1631, 0
      %vm1643 = vcmask 1041408
      %v1645 = vsel %vm1643, %v1635, 0
      %1647 = vmatprep.subr.bf16.mxu0 0
      %1648 = vmatpush1.bf16.msra.mxu0 0
      %1649 = vmatprep.subr.bf16.mxu0 0
      %1650 = vmatpush1.bf16.msra.mxu0 0
      %1651 = vmatprep.subr.bf16.mxu0 0
      %1652 = vmatpush1.bf16.msra.mxu0 0
      %1653 = vmatprep.subr.bf16.mxu0 0
      %1654 = vmatpush1.bf16.msra.mxu0 0
      %1655 = vmatprep.subr.bf16.mxu0 0
      %1656 = vmatpush1.bf16.msra.mxu0 0
      %1657 = vmatprep.subr.bf16.mxu0 0
      %1658 = vmatpush1.bf16.msra.mxu0 0
      %1659 = vmatprep.subr.bf16.mxu0 0
      %1660 = vmatpush1.bf16.msra.mxu0 0
      %1661 = vmatprep.subr.bf16.mxu0 0
      %1662 = vmatpush1.bf16.msra.mxu0 %v1645
      %1663 = vmatprep.subr.bf16.mxu0 0
      %1664 = vmatpush2.bf16.msra.mxu0 0
      %1665 = vmatprep.subr.bf16.mxu0 0
      %1666 = vmatpush2.bf16.msra.mxu0 0
      %1667 = vmatprep.subr.bf16.mxu0 0
      %1668 = vmatpush2.bf16.msra.mxu0 0
      %1669 = vmatprep.subr.bf16.mxu0 0
      %1670 = vmatpush2.bf16.msra.mxu0 0
      %1671 = vmatprep.subr.bf16.mxu0 0
      %1672 = vmatpush2.bf16.msra.mxu0 0
      %1673 = vmatprep.subr.bf16.mxu0 0
      %1674 = vmatpush2.bf16.msra.mxu0 0
      %1675 = vmatprep.subr.bf16.mxu0 0
      %1676 = vmatpush2.bf16.msra.mxu0 0
      %1677 = vmatprep.subr.bf16.mxu0 0
      %1678 = vmatpush2.bf16.msra.mxu0 0
      %1679 = vmatprep.mubr.bf16.mxu0 0
      %1680 = vmatmul.mubr.bf16.gmra.mxu0 %v1641
      %v1681 = vpop.f32.mrf.mxu0
      %v1682 = vadd.f32 0.0, %v1681
      %v1683 = vpop.f32.mrf.mxu0
      %v1684 = vpop.f32.mrf.mxu0
      %v1685 = vpop.f32.mrf.mxu0
      %1686 = vdwg.mxu0
      %v1688 = vsel %vm1639, %v1632, 0
      %v1691 = vsel %vm1643, %v1636, 0
      %1693 = vmatprep.subr.bf16.mxu0 0
      %1694 = vmatpush1.bf16.msra.mxu0 0
      %1695 = vmatprep.subr.bf16.mxu0 0
      %1696 = vmatpush1.bf16.msra.mxu0 0
      %1697 = vmatprep.subr.bf16.mxu0 0
      %1698 = vmatpush1.bf16.msra.mxu0 0
      %1699 = vmatprep.subr.bf16.mxu0 0
      %1700 = vmatpush1.bf16.msra.mxu0 0
      %1701 = vmatprep.subr.bf16.mxu0 0
      %1702 = vmatpush1.bf16.msra.mxu0 0
      %1703 = vmatprep.subr.bf16.mxu0 0
      %1704 = vmatpush1.bf16.msra.mxu0 0
      %1705 = vmatprep.subr.bf16.mxu0 0
      %1706 = vmatpush1.bf16.msra.mxu0 0
      %1707 = vmatprep.subr.bf16.mxu0 0
      %1708 = vmatpush1.bf16.msra.mxu0 %v1691
      %1709 = vmatprep.subr.bf16.mxu0 0
      %1710 = vmatpush2.bf16.msra.mxu0 0
      %1711 = vmatprep.subr.bf16.mxu0 0
      %1712 = vmatpush2.bf16.msra.mxu0 0
      %1713 = vmatprep.subr.bf16.mxu0 0
      %1714 = vmatpush2.bf16.msra.mxu0 0
      %1715 = vmatprep.subr.bf16.mxu0 0
      %1716 = vmatpush2.bf16.msra.mxu0 0
      %1717 = vmatprep.subr.bf16.mxu0 0
      %1718 = vmatpush2.bf16.msra.mxu0 0
      %1719 = vmatprep.subr.bf16.mxu0 0
      %1720 = vmatpush2.bf16.msra.mxu0 0
      %1721 = vmatprep.subr.bf16.mxu0 0
      %1722 = vmatpush2.bf16.msra.mxu0 0
      %1723 = vmatprep.subr.bf16.mxu0 0
      %1724 = vmatpush2.bf16.msra.mxu0 0
      %1725 = vmatprep.mubr.bf16.mxu0 0
      %1726 = vmatmul.mubr.bf16.gmra.mxu0 %v1688
      %v1727 = vpop.f32.mrf.mxu0
      %v1728 = vadd.f32 0.0, %v1727
      %v1729 = vpop.f32.mrf.mxu0
      %v1730 = vpop.f32.mrf.mxu0
      %v1731 = vpop.f32.mrf.mxu0
      %1732 = vdwg.mxu0
      %v1734 = vsel %vm1639, %v1633, 0
      %v1737 = vsel %vm1643, %v1637, 0
      %1739 = vmatprep.subr.bf16.mxu0 0
      %1740 = vmatpush1.bf16.msra.mxu0 0
      %1741 = vmatprep.subr.bf16.mxu0 0
      %1742 = vmatpush1.bf16.msra.mxu0 0
      %1743 = vmatprep.subr.bf16.mxu0 0
      %1744 = vmatpush1.bf16.msra.mxu0 0
      %1745 = vmatprep.subr.bf16.mxu0 0
      %1746 = vmatpush1.bf16.msra.mxu0 0
      %1747 = vmatprep.subr.bf16.mxu0 0
      %1748 = vmatpush1.bf16.msra.mxu0 0
      %1749 = vmatprep.subr.bf16.mxu0 0
      %1750 = vmatpush1.bf16.msra.mxu0 0
      %1751 = vmatprep.subr.bf16.mxu0 0
      %1752 = vmatpush1.bf16.msra.mxu0 0
      %1753 = vmatprep.subr.bf16.mxu0 0
      %1754 = vmatpush1.bf16.msra.mxu0 %v1737
      %1755 = vmatprep.subr.bf16.mxu0 0
      %1756 = vmatpush2.bf16.msra.mxu0 0
      %1757 = vmatprep.subr.bf16.mxu0 0
      %1758 = vmatpush2.bf16.msra.mxu0 0
      %1759 = vmatprep.subr.bf16.mxu0 0
      %1760 = vmatpush2.bf16.msra.mxu0 0
      %1761 = vmatprep.subr.bf16.mxu0 0
      %1762 = vmatpush2.bf16.msra.mxu0 0
      %1763 = vmatprep.subr.bf16.mxu0 0
      %1764 = vmatpush2.bf16.msra.mxu0 0
      %1765 = vmatprep.subr.bf16.mxu0 0
      %1766 = vmatpush2.bf16.msra.mxu0 0
      %1767 = vmatprep.subr.bf16.mxu0 0
      %1768 = vmatpush2.bf16.msra.mxu0 0
      %1769 = vmatprep.subr.bf16.mxu0 0
      %1770 = vmatpush2.bf16.msra.mxu0 0
      %1771 = vmatprep.mubr.bf16.mxu0 0
      %1772 = vmatmul.mubr.bf16.gmra.mxu0 %v1734
      %v1773 = vpop.f32.mrf.mxu0
      %v1774 = vadd.f32 0.0, %v1773
      %v1775 = vpop.f32.mrf.mxu0
      %v1776 = vpop.f32.mrf.mxu0
      %v1777 = vpop.f32.mrf.mxu0
      %1778 = vdwg.mxu0
      %v1780 = vsel %vm1639, %v1634, 0
      %v1783 = vsel %vm1643, %v1638, 0
      %1785 = vmatprep.subr.bf16.mxu0 0
      %1786 = vmatpush1.bf16.msra.mxu0 0
      %1787 = vmatprep.subr.bf16.mxu0 0
      %1788 = vmatpush1.bf16.msra.mxu0 0
      %1789 = vmatprep.subr.bf16.mxu0 0
      %1790 = vmatpush1.bf16.msra.mxu0 0
      %1791 = vmatprep.subr.bf16.mxu0 0
      %1792 = vmatpush1.bf16.msra.mxu0 0
      %1793 = vmatprep.subr.bf16.mxu0 0
      %1794 = vmatpush1.bf16.msra.mxu0 0
      %1795 = vmatprep.subr.bf16.mxu0 0
      %1796 = vmatpush1.bf16.msra.mxu0 0
      %1797 = vmatprep.subr.bf16.mxu0 0
      %1798 = vmatpush1.bf16.msra.mxu0 0
      %1799 = vmatprep.subr.bf16.mxu0 0
      %1800 = vmatpush1.bf16.msra.mxu0 %v1783
      %1801 = vmatprep.subr.bf16.mxu0 0
      %1802 = vmatpush2.bf16.msra.mxu0 0
      %1803 = vmatprep.subr.bf16.mxu0 0
      %1804 = vmatpush2.bf16.msra.mxu0 0
      %1805 = vmatprep.subr.bf16.mxu0 0
      %1806 = vmatpush2.bf16.msra.mxu0 0
      %1807 = vmatprep.subr.bf16.mxu0 0
      %1808 = vmatpush2.bf16.msra.mxu0 0
      %1809 = vmatprep.subr.bf16.mxu0 0
      %1810 = vmatpush2.bf16.msra.mxu0 0
      %1811 = vmatprep.subr.bf16.mxu0 0
      %1812 = vmatpush2.bf16.msra.mxu0 0
      %1813 = vmatprep.subr.bf16.mxu0 0
      %1814 = vmatpush2.bf16.msra.mxu0 0
      %1815 = vmatprep.subr.bf16.mxu0 0
      %1816 = vmatpush2.bf16.msra.mxu0 0
      %1817 = vmatprep.mubr.bf16.mxu0 0
      %1818 = vmatmul.mubr.bf16.gmra.mxu0 %v1780
      %v1819 = vpop.f32.mrf.mxu0
      %v1820 = vadd.f32 0.0, %v1819
      %v1821 = vpop.f32.mrf.mxu0
      %v1822 = vpop.f32.mrf.mxu0
      %v1823 = vpop.f32.mrf.mxu0
      %1824 = vdwg.mxu0
      %v1825 = vcombine.low %v1682, %v1774
      %v1827 = vunpack.c.l.s4 1983009808
      %v1828 = vunpack.c.0.s8 %v1827
      %v1829 = vlaneseq
      %v1830 = vshrl.u32 %v1829, 7
      %v1831 = vsub.s32 %v1828, %v1830
      %v1832 = vrot.slane %v1825, %v1831
      %v1833 = vcombine.low %v1728, %v1820
      %v1835 = vunpack.c.l.s4 1983009808
      %v1836 = vunpack.c.0.s8 %v1835
      %v1837 = vlaneseq
      %v1838 = vshrl.u32 %v1837, 7
      %v1839 = vsub.s32 %v1836, %v1838
      %v1840 = vrot.slane %v1833, %v1839
      %v1841 = vcombine.low %v1832, %v1840
      %v1842 = vcombine.high %v1832, %v1840
      %v1844 = vunpack.c.l.s4 1934713408
      %v1845 = vunpack.c.0.s8 %v1844
      %v1846 = vlaneseq
      %v1847 = vshrl.u32 %v1846, 7
      %v1848 = vsub.s32 %v1845, %v1847
      %v1849 = vrot.slane %v1841, %v1848
      %v1851 = vunpack.c.l.s4 1934713408
      %v1852 = vunpack.c.0.s8 %v1851
      %v1853 = vlaneseq
      %v1854 = vshrl.u32 %v1853, 7
      %v1855 = vsub.s32 %v1852, %v1854
      %v1856 = vrot.slane %v1842, %v1855
      %v1857 = vcombine.high %v1849, 0.0
      %v1858 = vcombine.high %v1856, 0.0
      %v1859 = vcombine.low %v1849, %v1856
      %v1861 = vunpack.c.l.s4 1983009808
      %v1862 = vunpack.c.0.s8 %v1861
      %v1863 = vlaneseq
      %v1864 = vshrl.u32 %v1863, 7
      %v1865 = vsub.s32 %v1862, %v1864
      %v1866 = vrot.slane %v1859, %v1865
      %v1867 = vcombine.low %v1857, %v1858
      %v1869 = vunpack.c.l.s4 1983009808
      %v1870 = vunpack.c.0.s8 %v1869
      %v1871 = vlaneseq
      %v1872 = vshrl.u32 %v1871, 7
      %v1873 = vsub.s32 %v1870, %v1872
      %v1874 = vrot.slane %v1867, %v1873
      %v1875 = vcombine.low %v1866, %v1874
      %v1876 = vcombine.high %v1866, %v1874
      %v1878 = vunpack.c.l.s4 1934713408
      %v1879 = vunpack.c.0.s8 %v1878
      %v1880 = vlaneseq
      %v1881 = vshrl.u32 %v1880, 7
      %v1882 = vsub.s32 %v1879, %v1881
      %v1883 = vrot.slane %v1875, %v1882
      %v1885 = vunpack.c.l.s4 1934713408
      %v1886 = vunpack.c.0.s8 %v1885
      %v1887 = vlaneseq
      %v1888 = vshrl.u32 %v1887, 7
      %v1889 = vsub.s32 %v1886, %v1888
      %v1890 = vrot.slane %v1876, %v1889
      %v1891 = vcombine.high %v1883, 0.0
      %v1892 = vcombine.high %v1890, 0.0
      %1894 = vrot.lane.b32.xlu0 %v1891, 16
      %v1895 = vpop.permute.xlu0 %1894
      %1898 = vrot.lane.b32.xlu0 %v1890, 32
      %v1899 = vpop.permute.xlu0 %1898
      %1902 = vrot.lane.b32.xlu0 %v1892, 48
      %v1903 = vpop.permute.xlu0 %1902
      %v1905 = vsel %vm1397, %v1883, %v1895
      %vm1906 = vcmask 261120
      %v1907 = vsel %vm1906, %v1905, %v1899
      %vm1908 = vcmask 392192
      %v1909 = vsel %vm1908, %v1907, %v1903
      %v1910 = vpack.c.bf16 %v1909, %v1909
      %v1919 = vunpack.c.l.b16 %v1019
      %v1920 = vunpack.c.l.b16 %v1020
      %v1921 = vunpack.c.l.b16 %v1021
      %v1922 = vunpack.c.l.b16 %v1022
      %v1923 = vunpack.c.l.b16 %v1023
      %v1924 = vunpack.c.l.b16 %v1024
      %v1925 = vunpack.c.l.b16 %v1025
      %v1926 = vunpack.c.l.b16 %v1026
      %v1927 = vpack.c.b16 %v1920, %v1919
      %v1928 = vpack.c.b16 %v1922, %v1921
      %v1929 = vpack.c.b16 %v1924, %v1923
      %v1930 = vpack.c.b16 %v1926, %v1925
      %v1936 = vsel %vm1108, %v1910, 0
      %1938 = vmatprep.subr.bf16.mxu0 0
      %1939 = vmatpush1.bf16.msra.mxu0 0
      %1940 = vmatprep.subr.bf16.mxu0 0
      %1941 = vmatpush1.bf16.msra.mxu0 0
      %1942 = vmatprep.subr.bf16.mxu0 0
      %1943 = vmatpush1.bf16.msra.mxu0 0
      %1944 = vmatprep.subr.bf16.mxu0 0
      %1945 = vmatpush1.bf16.msra.mxu0 0
      %1946 = vmatprep.subr.bf16.mxu0 0
      %1947 = vmatpush1.bf16.msra.mxu0 %v1930
      %1948 = vmatprep.subr.bf16.mxu0 0
      %1949 = vmatpush1.bf16.msra.mxu0 %v1929
      %1950 = vmatprep.subr.bf16.mxu0 0
      %1951 = vmatpush1.bf16.msra.mxu0 %v1928
      %1952 = vmatprep.subr.bf16.mxu0 0
      %1953 = vmatpush1.bf16.msra.mxu0 %v1927
      %1954 = vmatprep.subr.bf16.mxu0 0
      %1955 = vmatpush2.bf16.msra.mxu0 0
      %1956 = vmatprep.subr.bf16.mxu0 0
      %1957 = vmatpush2.bf16.msra.mxu0 0
      %1958 = vmatprep.subr.bf16.mxu0 0
      %1959 = vmatpush2.bf16.msra.mxu0 0
      %1960 = vmatprep.subr.bf16.mxu0 0
      %1961 = vmatpush2.bf16.msra.mxu0 0
      %1962 = vmatprep.subr.bf16.mxu0 0
      %1963 = vmatpush2.bf16.msra.mxu0 0
      %1964 = vmatprep.subr.bf16.mxu0 0
      %1965 = vmatpush2.bf16.msra.mxu0 0
      %1966 = vmatprep.subr.bf16.mxu0 0
      %1967 = vmatpush2.bf16.msra.mxu0 0
      %1968 = vmatprep.subr.bf16.mxu0 0
      %1969 = vmatpush2.bf16.msra.mxu0 0
      %1970 = vmatprep.mubr.bf16.mxu0 0
      %1971 = vmatmul.mubr.bf16.gmra.mxu0 %v1936
      %v1972 = vpop.f32.mrf.mxu0
      %v1973 = vadd.f32 0.0, %v1972
      %v1974 = vpop.f32.mrf.mxu0
      %v1975 = vpop.f32.mrf.mxu0
      %v1976 = vpop.f32.mrf.mxu0
      %1977 = vdwg.mxu0
      %v1978 = vadd.f32 %v1009, %v1973
      %v1979 = vmul.f32 %v1978, %v1978
      %v1980 = vsel %vm992, %v1979, 0.0
      %1981 = vadd.xlane.f32.xlu0 %v1980
      %v1982 = vpop.xlane.xlu0 %1981
      %v1983 = vmul.f32 %v1982, %v996
      %v1984 = vadd.f32 %v1983, 1e-05
      %v1985 = vrsqrt.pop %v1984
      %v1986 = vmul.f32 %v1978, %v1985
      %v1988 = vlaneseq
      %v1989 = vshrl.u32 %v1988, 7
      %v1990 = vsub.s32 0, %v1989
      %v1991 = vrot.slane %v1027, %v1990
      %v1993 = vmul.f32 %v1986, %v1991
      %v1994 = vpack.c.bf16 %v1993, %v1993
      %v2003 = vunpack.c.l.b16 %v1028
      %v2004 = vunpack.c.h.b16 %v1028
      %v2005 = vunpack.c.l.b16 %v1029
      %v2006 = vunpack.c.h.b16 %v1029
      %v2007 = vunpack.c.l.b16 %v1030
      %v2008 = vunpack.c.h.b16 %v1030
      %v2009 = vunpack.c.l.b16 %v1031
      %v2010 = vunpack.c.h.b16 %v1031
      %v2011 = vunpack.c.l.b16 %v1032
      %v2012 = vunpack.c.h.b16 %v1032
      %v2013 = vunpack.c.l.b16 %v1033
      %v2014 = vunpack.c.h.b16 %v1033
      %v2015 = vunpack.c.l.b16 %v1034
      %v2016 = vunpack.c.h.b16 %v1034
      %v2017 = vunpack.c.l.b16 %v1035
      %v2018 = vunpack.c.h.b16 %v1035
      %v2019 = vpack.c.b16 %v2005, %v2003
      %v2020 = vpack.c.b16 %v2006, %v2004
      %v2021 = vpack.c.b16 %v2009, %v2007
      %v2022 = vpack.c.b16 %v2010, %v2008
      %v2023 = vpack.c.b16 %v2013, %v2011
      %v2024 = vpack.c.b16 %v2014, %v2012
      %v2025 = vpack.c.b16 %v2017, %v2015
      %v2026 = vpack.c.b16 %v2018, %v2016
      %v2036 = vsel %vm1108, %v1994, 0
      %2038 = vmatprep.subr.bf16.mxu0 0
      %2039 = vmatpush1.bf16.msra.mxu0 0
      %2040 = vmatprep.subr.bf16.mxu0 0
      %2041 = vmatpush1.bf16.msra.mxu0 0
      %2042 = vmatprep.subr.bf16.mxu0 0
      %2043 = vmatpush1.bf16.msra.mxu0 0
      %2044 = vmatprep.subr.bf16.mxu0 0
      %2045 = vmatpush1.bf16.msra.mxu0 0
      %2046 = vmatprep.subr.bf16.mxu0 %v2026
      %2047 = vmatpush1.bf16.msra.mxu0 %v2025
      %2048 = vmatprep.subr.bf16.mxu0 %v2024
      %2049 = vmatpush1.bf16.msra.mxu0 %v2023
      %2050 = vmatprep.subr.bf16.mxu0 %v2022
      %2051 = vmatpush1.bf16.msra.mxu0 %v2021
      %2052 = vmatprep.subr.bf16.mxu0 %v2020
      %2053 = vmatpush1.bf16.msra.mxu0 %v2019
      %2054 = vmatprep.subr.bf16.mxu0 0
      %2055 = vmatpush2.bf16.msra.mxu0 0
      %2056 = vmatprep.subr.bf16.mxu0 0
      %2057 = vmatpush2.bf16.msra.mxu0 0
      %2058 = vmatprep.subr.bf16.mxu0 0
      %2059 = vmatpush2.bf16.msra.mxu0 0
      %2060 = vmatprep.subr.bf16.mxu0 0
      %2061 = vmatpush2.bf16.msra.mxu0 0
      %2062 = vmatprep.subr.bf16.mxu0 0
      %2063 = vmatpush2.bf16.msra.mxu0 0
      %2064 = vmatprep.subr.bf16.mxu0 0
      %2065 = vmatpush2.bf16.msra.mxu0 0
      %2066 = vmatprep.subr.bf16.mxu0 0
      %2067 = vmatpush2.bf16.msra.mxu0 0
      %2068 = vmatprep.subr.bf16.mxu0 0
      %2069 = vmatpush2.bf16.msra.mxu0 0
      %2070 = vmatprep.mubr.bf16.mxu0 0
      %2071 = vmatmul.mubr.bf16.gmra.mxu0 %v2036
      %v2072 = vpop.f32.mrf.mxu0
      %v2073 = vadd.f32 0.0, %v2072
      %v2074 = vpop.f32.mrf.mxu0
      %v2075 = vadd.f32 0.0, %v2074
      %v2076 = vpop.f32.mrf.mxu0
      %v2077 = vpop.f32.mrf.mxu0
      %2078 = vdwg.mxu0
      %v2079 = vxor.u32 %v2073, 2147483648
      %v2080 = vmul.f32 %v2079, 1.442695
      %v2081 = vpow.pop %v2080
      %v2082 = vadd.f32 %v2081, 1.0
      %v2083 = vrcp.pop %v2082
      %v2084 = vmul.f32 1.0, %v2083
      %v2085 = vmul.f32 %v2073, %v2084
      %v2086 = vmul.f32 %v2085, %v2075
      %v2087 = vpack.c.bf16 %v2086, %v2086
      %v2104 = vunpack.c.l.b16 %v1036
      %v2105 = vunpack.c.l.b16 %v1037
      %v2106 = vunpack.c.l.b16 %v1038
      %v2107 = vunpack.c.l.b16 %v1039
      %v2108 = vunpack.c.l.b16 %v1040
      %v2109 = vunpack.c.l.b16 %v1041
      %v2110 = vunpack.c.l.b16 %v1042
      %v2111 = vunpack.c.l.b16 %v1043
      %v2112 = vunpack.c.l.b16 %v1044
      %v2113 = vunpack.c.l.b16 %v1045
      %v2114 = vunpack.c.l.b16 %v1046
      %v2115 = vunpack.c.l.b16 %v1047
      %v2116 = vunpack.c.l.b16 %v1048
      %v2117 = vunpack.c.l.b16 %v1049
      %v2118 = vunpack.c.l.b16 %v1050
      %v2119 = vunpack.c.l.b16 %v1051
      %v2120 = vpack.c.b16 %v2105, %v2104
      %v2121 = vpack.c.b16 %v2107, %v2106
      %v2122 = vpack.c.b16 %v2109, %v2108
      %v2123 = vpack.c.b16 %v2111, %v2110
      %v2124 = vpack.c.b16 %v2113, %v2112
      %v2125 = vpack.c.b16 %v2115, %v2114
      %v2126 = vpack.c.b16 %v2117, %v2116
      %v2127 = vpack.c.b16 %v2119, %v2118
      %2136 = vmatprep.subr.bf16.mxu0 0
      %2137 = vmatpush1.bf16.msra.mxu0 %v2127
      %2138 = vmatprep.subr.bf16.mxu0 0
      %2139 = vmatpush1.bf16.msra.mxu0 %v2126
      %2140 = vmatprep.subr.bf16.mxu0 0
      %2141 = vmatpush1.bf16.msra.mxu0 %v2125
      %2142 = vmatprep.subr.bf16.mxu0 0
      %2143 = vmatpush1.bf16.msra.mxu0 %v2124
      %2144 = vmatprep.subr.bf16.mxu0 0
      %2145 = vmatpush1.bf16.msra.mxu0 %v2123
      %2146 = vmatprep.subr.bf16.mxu0 0
      %2147 = vmatpush1.bf16.msra.mxu0 %v2122
      %2148 = vmatprep.subr.bf16.mxu0 0
      %2149 = vmatpush1.bf16.msra.mxu0 %v2121
      %2150 = vmatprep.subr.bf16.mxu0 0
      %2151 = vmatpush1.bf16.msra.mxu0 %v2120
      %2152 = vmatprep.subr.bf16.mxu0 0
      %2153 = vmatpush2.bf16.msra.mxu0 0
      %2154 = vmatprep.subr.bf16.mxu0 0
      %2155 = vmatpush2.bf16.msra.mxu0 0
      %2156 = vmatprep.subr.bf16.mxu0 0
      %2157 = vmatpush2.bf16.msra.mxu0 0
      %2158 = vmatprep.subr.bf16.mxu0 0
      %2159 = vmatpush2.bf16.msra.mxu0 0
      %2160 = vmatprep.subr.bf16.mxu0 0
      %2161 = vmatpush2.bf16.msra.mxu0 0
      %2162 = vmatprep.subr.bf16.mxu0 0
      %2163 = vmatpush2.bf16.msra.mxu0 0
      %2164 = vmatprep.subr.bf16.mxu0 0
      %2165 = vmatpush2.bf16.msra.mxu0 0
      %2166 = vmatprep.subr.bf16.mxu0 0
      %2167 = vmatpush2.bf16.msra.mxu0 0
      %2168 = vmatprep.mubr.bf16.mxu0 0
      %2169 = vmatmul.mubr.bf16.gmra.mxu0 %v2087
      %v2170 = vpop.f32.mrf.mxu0
      %v2171 = vadd.f32 0.0, %v2170
      %v2172 = vpop.f32.mrf.mxu0
      %v2173 = vpop.f32.mrf.mxu0
      %v2174 = vpop.f32.mrf.mxu0
      %2175 = vdwg.mxu0
      %v2176 = vadd.f32 %v1978, %v2171
      %s2177 = scalar_lea.vmem %s5, 1
      %v2178 = vld [vmem:[%s2177] sm:$0x1]
      %s2179 = scalar_lea.vmem %s6, 64
      %v2180 = vld [vmem:[%s2179] sm:$0xff]
      %v2181 = vld [vmem:[%s2179 + $0x8] sm:$0xff]
      %v2182 = vld [vmem:[%s2179 + $0x10] sm:$0xff]
      %v2183 = vld [vmem:[%s2179 + $0x18] sm:$0xff]
      %v2184 = vld [vmem:[%s2179 + $0x20] sm:$0xff]
      %v2185 = vld [vmem:[%s2179 + $0x28] sm:$0xff]
      %v2186 = vld [vmem:[%s2179 + $0x30] sm:$0xff]
      %v2187 = vld [vmem:[%s2179 + $0x38] sm:$0xff]
      %s2188 = scalar_lea.vmem %s7, 32
      %v2189 = vld [vmem:[%s2188] sm:$0xf]
      %v2190 = vld [vmem:[%s2188 + $0x4] sm:$0xf]
      %v2191 = vld [vmem:[%s2188 + $0x8] sm:$0xf]
      %v2192 = vld [vmem:[%s2188 + $0xc] sm:$0xf]
      %v2193 = vld [vmem:[%s2188 + $0x10] sm:$0xf]
      %v2194 = vld [vmem:[%s2188 + $0x14] sm:$0xf]
      %v2195 = vld [vmem:[%s2188 + $0x18] sm:$0xf]
      %v2196 = vld [vmem:[%s2188 + $0x1c] sm:$0xf]
      %s2197 = scalar_lea.vmem %s8, 1
      %v2198 = vld [vmem:[%s2197] sm:$0x1]
      %s2199 = scalar_lea.vmem %s9, 64
      %v2200 = vld [vmem:[%s2199] sm:$0xff]
      %v2201 = vld [vmem:[%s2199 + $0x8] sm:$0xff]
      %v2202 = vld [vmem:[%s2199 + $0x10] sm:$0xff]
      %v2203 = vld [vmem:[%s2199 + $0x18] sm:$0xff]
      %v2204 = vld [vmem:[%s2199 + $0x20] sm:$0xff]
      %v2205 = vld [vmem:[%s2199 + $0x28] sm:$0xff]
      %v2206 = vld [vmem:[%s2199 + $0x30] sm:$0xff]
      %v2207 = vld [vmem:[%s2199 + $0x38] sm:$0xff]
      %s2208 = scalar_lea.vmem %s10, 64
      %v2209 = vld [vmem:[%s2208] sm:$0xf]
      %v2210 = vld [vmem:[%s2208 + $0x4] sm:$0xf]
      %v2211 = vld [vmem:[%s2208 + $0x8] sm:$0xf]
      %v2212 = vld [vmem:[%s2208 + $0xc] sm:$0xf]
      %v2213 = vld [vmem:[%s2208 + $0x10] sm:$0xf]
      %v2214 = vld [vmem:[%s2208 + $0x14] sm:$0xf]
      %v2215 = vld [vmem:[%s2208 + $0x18] sm:$0xf]
      %v2216 = vld [vmem:[%s2208 + $0x1c] sm:$0xf]
      %v2217 = vld [vmem:[%s2208 + $0x20] sm:$0xf]
      %v2218 = vld [vmem:[%s2208 + $0x24] sm:$0xf]
      %v2219 = vld [vmem:[%s2208 + $0x28] sm:$0xf]
      %v2220 = vld [vmem:[%s2208 + $0x2c] sm:$0xf]
      %v2221 = vld [vmem:[%s2208 + $0x30] sm:$0xf]
      %v2222 = vld [vmem:[%s2208 + $0x34] sm:$0xf]
      %v2223 = vld [vmem:[%s2208 + $0x38] sm:$0xf]
      %v2224 = vld [vmem:[%s2208 + $0x3c] sm:$0xf]
      %v2225 = vmul.f32 %v2176, %v2176
      %v2226 = vsel %vm992, %v2225, 0.0
      %2227 = vadd.xlane.f32.xlu0 %v2226
      %v2228 = vpop.xlane.xlu0 %2227
      %v2229 = vmul.f32 %v2228, %v996
      %v2230 = vadd.f32 %v2229, 1e-05
      %v2231 = vrsqrt.pop %v2230
      %v2232 = vmul.f32 %v2176, %v2231
      %v2234 = vlaneseq
      %v2235 = vshrl.u32 %v2234, 7
      %v2236 = vsub.s32 0, %v2235
      %v2237 = vrot.slane %v2178, %v2236
      %v2239 = vmul.f32 %v2232, %v2237
      %v2240 = vpack.c.bf16 %v2239, %v2239
      %v2249 = vunpack.c.l.b16 %v2180
      %v2250 = vunpack.c.h.b16 %v2180
      %v2251 = vunpack.c.l.b16 %v2181
      %v2252 = vunpack.c.h.b16 %v2181
      %v2253 = vunpack.c.l.b16 %v2182
      %v2254 = vunpack.c.h.b16 %v2182
      %v2255 = vunpack.c.l.b16 %v2183
      %v2256 = vunpack.c.h.b16 %v2183
      %v2257 = vunpack.c.l.b16 %v2184
      %v2258 = vunpack.c.h.b16 %v2184
      %v2259 = vunpack.c.l.b16 %v2185
      %v2260 = vunpack.c.h.b16 %v2185
      %v2261 = vunpack.c.l.b16 %v2186
      %v2262 = vunpack.c.h.b16 %v2186
      %v2263 = vunpack.c.l.b16 %v2187
      %v2264 = vunpack.c.h.b16 %v2187
      %v2265 = vpack.c.b16 %v2251, %v2249
      %v2266 = vpack.c.b16 %v2252, %v2250
      %v2267 = vpack.c.b16 %v2255, %v2253
      %v2268 = vpack.c.b16 %v2256, %v2254
      %v2269 = vpack.c.b16 %v2259, %v2257
      %v2270 = vpack.c.b16 %v2260, %v2258
      %v2271 = vpack.c.b16 %v2263, %v2261
      %v2272 = vpack.c.b16 %v2264, %v2262
      %v2282 = vsel %vm1108, %v2240, 0
      %2284 = vmatprep.subr.bf16.mxu0 0
      %2285 = vmatpush1.bf16.msra.mxu0 0
      %2286 = vmatprep.subr.bf16.mxu0 0
      %2287 = vmatpush1.bf16.msra.mxu0 0
      %2288 = vmatprep.subr.bf16.mxu0 0
      %2289 = vmatpush1.bf16.msra.mxu0 0
      %2290 = vmatprep.subr.bf16.mxu0 0
      %2291 = vmatpush1.bf16.msra.mxu0 0
      %2292 = vmatprep.subr.bf16.mxu0 %v2272
      %2293 = vmatpush1.bf16.msra.mxu0 %v2271
      %2294 = vmatprep.subr.bf16.mxu0 %v2270
      %2295 = vmatpush1.bf16.msra.mxu0 %v2269
      %2296 = vmatprep.subr.bf16.mxu0 %v2268
      %2297 = vmatpush1.bf16.msra.mxu0 %v2267
      %2298 = vmatprep.subr.bf16.mxu0 %v2266
      %2299 = vmatpush1.bf16.msra.mxu0 %v2265
      %2300 = vmatprep.subr.bf16.mxu0 0
      %2301 = vmatpush2.bf16.msra.mxu0 0
      %2302 = vmatprep.subr.bf16.mxu0 0
      %2303 = vmatpush2.bf16.msra.mxu0 0
      %2304 = vmatprep.subr.bf16.mxu0 0
      %2305 = vmatpush2.bf16.msra.mxu0 0
      %2306 = vmatprep.subr.bf16.mxu0 0
      %2307 = vmatpush2.bf16.msra.mxu0 0
      %2308 = vmatprep.subr.bf16.mxu0 0
      %2309 = vmatpush2.bf16.msra.mxu0 0
      %2310 = vmatprep.subr.bf16.mxu0 0
      %2311 = vmatpush2.bf16.msra.mxu0 0
      %2312 = vmatprep.subr.bf16.mxu0 0
      %2313 = vmatpush2.bf16.msra.mxu0 0
      %2314 = vmatprep.subr.bf16.mxu0 0
      %2315 = vmatpush2.bf16.msra.mxu0 0
      %2316 = vmatprep.mubr.bf16.mxu0 0
      %2317 = vmatmul.mubr.bf16.gmra.mxu0 %v2282
      %v2318 = vpop.f32.mrf.mxu0
      %v2319 = vadd.f32 0.0, %v2318
      %v2320 = vpop.f32.mrf.mxu0
      %v2321 = vadd.f32 0.0, %v2320
      %v2322 = vpop.f32.mrf.mxu0
      %v2323 = vpop.f32.mrf.mxu0
      %2324 = vdwg.mxu0
      %2326 = vrot.lane.b32.xlu0 %v2319, 112
      %v2327 = vpop.permute.xlu0 %2326
      %2329 = vrot.lane.b32.xlu0 %v2319, 96
      %v2330 = vpop.permute.xlu0 %2329
      %2332 = vrot.lane.b32.xlu0 %v2319, 80
      %v2333 = vpop.permute.xlu0 %2332
      %2335 = vrot.lane.b32.xlu0 %v2319, 64
      %v2336 = vpop.permute.xlu0 %2335
      %2338 = vrot.lane.b32.xlu0 %v2319, 48
      %v2339 = vpop.permute.xlu0 %2338
      %2341 = vrot.lane.b32.xlu0 %v2319, 32
      %v2342 = vpop.permute.xlu0 %2341
      %2344 = vrot.lane.b32.xlu0 %v2319, 16
      %v2345 = vpop.permute.xlu0 %2344
      %2348 = vrot.lane.b32.xlu0 %v2321, 112
      %v2349 = vpop.permute.xlu0 %2348
      %2351 = vrot.lane.b32.xlu0 %v2321, 96
      %v2352 = vpop.permute.xlu0 %2351
      %2354 = vrot.lane.b32.xlu0 %v2321, 80
      %v2355 = vpop.permute.xlu0 %2354
      %v2357 = vcombine.low %v2319, %v2330
      %v2359 = vunpack.c.l.s4 1983009808
      %v2360 = vunpack.c.0.s8 %v2359
      %v2361 = vlaneseq
      %v2362 = vshrl.u32 %v2361, 7
      %v2363 = vsub.s32 %v2360, %v2362
      %v2364 = vrot.slane %v2357, %v2363
      %v2365 = vcombine.low %v2327, %v2333
      %v2367 = vunpack.c.l.s4 1983009808
      %v2368 = vunpack.c.0.s8 %v2367
      %v2369 = vlaneseq
      %v2370 = vshrl.u32 %v2369, 7
      %v2371 = vsub.s32 %v2368, %v2370
      %v2372 = vrot.slane %v2365, %v2371
      %v2373 = vcombine.low %v2336, %v2342
      %v2375 = vunpack.c.l.s4 1983009808
      %v2376 = vunpack.c.0.s8 %v2375
      %v2377 = vlaneseq
      %v2378 = vshrl.u32 %v2377, 7
      %v2379 = vsub.s32 %v2376, %v2378
      %v2380 = vrot.slane %v2373, %v2379
      %v2381 = vcombine.low %v2339, %v2345
      %v2383 = vunpack.c.l.s4 1983009808
      %v2384 = vunpack.c.0.s8 %v2383
      %v2385 = vlaneseq
      %v2386 = vshrl.u32 %v2385, 7
      %v2387 = vsub.s32 %v2384, %v2386
      %v2388 = vrot.slane %v2381, %v2387
      %v2389 = vcombine.low %v2364, %v2372
      %v2390 = vcombine.high %v2364, %v2372
      %v2392 = vunpack.c.l.s4 1934713408
      %v2393 = vunpack.c.0.s8 %v2392
      %v2394 = vlaneseq
      %v2395 = vshrl.u32 %v2394, 7
      %v2396 = vsub.s32 %v2393, %v2395
      %v2397 = vrot.slane %v2389, %v2396
      %v2399 = vunpack.c.l.s4 1934713408
      %v2400 = vunpack.c.0.s8 %v2399
      %v2401 = vlaneseq
      %v2402 = vshrl.u32 %v2401, 7
      %v2403 = vsub.s32 %v2400, %v2402
      %v2404 = vrot.slane %v2390, %v2403
      %v2405 = vcombine.low %v2380, %v2388
      %v2406 = vcombine.high %v2380, %v2388
      %v2408 = vunpack.c.l.s4 1934713408
      %v2409 = vunpack.c.0.s8 %v2408
      %v2410 = vlaneseq
      %v2411 = vshrl.u32 %v2410, 7
      %v2412 = vsub.s32 %v2409, %v2411
      %v2413 = vrot.slane %v2405, %v2412
      %v2415 = vunpack.c.l.s4 1934713408
      %v2416 = vunpack.c.0.s8 %v2415
      %v2417 = vlaneseq
      %v2418 = vshrl.u32 %v2417, 7
      %v2419 = vsub.s32 %v2416, %v2418
      %v2420 = vrot.slane %v2406, %v2419
      %v2421 = vcombine.low %v2397, %v2413
      %v2422 = vcombine.high %v2397, %v2413
      %v2423 = vcombine.low %v2404, %v2420
      %v2424 = vcombine.high %v2404, %v2420
      %v2425 = vcombine.low %v2321, %v2352
      %v2427 = vunpack.c.l.s4 1983009808
      %v2428 = vunpack.c.0.s8 %v2427
      %v2429 = vlaneseq
      %v2430 = vshrl.u32 %v2429, 7
      %v2431 = vsub.s32 %v2428, %v2430
      %v2432 = vrot.slane %v2425, %v2431
      %v2433 = vcombine.low %v2349, %v2355
      %v2435 = vunpack.c.l.s4 1983009808
      %v2436 = vunpack.c.0.s8 %v2435
      %v2437 = vlaneseq
      %v2438 = vshrl.u32 %v2437, 7
      %v2439 = vsub.s32 %v2436, %v2438
      %v2440 = vrot.slane %v2433, %v2439
      %v2441 = vcombine.low %v2432, %v2440
      %v2442 = vcombine.high %v2432, %v2440
      %v2444 = vunpack.c.l.s4 1934713408
      %v2445 = vunpack.c.0.s8 %v2444
      %v2446 = vlaneseq
      %v2447 = vshrl.u32 %v2446, 7
      %v2448 = vsub.s32 %v2445, %v2447
      %v2449 = vrot.slane %v2441, %v2448
      %v2451 = vunpack.c.l.s4 1934713408
      %v2452 = vunpack.c.0.s8 %v2451
      %v2453 = vlaneseq
      %v2454 = vshrl.u32 %v2453, 7
      %v2455 = vsub.s32 %v2452, %v2454
      %v2456 = vrot.slane %v2442, %v2455
      %v2457 = vcombine.high %v2449, 0.0
      %v2458 = vcombine.high %v2456, 0.0
      %v2459 = vcombine.low %v2421, %v2423
      %v2460 = vcombine.high %v2421, %v2423
      %v2462 = vunpack.c.l.s4 1983009808
      %v2463 = vunpack.c.0.s8 %v2462
      %v2464 = vlaneseq
      %v2465 = vshrl.u32 %v2464, 7
      %v2466 = vsub.s32 %v2463, %v2465
      %v2467 = vrot.slane %v2459, %v2466
      %v2469 = vunpack.c.l.s4 1983009808
      %v2470 = vunpack.c.0.s8 %v2469
      %v2471 = vlaneseq
      %v2472 = vshrl.u32 %v2471, 7
      %v2473 = vsub.s32 %v2470, %v2472
      %v2474 = vrot.slane %v2460, %v2473
      %v2475 = vcombine.low %v2422, %v2424
      %v2476 = vcombine.high %v2422, %v2424
      %v2478 = vunpack.c.l.s4 1983009808
      %v2479 = vunpack.c.0.s8 %v2478
      %v2480 = vlaneseq
      %v2481 = vshrl.u32 %v2480, 7
      %v2482 = vsub.s32 %v2479, %v2481
      %v2483 = vrot.slane %v2475, %v2482
      %v2485 = vunpack.c.l.s4 1983009808
      %v2486 = vunpack.c.0.s8 %v2485
      %v2487 = vlaneseq
      %v2488 = vshrl.u32 %v2487, 7
      %v2489 = vsub.s32 %v2486, %v2488
      %v2490 = vrot.slane %v2476, %v2489
      %v2491 = vcombine.low %v2467, %v2483
      %v2492 = vcombine.high %v2467, %v2483
      %v2494 = vunpack.c.l.s4 1934713408
      %v2495 = vunpack.c.0.s8 %v2494
      %v2496 = vlaneseq
      %v2497 = vshrl.u32 %v2496, 7
      %v2498 = vsub.s32 %v2495, %v2497
      %v2499 = vrot.slane %v2491, %v2498
      %v2501 = vunpack.c.l.s4 1934713408
      %v2502 = vunpack.c.0.s8 %v2501
      %v2503 = vlaneseq
      %v2504 = vshrl.u32 %v2503, 7
      %v2505 = vsub.s32 %v2502, %v2504
      %v2506 = vrot.slane %v2492, %v2505
      %v2507 = vcombine.low %v2474, %v2490
      %v2508 = vcombine.high %v2474, %v2490
      %v2510 = vunpack.c.l.s4 1934713408
      %v2511 = vunpack.c.0.s8 %v2510
      %v2512 = vlaneseq
      %v2513 = vshrl.u32 %v2512, 7
      %v2514 = vsub.s32 %v2511, %v2513
      %v2515 = vrot.slane %v2507, %v2514
      %v2517 = vunpack.c.l.s4 1934713408
      %v2518 = vunpack.c.0.s8 %v2517
      %v2519 = vlaneseq
      %v2520 = vshrl.u32 %v2519, 7
      %v2521 = vsub.s32 %v2518, %v2520
      %v2522 = vrot.slane %v2508, %v2521
      %v2523 = vcombine.high %v2499, 0.0
      %v2524 = vcombine.high %v2506, 0.0
      %v2525 = vcombine.high %v2515, 0.0
      %v2526 = vcombine.high %v2522, 0.0
      %v2527 = vcombine.low %v2449, %v2456
      %v2529 = vunpack.c.l.s4 1983009808
      %v2530 = vunpack.c.0.s8 %v2529
      %v2531 = vlaneseq
      %v2532 = vshrl.u32 %v2531, 7
      %v2533 = vsub.s32 %v2530, %v2532
      %v2534 = vrot.slane %v2527, %v2533
      %v2535 = vcombine.low %v2457, %v2458
      %v2537 = vunpack.c.l.s4 1983009808
      %v2538 = vunpack.c.0.s8 %v2537
      %v2539 = vlaneseq
      %v2540 = vshrl.u32 %v2539, 7
      %v2541 = vsub.s32 %v2538, %v2540
      %v2542 = vrot.slane %v2535, %v2541
      %v2543 = vcombine.low %v2534, %v2542
      %v2544 = vcombine.high %v2534, %v2542
      %v2546 = vunpack.c.l.s4 1934713408
      %v2547 = vunpack.c.0.s8 %v2546
      %v2548 = vlaneseq
      %v2549 = vshrl.u32 %v2548, 7
      %v2550 = vsub.s32 %v2547, %v2549
      %v2551 = vrot.slane %v2543, %v2550
      %v2553 = vunpack.c.l.s4 1934713408
      %v2554 = vunpack.c.0.s8 %v2553
      %v2555 = vlaneseq
      %v2556 = vshrl.u32 %v2555, 7
      %v2557 = vsub.s32 %v2554, %v2556
      %v2558 = vrot.slane %v2544, %v2557
      %v2559 = vcombine.high %v2551, 0.0
      %v2560 = vcombine.high %v2558, 0.0
      %v2561 = vpack.c.bf16 %v2499, %v2499
      %v2562 = vpack.c.bf16 %v2523, %v2523
      %v2563 = vpack.c.bf16 %v2506, %v2506
      %v2564 = vpack.c.bf16 %v2524, %v2524
      %v2565 = vpack.c.bf16 %v2515, %v2515
      %v2566 = vpack.c.bf16 %v2525, %v2525
      %v2567 = vpack.c.bf16 %v2522, %v2522
      %v2568 = vpack.c.bf16 %v2526, %v2526
      %v2570 = vsel %vm1397, %v2561, 0
      %v2573 = vsel %vm1397, %v2565, 0
      %2575 = vmatprep.subr.bf16.mxu0 0
      %2576 = vmatpush1.bf16.xpose.msra.mxu0 0
      %2577 = vmatprep.subr.bf16.mxu0 0
      %2578 = vmatpush1.bf16.xpose.msra.mxu0 0
      %2579 = vmatprep.subr.bf16.mxu0 0
      %2580 = vmatpush1.bf16.xpose.msra.mxu0 0
      %2581 = vmatprep.subr.bf16.mxu0 0
      %2582 = vmatpush1.bf16.xpose.msra.mxu0 0
      %2583 = vmatprep.subr.bf16.mxu0 0
      %2584 = vmatpush1.bf16.xpose.msra.mxu0 0
      %2585 = vmatprep.subr.bf16.mxu0 0
      %2586 = vmatpush1.bf16.xpose.msra.mxu0 0
      %2587 = vmatprep.subr.bf16.mxu0 0
      %2588 = vmatpush1.bf16.xpose.msra.mxu0 0
      %2589 = vmatprep.subr.bf16.mxu0 0
      %2590 = vmatpush1.bf16.xpose.msra.mxu0 %v2573
      %2591 = vmatprep.subr.bf16.mxu0 0
      %2592 = vmatpush2.bf16.xpose.msra.mxu0 0
      %2593 = vmatprep.subr.bf16.mxu0 0
      %2594 = vmatpush2.bf16.xpose.msra.mxu0 0
      %2595 = vmatprep.subr.bf16.mxu0 0
      %2596 = vmatpush2.bf16.xpose.msra.mxu0 0
      %2597 = vmatprep.subr.bf16.mxu0 0
      %2598 = vmatpush2.bf16.xpose.msra.mxu0 0
      %2599 = vmatprep.subr.bf16.mxu0 0
      %2600 = vmatpush2.bf16.xpose.msra.mxu0 0
      %2601 = vmatprep.subr.bf16.mxu0 0
      %2602 = vmatpush2.bf16.xpose.msra.mxu0 0
      %2603 = vmatprep.subr.bf16.mxu0 0
      %2604 = vmatpush2.bf16.xpose.msra.mxu0 0
      %2605 = vmatprep.subr.bf16.mxu0 0
      %2606 = vmatpush2.bf16.xpose.msra.mxu0 0
      %2607 = vmatprep.mubr.bf16.mxu0 0
      %2608 = vmatmul.mubr.bf16.gmra.mxu0 %v2570
      %v2609 = vpop.f32.mrf.mxu0
      %v2610 = vadd.f32 0.0, %v2609
      %v2611 = vpop.f32.mrf.mxu0
      %v2612 = vpop.f32.mrf.mxu0
      %v2613 = vpop.f32.mrf.mxu0
      %2614 = vdwg.mxu0
      %v2616 = vsel %vm1397, %v2562, 0
      %v2619 = vsel %vm1397, %v2566, 0
      %2621 = vmatprep.subr.bf16.mxu0 0
      %2622 = vmatpush1.bf16.xpose.msra.mxu0 0
      %2623 = vmatprep.subr.bf16.mxu0 0
      %2624 = vmatpush1.bf16.xpose.msra.mxu0 0
      %2625 = vmatprep.subr.bf16.mxu0 0
      %2626 = vmatpush1.bf16.xpose.msra.mxu0 0
      %2627 = vmatprep.subr.bf16.mxu0 0
      %2628 = vmatpush1.bf16.xpose.msra.mxu0 0
      %2629 = vmatprep.subr.bf16.mxu0 0
      %2630 = vmatpush1.bf16.xpose.msra.mxu0 0
      %2631 = vmatprep.subr.bf16.mxu0 0
      %2632 = vmatpush1.bf16.xpose.msra.mxu0 0
      %2633 = vmatprep.subr.bf16.mxu0 0
      %2634 = vmatpush1.bf16.xpose.msra.mxu0 0
      %2635 = vmatprep.subr.bf16.mxu0 0
      %2636 = vmatpush1.bf16.xpose.msra.mxu0 %v2619
      %2637 = vmatprep.subr.bf16.mxu0 0
      %2638 = vmatpush2.bf16.xpose.msra.mxu0 0
      %2639 = vmatprep.subr.bf16.mxu0 0
      %2640 = vmatpush2.bf16.xpose.msra.mxu0 0
      %2641 = vmatprep.subr.bf16.mxu0 0
      %2642 = vmatpush2.bf16.xpose.msra.mxu0 0
      %2643 = vmatprep.subr.bf16.mxu0 0
      %2644 = vmatpush2.bf16.xpose.msra.mxu0 0
      %2645 = vmatprep.subr.bf16.mxu0 0
      %2646 = vmatpush2.bf16.xpose.msra.mxu0 0
      %2647 = vmatprep.subr.bf16.mxu0 0
      %2648 = vmatpush2.bf16.xpose.msra.mxu0 0
      %2649 = vmatprep.subr.bf16.mxu0 0
      %2650 = vmatpush2.bf16.xpose.msra.mxu0 0
      %2651 = vmatprep.subr.bf16.mxu0 0
      %2652 = vmatpush2.bf16.xpose.msra.mxu0 0
      %2653 = vmatprep.mubr.bf16.mxu0 0
      %2654 = vmatmul.mubr.bf16.gmra.mxu0 %v2616
      %v2655 = vpop.f32.mrf.mxu0
      %v2656 = vadd.f32 0.0, %v2655
      %v2657 = vpop.f32.mrf.mxu0
      %v2658 = vpop.f32.mrf.mxu0
      %v2659 = vpop.f32.mrf.mxu0
      %2660 = vdwg.mxu0
      %v2662 = vsel %vm1397, %v2563, 0
      %v2665 = vsel %vm1397, %v2567, 0
      %2667 = vmatprep.subr.bf16.mxu0 0
      %2668 = vmatpush1.bf16.xpose.msra.mxu0 0
      %2669 = vmatprep.subr.bf16.mxu0 0
      %2670 = vmatpush1.bf16.xpose.msra.mxu0 0
      %2671 = vmatprep.subr.bf16.mxu0 0
      %2672 = vmatpush1.bf16.xpose.msra.mxu0 0
      %2673 = vmatprep.subr.bf16.mxu0 0
      %2674 = vmatpush1.bf16.xpose.msra.mxu0 0
      %2675 = vmatprep.subr.bf16.mxu0 0
      %2676 = vmatpush1.bf16.xpose.msra.mxu0 0
      %2677 = vmatprep.subr.bf16.mxu0 0
      %2678 = vmatpush1.bf16.xpose.msra.mxu0 0
      %2679 = vmatprep.subr.bf16.mxu0 0
      %2680 = vmatpush1.bf16.xpose.msra.mxu0 0
      %2681 = vmatprep.subr.bf16.mxu0 0
      %2682 = vmatpush1.bf16.xpose.msra.mxu0 %v2665
      %2683 = vmatprep.subr.bf16.mxu0 0
      %2684 = vmatpush2.bf16.xpose.msra.mxu0 0
      %2685 = vmatprep.subr.bf16.mxu0 0
      %2686 = vmatpush2.bf16.xpose.msra.mxu0 0
      %2687 = vmatprep.subr.bf16.mxu0 0
      %2688 = vmatpush2.bf16.xpose.msra.mxu0 0
      %2689 = vmatprep.subr.bf16.mxu0 0
      %2690 = vmatpush2.bf16.xpose.msra.mxu0 0
      %2691 = vmatprep.subr.bf16.mxu0 0
      %2692 = vmatpush2.bf16.xpose.msra.mxu0 0
      %2693 = vmatprep.subr.bf16.mxu0 0
      %2694 = vmatpush2.bf16.xpose.msra.mxu0 0
      %2695 = vmatprep.subr.bf16.mxu0 0
      %2696 = vmatpush2.bf16.xpose.msra.mxu0 0
      %2697 = vmatprep.subr.bf16.mxu0 0
      %2698 = vmatpush2.bf16.xpose.msra.mxu0 0
      %2699 = vmatprep.mubr.bf16.mxu0 0
      %2700 = vmatmul.mubr.bf16.gmra.mxu0 %v2662
      %v2701 = vpop.f32.mrf.mxu0
      %v2702 = vadd.f32 0.0, %v2701
      %v2703 = vpop.f32.mrf.mxu0
      %v2704 = vpop.f32.mrf.mxu0
      %v2705 = vpop.f32.mrf.mxu0
      %2706 = vdwg.mxu0
      %v2708 = vsel %vm1397, %v2564, 0
      %v2711 = vsel %vm1397, %v2568, 0
      %2713 = vmatprep.subr.bf16.mxu0 0
      %2714 = vmatpush1.bf16.xpose.msra.mxu0 0
      %2715 = vmatprep.subr.bf16.mxu0 0
      %2716 = vmatpush1.bf16.xpose.msra.mxu0 0
      %2717 = vmatprep.subr.bf16.mxu0 0
      %2718 = vmatpush1.bf16.xpose.msra.mxu0 0
      %2719 = vmatprep.subr.bf16.mxu0 0
      %2720 = vmatpush1.bf16.xpose.msra.mxu0 0
      %2721 = vmatprep.subr.bf16.mxu0 0
      %2722 = vmatpush1.bf16.xpose.msra.mxu0 0
      %2723 = vmatprep.subr.bf16.mxu0 0
      %2724 = vmatpush1.bf16.xpose.msra.mxu0 0
      %2725 = vmatprep.subr.bf16.mxu0 0
      %2726 = vmatpush1.bf16.xpose.msra.mxu0 0
      %2727 = vmatprep.subr.bf16.mxu0 0
      %2728 = vmatpush1.bf16.xpose.msra.mxu0 %v2711
      %2729 = vmatprep.subr.bf16.mxu0 0
      %2730 = vmatpush2.bf16.xpose.msra.mxu0 0
      %2731 = vmatprep.subr.bf16.mxu0 0
      %2732 = vmatpush2.bf16.xpose.msra.mxu0 0
      %2733 = vmatprep.subr.bf16.mxu0 0
      %2734 = vmatpush2.bf16.xpose.msra.mxu0 0
      %2735 = vmatprep.subr.bf16.mxu0 0
      %2736 = vmatpush2.bf16.xpose.msra.mxu0 0
      %2737 = vmatprep.subr.bf16.mxu0 0
      %2738 = vmatpush2.bf16.xpose.msra.mxu0 0
      %2739 = vmatprep.subr.bf16.mxu0 0
      %2740 = vmatpush2.bf16.xpose.msra.mxu0 0
      %2741 = vmatprep.subr.bf16.mxu0 0
      %2742 = vmatpush2.bf16.xpose.msra.mxu0 0
      %2743 = vmatprep.subr.bf16.mxu0 0
      %2744 = vmatpush2.bf16.xpose.msra.mxu0 0
      %2745 = vmatprep.mubr.bf16.mxu0 0
      %2746 = vmatmul.mubr.bf16.gmra.mxu0 %v2708
      %v2747 = vpop.f32.mrf.mxu0
      %v2748 = vadd.f32 0.0, %v2747
      %v2749 = vpop.f32.mrf.mxu0
      %v2750 = vpop.f32.mrf.mxu0
      %v2751 = vpop.f32.mrf.mxu0
      %2752 = vdwg.mxu0
      %v2753 = vmul.f32 %v2610, 0.25
      %v2754 = vmul.f32 %v2656, 0.25
      %v2755 = vmul.f32 %v2702, 0.25
      %v2756 = vmul.f32 %v2748, 0.25
      %v2757 = vsel %vm1586, %v2753, -inf
      %2758 = vmax.xlane.f32.xlu0 %v2757
      %v2759 = vpop.xlane.xlu0 %2758
      %v2760 = vsel %vm1586, %v2754, -inf
      %2761 = vmax.xlane.f32.xlu0 %v2760
      %v2762 = vpop.xlane.xlu0 %2761
      %v2763 = vsel %vm1586, %v2755, -inf
      %2764 = vmax.xlane.f32.xlu0 %v2763
      %v2765 = vpop.xlane.xlu0 %2764
      %v2766 = vsel %vm1586, %v2756, -inf
      %2767 = vmax.xlane.f32.xlu0 %v2766
      %v2768 = vpop.xlane.xlu0 %2767
      %v2769 = vsub.f32 %v2753, %v2759
      %v2770 = vsub.f32 %v2754, %v2762
      %v2771 = vsub.f32 %v2755, %v2765
      %v2772 = vsub.f32 %v2756, %v2768
      %v2773 = vmul.f32 %v2769, 1.442695
      %v2774 = vpow.pop %v2773
      %v2775 = vmul.f32 %v2770, 1.442695
      %v2776 = vpow.pop %v2775
      %v2777 = vmul.f32 %v2771, 1.442695
      %v2778 = vpow.pop %v2777
      %v2779 = vmul.f32 %v2772, 1.442695
      %v2780 = vpow.pop %v2779
      %v2781 = vsel %vm1586, %v2774, 0.0
      %2782 = vadd.xlane.f32.xlu0 %v2781
      %v2783 = vpop.xlane.xlu0 %2782
      %v2784 = vsel %vm1586, %v2776, 0.0
      %2785 = vadd.xlane.f32.xlu0 %v2784
      %v2786 = vpop.xlane.xlu0 %2785
      %v2787 = vsel %vm1586, %v2778, 0.0
      %2788 = vadd.xlane.f32.xlu0 %v2787
      %v2789 = vpop.xlane.xlu0 %2788
      %v2790 = vsel %vm1586, %v2780, 0.0
      %2791 = vadd.xlane.f32.xlu0 %v2790
      %v2792 = vpop.xlane.xlu0 %2791
      %v2793 = vrcp.pop %v2783
      %v2794 = vrcp.pop %v2786
      %v2795 = vrcp.pop %v2789
      %v2796 = vrcp.pop %v2792
      %v2797 = vmul.f32 %v2774, %v2793
      %v2798 = vmul.f32 %v2776, %v2794
      %v2799 = vmul.f32 %v2778, %v2795
      %v2800 = vmul.f32 %v2780, %v2796
      %v2801 = vpack.c.bf16 %v2797, %v2797
      %v2802 = vpack.c.bf16 %v2798, %v2798
      %v2803 = vpack.c.bf16 %v2799, %v2799
      %v2804 = vpack.c.bf16 %v2800, %v2800
      %v2805 = vpack.c.bf16 %v2551, %v2551
      %v2806 = vpack.c.bf16 %v2559, %v2559
      %v2807 = vpack.c.bf16 %v2558, %v2558
      %v2808 = vpack.c.bf16 %v2560, %v2560
      %v2810 = vsel %vm1639, %v2801, 0
      %v2813 = vsel %vm1643, %v2805, 0
      %2815 = vmatprep.subr.bf16.mxu0 0
      %2816 = vmatpush1.bf16.msra.mxu0 0
      %2817 = vmatprep.subr.bf16.mxu0 0
      %2818 = vmatpush1.bf16.msra.mxu0 0
      %2819 = vmatprep.subr.bf16.mxu0 0
      %2820 = vmatpush1.bf16.msra.mxu0 0
      %2821 = vmatprep.subr.bf16.mxu0 0
      %2822 = vmatpush1.bf16.msra.mxu0 0
      %2823 = vmatprep.subr.bf16.mxu0 0
      %2824 = vmatpush1.bf16.msra.mxu0 0
      %2825 = vmatprep.subr.bf16.mxu0 0
      %2826 = vmatpush1.bf16.msra.mxu0 0
      %2827 = vmatprep.subr.bf16.mxu0 0
      %2828 = vmatpush1.bf16.msra.mxu0 0
      %2829 = vmatprep.subr.bf16.mxu0 0
      %2830 = vmatpush1.bf16.msra.mxu0 %v2813
      %2831 = vmatprep.subr.bf16.mxu0 0
      %2832 = vmatpush2.bf16.msra.mxu0 0
      %2833 = vmatprep.subr.bf16.mxu0 0
      %2834 = vmatpush2.bf16.msra.mxu0 0
      %2835 = vmatprep.subr.bf16.mxu0 0
      %2836 = vmatpush2.bf16.msra.mxu0 0
      %2837 = vmatprep.subr.bf16.mxu0 0
      %2838 = vmatpush2.bf16.msra.mxu0 0
      %2839 = vmatprep.subr.bf16.mxu0 0
      %2840 = vmatpush2.bf16.msra.mxu0 0
      %2841 = vmatprep.subr.bf16.mxu0 0
      %2842 = vmatpush2.bf16.msra.mxu0 0
      %2843 = vmatprep.subr.bf16.mxu0 0
      %2844 = vmatpush2.bf16.msra.mxu0 0
      %2845 = vmatprep.subr.bf16.mxu0 0
      %2846 = vmatpush2.bf16.msra.mxu0 0
      %2847 = vmatprep.mubr.bf16.mxu0 0
      %2848 = vmatmul.mubr.bf16.gmra.mxu0 %v2810
      %v2849 = vpop.f32.mrf.mxu0
      %v2850 = vadd.f32 0.0, %v2849
      %v2851 = vpop.f32.mrf.mxu0
      %v2852 = vpop.f32.mrf.mxu0
      %v2853 = vpop.f32.mrf.mxu0
      %2854 = vdwg.mxu0
      %v2856 = vsel %vm1639, %v2802, 0
      %v2859 = vsel %vm1643, %v2806, 0
      %2861 = vmatprep.subr.bf16.mxu0 0
      %2862 = vmatpush1.bf16.msra.mxu0 0
      %2863 = vmatprep.subr.bf16.mxu0 0
      %2864 = vmatpush1.bf16.msra.mxu0 0
      %2865 = vmatprep.subr.bf16.mxu0 0
      %2866 = vmatpush1.bf16.msra.mxu0 0
      %2867 = vmatprep.subr.bf16.mxu0 0
      %2868 = vmatpush1.bf16.msra.mxu0 0
      %2869 = vmatprep.subr.bf16.mxu0 0
      %2870 = vmatpush1.bf16.msra.mxu0 0
      %2871 = vmatprep.subr.bf16.mxu0 0
      %2872 = vmatpush1.bf16.msra.mxu0 0
      %2873 = vmatprep.subr.bf16.mxu0 0
      %2874 = vmatpush1.bf16.msra.mxu0 0
      %2875 = vmatprep.subr.bf16.mxu0 0
      %2876 = vmatpush1.bf16.msra.mxu0 %v2859
      %2877 = vmatprep.subr.bf16.mxu0 0
      %2878 = vmatpush2.bf16.msra.mxu0 0
      %2879 = vmatprep.subr.bf16.mxu0 0
      %2880 = vmatpush2.bf16.msra.mxu0 0
      %2881 = vmatprep.subr.bf16.mxu0 0
      %2882 = vmatpush2.bf16.msra.mxu0 0
      %2883 = vmatprep.subr.bf16.mxu0 0
      %2884 = vmatpush2.bf16.msra.mxu0 0
      %2885 = vmatprep.subr.bf16.mxu0 0
      %2886 = vmatpush2.bf16.msra.mxu0 0
      %2887 = vmatprep.subr.bf16.mxu0 0
      %2888 = vmatpush2.bf16.msra.mxu0 0
      %2889 = vmatprep.subr.bf16.mxu0 0
      %2890 = vmatpush2.bf16.msra.mxu0 0
      %2891 = vmatprep.subr.bf16.mxu0 0
      %2892 = vmatpush2.bf16.msra.mxu0 0
      %2893 = vmatprep.mubr.bf16.mxu0 0
      %2894 = vmatmul.mubr.bf16.gmra.mxu0 %v2856
      %v2895 = vpop.f32.mrf.mxu0
      %v2896 = vadd.f32 0.0, %v2895
      %v2897 = vpop.f32.mrf.mxu0
      %v2898 = vpop.f32.mrf.mxu0
      %v2899 = vpop.f32.mrf.mxu0
      %2900 = vdwg.mxu0
      %v2902 = vsel %vm1639, %v2803, 0
      %v2905 = vsel %vm1643, %v2807, 0
      %2907 = vmatprep.subr.bf16.mxu0 0
      %2908 = vmatpush1.bf16.msra.mxu0 0
      %2909 = vmatprep.subr.bf16.mxu0 0
      %2910 = vmatpush1.bf16.msra.mxu0 0
      %2911 = vmatprep.subr.bf16.mxu0 0
      %2912 = vmatpush1.bf16.msra.mxu0 0
      %2913 = vmatprep.subr.bf16.mxu0 0
      %2914 = vmatpush1.bf16.msra.mxu0 0
      %2915 = vmatprep.subr.bf16.mxu0 0
      %2916 = vmatpush1.bf16.msra.mxu0 0
      %2917 = vmatprep.subr.bf16.mxu0 0
      %2918 = vmatpush1.bf16.msra.mxu0 0
      %2919 = vmatprep.subr.bf16.mxu0 0
      %2920 = vmatpush1.bf16.msra.mxu0 0
      %2921 = vmatprep.subr.bf16.mxu0 0
      %2922 = vmatpush1.bf16.msra.mxu0 %v2905
      %2923 = vmatprep.subr.bf16.mxu0 0
      %2924 = vmatpush2.bf16.msra.mxu0 0
      %2925 = vmatprep.subr.bf16.mxu0 0
      %2926 = vmatpush2.bf16.msra.mxu0 0
      %2927 = vmatprep.subr.bf16.mxu0 0
      %2928 = vmatpush2.bf16.msra.mxu0 0
      %2929 = vmatprep.subr.bf16.mxu0 0
      %2930 = vmatpush2.bf16.msra.mxu0 0
      %2931 = vmatprep.subr.bf16.mxu0 0
      %2932 = vmatpush2.bf16.msra.mxu0 0
      %2933 = vmatprep.subr.bf16.mxu0 0
      %2934 = vmatpush2.bf16.msra.mxu0 0
      %2935 = vmatprep.subr.bf16.mxu0 0
      %2936 = vmatpush2.bf16.msra.mxu0 0
      %2937 = vmatprep.subr.bf16.mxu0 0
      %2938 = vmatpush2.bf16.msra.mxu0 0
      %2939 = vmatprep.mubr.bf16.mxu0 0
      %2940 = vmatmul.mubr.bf16.gmra.mxu0 %v2902
      %v2941 = vpop.f32.mrf.mxu0
      %v2942 = vadd.f32 0.0, %v2941
      %v2943 = vpop.f32.mrf.mxu0
      %v2944 = vpop.f32.mrf.mxu0
      %v2945 = vpop.f32.mrf.mxu0
      %2946 = vdwg.mxu0
      %v2948 = vsel %vm1639, %v2804, 0
      %v2951 = vsel %vm1643, %v2808, 0
      %2953 = vmatprep.subr.bf16.mxu0 0
      %2954 = vmatpush1.bf16.msra.mxu0 0
      %2955 = vmatprep.subr.bf16.mxu0 0
      %2956 = vmatpush1.bf16.msra.mxu0 0
      %2957 = vmatprep.subr.bf16.mxu0 0
      %2958 = vmatpush1.bf16.msra.mxu0 0
      %2959 = vmatprep.subr.bf16.mxu0 0
      %2960 = vmatpush1.bf16.msra.mxu0 0
      %2961 = vmatprep.subr.bf16.mxu0 0
      %2962 = vmatpush1.bf16.msra.mxu0 0
      %2963 = vmatprep.subr.bf16.mxu0 0
      %2964 = vmatpush1.bf16.msra.mxu0 0
      %2965 = vmatprep.subr.bf16.mxu0 0
      %2966 = vmatpush1.bf16.msra.mxu0 0
      %2967 = vmatprep.subr.bf16.mxu0 0
      %2968 = vmatpush1.bf16.msra.mxu0 %v2951
      %2969 = vmatprep.subr.bf16.mxu0 0
      %2970 = vmatpush2.bf16.msra.mxu0 0
      %2971 = vmatprep.subr.bf16.mxu0 0
      %2972 = vmatpush2.bf16.msra.mxu0 0
      %2973 = vmatprep.subr.bf16.mxu0 0
      %2974 = vmatpush2.bf16.msra.mxu0 0
      %2975 = vmatprep.subr.bf16.mxu0 0
      %2976 = vmatpush2.bf16.msra.mxu0 0
      %2977 = vmatprep.subr.bf16.mxu0 0
      %2978 = vmatpush2.bf16.msra.mxu0 0
      %2979 = vmatprep.subr.bf16.mxu0 0
      %2980 = vmatpush2.bf16.msra.mxu0 0
      %2981 = vmatprep.subr.bf16.mxu0 0
      %2982 = vmatpush2.bf16.msra.mxu0 0
      %2983 = vmatprep.subr.bf16.mxu0 0
      %2984 = vmatpush2.bf16.msra.mxu0 0
      %2985 = vmatprep.mubr.bf16.mxu0 0
      %2986 = vmatmul.mubr.bf16.gmra.mxu0 %v2948
      %v2987 = vpop.f32.mrf.mxu0
      %v2988 = vadd.f32 0.0, %v2987
      %v2989 = vpop.f32.mrf.mxu0
      %v2990 = vpop.f32.mrf.mxu0
      %v2991 = vpop.f32.mrf.mxu0
      %2992 = vdwg.mxu0
      %v2993 = vcombine.low %v2850, %v2942
      %v2995 = vunpack.c.l.s4 1983009808
      %v2996 = vunpack.c.0.s8 %v2995
      %v2997 = vlaneseq
      %v2998 = vshrl.u32 %v2997, 7
      %v2999 = vsub.s32 %v2996, %v2998
      %v3000 = vrot.slane %v2993, %v2999
      %v3001 = vcombine.low %v2896, %v2988
      %v3003 = vunpack.c.l.s4 1983009808
      %v3004 = vunpack.c.0.s8 %v3003
      %v3005 = vlaneseq
      %v3006 = vshrl.u32 %v3005, 7
      %v3007 = vsub.s32 %v3004, %v3006
      %v3008 = vrot.slane %v3001, %v3007
      %v3009 = vcombine.low %v3000, %v3008
      %v3010 = vcombine.high %v3000, %v3008
      %v3012 = vunpack.c.l.s4 1934713408
      %v3013 = vunpack.c.0.s8 %v3012
      %v3014 = vlaneseq
      %v3015 = vshrl.u32 %v3014, 7
      %v3016 = vsub.s32 %v3013, %v3015
      %v3017 = vrot.slane %v3009, %v3016
      %v3019 = vunpack.c.l.s4 1934713408
      %v3020 = vunpack.c.0.s8 %v3019
      %v3021 = vlaneseq
      %v3022 = vshrl.u32 %v3021, 7
      %v3023 = vsub.s32 %v3020, %v3022
      %v3024 = vrot.slane %v3010, %v3023
      %v3025 = vcombine.high %v3017, 0.0
      %v3026 = vcombine.high %v3024, 0.0
      %v3027 = vcombine.low %v3017, %v3024
      %v3029 = vunpack.c.l.s4 1983009808
      %v3030 = vunpack.c.0.s8 %v3029
      %v3031 = vlaneseq
      %v3032 = vshrl.u32 %v3031, 7
      %v3033 = vsub.s32 %v3030, %v3032
      %v3034 = vrot.slane %v3027, %v3033
      %v3035 = vcombine.low %v3025, %v3026
      %v3037 = vunpack.c.l.s4 1983009808
      %v3038 = vunpack.c.0.s8 %v3037
      %v3039 = vlaneseq
      %v3040 = vshrl.u32 %v3039, 7
      %v3041 = vsub.s32 %v3038, %v3040
      %v3042 = vrot.slane %v3035, %v3041
      %v3043 = vcombine.low %v3034, %v3042
      %v3044 = vcombine.high %v3034, %v3042
      %v3046 = vunpack.c.l.s4 1934713408
      %v3047 = vunpack.c.0.s8 %v3046
      %v3048 = vlaneseq
      %v3049 = vshrl.u32 %v3048, 7
      %v3050 = vsub.s32 %v3047, %v3049
      %v3051 = vrot.slane %v3043, %v3050
      %v3053 = vunpack.c.l.s4 1934713408
      %v3054 = vunpack.c.0.s8 %v3053
      %v3055 = vlaneseq
      %v3056 = vshrl.u32 %v3055, 7
      %v3057 = vsub.s32 %v3054, %v3056
      %v3058 = vrot.slane %v3044, %v3057
      %v3059 = vcombine.high %v3051, 0.0
      %v3060 = vcombine.high %v3058, 0.0
      %3062 = vrot.lane.b32.xlu0 %v3059, 16
      %v3063 = vpop.permute.xlu0 %3062
      %3066 = vrot.lane.b32.xlu0 %v3058, 32
      %v3067 = vpop.permute.xlu0 %3066
      %3070 = vrot.lane.b32.xlu0 %v3060, 48
      %v3071 = vpop.permute.xlu0 %3070
      %v3073 = vsel %vm1397, %v3051, %v3063
      %v3074 = vsel %vm1906, %v3073, %v3067
      %v3075 = vsel %vm1908, %v3074, %v3071
      %v3076 = vpack.c.bf16 %v3075, %v3075
      %v3085 = vunpack.c.l.b16 %v2189
      %v3086 = vunpack.c.l.b16 %v2190
      %v3087 = vunpack.c.l.b16 %v2191
      %v3088 = vunpack.c.l.b16 %v2192
      %v3089 = vunpack.c.l.b16 %v2193
      %v3090 = vunpack.c.l.b16 %v2194
      %v3091 = vunpack.c.l.b16 %v2195
      %v3092 = vunpack.c.l.b16 %v2196
      %v3093 = vpack.c.b16 %v3086, %v3085
      %v3094 = vpack.c.b16 %v3088, %v3087
      %v3095 = vpack.c.b16 %v3090, %v3089
      %v3096 = vpack.c.b16 %v3092, %v3091
      %v3102 = vsel %vm1108, %v3076, 0
      %3104 = vmatprep.subr.bf16.mxu0 0
      %3105 = vmatpush1.bf16.msra.mxu0 0
      %3106 = vmatprep.subr.bf16.mxu0 0
      %3107 = vmatpush1.bf16.msra.mxu0 0
      %3108 = vmatprep.subr.bf16.mxu0 0
      %3109 = vmatpush1.bf16.msra.mxu0 0
      %3110 = vmatprep.subr.bf16.mxu0 0
      %3111 = vmatpush1.bf16.msra.mxu0 0
      %3112 = vmatprep.subr.bf16.mxu0 0
      %3113 = vmatpush1.bf16.msra.mxu0 %v3096
      %3114 = vmatprep.subr.bf16.mxu0 0
      %3115 = vmatpush1.bf16.msra.mxu0 %v3095
      %3116 = vmatprep.subr.bf16.mxu0 0
      %3117 = vmatpush1.bf16.msra.mxu0 %v3094
      %3118 = vmatprep.subr.bf16.mxu0 0
      %3119 = vmatpush1.bf16.msra.mxu0 %v3093
      %3120 = vmatprep.subr.bf16.mxu0 0
      %3121 = vmatpush2.bf16.msra.mxu0 0
      %3122 = vmatprep.subr.bf16.mxu0 0
      %3123 = vmatpush2.bf16.msra.mxu0 0
      %3124 = vmatprep.subr.bf16.mxu0 0
      %3125 = vmatpush2.bf16.msra.mxu0 0
      %3126 = vmatprep.subr.bf16.mxu0 0
      %3127 = vmatpush2.bf16.msra.mxu0 0
      %3128 = vmatprep.subr.bf16.mxu0 0
      %3129 = vmatpush2.bf16.msra.mxu0 0
      %3130 = vmatprep.subr.bf16.mxu0 0
      %3131 = vmatpush2.bf16.msra.mxu0 0
      %3132 = vmatprep.subr.bf16.mxu0 0
      %3133 = vmatpush2.bf16.msra.mxu0 0
      %3134 = vmatprep.subr.bf16.mxu0 0
      %3135 = vmatpush2.bf16.msra.mxu0 0
      %3136 = vmatprep.mubr.bf16.mxu0 0
      %3137 = vmatmul.mubr.bf16.gmra.mxu0 %v3102
      %v3138 = vpop.f32.mrf.mxu0
      %v3139 = vadd.f32 0.0, %v3138
      %v3140 = vpop.f32.mrf.mxu0
      %v3141 = vpop.f32.mrf.mxu0
      %v3142 = vpop.f32.mrf.mxu0
      %3143 = vdwg.mxu0
      %v3144 = vadd.f32 %v2176, %v3139
      %v3145 = vmul.f32 %v3144, %v3144
      %v3146 = vsel %vm992, %v3145, 0.0
      %3147 = vadd.xlane.f32.xlu0 %v3146
      %v3148 = vpop.xlane.xlu0 %3147
      %v3149 = vmul.f32 %v3148, %v996
      %v3150 = vadd.f32 %v3149, 1e-05
      %v3151 = vrsqrt.pop %v3150
      %v3152 = vmul.f32 %v3144, %v3151
      %v3154 = vlaneseq
      %v3155 = vshrl.u32 %v3154, 7
      %v3156 = vsub.s32 0, %v3155
      %v3157 = vrot.slane %v2198, %v3156
      %v3159 = vmul.f32 %v3152, %v3157
      %v3160 = vpack.c.bf16 %v3159, %v3159
      %v3169 = vunpack.c.l.b16 %v2200
      %v3170 = vunpack.c.h.b16 %v2200
      %v3171 = vunpack.c.l.b16 %v2201
      %v3172 = vunpack.c.h.b16 %v2201
      %v3173 = vunpack.c.l.b16 %v2202
      %v3174 = vunpack.c.h.b16 %v2202
      %v3175 = vunpack.c.l.b16 %v2203
      %v3176 = vunpack.c.h.b16 %v2203
      %v3177 = vunpack.c.l.b16 %v2204
      %v3178 = vunpack.c.h.b16 %v2204
      %v3179 = vunpack.c.l.b16 %v2205
      %v3180 = vunpack.c.h.b16 %v2205
      %v3181 = vunpack.c.l.b16 %v2206
      %v3182 = vunpack.c.h.b16 %v2206
      %v3183 = vunpack.c.l.b16 %v2207
      %v3184 = vunpack.c.h.b16 %v2207
      %v3185 = vpack.c.b16 %v3171, %v3169
      %v3186 = vpack.c.b16 %v3172, %v3170
      %v3187 = vpack.c.b16 %v3175, %v3173
      %v3188 = vpack.c.b16 %v3176, %v3174
      %v3189 = vpack.c.b16 %v3179, %v3177
      %v3190 = vpack.c.b16 %v3180, %v3178
      %v3191 = vpack.c.b16 %v3183, %v3181
      %v3192 = vpack.c.b16 %v3184, %v3182
      %v3202 = vsel %vm1108, %v3160, 0
      %3204 = vmatprep.subr.bf16.mxu0 0
      %3205 = vmatpush1.bf16.msra.mxu0 0
      %3206 = vmatprep.subr.bf16.mxu0 0
      %3207 = vmatpush1.bf16.msra.mxu0 0
      %3208 = vmatprep.subr.bf16.mxu0 0
      %3209 = vmatpush1.bf16.msra.mxu0 0
      %3210 = vmatprep.subr.bf16.mxu0 0
      %3211 = vmatpush1.bf16.msra.mxu0 0
      %3212 = vmatprep.subr.bf16.mxu0 %v3192
      %3213 = vmatpush1.bf16.msra.mxu0 %v3191
      %3214 = vmatprep.subr.bf16.mxu0 %v3190
      %3215 = vmatpush1.bf16.msra.mxu0 %v3189
      %3216 = vmatprep.subr.bf16.mxu0 %v3188
      %3217 = vmatpush1.bf16.msra.mxu0 %v3187
      %3218 = vmatprep.subr.bf16.mxu0 %v3186
      %3219 = vmatpush1.bf16.msra.mxu0 %v3185
      %3220 = vmatprep.subr.bf16.mxu0 0
      %3221 = vmatpush2.bf16.msra.mxu0 0
      %3222 = vmatprep.subr.bf16.mxu0 0
      %3223 = vmatpush2.bf16.msra.mxu0 0
      %3224 = vmatprep.subr.bf16.mxu0 0
      %3225 = vmatpush2.bf16.msra.mxu0 0
      %3226 = vmatprep.subr.bf16.mxu0 0
      %3227 = vmatpush2.bf16.msra.mxu0 0
      %3228 = vmatprep.subr.bf16.mxu0 0
      %3229 = vmatpush2.bf16.msra.mxu0 0
      %3230 = vmatprep.subr.bf16.mxu0 0
      %3231 = vmatpush2.bf16.msra.mxu0 0
      %3232 = vmatprep.subr.bf16.mxu0 0
      %3233 = vmatpush2.bf16.msra.mxu0 0
      %3234 = vmatprep.subr.bf16.mxu0 0
      %3235 = vmatpush2.bf16.msra.mxu0 0
      %3236 = vmatprep.mubr.bf16.mxu0 0
      %3237 = vmatmul.mubr.bf16.gmra.mxu0 %v3202
      %v3238 = vpop.f32.mrf.mxu0
      %v3239 = vadd.f32 0.0, %v3238
      %v3240 = vpop.f32.mrf.mxu0
      %v3241 = vadd.f32 0.0, %v3240
      %v3242 = vpop.f32.mrf.mxu0
      %v3243 = vpop.f32.mrf.mxu0
      %3244 = vdwg.mxu0
      %v3245 = vxor.u32 %v3239, 2147483648
      %v3246 = vmul.f32 %v3245, 1.442695
      %v3247 = vpow.pop %v3246
      %v3248 = vadd.f32 %v3247, 1.0
      %v3249 = vrcp.pop %v3248
      %v3250 = vmul.f32 1.0, %v3249
      %v3251 = vmul.f32 %v3239, %v3250
      %v3252 = vmul.f32 %v3251, %v3241
      %v3253 = vpack.c.bf16 %v3252, %v3252
      %v3270 = vunpack.c.l.b16 %v2209
      %v3271 = vunpack.c.l.b16 %v2210
      %v3272 = vunpack.c.l.b16 %v2211
      %v3273 = vunpack.c.l.b16 %v2212
      %v3274 = vunpack.c.l.b16 %v2213
      %v3275 = vunpack.c.l.b16 %v2214
      %v3276 = vunpack.c.l.b16 %v2215
      %v3277 = vunpack.c.l.b16 %v2216
      %v3278 = vunpack.c.l.b16 %v2217
      %v3279 = vunpack.c.l.b16 %v2218
      %v3280 = vunpack.c.l.b16 %v2219
      %v3281 = vunpack.c.l.b16 %v2220
      %v3282 = vunpack.c.l.b16 %v2221
      %v3283 = vunpack.c.l.b16 %v2222
      %v3284 = vunpack.c.l.b16 %v2223
      %v3285 = vunpack.c.l.b16 %v2224
      %v3286 = vpack.c.b16 %v3271, %v3270
      %v3287 = vpack.c.b16 %v3273, %v3272
      %v3288 = vpack.c.b16 %v3275, %v3274
      %v3289 = vpack.c.b16 %v3277, %v3276
      %v3290 = vpack.c.b16 %v3279, %v3278
      %v3291 = vpack.c.b16 %v3281, %v3280
      %v3292 = vpack.c.b16 %v3283, %v3282
      %v3293 = vpack.c.b16 %v3285, %v3284
      %3302 = vmatprep.subr.bf16.mxu0 0
      %3303 = vmatpush1.bf16.msra.mxu0 %v3293
      %3304 = vmatprep.subr.bf16.mxu0 0
      %3305 = vmatpush1.bf16.msra.mxu0 %v3292
      %3306 = vmatprep.subr.bf16.mxu0 0
      %3307 = vmatpush1.bf16.msra.mxu0 %v3291
      %3308 = vmatprep.subr.bf16.mxu0 0
      %3309 = vmatpush1.bf16.msra.mxu0 %v3290
      %3310 = vmatprep.subr.bf16.mxu0 0
      %3311 = vmatpush1.bf16.msra.mxu0 %v3289
      %3312 = vmatprep.subr.bf16.mxu0 0
      %3313 = vmatpush1.bf16.msra.mxu0 %v3288
      %3314 = vmatprep.subr.bf16.mxu0 0
      %3315 = vmatpush1.bf16.msra.mxu0 %v3287
      %3316 = vmatprep.subr.bf16.mxu0 0
      %3317 = vmatpush1.bf16.msra.mxu0 %v3286
      %3318 = vmatprep.subr.bf16.mxu0 0
      %3319 = vmatpush2.bf16.msra.mxu0 0
      %3320 = vmatprep.subr.bf16.mxu0 0
      %3321 = vmatpush2.bf16.msra.mxu0 0
      %3322 = vmatprep.subr.bf16.mxu0 0
      %3323 = vmatpush2.bf16.msra.mxu0 0
      %3324 = vmatprep.subr.bf16.mxu0 0
      %3325 = vmatpush2.bf16.msra.mxu0 0
      %3326 = vmatprep.subr.bf16.mxu0 0
      %3327 = vmatpush2.bf16.msra.mxu0 0
      %3328 = vmatprep.subr.bf16.mxu0 0
      %3329 = vmatpush2.bf16.msra.mxu0 0
      %3330 = vmatprep.subr.bf16.mxu0 0
      %3331 = vmatpush2.bf16.msra.mxu0 0
      %3332 = vmatprep.subr.bf16.mxu0 0
      %3333 = vmatpush2.bf16.msra.mxu0 0
      %3334 = vmatprep.mubr.bf16.mxu0 0
      %3335 = vmatmul.mubr.bf16.gmra.mxu0 %v3253
      %v3336 = vpop.f32.mrf.mxu0
      %v3337 = vadd.f32 0.0, %v3336
      %v3338 = vpop.f32.mrf.mxu0
      %v3339 = vpop.f32.mrf.mxu0
      %v3340 = vpop.f32.mrf.mxu0
      %3341 = vdwg.mxu0
      %v3342 = vadd.f32 %v3144, %v3337
      %v3343 = vld [vmem:[%s11] sm:$0x1]
      %v3344 = vmul.f32 %v3342, %v3342
      %v3345 = vsel %vm992, %v3344, 0.0
      %3346 = vadd.xlane.f32.xlu0 %v3345
      %v3347 = vpop.xlane.xlu0 %3346
      %v3348 = vmul.f32 %v3347, %v996
      %v3349 = vadd.f32 %v3348, 1e-05
      %v3350 = vrsqrt.pop %v3349
      %v3351 = vmul.f32 %v3342, %v3350
      %v3353 = vlaneseq
      %v3354 = vshrl.u32 %v3353, 7
      %v3355 = vsub.s32 0, %v3354
      %v3356 = vrot.slane %v3343, %v3355
      %v3358 = vmul.f32 %v3351, %v3356
      %v3359 = vmul.f32 %v3358, 0.9999995
      %v3360 = vpack.c.bf16 %v3359, %v3359
      %v3361 = vld [vmem:[%s13] sm:$0xf]
      %v3362 = vld [vmem:[%s13 + $0x4] sm:$0xf]
      %v3363 = vld [vmem:[%s13 + $0x8] sm:$0xf]
      %v3364 = vld [vmem:[%s13 + $0xc] sm:$0xf]
      %v3365 = vld [vmem:[%s13 + $0x10] sm:$0xf]
      %v3366 = vld [vmem:[%s13 + $0x14] sm:$0xf]
      %v3367 = vld [vmem:[%s13 + $0x18] sm:$0xf]
      %v3368 = vld [vmem:[%s13 + $0x1c] sm:$0xf]
      %v3377 = vunpack.c.l.b16 %v3361
      %v3378 = vunpack.c.l.b16 %v3362
      %v3379 = vunpack.c.l.b16 %v3363
      %v3380 = vunpack.c.l.b16 %v3364
      %v3381 = vunpack.c.l.b16 %v3365
      %v3382 = vunpack.c.l.b16 %v3366
      %v3383 = vunpack.c.l.b16 %v3367
      %v3384 = vunpack.c.l.b16 %v3368
      %v3385 = vpack.c.b16 %v3378, %v3377
      %v3386 = vpack.c.b16 %v3380, %v3379
      %v3387 = vpack.c.b16 %v3382, %v3381
      %v3388 = vpack.c.b16 %v3384, %v3383
      %v3394 = vsel %vm1108, %v3360, 0
      %3396 = vmatprep.subr.bf16.mxu0 0
      %3397 = vmatpush1.bf16.msra.mxu0 0
      %3398 = vmatprep.subr.bf16.mxu0 0
      %3399 = vmatpush1.bf16.msra.mxu0 0
      %3400 = vmatprep.subr.bf16.mxu0 0
      %3401 = vmatpush1.bf16.msra.mxu0 0
      %3402 = vmatprep.subr.bf16.mxu0 0
      %3403 = vmatpush1.bf16.msra.mxu0 0
      %3404 = vmatprep.subr.bf16.mxu0 0
      %3405 = vmatpush1.bf16.msra.mxu0 %v3388
      %3406 = vmatprep.subr.bf16.mxu0 0
      %3407 = vmatpush1.bf16.msra.mxu0 %v3387
      %3408 = vmatprep.subr.bf16.mxu0 0
      %3409 = vmatpush1.bf16.msra.mxu0 %v3386
      %3410 = vmatprep.subr.bf16.mxu0 0
      %3411 = vmatpush1.bf16.msra.mxu0 %v3385
      %3412 = vmatprep.subr.bf16.mxu0 0
      %3413 = vmatpush2.bf16.msra.mxu0 0
      %3414 = vmatprep.subr.bf16.mxu0 0
      %3415 = vmatpush2.bf16.msra.mxu0 0
      %3416 = vmatprep.subr.bf16.mxu0 0
      %3417 = vmatpush2.bf16.msra.mxu0 0
      %3418 = vmatprep.subr.bf16.mxu0 0
      %3419 = vmatpush2.bf16.msra.mxu0 0
      %3420 = vmatprep.subr.bf16.mxu0 0
      %3421 = vmatpush2.bf16.msra.mxu0 0
      %3422 = vmatprep.subr.bf16.mxu0 0
      %3423 = vmatpush2.bf16.msra.mxu0 0
      %3424 = vmatprep.subr.bf16.mxu0 0
      %3425 = vmatpush2.bf16.msra.mxu0 0
      %3426 = vmatprep.subr.bf16.mxu0 0
      %3427 = vmatpush2.bf16.msra.mxu0 0
      %3428 = vmatprep.mubr.bf16.mxu0 0
      %3429 = vmatmul.mubr.bf16.gmra.mxu0 %v3394
      %v3430 = vpop.f32.mrf.mxu0
      %v3431 = vadd.f32 0.0, %v3430
      %v3432 = vpop.f32.mrf.mxu0
      %v3433 = vpop.f32.mrf.mxu0
      %v3434 = vpop.f32.mrf.mxu0
      %3435 = vdwg.mxu0
      %3437 = vrot.lane.b32.xlu0 %v3431, 112
      %v3438 = vpop.permute.xlu0 %3437
      %3440 = vrot.lane.b32.xlu0 %v3431, 96
      %v3441 = vpop.permute.xlu0 %3440
      %3443 = vrot.lane.b32.xlu0 %v3431, 80
      %v3444 = vpop.permute.xlu0 %3443
      %3446 = vrot.lane.b32.xlu0 %v3431, 64
      %v3447 = vpop.permute.xlu0 %3446
      %3449 = vrot.lane.b32.xlu0 %v3431, 48
      %v3450 = vpop.permute.xlu0 %3449
      %3452 = vrot.lane.b32.xlu0 %v3431, 32
      %v3453 = vpop.permute.xlu0 %3452
      %3455 = vrot.lane.b32.xlu0 %v3431, 16
      %v3456 = vpop.permute.xlu0 %3455
      %v3458 = vcombine.low %v3431, %v3441
      %v3460 = vunpack.c.l.s4 1983009808
      %v3461 = vunpack.c.0.s8 %v3460
      %v3462 = vlaneseq
      %v3463 = vshrl.u32 %v3462, 7
      %v3464 = vsub.s32 %v3461, %v3463
      %v3465 = vrot.slane %v3458, %v3464
      %v3466 = vcombine.low %v3438, %v3444
      %v3468 = vunpack.c.l.s4 1983009808
      %v3469 = vunpack.c.0.s8 %v3468
      %v3470 = vlaneseq
      %v3471 = vshrl.u32 %v3470, 7
      %v3472 = vsub.s32 %v3469, %v3471
      %v3473 = vrot.slane %v3466, %v3472
      %v3474 = vcombine.low %v3447, %v3453
      %v3476 = vunpack.c.l.s4 1983009808
      %v3477 = vunpack.c.0.s8 %v3476
      %v3478 = vlaneseq
      %v3479 = vshrl.u32 %v3478, 7
      %v3480 = vsub.s32 %v3477, %v3479
      %v3481 = vrot.slane %v3474, %v3480
      %v3482 = vcombine.low %v3450, %v3456
      %v3484 = vunpack.c.l.s4 1983009808
      %v3485 = vunpack.c.0.s8 %v3484
      %v3486 = vlaneseq
      %v3487 = vshrl.u32 %v3486, 7
      %v3488 = vsub.s32 %v3485, %v3487
      %v3489 = vrot.slane %v3482, %v3488
      %v3490 = vcombine.low %v3465, %v3473
      %v3491 = vcombine.high %v3465, %v3473
      %v3493 = vunpack.c.l.s4 1934713408
      %v3494 = vunpack.c.0.s8 %v3493
      %v3495 = vlaneseq
      %v3496 = vshrl.u32 %v3495, 7
      %v3497 = vsub.s32 %v3494, %v3496
      %v3498 = vrot.slane %v3490, %v3497
      %v3500 = vunpack.c.l.s4 1934713408
      %v3501 = vunpack.c.0.s8 %v3500
      %v3502 = vlaneseq
      %v3503 = vshrl.u32 %v3502, 7
      %v3504 = vsub.s32 %v3501, %v3503
      %v3505 = vrot.slane %v3491, %v3504
      %v3506 = vcombine.low %v3481, %v3489
      %v3507 = vcombine.high %v3481, %v3489
      %v3509 = vunpack.c.l.s4 1934713408
      %v3510 = vunpack.c.0.s8 %v3509
      %v3511 = vlaneseq
      %v3512 = vshrl.u32 %v3511, 7
      %v3513 = vsub.s32 %v3510, %v3512
      %v3514 = vrot.slane %v3506, %v3513
      %v3516 = vunpack.c.l.s4 1934713408
      %v3517 = vunpack.c.0.s8 %v3516
      %v3518 = vlaneseq
      %v3519 = vshrl.u32 %v3518, 7
      %v3520 = vsub.s32 %v3517, %v3519
      %v3521 = vrot.slane %v3507, %v3520
      %v3522 = vcombine.low %v3498, %v3514
      %v3523 = vcombine.high %v3498, %v3514
      %v3524 = vcombine.low %v3505, %v3521
      %v3525 = vcombine.high %v3505, %v3521
      %v3526 = vcombine.low %v3522, %v3524
      %v3527 = vcombine.high %v3522, %v3524
      %v3529 = vunpack.c.l.s4 1983009808
      %v3530 = vunpack.c.0.s8 %v3529
      %v3531 = vlaneseq
      %v3532 = vshrl.u32 %v3531, 7
      %v3533 = vsub.s32 %v3530, %v3532
      %v3534 = vrot.slane %v3526, %v3533
      %v3536 = vunpack.c.l.s4 1983009808
      %v3537 = vunpack.c.0.s8 %v3536
      %v3538 = vlaneseq
      %v3539 = vshrl.u32 %v3538, 7
      %v3540 = vsub.s32 %v3537, %v3539
      %v3541 = vrot.slane %v3527, %v3540
      %v3542 = vcombine.low %v3523, %v3525
      %v3543 = vcombine.high %v3523, %v3525
      %v3545 = vunpack.c.l.s4 1983009808
      %v3546 = vunpack.c.0.s8 %v3545
      %v3547 = vlaneseq
      %v3548 = vshrl.u32 %v3547, 7
      %v3549 = vsub.s32 %v3546, %v3548
      %v3550 = vrot.slane %v3542, %v3549
      %v3552 = vunpack.c.l.s4 1983009808
      %v3553 = vunpack.c.0.s8 %v3552
      %v3554 = vlaneseq
      %v3555 = vshrl.u32 %v3554, 7
      %v3556 = vsub.s32 %v3553, %v3555
      %v3557 = vrot.slane %v3543, %v3556
      %v3558 = vcombine.low %v3534, %v3550
      %v3559 = vcombine.high %v3534, %v3550
      %v3561 = vunpack.c.l.s4 1934713408
      %v3562 = vunpack.c.0.s8 %v3561
      %v3563 = vlaneseq
      %v3564 = vshrl.u32 %v3563, 7
      %v3565 = vsub.s32 %v3562, %v3564
      %v3566 = vrot.slane %v3558, %v3565
      %v3568 = vunpack.c.l.s4 1934713408
      %v3569 = vunpack.c.0.s8 %v3568
      %v3570 = vlaneseq
      %v3571 = vshrl.u32 %v3570, 7
      %v3572 = vsub.s32 %v3569, %v3571
      %v3573 = vrot.slane %v3559, %v3572
      %v3574 = vcombine.low %v3541, %v3557
      %v3575 = vcombine.high %v3541, %v3557
      %v3577 = vunpack.c.l.s4 1934713408
      %v3578 = vunpack.c.0.s8 %v3577
      %v3579 = vlaneseq
      %v3580 = vshrl.u32 %v3579, 7
      %v3581 = vsub.s32 %v3578, %v3580
      %v3582 = vrot.slane %v3574, %v3581
      %v3584 = vunpack.c.l.s4 1934713408
      %v3585 = vunpack.c.0.s8 %v3584
      %v3586 = vlaneseq
      %v3587 = vshrl.u32 %v3586, 7
      %v3588 = vsub.s32 %v3585, %v3587
      %v3589 = vrot.slane %v3575, %v3588
      %v3590 = vcombine.high %v3566, 0.0
      %v3591 = vcombine.high %v3573, 0.0
      %v3592 = vcombine.high %v3582, 0.0
      %v3593 = vcombine.high %v3589, 0.0
      %v3594 = vld [vmem:[%s12] sm:$0x1]
      %3596 = vrot.lane.b32.xlu0 %v3594, 112
      %v3597 = vpop.permute.xlu0 %3596
      %3599 = vrot.lane.b32.xlu0 %v3594, 96
      %v3600 = vpop.permute.xlu0 %3599
      %3602 = vrot.lane.b32.xlu0 %v3594, 80
      %v3603 = vpop.permute.xlu0 %3602
      %v3605 = vpack.c.bf16 %v3594, %v3594
      %v3606 = vpack.c.bf16 %v3597, %v3597
      %v3607 = vpack.c.bf16 %v3600, %v3600
      %v3608 = vpack.c.bf16 %v3603, %v3603
      %v3609 = vpack.c.bf16 %v3566, %v3566
      %v3610 = vpack.c.bf16 %v3590, %v3590
      %v3611 = vpack.c.bf16 %v3573, %v3573
      %v3612 = vpack.c.bf16 %v3591, %v3591
      %v3614 = vsel %vm1397, %v3605, 0
      %v3617 = vsel %vm1397, %v3609, 0
      %3619 = vmatprep.subr.bf16.mxu0 0
      %3620 = vmatpush1.bf16.xpose.msra.mxu0 0
      %3621 = vmatprep.subr.bf16.mxu0 0
      %3622 = vmatpush1.bf16.xpose.msra.mxu0 0
      %3623 = vmatprep.subr.bf16.mxu0 0
      %3624 = vmatpush1.bf16.xpose.msra.mxu0 0
      %3625 = vmatprep.subr.bf16.mxu0 0
      %3626 = vmatpush1.bf16.xpose.msra.mxu0 0
      %3627 = vmatprep.subr.bf16.mxu0 0
      %3628 = vmatpush1.bf16.xpose.msra.mxu0 0
      %3629 = vmatprep.subr.bf16.mxu0 0
      %3630 = vmatpush1.bf16.xpose.msra.mxu0 0
      %3631 = vmatprep.subr.bf16.mxu0 0
      %3632 = vmatpush1.bf16.xpose.msra.mxu0 0
      %3633 = vmatprep.subr.bf16.mxu0 0
      %3634 = vmatpush1.bf16.xpose.msra.mxu0 %v3617
      %3635 = vmatprep.subr.bf16.mxu0 0
      %3636 = vmatpush2.bf16.xpose.msra.mxu0 0
      %3637 = vmatprep.subr.bf16.mxu0 0
      %3638 = vmatpush2.bf16.xpose.msra.mxu0 0
      %3639 = vmatprep.subr.bf16.mxu0 0
      %3640 = vmatpush2.bf16.xpose.msra.mxu0 0
      %3641 = vmatprep.subr.bf16.mxu0 0
      %3642 = vmatpush2.bf16.xpose.msra.mxu0 0
      %3643 = vmatprep.subr.bf16.mxu0 0
      %3644 = vmatpush2.bf16.xpose.msra.mxu0 0
      %3645 = vmatprep.subr.bf16.mxu0 0
      %3646 = vmatpush2.bf16.xpose.msra.mxu0 0
      %3647 = vmatprep.subr.bf16.mxu0 0
      %3648 = vmatpush2.bf16.xpose.msra.mxu0 0
      %3649 = vmatprep.subr.bf16.mxu0 0
      %3650 = vmatpush2.bf16.xpose.msra.mxu0 0
      %3651 = vmatprep.mubr.bf16.mxu0 0
      %3652 = vmatmul.mubr.bf16.gmra.mxu0 %v3614
      %v3653 = vpop.f32.mrf.mxu0
      %v3654 = vadd.f32 0.0, %v3653
      %v3655 = vpop.f32.mrf.mxu0
      %v3656 = vpop.f32.mrf.mxu0
      %v3657 = vpop.f32.mrf.mxu0
      %3658 = vdwg.mxu0
      %v3660 = vsel %vm1397, %v3606, 0
      %v3663 = vsel %vm1397, %v3610, 0
      %3665 = vmatprep.subr.bf16.mxu0 0
      %3666 = vmatpush1.bf16.xpose.msra.mxu0 0
      %3667 = vmatprep.subr.bf16.mxu0 0
      %3668 = vmatpush1.bf16.xpose.msra.mxu0 0
      %3669 = vmatprep.subr.bf16.mxu0 0
      %3670 = vmatpush1.bf16.xpose.msra.mxu0 0
      %3671 = vmatprep.subr.bf16.mxu0 0
      %3672 = vmatpush1.bf16.xpose.msra.mxu0 0
      %3673 = vmatprep.subr.bf16.mxu0 0
      %3674 = vmatpush1.bf16.xpose.msra.mxu0 0
      %3675 = vmatprep.subr.bf16.mxu0 0
      %3676 = vmatpush1.bf16.xpose.msra.mxu0 0
      %3677 = vmatprep.subr.bf16.mxu0 0
      %3678 = vmatpush1.bf16.xpose.msra.mxu0 0
      %3679 = vmatprep.subr.bf16.mxu0 0
      %3680 = vmatpush1.bf16.xpose.msra.mxu0 %v3663
      %3681 = vmatprep.subr.bf16.mxu0 0
      %3682 = vmatpush2.bf16.xpose.msra.mxu0 0
      %3683 = vmatprep.subr.bf16.mxu0 0
      %3684 = vmatpush2.bf16.xpose.msra.mxu0 0
      %3685 = vmatprep.subr.bf16.mxu0 0
      %3686 = vmatpush2.bf16.xpose.msra.mxu0 0
      %3687 = vmatprep.subr.bf16.mxu0 0
      %3688 = vmatpush2.bf16.xpose.msra.mxu0 0
      %3689 = vmatprep.subr.bf16.mxu0 0
      %3690 = vmatpush2.bf16.xpose.msra.mxu0 0
      %3691 = vmatprep.subr.bf16.mxu0 0
      %3692 = vmatpush2.bf16.xpose.msra.mxu0 0
      %3693 = vmatprep.subr.bf16.mxu0 0
      %3694 = vmatpush2.bf16.xpose.msra.mxu0 0
      %3695 = vmatprep.subr.bf16.mxu0 0
      %3696 = vmatpush2.bf16.xpose.msra.mxu0 0
      %3697 = vmatprep.mubr.bf16.mxu0 0
      %3698 = vmatmul.mubr.bf16.gmra.mxu0 %v3660
      %v3699 = vpop.f32.mrf.mxu0
      %v3700 = vadd.f32 0.0, %v3699
      %v3701 = vpop.f32.mrf.mxu0
      %v3702 = vpop.f32.mrf.mxu0
      %v3703 = vpop.f32.mrf.mxu0
      %3704 = vdwg.mxu0
      %v3706 = vsel %vm1397, %v3607, 0
      %v3709 = vsel %vm1397, %v3611, 0
      %3711 = vmatprep.subr.bf16.mxu0 0
      %3712 = vmatpush1.bf16.xpose.msra.mxu0 0
      %3713 = vmatprep.subr.bf16.mxu0 0
      %3714 = vmatpush1.bf16.xpose.msra.mxu0 0
      %3715 = vmatprep.subr.bf16.mxu0 0
      %3716 = vmatpush1.bf16.xpose.msra.mxu0 0
      %3717 = vmatprep.subr.bf16.mxu0 0
      %3718 = vmatpush1.bf16.xpose.msra.mxu0 0
      %3719 = vmatprep.subr.bf16.mxu0 0
      %3720 = vmatpush1.bf16.xpose.msra.mxu0 0
      %3721 = vmatprep.subr.bf16.mxu0 0
      %3722 = vmatpush1.bf16.xpose.msra.mxu0 0
      %3723 = vmatprep.subr.bf16.mxu0 0
      %3724 = vmatpush1.bf16.xpose.msra.mxu0 0
      %3725 = vmatprep.subr.bf16.mxu0 0
      %3726 = vmatpush1.bf16.xpose.msra.mxu0 %v3709
      %3727 = vmatprep.subr.bf16.mxu0 0
      %3728 = vmatpush2.bf16.xpose.msra.mxu0 0
      %3729 = vmatprep.subr.bf16.mxu0 0
      %3730 = vmatpush2.bf16.xpose.msra.mxu0 0
      %3731 = vmatprep.subr.bf16.mxu0 0
      %3732 = vmatpush2.bf16.xpose.msra.mxu0 0
      %3733 = vmatprep.subr.bf16.mxu0 0
      %3734 = vmatpush2.bf16.xpose.msra.mxu0 0
      %3735 = vmatprep.subr.bf16.mxu0 0
      %3736 = vmatpush2.bf16.xpose.msra.mxu0 0
      %3737 = vmatprep.subr.bf16.mxu0 0
      %3738 = vmatpush2.bf16.xpose.msra.mxu0 0
      %3739 = vmatprep.subr.bf16.mxu0 0
      %3740 = vmatpush2.bf16.xpose.msra.mxu0 0
      %3741 = vmatprep.subr.bf16.mxu0 0
      %3742 = vmatpush2.bf16.xpose.msra.mxu0 0
      %3743 = vmatprep.mubr.bf16.mxu0 0
      %3744 = vmatmul.mubr.bf16.gmra.mxu0 %v3706
      %v3745 = vpop.f32.mrf.mxu0
      %v3746 = vadd.f32 0.0, %v3745
      %v3747 = vpop.f32.mrf.mxu0
      %v3748 = vpop.f32.mrf.mxu0
      %v3749 = vpop.f32.mrf.mxu0
      %3750 = vdwg.mxu0
      %v3752 = vsel %vm1397, %v3608, 0
      %v3755 = vsel %vm1397, %v3612, 0
      %3757 = vmatprep.subr.bf16.mxu0 0
      %3758 = vmatpush1.bf16.xpose.msra.mxu0 0
      %3759 = vmatprep.subr.bf16.mxu0 0
      %3760 = vmatpush1.bf16.xpose.msra.mxu0 0
      %3761 = vmatprep.subr.bf16.mxu0 0
      %3762 = vmatpush1.bf16.xpose.msra.mxu0 0
      %3763 = vmatprep.subr.bf16.mxu0 0
      %3764 = vmatpush1.bf16.xpose.msra.mxu0 0
      %3765 = vmatprep.subr.bf16.mxu0 0
      %3766 = vmatpush1.bf16.xpose.msra.mxu0 0
      %3767 = vmatprep.subr.bf16.mxu0 0
      %3768 = vmatpush1.bf16.xpose.msra.mxu0 0
      %3769 = vmatprep.subr.bf16.mxu0 0
      %3770 = vmatpush1.bf16.xpose.msra.mxu0 0
      %3771 = vmatprep.subr.bf16.mxu0 0
      %3772 = vmatpush1.bf16.xpose.msra.mxu0 %v3755
      %3773 = vmatprep.subr.bf16.mxu0 0
      %3774 = vmatpush2.bf16.xpose.msra.mxu0 0
      %3775 = vmatprep.subr.bf16.mxu0 0
      %3776 = vmatpush2.bf16.xpose.msra.mxu0 0
      %3777 = vmatprep.subr.bf16.mxu0 0
      %3778 = vmatpush2.bf16.xpose.msra.mxu0 0
      %3779 = vmatprep.subr.bf16.mxu0 0
      %3780 = vmatpush2.bf16.xpose.msra.mxu0 0
      %3781 = vmatprep.subr.bf16.mxu0 0
      %3782 = vmatpush2.bf16.xpose.msra.mxu0 0
      %3783 = vmatprep.subr.bf16.mxu0 0
      %3784 = vmatpush2.bf16.xpose.msra.mxu0 0
      %3785 = vmatprep.subr.bf16.mxu0 0
      %3786 = vmatpush2.bf16.xpose.msra.mxu0 0
      %3787 = vmatprep.subr.bf16.mxu0 0
      %3788 = vmatpush2.bf16.xpose.msra.mxu0 0
      %3789 = vmatprep.mubr.bf16.mxu0 0
      %3790 = vmatmul.mubr.bf16.gmra.mxu0 %v3752
      %v3791 = vpop.f32.mrf.mxu0
      %v3792 = vadd.f32 0.0, %v3791
      %v3793 = vpop.f32.mrf.mxu0
      %v3794 = vpop.f32.mrf.mxu0
      %v3795 = vpop.f32.mrf.mxu0
      %3796 = vdwg.mxu0
      %v3797 = vmul.f32 %v3654, 0.25
      %v3798 = vmul.f32 %v3700, 0.25
      %v3799 = vmul.f32 %v3746, 0.25
      %v3800 = vmul.f32 %v3792, 0.25
      %vm3801 = vcmask 24576
      %v3802 = vsel %vm3801, %v3797, -inf
      %3803 = vmax.xlane.f32.xlu0 %v3802
      %v3804 = vpop.xlane.xlu0 %3803
      %v3805 = vsel %vm3801, %v3798, -inf
      %3806 = vmax.xlane.f32.xlu0 %v3805
      %v3807 = vpop.xlane.xlu0 %3806
      %v3808 = vsel %vm3801, %v3799, -inf
      %3809 = vmax.xlane.f32.xlu0 %v3808
      %v3810 = vpop.xlane.xlu0 %3809
      %v3811 = vsel %vm3801, %v3800, -inf
      %3812 = vmax.xlane.f32.xlu0 %v3811
      %v3813 = vpop.xlane.xlu0 %3812
      %v3814 = vsub.f32 %v3797, %v3804
      %v3815 = vsub.f32 %v3798, %v3807
      %v3816 = vsub.f32 %v3799, %v3810
      %v3817 = vsub.f32 %v3800, %v3813
      %v3818 = vmul.f32 %v3814, 1.442695
      %v3819 = vpow.pop %v3818
      %v3820 = vmul.f32 %v3815, 1.442695
      %v3821 = vpow.pop %v3820
      %v3822 = vmul.f32 %v3816, 1.442695
      %v3823 = vpow.pop %v3822
      %v3824 = vmul.f32 %v3817, 1.442695
      %v3825 = vpow.pop %v3824
      %v3826 = vsel %vm3801, %v3819, 0.0
      %3827 = vadd.xlane.f32.xlu0 %v3826
      %v3828 = vpop.xlane.xlu0 %3827
      %v3829 = vsel %vm3801, %v3821, 0.0
      %3830 = vadd.xlane.f32.xlu0 %v3829
      %v3831 = vpop.xlane.xlu0 %3830
      %v3832 = vsel %vm3801, %v3823, 0.0
      %3833 = vadd.xlane.f32.xlu0 %v3832
      %v3834 = vpop.xlane.xlu0 %3833
      %v3835 = vsel %vm3801, %v3825, 0.0
      %3836 = vadd.xlane.f32.xlu0 %v3835
      %v3837 = vpop.xlane.xlu0 %3836
      %v3838 = vrcp.pop %v3828
      %v3839 = vrcp.pop %v3831
      %v3840 = vrcp.pop %v3834
      %v3841 = vrcp.pop %v3837
      %v3842 = vmul.f32 %v3819, %v3838
      %v3843 = vmul.f32 %v3821, %v3839
      %v3844 = vmul.f32 %v3823, %v3840
      %v3845 = vmul.f32 %v3825, %v3841
      %v3846 = vpack.c.bf16 %v3842, %v3842
      %v3847 = vpack.c.bf16 %v3843, %v3843
      %v3848 = vpack.c.bf16 %v3844, %v3844
      %v3849 = vpack.c.bf16 %v3845, %v3845
      %v3850 = vpack.c.bf16 %v3582, %v3582
      %v3851 = vpack.c.bf16 %v3592, %v3592
      %v3852 = vpack.c.bf16 %v3589, %v3589
      %v3853 = vpack.c.bf16 %v3593, %v3593
      %v3855 = vsel %vm1639, %v3846, 0
      %v3858 = vsel %vm1643, %v3850, 0
      %3860 = vmatprep.subr.bf16.mxu0 0
      %3861 = vmatpush1.bf16.msra.mxu0 0
      %3862 = vmatprep.subr.bf16.mxu0 0
      %3863 = vmatpush1.bf16.msra.mxu0 0
      %3864 = vmatprep.subr.bf16.mxu0 0
      %3865 = vmatpush1.bf16.msra.mxu0 0
      %3866 = vmatprep.subr.bf16.mxu0 0
      %3867 = vmatpush1.bf16.msra.mxu0 0
      %3868 = vmatprep.subr.bf16.mxu0 0
      %3869 = vmatpush1.bf16.msra.mxu0 0
      %3870 = vmatprep.subr.bf16.mxu0 0
      %3871 = vmatpush1.bf16.msra.mxu0 0
      %3872 = vmatprep.subr.bf16.mxu0 0
      %3873 = vmatpush1.bf16.msra.mxu0 0
      %3874 = vmatprep.subr.bf16.mxu0 0
      %3875 = vmatpush1.bf16.msra.mxu0 %v3858
      %3876 = vmatprep.subr.bf16.mxu0 0
      %3877 = vmatpush2.bf16.msra.mxu0 0
      %3878 = vmatprep.subr.bf16.mxu0 0
      %3879 = vmatpush2.bf16.msra.mxu0 0
      %3880 = vmatprep.subr.bf16.mxu0 0
      %3881 = vmatpush2.bf16.msra.mxu0 0
      %3882 = vmatprep.subr.bf16.mxu0 0
      %3883 = vmatpush2.bf16.msra.mxu0 0
      %3884 = vmatprep.subr.bf16.mxu0 0
      %3885 = vmatpush2.bf16.msra.mxu0 0
      %3886 = vmatprep.subr.bf16.mxu0 0
      %3887 = vmatpush2.bf16.msra.mxu0 0
      %3888 = vmatprep.subr.bf16.mxu0 0
      %3889 = vmatpush2.bf16.msra.mxu0 0
      %3890 = vmatprep.subr.bf16.mxu0 0
      %3891 = vmatpush2.bf16.msra.mxu0 0
      %3892 = vmatprep.mubr.bf16.mxu0 0
      %3893 = vmatmul.mubr.bf16.gmra.mxu0 %v3855
      %v3894 = vpop.f32.mrf.mxu0
      %v3895 = vadd.f32 0.0, %v3894
      %v3896 = vpop.f32.mrf.mxu0
      %v3897 = vpop.f32.mrf.mxu0
      %v3898 = vpop.f32.mrf.mxu0
      %3899 = vdwg.mxu0
      %v3901 = vsel %vm1639, %v3847, 0
      %v3904 = vsel %vm1643, %v3851, 0
      %3906 = vmatprep.subr.bf16.mxu0 0
      %3907 = vmatpush1.bf16.msra.mxu0 0
      %3908 = vmatprep.subr.bf16.mxu0 0
      %3909 = vmatpush1.bf16.msra.mxu0 0
      %3910 = vmatprep.subr.bf16.mxu0 0
      %3911 = vmatpush1.bf16.msra.mxu0 0
      %3912 = vmatprep.subr.bf16.mxu0 0
      %3913 = vmatpush1.bf16.msra.mxu0 0
      %3914 = vmatprep.subr.bf16.mxu0 0
      %3915 = vmatpush1.bf16.msra.mxu0 0
      %3916 = vmatprep.subr.bf16.mxu0 0
      %3917 = vmatpush1.bf16.msra.mxu0 0
      %3918 = vmatprep.subr.bf16.mxu0 0
      %3919 = vmatpush1.bf16.msra.mxu0 0
      %3920 = vmatprep.subr.bf16.mxu0 0
      %3921 = vmatpush1.bf16.msra.mxu0 %v3904
      %3922 = vmatprep.subr.bf16.mxu0 0
      %3923 = vmatpush2.bf16.msra.mxu0 0
      %3924 = vmatprep.subr.bf16.mxu0 0
      %3925 = vmatpush2.bf16.msra.mxu0 0
      %3926 = vmatprep.subr.bf16.mxu0 0
      %3927 = vmatpush2.bf16.msra.mxu0 0
      %3928 = vmatprep.subr.bf16.mxu0 0
      %3929 = vmatpush2.bf16.msra.mxu0 0
      %3930 = vmatprep.subr.bf16.mxu0 0
      %3931 = vmatpush2.bf16.msra.mxu0 0
      %3932 = vmatprep.subr.bf16.mxu0 0
      %3933 = vmatpush2.bf16.msra.mxu0 0
      %3934 = vmatprep.subr.bf16.mxu0 0
      %3935 = vmatpush2.bf16.msra.mxu0 0
      %3936 = vmatprep.subr.bf16.mxu0 0
      %3937 = vmatpush2.bf16.msra.mxu0 0
      %3938 = vmatprep.mubr.bf16.mxu0 0
      %3939 = vmatmul.mubr.bf16.gmra.mxu0 %v3901
      %v3940 = vpop.f32.mrf.mxu0
      %v3941 = vadd.f32 0.0, %v3940
      %v3942 = vpop.f32.mrf.mxu0
      %v3943 = vpop.f32.mrf.mxu0
      %v3944 = vpop.f32.mrf.mxu0
      %3945 = vdwg.mxu0
      %v3947 = vsel %vm1639, %v3848, 0
      %v3950 = vsel %vm1643, %v3852, 0
      %3952 = vmatprep.subr.bf16.mxu0 0
      %3953 = vmatpush1.bf16.msra.mxu0 0
      %3954 = vmatprep.subr.bf16.mxu0 0
      %3955 = vmatpush1.bf16.msra.mxu0 0
      %3956 = vmatprep.subr.bf16.mxu0 0
      %3957 = vmatpush1.bf16.msra.mxu0 0
      %3958 = vmatprep.subr.bf16.mxu0 0
      %3959 = vmatpush1.bf16.msra.mxu0 0
      %3960 = vmatprep.subr.bf16.mxu0 0
      %3961 = vmatpush1.bf16.msra.mxu0 0
      %3962 = vmatprep.subr.bf16.mxu0 0
      %3963 = vmatpush1.bf16.msra.mxu0 0
      %3964 = vmatprep.subr.bf16.mxu0 0
      %3965 = vmatpush1.bf16.msra.mxu0 0
      %3966 = vmatprep.subr.bf16.mxu0 0
      %3967 = vmatpush1.bf16.msra.mxu0 %v3950
      %3968 = vmatprep.subr.bf16.mxu0 0
      %3969 = vmatpush2.bf16.msra.mxu0 0
      %3970 = vmatprep.subr.bf16.mxu0 0
      %3971 = vmatpush2.bf16.msra.mxu0 0
      %3972 = vmatprep.subr.bf16.mxu0 0
      %3973 = vmatpush2.bf16.msra.mxu0 0
      %3974 = vmatprep.subr.bf16.mxu0 0
      %3975 = vmatpush2.bf16.msra.mxu0 0
      %3976 = vmatprep.subr.bf16.mxu0 0
      %3977 = vmatpush2.bf16.msra.mxu0 0
      %3978 = vmatprep.subr.bf16.mxu0 0
      %3979 = vmatpush2.bf16.msra.mxu0 0
      %3980 = vmatprep.subr.bf16.mxu0 0
      %3981 = vmatpush2.bf16.msra.mxu0 0
      %3982 = vmatprep.subr.bf16.mxu0 0
      %3983 = vmatpush2.bf16.msra.mxu0 0
      %3984 = vmatprep.mubr.bf16.mxu0 0
      %3985 = vmatmul.mubr.bf16.gmra.mxu0 %v3947
      %v3986 = vpop.f32.mrf.mxu0
      %v3987 = vadd.f32 0.0, %v3986
      %v3988 = vpop.f32.mrf.mxu0
      %v3989 = vpop.f32.mrf.mxu0
      %v3990 = vpop.f32.mrf.mxu0
      %3991 = vdwg.mxu0
      %v3993 = vsel %vm1639, %v3849, 0
      %v3996 = vsel %vm1643, %v3853, 0
      %3998 = vmatprep.subr.bf16.mxu0 0
      %3999 = vmatpush1.bf16.msra.mxu0 0
      %4000 = vmatprep.subr.bf16.mxu0 0
      %4001 = vmatpush1.bf16.msra.mxu0 0
      %4002 = vmatprep.subr.bf16.mxu0 0
      %4003 = vmatpush1.bf16.msra.mxu0 0
      %4004 = vmatprep.subr.bf16.mxu0 0
      %4005 = vmatpush1.bf16.msra.mxu0 0
      %4006 = vmatprep.subr.bf16.mxu0 0
      %4007 = vmatpush1.bf16.msra.mxu0 0
      %4008 = vmatprep.subr.bf16.mxu0 0
      %4009 = vmatpush1.bf16.msra.mxu0 0
      %4010 = vmatprep.subr.bf16.mxu0 0
      %4011 = vmatpush1.bf16.msra.mxu0 0
      %4012 = vmatprep.subr.bf16.mxu0 0
      %4013 = vmatpush1.bf16.msra.mxu0 %v3996
      %4014 = vmatprep.subr.bf16.mxu0 0
      %4015 = vmatpush2.bf16.msra.mxu0 0
      %4016 = vmatprep.subr.bf16.mxu0 0
      %4017 = vmatpush2.bf16.msra.mxu0 0
      %4018 = vmatprep.subr.bf16.mxu0 0
      %4019 = vmatpush2.bf16.msra.mxu0 0
      %4020 = vmatprep.subr.bf16.mxu0 0
      %4021 = vmatpush2.bf16.msra.mxu0 0
      %4022 = vmatprep.subr.bf16.mxu0 0
      %4023 = vmatpush2.bf16.msra.mxu0 0
      %4024 = vmatprep.subr.bf16.mxu0 0
      %4025 = vmatpush2.bf16.msra.mxu0 0
      %4026 = vmatprep.subr.bf16.mxu0 0
      %4027 = vmatpush2.bf16.msra.mxu0 0
      %4028 = vmatprep.subr.bf16.mxu0 0
      %4029 = vmatpush2.bf16.msra.mxu0 0
      %4030 = vmatprep.mubr.bf16.mxu0 0
      %4031 = vmatmul.mubr.bf16.gmra.mxu0 %v3993
      %v4032 = vpop.f32.mrf.mxu0
      %v4033 = vadd.f32 0.0, %v4032
      %v4034 = vpop.f32.mrf.mxu0
      %v4035 = vpop.f32.mrf.mxu0
      %v4036 = vpop.f32.mrf.mxu0
      %4037 = vdwg.mxu0
      %v4038 = vcombine.low %v3895, %v3987
      %v4040 = vunpack.c.l.s4 1983009808
      %v4041 = vunpack.c.0.s8 %v4040
      %v4042 = vlaneseq
      %v4043 = vshrl.u32 %v4042, 7
      %v4044 = vsub.s32 %v4041, %v4043
      %v4045 = vrot.slane %v4038, %v4044
      %v4046 = vcombine.low %v3941, %v4033
      %v4048 = vunpack.c.l.s4 1983009808
      %v4049 = vunpack.c.0.s8 %v4048
      %v4050 = vlaneseq
      %v4051 = vshrl.u32 %v4050, 7
      %v4052 = vsub.s32 %v4049, %v4051
      %v4053 = vrot.slane %v4046, %v4052
      %v4054 = vcombine.low %v4045, %v4053
      %v4056 = vunpack.c.l.s4 1934713408
      %v4057 = vunpack.c.0.s8 %v4056
      %v4058 = vlaneseq
      %v4059 = vshrl.u32 %v4058, 7
      %v4060 = vsub.s32 %v4057, %v4059
      %v4061 = vrot.slane %v4054, %v4060
      %v4063 = vunpack.c.l.s4 1983009808
      %v4064 = vunpack.c.0.s8 %v4063
      %v4065 = vlaneseq
      %v4066 = vshrl.u32 %v4065, 7
      %v4067 = vsub.s32 %v4064, %v4066
      %v4068 = vrot.slane %v4061, %v4067
      %v4069 = vcombine.high %v4068, 0.0
      %v4071 = vunpack.c.l.s4 1934713408
      %v4072 = vunpack.c.0.s8 %v4071
      %v4073 = vlaneseq
      %v4074 = vshrl.u32 %v4073, 7
      %v4075 = vsub.s32 %v4072, %v4074
      %v4076 = vrot.slane %v4068, %v4075
      %v4078 = vunpack.c.l.s4 1934713408
      %v4079 = vunpack.c.0.s8 %v4078
      %v4080 = vlaneseq
      %v4081 = vshrl.u32 %v4080, 7
      %v4082 = vsub.s32 %v4079, %v4081
      %v4083 = vrot.slane %v4069, %v4082
      %v4084 = vcombine.high %v4076, 0.0
      %v4085 = vcombine.high %v4083, 0.0
      %4087 = vrot.lane.b32.xlu0 %v4084, 16
      %v4088 = vpop.permute.xlu0 %4087
      %4091 = vrot.lane.b32.xlu0 %v4083, 32
      %v4092 = vpop.permute.xlu0 %4091
      %4095 = vrot.lane.b32.xlu0 %v4085, 48
      %v4096 = vpop.permute.xlu0 %4095
      %v4098 = vsel %vm1397, %v4076, %v4088
      %v4099 = vsel %vm1906, %v4098, %v4092
      %v4100 = vsel %vm1908, %v4099, %v4096
      %v4101 = vpack.c.bf16 %v4100, %v4100
      %v4102 = vld [vmem:[%s14] sm:$0xf]
      %v4103 = vld [vmem:[%s14 + $0x4] sm:$0xf]
      %v4104 = vld [vmem:[%s14 + $0x8] sm:$0xf]
      %v4105 = vld [vmem:[%s14 + $0xc] sm:$0xf]
      %v4106 = vld [vmem:[%s14 + $0x10] sm:$0xf]
      %v4107 = vld [vmem:[%s14 + $0x14] sm:$0xf]
      %v4108 = vld [vmem:[%s14 + $0x18] sm:$0xf]
      %v4109 = vld [vmem:[%s14 + $0x1c] sm:$0xf]
      %v4110 = vld [vmem:[%s15] sm:$0x1]
      %v4119 = vunpack.c.l.b16 %v4102
      %v4120 = vunpack.c.l.b16 %v4103
      %v4121 = vunpack.c.l.b16 %v4104
      %v4122 = vunpack.c.l.b16 %v4105
      %v4123 = vunpack.c.l.b16 %v4106
      %v4124 = vunpack.c.l.b16 %v4107
      %v4125 = vunpack.c.l.b16 %v4108
      %v4126 = vunpack.c.l.b16 %v4109
      %v4127 = vpack.c.b16 %v4120, %v4119
      %v4128 = vpack.c.b16 %v4122, %v4121
      %v4129 = vpack.c.b16 %v4124, %v4123
      %v4130 = vpack.c.b16 %v4126, %v4125
      %v4136 = vsel %vm1108, %v4101, 0
      %4138 = vmatprep.subr.bf16.mxu0 0
      %4139 = vmatpush1.bf16.msra.mxu0 0
      %4140 = vmatprep.subr.bf16.mxu0 0
      %4141 = vmatpush1.bf16.msra.mxu0 0
      %4142 = vmatprep.subr.bf16.mxu0 0
      %4143 = vmatpush1.bf16.msra.mxu0 0
      %4144 = vmatprep.subr.bf16.mxu0 0
      %4145 = vmatpush1.bf16.msra.mxu0 0
      %4146 = vmatprep.subr.bf16.mxu0 0
      %4147 = vmatpush1.bf16.msra.mxu0 %v4130
      %4148 = vmatprep.subr.bf16.mxu0 0
      %4149 = vmatpush1.bf16.msra.mxu0 %v4129
      %4150 = vmatprep.subr.bf16.mxu0 0
      %4151 = vmatpush1.bf16.msra.mxu0 %v4128
      %4152 = vmatprep.subr.bf16.mxu0 0
      %4153 = vmatpush1.bf16.msra.mxu0 %v4127
      %4154 = vmatprep.subr.bf16.mxu0 0
      %4155 = vmatpush2.bf16.msra.mxu0 0
      %4156 = vmatprep.subr.bf16.mxu0 0
      %4157 = vmatpush2.bf16.msra.mxu0 0
      %4158 = vmatprep.subr.bf16.mxu0 0
      %4159 = vmatpush2.bf16.msra.mxu0 0
      %4160 = vmatprep.subr.bf16.mxu0 0
      %4161 = vmatpush2.bf16.msra.mxu0 0
      %4162 = vmatprep.subr.bf16.mxu0 0
      %4163 = vmatpush2.bf16.msra.mxu0 0
      %4164 = vmatprep.subr.bf16.mxu0 0
      %4165 = vmatpush2.bf16.msra.mxu0 0
      %4166 = vmatprep.subr.bf16.mxu0 0
      %4167 = vmatpush2.bf16.msra.mxu0 0
      %4168 = vmatprep.subr.bf16.mxu0 0
      %4169 = vmatpush2.bf16.msra.mxu0 0
      %4170 = vmatprep.mubr.bf16.mxu0 0
      %4171 = vmatmul.mubr.bf16.gmra.mxu0 %v4136
      %v4172 = vpop.f32.mrf.mxu0
      %v4173 = vadd.f32 %v4110, %v4172
      %v4174 = vpop.f32.mrf.mxu0
      %v4175 = vpop.f32.mrf.mxu0
      %v4176 = vpop.f32.mrf.mxu0
      %4177 = vdwg.mxu0
      %v4178 = vpack.c.bf16 %v4173, %v4173
      %v4179 = vld [vmem:[%s16] sm:$0xf]
      %v4180 = vld [vmem:[%s16 + $0x4] sm:$0xf]
      %v4181 = vld [vmem:[%s16 + $0x8] sm:$0xf]
      %v4182 = vld [vmem:[%s16 + $0xc] sm:$0xf]
      %v4183 = vld [vmem:[%s16 + $0x10] sm:$0xf]
      %v4184 = vld [vmem:[%s16 + $0x14] sm:$0xf]
      %v4185 = vld [vmem:[%s16 + $0x18] sm:$0xf]
      %v4186 = vld [vmem:[%s16 + $0x1c] sm:$0xf]
      %v4195 = vunpack.c.l.b16 %v4179
      %v4196 = vunpack.c.l.b16 %v4180
      %v4197 = vunpack.c.l.b16 %v4181
      %v4198 = vunpack.c.l.b16 %v4182
      %v4199 = vunpack.c.l.b16 %v4183
      %v4200 = vunpack.c.l.b16 %v4184
      %v4201 = vunpack.c.l.b16 %v4185
      %v4202 = vunpack.c.l.b16 %v4186
      %v4203 = vpack.c.b16 %v4196, %v4195
      %v4204 = vpack.c.b16 %v4198, %v4197
      %v4205 = vpack.c.b16 %v4200, %v4199
      %v4206 = vpack.c.b16 %v4202, %v4201
      %v4212 = vsel %vm1108, %v4178, 0
      %4214 = vmatprep.subr.bf16.mxu0 0
      %4215 = vmatpush1.bf16.msra.mxu0 0
      %4216 = vmatprep.subr.bf16.mxu0 0
      %4217 = vmatpush1.bf16.msra.mxu0 0
      %4218 = vmatprep.subr.bf16.mxu0 0
      %4219 = vmatpush1.bf16.msra.mxu0 0
      %4220 = vmatprep.subr.bf16.mxu0 0
      %4221 = vmatpush1.bf16.msra.mxu0 0
      %4222 = vmatprep.subr.bf16.mxu0 0
      %4223 = vmatpush1.bf16.msra.mxu0 %v4206
      %4224 = vmatprep.subr.bf16.mxu0 0
      %4225 = vmatpush1.bf16.msra.mxu0 %v4205
      %4226 = vmatprep.subr.bf16.mxu0 0
      %4227 = vmatpush1.bf16.msra.mxu0 %v4204
      %4228 = vmatprep.subr.bf16.mxu0 0
      %4229 = vmatpush1.bf16.msra.mxu0 %v4203
      %4230 = vmatprep.subr.bf16.mxu0 0
      %4231 = vmatpush2.bf16.msra.mxu0 0
      %4232 = vmatprep.subr.bf16.mxu0 0
      %4233 = vmatpush2.bf16.msra.mxu0 0
      %4234 = vmatprep.subr.bf16.mxu0 0
      %4235 = vmatpush2.bf16.msra.mxu0 0
      %4236 = vmatprep.subr.bf16.mxu0 0
      %4237 = vmatpush2.bf16.msra.mxu0 0
      %4238 = vmatprep.subr.bf16.mxu0 0
      %4239 = vmatpush2.bf16.msra.mxu0 0
      %4240 = vmatprep.subr.bf16.mxu0 0
      %4241 = vmatpush2.bf16.msra.mxu0 0
      %4242 = vmatprep.subr.bf16.mxu0 0
      %4243 = vmatpush2.bf16.msra.mxu0 0
      %4244 = vmatprep.subr.bf16.mxu0 0
      %4245 = vmatpush2.bf16.msra.mxu0 0
      %4246 = vmatprep.mubr.bf16.mxu0 0
      %4247 = vmatmul.mubr.bf16.gmra.mxu0 %v4212
      %v4248 = vpop.f32.mrf.mxu0
      %v4249 = vadd.f32 0.0, %v4248
      %v4250 = vpop.f32.mrf.mxu0
      %v4251 = vpop.f32.mrf.mxu0
      %v4252 = vpop.f32.mrf.mxu0
      %4253 = vdwg.mxu0
      %v4254 = vmul.f32 %v4249, %v4249
      %vm4255 = vcmask 253952
      %v4256 = vsel %vm4255, %v4254, 0.0
      %4257 = vadd.xlane.f32.xlu0 %v4256
      %v4258 = vpop.xlane.xlu0 %4257
      %v4259 = vmax.f32 %v4258, 1e-24
      %v4260 = vrsqrt.pop %v4259
      %v4261 = vmul.f32 %v4249, %v4260
      %4262 = vst.msk [vmem:[%s544] sm:$0x1] %vm4255, %v4261
      %p4263 = scmp.lt.s32.totalorder %s28, 1
      %s4264 = scalar_select %p4263, %s28, 1
      %s4265 = scalar_lea.vmem %s17, %s4264
      // Predicated region
      $region89: #{aimv2_lit_forward.2} parent=87 // pred_check
        %p4266 = pneg %p408
      $region90: #{aimv2_lit_forward.2} parent=87 // pred_check_branch
        %4268 = sbr.rel (%p4266) target = $region92
      $region91: #{aimv2_lit_forward.2} parent=87 // pred_region
        _
      $region92: #{aimv2_lit_forward.2} parent=87 // pred_fallthru
        _
    $region88: #{aimv2_lit_forward.2} parent=5 // pred_fallthru
      _
    %p4269 = scmp.le.s32.totalorder 2, %s23
    // Predicated region
    $region93: #{aimv2_lit_forward.2} parent=5 // pred_check
      %p4270 = pneg %p4269
    $region94: #{aimv2_lit_forward.2} parent=5 // pred_check_branch
      %4272 = sbr.rel (%p4270) target = $region96
    $region95: #{aimv2_lit_forward.2} parent=5 // pred_region
      %s4273 = ssub.s32 %s23, 2
      // Predicated region
      $region97: #{aimv2_lit_forward.2} parent=95 // pred_check
        %p4274 = pneg %p414
      $region98: #{aimv2_lit_forward.2} parent=95 // pred_check_branch
        %4276 = sbr.rel (%p4274) target = $region100
      $region99: #{aimv2_lit_forward.2} parent=95 // pred_region
        %p4277 = scmp.lt.s32.totalorder %s29, 1
        %s4278 = scalar_select %p4277, %s29, 1
        %s4279 = scalar_lea.vmem %s17, %s4278
      $region100: #{aimv2_lit_forward.2} parent=95 // pred_fallthru
        _
    $region96: #{aimv2_lit_forward.2} parent=5 // pred_fallthru
      _
  $region6: #{aimv2_lit_forward.2} parent=0 // loop_footer
    %s27 = sadd.s32 1, %s23
  $region7: #{aimv2_lit_forward.2} parent=0 // loop_footer_branch
    %22 = sbr.rel target = $region3
  $region8: #{aimv2_lit_forward.2} parent=0 // loop_exit
    _

</llo_original>
